<compile_context>
chip_gen: v7x
topology: tpu7x:2x2x1
jax: 0.10.0
libtpu: 0.0.40
codegen_flags: <defaults>
</compile_context>

<pallas_src>
import functools

import jax
import jax.numpy as jnp
from jax import lax
from jax.experimental import pallas as pl
from jax.experimental.pallas import tpu as pltpu

_MIB = 1024 * 1024


# ---------------------------------------------------------------------------
# Generation-aware knobs
# ---------------------------------------------------------------------------
def _tpu_settings():
    """Tiling / scoped-VMEM knobs per TPU generation (conservative default)."""
    kind = ""
    try:
        kind = (jax.devices()[0].device_kind or "").lower()
    except Exception:
        kind = ""
    if "v5" in kind:
        gen = "v5e"
    elif "v6" in kind:
        gen = "v6e"
    elif "7" in kind:
        gen = "v7x"
    else:
        gen = "unknown"
    if gen == "v5e":
        return dict(gen=gen, lane_align=128, vmem_limit=64 * _MIB)   # 128 MiB physical
    if gen == "v6e":
        return dict(gen=gen, lane_align=256, vmem_limit=64 * _MIB)   # 128 MiB physical
    # v7x has only 64 MiB VMEM per TensorCore; unknown -> stay conservative.
    return dict(gen=gen, lane_align=256, vmem_limit=48 * _MIB)


def _round_up(x, m):
    return ((x + m - 1) // m) * m


def _pick_col_tile(dp, gen):
    """Output/column tile for the covariance kernel; always divides dp."""
    if dp <= 512:
        return dp
    if gen == "v5e":                      # 4x128^2 MXU is natively 128-wide
        return 256 if dp % 256 == 0 else 128
    if gen == "v6e":                      # bigger tiles = less redundant B traffic
        return 512 if (dp % 512 == 0 and dp >= 1024) else 256
    return 256                            # v7x / unknown: keep VMEM small


def _pick_row_tile(n, dp):
    """Row tile shared by the K-axis of the cov kernel and the projection kernel.

    Chosen so a double-buffered (tn, dp) f32 projection block stays around <= 8 MiB.
    Returns (n_pad, tn); n_pad == n and tn == n when no tiling is needed.
    """
    cap = max(128, (8 * _MIB // (dp * 4)) // 128 * 128)
    tn = int(min(1024, cap))
    if n <= tn:
        return n, n
    n_pad = _round_up(n, tn)
    return n_pad, tn


# ---------------------------------------------------------------------------
# Kernel 1: covariance  cov = Xc^T @ Xc  with a contraction-axis accumulator
# ---------------------------------------------------------------------------
def _ata_kernel(a_ref, b_ref, o_ref, acc_ref):
    @pl.when(pl.program_id(2) == 0)
    def _():
        acc_ref[...] = jnp.zeros_like(acc_ref)

    # Contract over the row axis of both operands: A^T @ A (MXU takes the transpose).
    acc_ref[...] += lax.dot_general(
        a_ref[...], b_ref[...],
        dimension_numbers=(((0,), (0,)), ((), ())),
        preferred_element_type=jnp.float32)

    @pl.when(pl.program_id(2) == pl.num_programs(2) - 1)
    def _():
        o_ref[...] = acc_ref[...]


def pallas_ata(xc, tn, settings):
    """xc (n_pad, dp), dims already tile-aligned -> cov = xc^T @ xc (dp, dp) f32."""
    n_pad, dp = xc.shape
    td = _pick_col_tile(dp, settings["gen"])
    nk = n_pad // tn

    # bf16 MXU feed (f32 accumulation) only when the GEMM is actually compute-bound.
    macs = n_pad * dp * dp
    x_in = xc.astype(jnp.bfloat16) if macs >= (1 << 26) else xc.astype(jnp.float32)

    # NOTE: cov is symmetric; computing only upper-triangular tiles (PrefetchScalarGridSpec
    # driven (i,j) lists) would halve MXU work / B traffic — left as a follow-up.
    grid = (dp // td, dp // td, nk)
    return pl.pallas_call(
        _ata_kernel,
        out_shape=jax.ShapeDtypeStruct((dp, dp), jnp.float32),
        grid=grid,
        in_specs=[
            pl.BlockSpec((tn, td), lambda i, j, k: (k, i)),
            pl.BlockSpec((tn, td), lambda i, j, k: (k, j)),
        ],
        out_specs=pl.BlockSpec((td, td), lambda i, j, k: (i, j)),
        scratch_shapes=[pltpu.VMEM((td, td), jnp.float32)],
        compiler_params=pltpu.CompilerParams(
            dimension_semantics=("parallel", "parallel", "arbitrary"),
            vmem_limit_bytes=settings["vmem_limit"]),
    )(x_in, x_in)


# ---------------------------------------------------------------------------
# Kernel 2: tiled PCA projection, emitted transposed as a lane-dense (3, N) slab
# ---------------------------------------------------------------------------
def _project_kernel(v3t_ref, xc_ref, embt_ref):
    # (3, dp) @ (tn, dp)^T -> (3, tn): embedded block, already transposed.
    embt_ref[...] = lax.dot_general(
        v3t_ref[...], xc_ref[...],
        dimension_numbers=(((1,), (1,)), ((), ())),
        preferred_element_type=jnp.float32)


def pallas_project(xc, v3t, tn, settings):
    n_pad, dp = xc.shape
    grid = (n_pad // tn,)
    return pl.pallas_call(
        _project_kernel,
        out_shape=jax.ShapeDtypeStruct((3, n_pad), jnp.float32),
        grid=grid,
        in_specs=[
            pl.BlockSpec((3, dp), lambda i: (0, 0)),
            pl.BlockSpec((tn, dp), lambda i: (i, 0)),
        ],
        out_specs=pl.BlockSpec((3, tn), lambda i: (0, i)),
        compiler_params=pltpu.CompilerParams(
            dimension_semantics=("parallel",),
            vmem_limit_bytes=settings["vmem_limit"]),
    )(v3t.astype(jnp.float32), xc.astype(jnp.float32))


# ---------------------------------------------------------------------------
# Kernel 3: fused Lloyd k-means (K,N layout) + cluster->label + prediction
# ---------------------------------------------------------------------------
def _cluster_predict_kernel(embt_ref, yoh_ref, ypred_ref, *,
                            n_cluster, n_iter, n_valid):
    f32 = jnp.float32
    embt = embt_ref[...]                                   # (3, Np)  embedded points^T
    yoh = yoh_ref[...]                                     # (Np, n_class) one-hot labels
    k = n_cluster
    npad = embt.shape[1]

    valid = (lax.broadcasted_iota(jnp.int32, (1, npad), 1) < n_valid).astype(f32)
    ee = jnp.sum(embt * embt, axis=0, keepdims=True)       # (1, Np) ||e_i||^2
    row_iota = lax.broadcasted_iota(jnp.int32, (k, npad), 0)
    eye_k = (lax.broadcasted_iota(jnp.int32, (k, k), 0) ==
             lax.broadcasted_iota(jnp.int32, (k, k), 1)).astype(f32)

    # TODO(synk): MiniBatchKMeans' stochastic mini-batches / k-means++ init replaced by
    # deterministic full-batch Lloyd initialized from the first K embedded points.
    ct0 = embt[:, :k]                                      # (3, K)

    def assign(ct):
        # ||c_k||^2 as a (K,1) column without any lane<->sublane relayout.
        gram = lax.dot_general(ct, ct, dimension_numbers=(((0,), (0,)), ((), ())),
                               preferred_element_type=f32)           # (K, K)
        cc = jnp.sum(gram * eye_k, axis=1, keepdims=True)            # (K, 1)
        cd = lax.dot_general(ct, embt, dimension_numbers=(((0,), (0,)), ((), ())),
                             preferred_element_type=f32)             # (K, Np)
        d2 = ee - 2.0 * cd + cc                                      # (K, Np)
        mind = jnp.min(d2, axis=0, keepdims=True)                    # (1, Np)
        labels = jnp.min(jnp.where(d2 <= mind, row_iota, k),
                         axis=0, keepdims=True)                      # (1, Np)
        return (labels == row_iota).astype(f32) * valid              # (K, Np) one-hot

    def body(_, ct):
        onehot = assign(ct)                                          # (K, Np)
        sums = lax.dot_general(embt, onehot,
                               dimension_numbers=(((1,), (1,)), ((), ())),
                               preferred_element_type=f32)           # (3, K)
        counts = lax.dot_general(valid, onehot,
                                 dimension_numbers=(((1,), (1,)), ((), ())),
                                 preferred_element_type=f32)         # (1, K)
        # empty cluster -> keep previous centroid
        return jnp.where(counts > 0.0, sums / jnp.maximum(counts, 1.0), ct)

    ct = lax.fori_loop(0, n_iter, body, ct0)

    onehot = assign(ct)                                              # final assignment

    # cluster -> label lookup: per-cluster mode of y (argmax co-occurrence, smallest tie).
    co = lax.dot_general(onehot, yoh, dimension_numbers=(((1,), (0,)), ((), ())),
                         preferred_element_type=f32)                 # (K, n_class)
    n_class = co.shape[1]
    maxv = jnp.max(co, axis=1, keepdims=True)                        # (K, 1)
    cls_iota = lax.broadcasted_iota(jnp.int32, co.shape, 1)
    lookup = jnp.min(jnp.where(co >= maxv, cls_iota, n_class),
                     axis=1, keepdims=True).astype(f32)              # (K, 1)

    # y_pred[i] = lookup[cluster[i]], emitted as a lane-dense (1, Np) row.
    ypred_ref[...] = jnp.sum(lookup * onehot, axis=0, keepdims=True)


def fused_cluster_predict(embt, yoh, n_cluster, n_iter, n_valid, settings):
    n_pad = embt.shape[1]
    return pl.pallas_call(
        functools.partial(_cluster_predict_kernel, n_cluster=n_cluster,
                          n_iter=n_iter, n_valid=n_valid),
        out_shape=jax.ShapeDtypeStruct((1, n_pad), jnp.float32),
        in_specs=[pl.BlockSpec(memory_space=pltpu.MemorySpace.VMEM),
                  pl.BlockSpec(memory_space=pltpu.MemorySpace.VMEM)],
        out_specs=pl.BlockSpec(memory_space=pltpu.MemorySpace.VMEM),
        compiler_params=pltpu.CompilerParams(
            vmem_limit_bytes=settings["vmem_limit"]),
    )(embt.astype(jnp.float32), yoh.astype(jnp.float32))


# ---------------------------------------------------------------------------
# Model forward
# ---------------------------------------------------------------------------
@functools.partial(jax.jit, static_argnames=("n_class", "n_cluster", "n_iter"))
def model_forward(X, y, n_class: int, n_cluster: int, n_iter: int = 10):
    assert X.ndim == 4
    n = X.shape[0]
    assert n >= n_cluster
    settings = _tpu_settings()

    x_flat = X.reshape(n, -1).astype(jnp.float32)                    # (N, D)
    d = x_flat.shape[1]
    dp = _round_up(d, settings["lane_align"])
    n_pad, tn = _pick_row_tile(n, dp)

    mean = jnp.mean(x_flat, axis=0, keepdims=True)
    xc = x_flat - mean                                               # (N, D) centered
    if (n_pad, dp) != (n, d):
        # One pad pass; zero rows/cols don't perturb cov, its top eigvecs or the
        # projection, so everything downstream stays padded (no slice round-trips).
        xc = jnp.pad(xc, ((0, n_pad - n), (0, dp - d)))

    # --- t-SNE 'pca' init: top-3 PCA directions ---
    cov = pallas_ata(xc, tn, settings)                               # (dp, dp) Pallas A^T A
    # TODO(synk): t-SNE's gradient optimization is not implemented (PCA init only); for
    # very large D replace the O(D^3) eigh with an MXU-friendly 3-vector subspace iteration.
    _, eigvecs = jnp.linalg.eigh(cov)                                # ascending eigenvalues
    v3t = jnp.flip(eigvecs[:, -3:], axis=1).T                        # (3, dp) top-3, desc.

    # Tiled, pipelined projection -> lane-dense (3, n_pad) embedding.
    embt = pallas_project(xc, v3t, tn, settings)

    # One-hot true labels (padded rows are all-zero -> never counted).
    y_ext = jnp.full((n_pad,), n_class, dtype=jnp.int32).at[:n].set(y.astype(jnp.int32))
    yoh = (y_ext[:, None] == jnp.arange(n_class)[None, :]).astype(jnp.float32)

    # k-means + cluster->label + gather, all in ONE small Pallas kernel.
    y_row = fused_cluster_predict(embt, yoh, n_cluster, n_iter, n, settings)  # (1, n_pad)
    return y_row[0, :n]                                              # (N,) float32


if __name__ == "__main__":
    n_class = 3
    n_cluster = 4
    N, C, H, W = 16, 4, 8, 8      # D = 256

    key = jax.random.PRNGKey(0)
    kx, ky, ks = jax.random.split(key, 3)
    y = jax.random.randint(ky, (N,), 0, n_class)
    # class-dependent shift so clusters are non-degenerate
    shift = jax.random.normal(ks, (n_class, C, H, W)) * 3.0
    X = jax.random.normal(kx, (N, C, H, W)) + shift[y]

    y_pred = model_forward(X, y, n_class, n_cluster)
    y_pred = jax.block_until_ready(y_pred)

    assert y_pred.shape == (N,)
    assert y_pred.dtype == jnp.float32
    assert int(jnp.unique(y_pred).shape[0]) <= n_class
    print("KERNEL_OK")
</pallas_src>

<mosaic_0001>
module attributes {stable_mosaic.version = 11 : i64} {
  func.func @_ata_kernel(%arg0: i32, %arg1: i32, %arg2: i32, %arg3: memref<16x256xf32, #tpu.memory_space<vmem>>, %arg4: memref<16x256xf32, #tpu.memory_space<vmem>>, %arg5: memref<256x256xf32, #tpu.memory_space<vmem>>, %arg6: memref<256x256xf32, #tpu.memory_space<vmem>>) attributes {dimension_semantics = [#tpu.dimension_semantics<parallel>, #tpu.dimension_semantics<parallel>, #tpu.dimension_semantics<arbitrary>], iteration_bounds = array<i64: 1, 1, 1>, scalar_prefetch = 0 : i64, scratch_operands = 1 : i64, tpu.core_type = #tpu.core_type<tc>, window_params = [{transform_indices = @transform_0, window_bounds = array<i64: 16, 256>}, {transform_indices = @transform_1, window_bounds = array<i64: 16, 256>}, {transform_indices = @transform_2, window_bounds = array<i64: 256, 256>}]} {
    %c0_i32 = arith.constant 0 : i32
    %0 = arith.cmpi eq, %arg2, %c0_i32 : i32
    %1 = arith.extui %0 : i1 to i32
    %c0_i32_0 = arith.constant 0 : i32
    %2 = arith.cmpi ne, %1, %c0_i32_0 : i32
    scf.if %2 {
      %cst_10 = arith.constant 0.000000e+00 : f32
      %12 = vector.broadcast %cst_10 : f32 to vector<256x256xf32>
      %c0_11 = arith.constant 0 : index
      %c0_12 = arith.constant 0 : index
      %13 = vector.load %arg6[%c0_11, %c0_12] : memref<256x256xf32, #tpu.memory_space<vmem>>, vector<256x256xf32>
      tpu.vector_store %arg6[%c0_11, %c0_12], %12 {strides = array<i32>} : memref<256x256xf32, #tpu.memory_space<vmem>>, vector<256x256xf32>,
    } else {
    }
    %c0 = arith.constant 0 : index
    %c0_1 = arith.constant 0 : index
    %3 = vector.load %arg6[%c0, %c0_1] : memref<256x256xf32, #tpu.memory_space<vmem>>, vector<256x256xf32>
    %c0_2 = arith.constant 0 : index
    %c0_3 = arith.constant 0 : index
    %4 = vector.load %arg3[%c0_2, %c0_3] : memref<16x256xf32, #tpu.memory_space<vmem>>, vector<16x256xf32>
    %c0_4 = arith.constant 0 : index
    %c0_5 = arith.constant 0 : index
    %5 = vector.load %arg4[%c0_4, %c0_5] : memref<16x256xf32, #tpu.memory_space<vmem>>, vector<16x256xf32>
    %cst = arith.constant dense<0.000000e+00> : vector<256x256xf32>
    %6 = tpu.matmul %4, %5, %cst {dimension_numbers = #tpu.dot_dimension_numbers<[0], [0], [1], [1], [0, 1, 1, 1], [], []>} : vector<16x256xf32>, vector<16x256xf32>, vector<256x256xf32> -> vector<256x256xf32>
    %7 = arith.addf %3, %6 : vector<256x256xf32>
    %c0_6 = arith.constant 0 : index
    %c0_7 = arith.constant 0 : index
    %8 = vector.load %arg6[%c0_6, %c0_7] : memref<256x256xf32, #tpu.memory_space<vmem>>, vector<256x256xf32>
    tpu.vector_store %arg6[%c0_6, %c0_7], %7 {strides = array<i32>} : memref<256x256xf32, #tpu.memory_space<vmem>>, vector<256x256xf32>,
    %c0_i32_8 = arith.constant 0 : i32
    %9 = arith.cmpi eq, %arg2, %c0_i32_8 : i32
    %10 = arith.extui %9 : i1 to i32
    %c0_i32_9 = arith.constant 0 : i32
    %11 = arith.cmpi ne, %10, %c0_i32_9 : i32
    scf.if %11 {
      %c0_10 = arith.constant 0 : index
      %c0_11 = arith.constant 0 : index
      %12 = vector.load %arg6[%c0_10, %c0_11] : memref<256x256xf32, #tpu.memory_space<vmem>>, vector<256x256xf32>
      %c0_12 = arith.constant 0 : index
      %c0_13 = arith.constant 0 : index
      %13 = vector.load %arg5[%c0_12, %c0_13] : memref<256x256xf32, #tpu.memory_space<vmem>>, vector<256x256xf32>
      tpu.vector_store %arg5[%c0_12, %c0_13], %12 {strides = array<i32>} : memref<256x256xf32, #tpu.memory_space<vmem>>, vector<256x256xf32>,
    } else {
    }
    return
  }
  func.func @transform_0(%arg0: i32, %arg1: i32, %arg2: i32) -> (i32, i32) {
    %c0_i32 = arith.constant 0 : i32
    return %arg2, %arg0 : i32, i32
  }
  func.func @transform_1(%arg0: i32, %arg1: i32, %arg2: i32) -> (i32, i32) {
    %c0_i32 = arith.constant 0 : i32
    return %arg2, %arg1 : i32, i32
  }
  func.func @transform_2(%arg0: i32, %arg1: i32, %arg2: i32) -> (i32, i32) {
    %c0_i32 = arith.constant 0 : i32
    return %arg0, %arg1 : i32, i32
  }
}

module attributes {stable_mosaic.version = 11 : i64} {
  func.func @_project_kernel(%arg0: i32, %arg1: memref<3x256xf32, #tpu.memory_space<vmem>>, %arg2: memref<16x256xf32, #tpu.memory_space<vmem>>, %arg3: memref<3x16xf32, #tpu.memory_space<vmem>>) attributes {dimension_semantics = [#tpu.dimension_semantics<parallel>], iteration_bounds = array<i64: 1>, scalar_prefetch = 0 : i64, scratch_operands = 0 : i64, tpu.core_type = #tpu.core_type<tc>, window_params = [{pipeline_mode = #tpu.pipeline_mode<synchronous>, transform_indices = @transform_0, window_bounds = array<i64: 3, 256>}, {transform_indices = @transform_1, window_bounds = array<i64: 16, 256>}, {transform_indices = @transform_2, window_bounds = array<i64: 3, 16>}]} {
    %c0 = arith.constant 0 : index
    %c0_0 = arith.constant 0 : index
    %0 = vector.load %arg1[%c0, %c0_0] : memref<3x256xf32, #tpu.memory_space<vmem>>, vector<3x256xf32>
    %c0_1 = arith.constant 0 : index
    %c0_2 = arith.constant 0 : index
    %1 = vector.load %arg2[%c0_1, %c0_2] : memref<16x256xf32, #tpu.memory_space<vmem>>, vector<16x256xf32>
    %cst = arith.constant dense<0.000000e+00> : vector<3x16xf32>
    %2 = tpu.matmul %0, %1, %cst {dimension_numbers = #tpu.dot_dimension_numbers<[1], [1], [0], [0], [0, 0, 1, 0], [], []>} : vector<3x256xf32>, vector<16x256xf32>, vector<3x16xf32> -> vector<3x16xf32>
    %c0_3 = arith.constant 0 : index
    %c0_4 = arith.constant 0 : index
    %3 = vector.load %arg3[%c0_3, %c0_4] : memref<3x16xf32, #tpu.memory_space<vmem>>, vector<3x16xf32>
    tpu.vector_store %arg3[%c0_3, %c0_4], %2 {strides = array<i32>} : memref<3x16xf32, #tpu.memory_space<vmem>>, vector<3x16xf32>,
    return
  }
  func.func @transform_0(%arg0: i32) -> (i32, i32) {
    %c0_i32 = arith.constant 0 : i32
    %c0_i32_0 = arith.constant 0 : i32
    %c0_i32_1 = arith.constant 0 : i32
    return %c0_i32, %c0_i32_0 : i32, i32
  }
  func.func @transform_1(%arg0: i32) -> (i32, i32) {
    %c0_i32 = arith.constant 0 : i32
    %c0_i32_0 = arith.constant 0 : i32
    return %arg0, %c0_i32 : i32, i32
  }
  func.func @transform_2(%arg0: i32) -> (i32, i32) {
    %c0_i32 = arith.constant 0 : i32
    %c0_i32_0 = arith.constant 0 : i32
    return %c0_i32, %arg0 : i32, i32
  }
}

module attributes {stable_mosaic.version = 11 : i64} {
  func.func @_cluster_predict_kernel(%arg0: memref<3x16xf32, #tpu.memory_space<vmem>>, %arg1: memref<16x3xf32, #tpu.memory_space<vmem>>, %arg2: memref<1x16xf32, #tpu.memory_space<vmem>>) attributes {dimension_semantics = [], scalar_prefetch = 0 : i64, scratch_operands = 0 : i64, tpu.core_type = #tpu.core_type<tc>} {
    %c0 = arith.constant 0 : index
    %c0_0 = arith.constant 0 : index
    %0 = vector.load %arg0[%c0, %c0_0] : memref<3x16xf32, #tpu.memory_space<vmem>>, vector<3x16xf32>
    %c0_1 = arith.constant 0 : index
    %c0_2 = arith.constant 0 : index
    %1 = vector.load %arg1[%c0_1, %c0_2] : memref<16x3xf32, #tpu.memory_space<vmem>>, vector<16x3xf32>
    %2 = tpu.iota {dimensions = array<i32: 1>} : vector<1x16xi32>
    %c16_i32 = arith.constant 16 : i32
    %3 = vector.broadcast %c16_i32 : i32 to vector<1x16xi32>
    %4 = arith.cmpi slt, %2, %3 : vector<1x16xi32>
    %5 = arith.extui %4 : vector<1x16xi1> to vector<1x16xi32>
    %6 = arith.sitofp %5 : vector<1x16xi32> to vector<1x16xf32>
    %7 = arith.mulf %0, %0 : vector<3x16xf32>
    %cst = arith.constant dense<0.000000e+00> : vector<16xf32>
    %8 = vector.multi_reduction <add>, %7, %cst [0] : vector<3x16xf32> to vector<16xf32>
    %9 = vector.shape_cast %8 : vector<16xf32> to vector<1x16xf32>
    %10 = tpu.iota {dimensions = array<i32: 0>} : vector<4x16xi32>
    %11 = tpu.iota {dimensions = array<i32: 0>} : vector<4x4xi32>
    %12 = tpu.iota {dimensions = array<i32: 1>} : vector<4x4xi32>
    %13 = arith.cmpi eq, %11, %12 : vector<4x4xi32>
    %14 = arith.extui %13 : vector<4x4xi1> to vector<4x4xi32>
    %15 = arith.sitofp %14 : vector<4x4xi32> to vector<4x4xf32>
    %16 = vector.extract_strided_slice %0 {offsets = [0, 0], sizes = [3, 4], strides = [1, 1]} : vector<3x16xf32> to vector<3x4xf32>
    %c0_i32 = arith.constant 0 : i32
    %c10_i32 = arith.constant 10 : i32
    %17 = arith.addi %c0_i32, %c10_i32 : i32
    %c1_i32 = arith.constant 1 : i32
    %18 = scf.for %arg3 = %c0_i32 to %17 step %c1_i32 iter_args(%arg4 = %16) -> (vector<3x4xf32>)  : i32 {
      %cst_15 = arith.constant dense<0.000000e+00> : vector<4x4xf32>
      %60 = tpu.matmul %arg4, %arg4, %cst_15 {dimension_numbers = #tpu.dot_dimension_numbers<[0], [0], [1], [1], [0, 1, 1, 1], [], []>} : vector<3x4xf32>, vector<3x4xf32>, vector<4x4xf32> -> vector<4x4xf32>
      %61 = arith.mulf %60, %15 : vector<4x4xf32>
      %cst_16 = arith.constant dense<0.000000e+00> : vector<4xf32>
      %62 = vector.multi_reduction <add>, %61, %cst_16 [1] : vector<4x4xf32> to vector<4xf32>
      %63 = vector.shape_cast %62 : vector<4xf32> to vector<4x1xf32>
      %cst_17 = arith.constant dense<0.000000e+00> : vector<4x16xf32>
      %64 = tpu.matmul %arg4, %0, %cst_17 {dimension_numbers = #tpu.dot_dimension_numbers<[0], [0], [1], [1], [0, 1, 1, 1], [], []>} : vector<3x4xf32>, vector<3x16xf32>, vector<4x16xf32> -> vector<4x16xf32>
      %cst_18 = arith.constant 2.000000e+00 : f32
      %65 = vector.broadcast %cst_18 : f32 to vector<4x16xf32>
      %66 = arith.mulf %65, %64 : vector<4x16xf32>
      %67 = vector.broadcast %9 : vector<1x16xf32> to vector<4x16xf32>
      %68 = arith.subf %67, %66 : vector<4x16xf32>
      %69 = vector.broadcast %63 : vector<4x1xf32> to vector<4x16xf32>
      %70 = arith.addf %68, %69 : vector<4x16xf32>
      %cst_19 = arith.constant dense<0x7F800000> : vector<16xf32>
      %71 = vector.multi_reduction <minimumf>, %70, %cst_19 [0] : vector<4x16xf32> to vector<16xf32>
      %72 = vector.shape_cast %71 : vector<16xf32> to vector<1x16xf32>
      %73 = vector.broadcast %72 : vector<1x16xf32> to vector<4x16xf32>
      %74 = arith.cmpf ole, %70, %73 : vector<4x16xf32>
      %c4_i32_20 = arith.constant 4 : i32
      %75 = vector.broadcast %c4_i32_20 : i32 to vector<4x16xi32>
      %76 = arith.select %74, %10, %75 : vector<4x16xi1>, vector<4x16xi32>
      %cst_21 = arith.constant dense<2147483647> : vector<16xi32>
      %77 = vector.multi_reduction <minsi>, %76, %cst_21 [0] : vector<4x16xi32> to vector<16xi32>
      %78 = vector.shape_cast %77 : vector<16xi32> to vector<1x16xi32>
      %79 = vector.broadcast %78 : vector<1x16xi32> to vector<4x16xi32>
      %80 = arith.cmpi eq, %79, %10 : vector<4x16xi32>
      %81 = arith.extui %80 : vector<4x16xi1> to vector<4x16xi32>
      %82 = arith.sitofp %81 : vector<4x16xi32> to vector<4x16xf32>
      %83 = vector.broadcast %6 : vector<1x16xf32> to vector<4x16xf32>
      %84 = arith.mulf %82, %83 : vector<4x16xf32>
      %cst_22 = arith.constant dense<0.000000e+00> : vector<3x4xf32>
      %85 = tpu.matmul %0, %84, %cst_22 {dimension_numbers = #tpu.dot_dimension_numbers<[1], [1], [0], [0], [0, 0, 1, 0], [], []>} : vector<3x16xf32>, vector<4x16xf32>, vector<3x4xf32> -> vector<3x4xf32>
      %cst_23 = arith.constant dense<0.000000e+00> : vector<1x4xf32>
      %86 = tpu.matmul %6, %84, %cst_23 {dimension_numbers = #tpu.dot_dimension_numbers<[1], [1], [0], [0], [0, 0, 1, 0], [], []>} : vector<1x16xf32>, vector<4x16xf32>, vector<1x4xf32> -> vector<1x4xf32>
      %cst_24 = arith.constant 0.000000e+00 : f32
      %87 = vector.broadcast %cst_24 : f32 to vector<1x4xf32>
      %88 = arith.cmpf ogt, %86, %87 : vector<1x4xf32>
      %cst_25 = arith.constant 1.000000e+00 : f32
      %89 = vector.broadcast %cst_25 : f32 to vector<1x4xf32>
      %90 = arith.maximumf %86, %89 : vector<1x4xf32>
      %91 = vector.broadcast %90 : vector<1x4xf32> to vector<3x4xf32>
      %92 = arith.divf %85, %91 : vector<3x4xf32>
      %93 = vector.shape_cast %88 : vector<1x4xi1> to vector<1x4xi1>
      %94 = vector.broadcast %93 : vector<1x4xi1> to vector<3x4xi1>
      %95 = arith.select %94, %92, %arg4 : vector<3x4xi1>, vector<3x4xf32>
      scf.yield %95 : vector<3x4xf32>
    }
    %cst_3 = arith.constant dense<0.000000e+00> : vector<4x4xf32>
    %19 = tpu.matmul %18, %18, %cst_3 {dimension_numbers = #tpu.dot_dimension_numbers<[0], [0], [1], [1], [0, 1, 1, 1], [], []>} : vector<3x4xf32>, vector<3x4xf32>, vector<4x4xf32> -> vector<4x4xf32>
    %20 = arith.mulf %19, %15 : vector<4x4xf32>
    %cst_4 = arith.constant dense<0.000000e+00> : vector<4xf32>
    %21 = vector.multi_reduction <add>, %20, %cst_4 [1] : vector<4x4xf32> to vector<4xf32>
    %22 = vector.shape_cast %21 : vector<4xf32> to vector<4x1xf32>
    %cst_5 = arith.constant dense<0.000000e+00> : vector<4x16xf32>
    %23 = tpu.matmul %18, %0, %cst_5 {dimension_numbers = #tpu.dot_dimension_numbers<[0], [0], [1], [1], [0, 1, 1, 1], [], []>} : vector<3x4xf32>, vector<3x16xf32>, vector<4x16xf32> -> vector<4x16xf32>
    %cst_6 = arith.constant 2.000000e+00 : f32
    %24 = vector.broadcast %cst_6 : f32 to vector<4x16xf32>
    %25 = arith.mulf %24, %23 : vector<4x16xf32>
    %26 = vector.broadcast %9 : vector<1x16xf32> to vector<4x16xf32>
    %27 = arith.subf %26, %25 : vector<4x16xf32>
    %28 = vector.broadcast %22 : vector<4x1xf32> to vector<4x16xf32>
    %29 = arith.addf %27, %28 : vector<4x16xf32>
    %cst_7 = arith.constant dense<0x7F800000> : vector<16xf32>
    %30 = vector.multi_reduction <minimumf>, %29, %cst_7 [0] : vector<4x16xf32> to vector<16xf32>
    %31 = vector.shape_cast %30 : vector<16xf32> to vector<1x16xf32>
    %32 = vector.broadcast %31 : vector<1x16xf32> to vector<4x16xf32>
    %33 = arith.cmpf ole, %29, %32 : vector<4x16xf32>
    %c4_i32 = arith.constant 4 : i32
    %34 = vector.broadcast %c4_i32 : i32 to vector<4x16xi32>
    %35 = arith.select %33, %10, %34 : vector<4x16xi1>, vector<4x16xi32>
    %cst_8 = arith.constant dense<2147483647> : vector<16xi32>
    %36 = vector.multi_reduction <minsi>, %35, %cst_8 [0] : vector<4x16xi32> to vector<16xi32>
    %37 = vector.shape_cast %36 : vector<16xi32> to vector<1x16xi32>
    %38 = vector.broadcast %37 : vector<1x16xi32> to vector<4x16xi32>
    %39 = arith.cmpi eq, %38, %10 : vector<4x16xi32>
    %40 = arith.extui %39 : vector<4x16xi1> to vector<4x16xi32>
    %41 = arith.sitofp %40 : vector<4x16xi32> to vector<4x16xf32>
    %42 = vector.broadcast %6 : vector<1x16xf32> to vector<4x16xf32>
    %43 = arith.mulf %41, %42 : vector<4x16xf32>
    %cst_9 = arith.constant dense<0.000000e+00> : vector<4x3xf32>
    %44 = tpu.matmul %43, %1, %cst_9 {dimension_numbers = #tpu.dot_dimension_numbers<[1], [0], [0], [1], [0, 0, 1, 1], [], []>} : vector<4x16xf32>, vector<16x3xf32>, vector<4x3xf32> -> vector<4x3xf32>
    %cst_10 = arith.constant dense<0xFF800000> : vector<4xf32>
    %45 = vector.multi_reduction <maximumf>, %44, %cst_10 [1] : vector<4x3xf32> to vector<4xf32>
    %46 = vector.shape_cast %45 : vector<4xf32> to vector<4x1xf32>
    %47 = tpu.iota {dimensions = array<i32: 1>} : vector<4x3xi32>
    %48 = vector.broadcast %46 : vector<4x1xf32> to vector<4x3xf32>
    %49 = arith.cmpf oge, %44, %48 : vector<4x3xf32>
    %c3_i32 = arith.constant 3 : i32
    %50 = vector.broadcast %c3_i32 : i32 to vector<4x3xi32>
    %51 = arith.select %49, %47, %50 : vector<4x3xi1>, vector<4x3xi32>
    %cst_11 = arith.constant dense<2147483647> : vector<4xi32>
    %52 = vector.multi_reduction <minsi>, %51, %cst_11 [1] : vector<4x3xi32> to vector<4xi32>
    %53 = vector.shape_cast %52 : vector<4xi32> to vector<4x1xi32>
    %54 = arith.sitofp %53 : vector<4x1xi32> to vector<4x1xf32>
    %55 = vector.broadcast %54 : vector<4x1xf32> to vector<4x16xf32>
    %56 = arith.mulf %55, %43 : vector<4x16xf32>
    %cst_12 = arith.constant dense<0.000000e+00> : vector<16xf32>
    %57 = vector.multi_reduction <add>, %56, %cst_12 [0] : vector<4x16xf32> to vector<16xf32>
    %58 = vector.shape_cast %57 : vector<16xf32> to vector<1x16xf32>
    %c0_13 = arith.constant 0 : index
    %c0_14 = arith.constant 0 : index
    %59 = vector.load %arg2[%c0_13, %c0_14] : memref<1x16xf32, #tpu.memory_space<vmem>>, vector<1x16xf32>
    tpu.vector_store %arg2[%c0_13, %c0_14], %58 {strides = array<i32>} : memref<1x16xf32, #tpu.memory_space<vmem>>, vector<1x16xf32>,
    return
  }
}

</mosaic_0001>

<llo_original>
// kernel: custom-call.2
$region0: #{custom-call.2}
  %s0 = inlined_call_operand.vmem [shape: f32[128,128], index: 0, kind: input, shape index: {}]
  %s1 = inlined_call_operand.vmem [shape: f32[128,128], index: 1, kind: input, shape index: {}]
  %s2 = inlined_call_operand.vmem [shape: f32[128,128], index: 2, kind: input, shape index: {}]
  %s3 = inlined_call_operand.vmem [shape: f32[128,128], index: 3, kind: input, shape index: {}]
  %s4 = inlined_call_operand.vmem [shape: f32[128], index: 4, kind: output, shape index: {0}]
  %s5 = inlined_call_operand.vmem [shape: f32[128], index: 5, kind: output, shape index: {1}]
  %s6 = inlined_call_operand.vmem [shape: f32[128,128], index: 6, kind: output, shape index: {2}]
  %s7 = inlined_call_operand.vmem [shape: f32[128,128], index: 7, kind: output, shape index: {3}]
  %s8 = inlined_call_operand.vmem [shape: f32[128,128], index: 8, kind: output, shape index: {4}]
  %s9 = inlined_call_operand.vmem [shape: f32[128,128], index: 9, kind: output, shape index: {5}]
  %10 = xla_tuple %s4, %s5, %s6, %s7, %s8, %s9
  $region1: #{custom-call.2} parent=0
    #allocation0 [shape = 'u8[65536]{0}', space=vmem, size = 0x10000, scoped, tag = 'operand span for operand 0']
    #allocation1 [shape = 'u8[65536]{0}', space=vmem, size = 0x10000, scoped, tag = 'operand span for operand 1']
    #allocation2 [shape = 'u8[65536]{0}', space=vmem, size = 0x10000, scoped, tag = 'operand span for operand 2']
    #allocation3 [shape = 'u8[65536]{0}', space=vmem, size = 0x10000, scoped, tag = 'operand span for operand 3']
    #allocation4 [shape = 'u8[4096]{0}', space=vmem, size = 0x1000, scoped, tag = 'operand span for operand 4']
    #allocation5 [shape = 'u8[512]{0}', space=vmem, size = 0x400, scoped, tag = 'packed  for operand 4']
    #allocation6 [shape = 'u8[4096]{0}', space=vmem, size = 0x1000, scoped, tag = 'operand span for operand 5']
    #allocation7 [shape = 'u8[512]{0}', space=vmem, size = 0x400, scoped, tag = 'packed  for operand 5']
    #allocation8 [shape = 'u8[65536]{0}', space=vmem, size = 0x10000, scoped, tag = 'operand span for operand 6']
    #allocation9 [shape = 'u8[65536]{0}', space=vmem, size = 0x10000, scoped, tag = 'operand span for operand 7']
    #allocation10 [shape = 'u8[65536]{0}', space=vmem, size = 0x10000, scoped, tag = 'operand span for operand 8']
    #allocation11 [shape = 'u8[65536]{0}', space=vmem, size = 0x10000, scoped, tag = 'operand span for operand 9']
    #allocation12 [shape = 'f32[128,128]{1,0}', space=vmem, size = 0x10000, scoped, tag = 'a top-left matrix']
    #allocation13 [shape = 'f32[128,128]{1,0}', space=vmem, size = 0x10000, scoped, tag = 'a top-right matrix']
    #allocation14 [shape = 'f32[128,128]{1,0}', space=vmem, size = 0x10000, scoped, tag = 'a bottom-left matrix']
    #allocation15 [shape = 'f32[128,128]{1,0}', space=vmem, size = 0x10000, scoped, tag = 'a bottom-right matrix']
    %p12 = scmp.gt.s32.totalorder 128, 0
    // Predicated region
    $region2: #{custom-call.2} parent=1 // pred_check
      %p13 = pneg %p12
    $region3: #{custom-call.2} parent=1 // pred_check_branch
      %15 = sbr.rel (%p13) target = $region5
    $region4: #{custom-call.2} parent=1 // pred_region
      %s16 = sshra.s32 128, 3
      %p17 = scmp.gt.s32.totalorder %s16, 0
      // Predicated region
      $region6: #{custom-call.2} parent=4 // pred_check
        %p18 = pneg %p17
      $region7: #{custom-call.2} parent=4 // pred_check_branch
        %20 = sbr.rel (%p18) target = $region9
      $region8: #{custom-call.2} parent=4 // pred_region
        %s21 = ssub.s32 %s16, 1
        %s22 = smul.u32 %s21, 128
        %s23 = sshra.s32 %s22, 4
        %s24 = scalar_lea.vmem %s0, %s23
        %v25 = vld [vmem:[%s0] sm:$0xff]
        // While loop
        $region10: #{custom-call.2} parent=8 // loop_pre_header
          _
        $region11: #{custom-call.2} parent=8 // loop_header
          %s26 = sphi %s0, %s48
          %s27 = sphi [#allocation0], %s49
          %v28 = vphi %v25, %v50
          %s29 = ssub.s32 %s24, 64
          %p30 = scmp.gt.s32.totalorder %s26, %s29
        $region12: #{custom-call.2} parent=8 // loop_header_branch
          %32 = sbr.rel (%p30) target = $region16
        $region13: #{custom-call.2} parent=8 // loop_body
          %33 = vst [vmem:[%s27] sm:$0xff] %v28
          %v34 = vld [vmem:[%s26 + $0x8] sm:$0xff]
          %35 = vst [vmem:[%s27 + $0x8] sm:$0xff] %v34
          %v36 = vld [vmem:[%s26 + $0x10] sm:$0xff]
          %37 = vst [vmem:[%s27 + $0x10] sm:$0xff] %v36
          %v38 = vld [vmem:[%s26 + $0x18] sm:$0xff]
          %39 = vst [vmem:[%s27 + $0x18] sm:$0xff] %v38
          %v40 = vld [vmem:[%s26 + $0x20] sm:$0xff]
          %41 = vst [vmem:[%s27 + $0x20] sm:$0xff] %v40
          %v42 = vld [vmem:[%s26 + $0x28] sm:$0xff]
          %43 = vst [vmem:[%s27 + $0x28] sm:$0xff] %v42
          %v44 = vld [vmem:[%s26 + $0x30] sm:$0xff]
          %45 = vst [vmem:[%s27 + $0x30] sm:$0xff] %v44
          %v46 = vld [vmem:[%s26 + $0x38] sm:$0xff]
          %47 = vst [vmem:[%s27 + $0x38] sm:$0xff] %v46
        $region14: #{custom-call.2} parent=8 // loop_footer
          %s48 = scalar_lea.vmem %s26, 64
          %s49 = scalar_lea.vmem %s27, 64
          %v50 = vld [vmem:[%s26 + $0x40] sm:$0xff]
        $region15: #{custom-call.2} parent=8 // loop_footer_branch
          %51 = sbr.rel target = $region11
        $region16: #{custom-call.2} parent=8 // loop_exit
          _
        // While loop
        $region17: #{custom-call.2} parent=8 // loop_pre_header
          _
        $region18: #{custom-call.2} parent=8 // loop_header
          %s52 = sphi %s26, %s60
          %s53 = sphi %s27, %s61
          %v54 = vphi %v28, %v54
          %p55 = scmp.gt.s32.totalorder %s52, %s24
        $region19: #{custom-call.2} parent=8 // loop_header_branch
          %57 = sbr.rel (%p55) target = $region23
        $region20: #{custom-call.2} parent=8 // loop_body
          %v58 = vld [vmem:[%s52] sm:$0xff]
          %59 = vst [vmem:[%s53] sm:$0xff] %v58
        $region21: #{custom-call.2} parent=8 // loop_footer
          %s60 = scalar_lea.vmem %s52, 8
          %s61 = scalar_lea.vmem %s53, 8
        $region22: #{custom-call.2} parent=8 // loop_footer_branch
          %62 = sbr.rel target = $region18
        $region23: #{custom-call.2} parent=8 // loop_exit
          _
      $region9: #{custom-call.2} parent=4 // pred_fallthru
        _
      %s63 = sand.u32 128, 7
      %s64 = sshllo.u32 0, %s63
      %s65 = smul.u32 %s16, 128
      %s66 = sshra.s32 %s65, 4
      %s67 = scalar_lea.vmem [#allocation0], %s66
      %s68 = smul.u32 %s16, 128
      %s69 = sshra.s32 %s68, 4
      %s70 = scalar_lea.vmem %s0, %s69
      %v71 = vld [vmem:[%s70] sm:%s64]
      %72 = vst [vmem:[%s67] sm:%s64] %v71
    $region5: #{custom-call.2} parent=1 // pred_fallthru
      _
    %p74 = scmp.gt.s32.totalorder 128, 0
    // Predicated region
    $region24: #{custom-call.2} parent=1 // pred_check
      %p75 = pneg %p74
    $region25: #{custom-call.2} parent=1 // pred_check_branch
      %77 = sbr.rel (%p75) target = $region27
    $region26: #{custom-call.2} parent=1 // pred_region
      %s78 = sshra.s32 128, 3
      %p79 = scmp.gt.s32.totalorder %s78, 0
      // Predicated region
      $region28: #{custom-call.2} parent=26 // pred_check
        %p80 = pneg %p79
      $region29: #{custom-call.2} parent=26 // pred_check_branch
        %82 = sbr.rel (%p80) target = $region31
      $region30: #{custom-call.2} parent=26 // pred_region
        %s83 = ssub.s32 %s78, 1
        %s84 = smul.u32 %s83, 128
        %s85 = sshra.s32 %s84, 4
        %s86 = scalar_lea.vmem %s1, %s85
        %v87 = vld [vmem:[%s1] sm:$0xff]
        // While loop
        $region32: #{custom-call.2} parent=30 // loop_pre_header
          _
        $region33: #{custom-call.2} parent=30 // loop_header
          %s88 = sphi %s1, %s110
          %s89 = sphi [#allocation1], %s111
          %v90 = vphi %v87, %v112
          %s91 = ssub.s32 %s86, 64
          %p92 = scmp.gt.s32.totalorder %s88, %s91
        $region34: #{custom-call.2} parent=30 // loop_header_branch
          %94 = sbr.rel (%p92) target = $region38
        $region35: #{custom-call.2} parent=30 // loop_body
          %95 = vst [vmem:[%s89] sm:$0xff] %v90
          %v96 = vld [vmem:[%s88 + $0x8] sm:$0xff]
          %97 = vst [vmem:[%s89 + $0x8] sm:$0xff] %v96
          %v98 = vld [vmem:[%s88 + $0x10] sm:$0xff]
          %99 = vst [vmem:[%s89 + $0x10] sm:$0xff] %v98
          %v100 = vld [vmem:[%s88 + $0x18] sm:$0xff]
          %101 = vst [vmem:[%s89 + $0x18] sm:$0xff] %v100
          %v102 = vld [vmem:[%s88 + $0x20] sm:$0xff]
          %103 = vst [vmem:[%s89 + $0x20] sm:$0xff] %v102
          %v104 = vld [vmem:[%s88 + $0x28] sm:$0xff]
          %105 = vst [vmem:[%s89 + $0x28] sm:$0xff] %v104
          %v106 = vld [vmem:[%s88 + $0x30] sm:$0xff]
          %107 = vst [vmem:[%s89 + $0x30] sm:$0xff] %v106
          %v108 = vld [vmem:[%s88 + $0x38] sm:$0xff]
          %109 = vst [vmem:[%s89 + $0x38] sm:$0xff] %v108
        $region36: #{custom-call.2} parent=30 // loop_footer
          %s110 = scalar_lea.vmem %s88, 64
          %s111 = scalar_lea.vmem %s89, 64
          %v112 = vld [vmem:[%s88 + $0x40] sm:$0xff]
        $region37: #{custom-call.2} parent=30 // loop_footer_branch
          %113 = sbr.rel target = $region33
        $region38: #{custom-call.2} parent=30 // loop_exit
          _
        // While loop
        $region39: #{custom-call.2} parent=30 // loop_pre_header
          _
        $region40: #{custom-call.2} parent=30 // loop_header
          %s114 = sphi %s88, %s122
          %s115 = sphi %s89, %s123
          %v116 = vphi %v90, %v116
          %p117 = scmp.gt.s32.totalorder %s114, %s86
        $region41: #{custom-call.2} parent=30 // loop_header_branch
          %119 = sbr.rel (%p117) target = $region45
        $region42: #{custom-call.2} parent=30 // loop_body
          %v120 = vld [vmem:[%s114] sm:$0xff]
          %121 = vst [vmem:[%s115] sm:$0xff] %v120
        $region43: #{custom-call.2} parent=30 // loop_footer
          %s122 = scalar_lea.vmem %s114, 8
          %s123 = scalar_lea.vmem %s115, 8
        $region44: #{custom-call.2} parent=30 // loop_footer_branch
          %124 = sbr.rel target = $region40
        $region45: #{custom-call.2} parent=30 // loop_exit
          _
      $region31: #{custom-call.2} parent=26 // pred_fallthru
        _
      %s125 = sand.u32 128, 7
      %s126 = sshllo.u32 0, %s125
      %s127 = smul.u32 %s78, 128
      %s128 = sshra.s32 %s127, 4
      %s129 = scalar_lea.vmem [#allocation1], %s128
      %s130 = smul.u32 %s78, 128
      %s131 = sshra.s32 %s130, 4
      %s132 = scalar_lea.vmem %s1, %s131
      %v133 = vld [vmem:[%s132] sm:%s126]
      %134 = vst [vmem:[%s129] sm:%s126] %v133
    $region27: #{custom-call.2} parent=1 // pred_fallthru
      _
    %p136 = scmp.gt.s32.totalorder 128, 0
    // Predicated region
    $region46: #{custom-call.2} parent=1 // pred_check
      %p137 = pneg %p136
    $region47: #{custom-call.2} parent=1 // pred_check_branch
      %139 = sbr.rel (%p137) target = $region49
    $region48: #{custom-call.2} parent=1 // pred_region
      %s140 = sshra.s32 128, 3
      %p141 = scmp.gt.s32.totalorder %s140, 0
      // Predicated region
      $region50: #{custom-call.2} parent=48 // pred_check
        %p142 = pneg %p141
      $region51: #{custom-call.2} parent=48 // pred_check_branch
        %144 = sbr.rel (%p142) target = $region53
      $region52: #{custom-call.2} parent=48 // pred_region
        %s145 = ssub.s32 %s140, 1
        %s146 = smul.u32 %s145, 128
        %s147 = sshra.s32 %s146, 4
        %s148 = scalar_lea.vmem %s2, %s147
        %v149 = vld [vmem:[%s2] sm:$0xff]
        // While loop
        $region54: #{custom-call.2} parent=52 // loop_pre_header
          _
        $region55: #{custom-call.2} parent=52 // loop_header
          %s150 = sphi %s2, %s172
          %s151 = sphi [#allocation2], %s173
          %v152 = vphi %v149, %v174
          %s153 = ssub.s32 %s148, 64
          %p154 = scmp.gt.s32.totalorder %s150, %s153
        $region56: #{custom-call.2} parent=52 // loop_header_branch
          %156 = sbr.rel (%p154) target = $region60
        $region57: #{custom-call.2} parent=52 // loop_body
          %157 = vst [vmem:[%s151] sm:$0xff] %v152
          %v158 = vld [vmem:[%s150 + $0x8] sm:$0xff]
          %159 = vst [vmem:[%s151 + $0x8] sm:$0xff] %v158
          %v160 = vld [vmem:[%s150 + $0x10] sm:$0xff]
          %161 = vst [vmem:[%s151 + $0x10] sm:$0xff] %v160
          %v162 = vld [vmem:[%s150 + $0x18] sm:$0xff]
          %163 = vst [vmem:[%s151 + $0x18] sm:$0xff] %v162
          %v164 = vld [vmem:[%s150 + $0x20] sm:$0xff]
          %165 = vst [vmem:[%s151 + $0x20] sm:$0xff] %v164
          %v166 = vld [vmem:[%s150 + $0x28] sm:$0xff]
          %167 = vst [vmem:[%s151 + $0x28] sm:$0xff] %v166
          %v168 = vld [vmem:[%s150 + $0x30] sm:$0xff]
          %169 = vst [vmem:[%s151 + $0x30] sm:$0xff] %v168
          %v170 = vld [vmem:[%s150 + $0x38] sm:$0xff]
          %171 = vst [vmem:[%s151 + $0x38] sm:$0xff] %v170
        $region58: #{custom-call.2} parent=52 // loop_footer
          %s172 = scalar_lea.vmem %s150, 64
          %s173 = scalar_lea.vmem %s151, 64
          %v174 = vld [vmem:[%s150 + $0x40] sm:$0xff]
        $region59: #{custom-call.2} parent=52 // loop_footer_branch
          %175 = sbr.rel target = $region55
        $region60: #{custom-call.2} parent=52 // loop_exit
          _
        // While loop
        $region61: #{custom-call.2} parent=52 // loop_pre_header
          _
        $region62: #{custom-call.2} parent=52 // loop_header
          %s176 = sphi %s150, %s184
          %s177 = sphi %s151, %s185
          %v178 = vphi %v152, %v178
          %p179 = scmp.gt.s32.totalorder %s176, %s148
        $region63: #{custom-call.2} parent=52 // loop_header_branch
          %181 = sbr.rel (%p179) target = $region67
        $region64: #{custom-call.2} parent=52 // loop_body
          %v182 = vld [vmem:[%s176] sm:$0xff]
          %183 = vst [vmem:[%s177] sm:$0xff] %v182
        $region65: #{custom-call.2} parent=52 // loop_footer
          %s184 = scalar_lea.vmem %s176, 8
          %s185 = scalar_lea.vmem %s177, 8
        $region66: #{custom-call.2} parent=52 // loop_footer_branch
          %186 = sbr.rel target = $region62
        $region67: #{custom-call.2} parent=52 // loop_exit
          _
      $region53: #{custom-call.2} parent=48 // pred_fallthru
        _
      %s187 = sand.u32 128, 7
      %s188 = sshllo.u32 0, %s187
      %s189 = smul.u32 %s140, 128
      %s190 = sshra.s32 %s189, 4
      %s191 = scalar_lea.vmem [#allocation2], %s190
      %s192 = smul.u32 %s140, 128
      %s193 = sshra.s32 %s192, 4
      %s194 = scalar_lea.vmem %s2, %s193
      %v195 = vld [vmem:[%s194] sm:%s188]
      %196 = vst [vmem:[%s191] sm:%s188] %v195
    $region49: #{custom-call.2} parent=1 // pred_fallthru
      _
    %p198 = scmp.gt.s32.totalorder 128, 0
    // Predicated region
    $region68: #{custom-call.2} parent=1 // pred_check
      %p199 = pneg %p198
    $region69: #{custom-call.2} parent=1 // pred_check_branch
      %201 = sbr.rel (%p199) target = $region71
    $region70: #{custom-call.2} parent=1 // pred_region
      %s202 = sshra.s32 128, 3
      %p203 = scmp.gt.s32.totalorder %s202, 0
      // Predicated region
      $region72: #{custom-call.2} parent=70 // pred_check
        %p204 = pneg %p203
      $region73: #{custom-call.2} parent=70 // pred_check_branch
        %206 = sbr.rel (%p204) target = $region75
      $region74: #{custom-call.2} parent=70 // pred_region
        %s207 = ssub.s32 %s202, 1
        %s208 = smul.u32 %s207, 128
        %s209 = sshra.s32 %s208, 4
        %s210 = scalar_lea.vmem %s3, %s209
        %v211 = vld [vmem:[%s3] sm:$0xff]
        // While loop
        $region76: #{custom-call.2} parent=74 // loop_pre_header
          _
        $region77: #{custom-call.2} parent=74 // loop_header
          %s212 = sphi %s3, %s234
          %s213 = sphi [#allocation3], %s235
          %v214 = vphi %v211, %v236
          %s215 = ssub.s32 %s210, 64
          %p216 = scmp.gt.s32.totalorder %s212, %s215
        $region78: #{custom-call.2} parent=74 // loop_header_branch
          %218 = sbr.rel (%p216) target = $region82
        $region79: #{custom-call.2} parent=74 // loop_body
          %219 = vst [vmem:[%s213] sm:$0xff] %v214
          %v220 = vld [vmem:[%s212 + $0x8] sm:$0xff]
          %221 = vst [vmem:[%s213 + $0x8] sm:$0xff] %v220
          %v222 = vld [vmem:[%s212 + $0x10] sm:$0xff]
          %223 = vst [vmem:[%s213 + $0x10] sm:$0xff] %v222
          %v224 = vld [vmem:[%s212 + $0x18] sm:$0xff]
          %225 = vst [vmem:[%s213 + $0x18] sm:$0xff] %v224
          %v226 = vld [vmem:[%s212 + $0x20] sm:$0xff]
          %227 = vst [vmem:[%s213 + $0x20] sm:$0xff] %v226
          %v228 = vld [vmem:[%s212 + $0x28] sm:$0xff]
          %229 = vst [vmem:[%s213 + $0x28] sm:$0xff] %v228
          %v230 = vld [vmem:[%s212 + $0x30] sm:$0xff]
          %231 = vst [vmem:[%s213 + $0x30] sm:$0xff] %v230
          %v232 = vld [vmem:[%s212 + $0x38] sm:$0xff]
          %233 = vst [vmem:[%s213 + $0x38] sm:$0xff] %v232
        $region80: #{custom-call.2} parent=74 // loop_footer
          %s234 = scalar_lea.vmem %s212, 64
          %s235 = scalar_lea.vmem %s213, 64
          %v236 = vld [vmem:[%s212 + $0x40] sm:$0xff]
        $region81: #{custom-call.2} parent=74 // loop_footer_branch
          %237 = sbr.rel target = $region77
        $region82: #{custom-call.2} parent=74 // loop_exit
          _
        // While loop
        $region83: #{custom-call.2} parent=74 // loop_pre_header
          _
        $region84: #{custom-call.2} parent=74 // loop_header
          %s238 = sphi %s212, %s246
          %s239 = sphi %s213, %s247
          %v240 = vphi %v214, %v240
          %p241 = scmp.gt.s32.totalorder %s238, %s210
        $region85: #{custom-call.2} parent=74 // loop_header_branch
          %243 = sbr.rel (%p241) target = $region89
        $region86: #{custom-call.2} parent=74 // loop_body
          %v244 = vld [vmem:[%s238] sm:$0xff]
          %245 = vst [vmem:[%s239] sm:$0xff] %v244
        $region87: #{custom-call.2} parent=74 // loop_footer
          %s246 = scalar_lea.vmem %s238, 8
          %s247 = scalar_lea.vmem %s239, 8
        $region88: #{custom-call.2} parent=74 // loop_footer_branch
          %248 = sbr.rel target = $region84
        $region89: #{custom-call.2} parent=74 // loop_exit
          _
      $region75: #{custom-call.2} parent=70 // pred_fallthru
        _
      %s249 = sand.u32 128, 7
      %s250 = sshllo.u32 0, %s249
      %s251 = smul.u32 %s202, 128
      %s252 = sshra.s32 %s251, 4
      %s253 = scalar_lea.vmem [#allocation3], %s252
      %s254 = smul.u32 %s202, 128
      %s255 = sshra.s32 %s254, 4
      %s256 = scalar_lea.vmem %s3, %s255
      %v257 = vld [vmem:[%s256] sm:%s250]
      %258 = vst [vmem:[%s253] sm:%s250] %v257
    $region71: #{custom-call.2} parent=1 // pred_fallthru
      _
    %s259 = smov [#allocation12]
    %v260 = vld [vmem:[#allocation0] sm:$0xff]
    %261 = vst [vmem:[%s259] sm:$0xff] %v260
    %s262 = scalar_lea.vmem %s259, 8
    %s263 = scalar_lea.vmem [#allocation0], 8
    %v264 = vld [vmem:[%s263] sm:$0xff]
    %265 = vst [vmem:[%s262] sm:$0xff] %v264
    %s266 = scalar_lea.vmem %s259, 16
    %s267 = scalar_lea.vmem [#allocation0], 16
    %v268 = vld [vmem:[%s267] sm:$0xff]
    %269 = vst [vmem:[%s266] sm:$0xff] %v268
    %s270 = scalar_lea.vmem %s259, 24
    %s271 = scalar_lea.vmem [#allocation0], 24
    %v272 = vld [vmem:[%s271] sm:$0xff]
    %273 = vst [vmem:[%s270] sm:$0xff] %v272
    %s274 = scalar_lea.vmem %s259, 32
    %s275 = scalar_lea.vmem [#allocation0], 32
    %v276 = vld [vmem:[%s275] sm:$0xff]
    %277 = vst [vmem:[%s274] sm:$0xff] %v276
    %s278 = scalar_lea.vmem %s259, 40
    %s279 = scalar_lea.vmem [#allocation0], 40
    %v280 = vld [vmem:[%s279] sm:$0xff]
    %281 = vst [vmem:[%s278] sm:$0xff] %v280
    %s282 = scalar_lea.vmem %s259, 48
    %s283 = scalar_lea.vmem [#allocation0], 48
    %v284 = vld [vmem:[%s283] sm:$0xff]
    %285 = vst [vmem:[%s282] sm:$0xff] %v284
    %s286 = scalar_lea.vmem %s259, 56
    %s287 = scalar_lea.vmem [#allocation0], 56
    %v288 = vld [vmem:[%s287] sm:$0xff]
    %289 = vst [vmem:[%s286] sm:$0xff] %v288
    %s290 = scalar_lea.vmem %s259, 64
    %s291 = scalar_lea.vmem [#allocation0], 64
    %v292 = vld [vmem:[%s291] sm:$0xff]
    %293 = vst [vmem:[%s290] sm:$0xff] %v292
    %s294 = scalar_lea.vmem %s259, 72
    %s295 = scalar_lea.vmem [#allocation0], 72
    %v296 = vld [vmem:[%s295] sm:$0xff]
    %297 = vst [vmem:[%s294] sm:$0xff] %v296
    %s298 = scalar_lea.vmem %s259, 80
    %s299 = scalar_lea.vmem [#allocation0], 80
    %v300 = vld [vmem:[%s299] sm:$0xff]
    %301 = vst [vmem:[%s298] sm:$0xff] %v300
    %s302 = scalar_lea.vmem %s259, 88
    %s303 = scalar_lea.vmem [#allocation0], 88
    %v304 = vld [vmem:[%s303] sm:$0xff]
    %305 = vst [vmem:[%s302] sm:$0xff] %v304
    %s306 = scalar_lea.vmem %s259, 96
    %s307 = scalar_lea.vmem [#allocation0], 96
    %v308 = vld [vmem:[%s307] sm:$0xff]
    %309 = vst [vmem:[%s306] sm:$0xff] %v308
    %s310 = scalar_lea.vmem %s259, 104
    %s311 = scalar_lea.vmem [#allocation0], 104
    %v312 = vld [vmem:[%s311] sm:$0xff]
    %313 = vst [vmem:[%s310] sm:$0xff] %v312
    %s314 = scalar_lea.vmem %s259, 112
    %s315 = scalar_lea.vmem [#allocation0], 112
    %v316 = vld [vmem:[%s315] sm:$0xff]
    %317 = vst [vmem:[%s314] sm:$0xff] %v316
    %s318 = scalar_lea.vmem %s259, 120
    %s319 = scalar_lea.vmem [#allocation0], 120
    %v320 = vld [vmem:[%s319] sm:$0xff]
    %321 = vst [vmem:[%s318] sm:$0xff] %v320
    %s322 = smov [#allocation13]
    %v323 = vld [vmem:[#allocation1] sm:$0xff]
    %324 = vst [vmem:[%s322] sm:$0xff] %v323
    %s325 = scalar_lea.vmem %s322, 8
    %s326 = scalar_lea.vmem [#allocation1], 8
    %v327 = vld [vmem:[%s326] sm:$0xff]
    %328 = vst [vmem:[%s325] sm:$0xff] %v327
    %s329 = scalar_lea.vmem %s322, 16
    %s330 = scalar_lea.vmem [#allocation1], 16
    %v331 = vld [vmem:[%s330] sm:$0xff]
    %332 = vst [vmem:[%s329] sm:$0xff] %v331
    %s333 = scalar_lea.vmem %s322, 24
    %s334 = scalar_lea.vmem [#allocation1], 24
    %v335 = vld [vmem:[%s334] sm:$0xff]
    %336 = vst [vmem:[%s333] sm:$0xff] %v335
    %s337 = scalar_lea.vmem %s322, 32
    %s338 = scalar_lea.vmem [#allocation1], 32
    %v339 = vld [vmem:[%s338] sm:$0xff]
    %340 = vst [vmem:[%s337] sm:$0xff] %v339
    %s341 = scalar_lea.vmem %s322, 40
    %s342 = scalar_lea.vmem [#allocation1], 40
    %v343 = vld [vmem:[%s342] sm:$0xff]
    %344 = vst [vmem:[%s341] sm:$0xff] %v343
    %s345 = scalar_lea.vmem %s322, 48
    %s346 = scalar_lea.vmem [#allocation1], 48
    %v347 = vld [vmem:[%s346] sm:$0xff]
    %348 = vst [vmem:[%s345] sm:$0xff] %v347
    %s349 = scalar_lea.vmem %s322, 56
    %s350 = scalar_lea.vmem [#allocation1], 56
    %v351 = vld [vmem:[%s350] sm:$0xff]
    %352 = vst [vmem:[%s349] sm:$0xff] %v351
    %s353 = scalar_lea.vmem %s322, 64
    %s354 = scalar_lea.vmem [#allocation1], 64
    %v355 = vld [vmem:[%s354] sm:$0xff]
    %356 = vst [vmem:[%s353] sm:$0xff] %v355
    %s357 = scalar_lea.vmem %s322, 72
    %s358 = scalar_lea.vmem [#allocation1], 72
    %v359 = vld [vmem:[%s358] sm:$0xff]
    %360 = vst [vmem:[%s357] sm:$0xff] %v359
    %s361 = scalar_lea.vmem %s322, 80
    %s362 = scalar_lea.vmem [#allocation1], 80
    %v363 = vld [vmem:[%s362] sm:$0xff]
    %364 = vst [vmem:[%s361] sm:$0xff] %v363
    %s365 = scalar_lea.vmem %s322, 88
    %s366 = scalar_lea.vmem [#allocation1], 88
    %v367 = vld [vmem:[%s366] sm:$0xff]
    %368 = vst [vmem:[%s365] sm:$0xff] %v367
    %s369 = scalar_lea.vmem %s322, 96
    %s370 = scalar_lea.vmem [#allocation1], 96
    %v371 = vld [vmem:[%s370] sm:$0xff]
    %372 = vst [vmem:[%s369] sm:$0xff] %v371
    %s373 = scalar_lea.vmem %s322, 104
    %s374 = scalar_lea.vmem [#allocation1], 104
    %v375 = vld [vmem:[%s374] sm:$0xff]
    %376 = vst [vmem:[%s373] sm:$0xff] %v375
    %s377 = scalar_lea.vmem %s322, 112
    %s378 = scalar_lea.vmem [#allocation1], 112
    %v379 = vld [vmem:[%s378] sm:$0xff]
    %380 = vst [vmem:[%s377] sm:$0xff] %v379
    %s381 = scalar_lea.vmem %s322, 120
    %s382 = scalar_lea.vmem [#allocation1], 120
    %v383 = vld [vmem:[%s382] sm:$0xff]
    %384 = vst [vmem:[%s381] sm:$0xff] %v383
    %s385 = smov [#allocation14]
    %v386 = vld [vmem:[#allocation2] sm:$0xff]
    %387 = vst [vmem:[%s385] sm:$0xff] %v386
    %s388 = scalar_lea.vmem %s385, 8
    %s389 = scalar_lea.vmem [#allocation2], 8
    %v390 = vld [vmem:[%s389] sm:$0xff]
    %391 = vst [vmem:[%s388] sm:$0xff] %v390
    %s392 = scalar_lea.vmem %s385, 16
    %s393 = scalar_lea.vmem [#allocation2], 16
    %v394 = vld [vmem:[%s393] sm:$0xff]
    %395 = vst [vmem:[%s392] sm:$0xff] %v394
    %s396 = scalar_lea.vmem %s385, 24
    %s397 = scalar_lea.vmem [#allocation2], 24
    %v398 = vld [vmem:[%s397] sm:$0xff]
    %399 = vst [vmem:[%s396] sm:$0xff] %v398
    %s400 = scalar_lea.vmem %s385, 32
    %s401 = scalar_lea.vmem [#allocation2], 32
    %v402 = vld [vmem:[%s401] sm:$0xff]
    %403 = vst [vmem:[%s400] sm:$0xff] %v402
    %s404 = scalar_lea.vmem %s385, 40
    %s405 = scalar_lea.vmem [#allocation2], 40
    %v406 = vld [vmem:[%s405] sm:$0xff]
    %407 = vst [vmem:[%s404] sm:$0xff] %v406
    %s408 = scalar_lea.vmem %s385, 48
    %s409 = scalar_lea.vmem [#allocation2], 48
    %v410 = vld [vmem:[%s409] sm:$0xff]
    %411 = vst [vmem:[%s408] sm:$0xff] %v410
    %s412 = scalar_lea.vmem %s385, 56
    %s413 = scalar_lea.vmem [#allocation2], 56
    %v414 = vld [vmem:[%s413] sm:$0xff]
    %415 = vst [vmem:[%s412] sm:$0xff] %v414
    %s416 = scalar_lea.vmem %s385, 64
    %s417 = scalar_lea.vmem [#allocation2], 64
    %v418 = vld [vmem:[%s417] sm:$0xff]
    %419 = vst [vmem:[%s416] sm:$0xff] %v418
    %s420 = scalar_lea.vmem %s385, 72
    %s421 = scalar_lea.vmem [#allocation2], 72
    %v422 = vld [vmem:[%s421] sm:$0xff]
    %423 = vst [vmem:[%s420] sm:$0xff] %v422
    %s424 = scalar_lea.vmem %s385, 80
    %s425 = scalar_lea.vmem [#allocation2], 80
    %v426 = vld [vmem:[%s425] sm:$0xff]
    %427 = vst [vmem:[%s424] sm:$0xff] %v426
    %s428 = scalar_lea.vmem %s385, 88
    %s429 = scalar_lea.vmem [#allocation2], 88
    %v430 = vld [vmem:[%s429] sm:$0xff]
    %431 = vst [vmem:[%s428] sm:$0xff] %v430
    %s432 = scalar_lea.vmem %s385, 96
    %s433 = scalar_lea.vmem [#allocation2], 96
    %v434 = vld [vmem:[%s433] sm:$0xff]
    %435 = vst [vmem:[%s432] sm:$0xff] %v434
    %s436 = scalar_lea.vmem %s385, 104
    %s437 = scalar_lea.vmem [#allocation2], 104
    %v438 = vld [vmem:[%s437] sm:$0xff]
    %439 = vst [vmem:[%s436] sm:$0xff] %v438
    %s440 = scalar_lea.vmem %s385, 112
    %s441 = scalar_lea.vmem [#allocation2], 112
    %v442 = vld [vmem:[%s441] sm:$0xff]
    %443 = vst [vmem:[%s440] sm:$0xff] %v442
    %s444 = scalar_lea.vmem %s385, 120
    %s445 = scalar_lea.vmem [#allocation2], 120
    %v446 = vld [vmem:[%s445] sm:$0xff]
    %447 = vst [vmem:[%s444] sm:$0xff] %v446
    %s448 = smov [#allocation15]
    %v449 = vld [vmem:[#allocation3] sm:$0xff]
    %450 = vst [vmem:[%s448] sm:$0xff] %v449
    %s451 = scalar_lea.vmem %s448, 8
    %s452 = scalar_lea.vmem [#allocation3], 8
    %v453 = vld [vmem:[%s452] sm:$0xff]
    %454 = vst [vmem:[%s451] sm:$0xff] %v453
    %s455 = scalar_lea.vmem %s448, 16
    %s456 = scalar_lea.vmem [#allocation3], 16
    %v457 = vld [vmem:[%s456] sm:$0xff]
    %458 = vst [vmem:[%s455] sm:$0xff] %v457
    %s459 = scalar_lea.vmem %s448, 24
    %s460 = scalar_lea.vmem [#allocation3], 24
    %v461 = vld [vmem:[%s460] sm:$0xff]
    %462 = vst [vmem:[%s459] sm:$0xff] %v461
    %s463 = scalar_lea.vmem %s448, 32
    %s464 = scalar_lea.vmem [#allocation3], 32
    %v465 = vld [vmem:[%s464] sm:$0xff]
    %466 = vst [vmem:[%s463] sm:$0xff] %v465
    %s467 = scalar_lea.vmem %s448, 40
    %s468 = scalar_lea.vmem [#allocation3], 40
    %v469 = vld [vmem:[%s468] sm:$0xff]
    %470 = vst [vmem:[%s467] sm:$0xff] %v469
    %s471 = scalar_lea.vmem %s448, 48
    %s472 = scalar_lea.vmem [#allocation3], 48
    %v473 = vld [vmem:[%s472] sm:$0xff]
    %474 = vst [vmem:[%s471] sm:$0xff] %v473
    %s475 = scalar_lea.vmem %s448, 56
    %s476 = scalar_lea.vmem [#allocation3], 56
    %v477 = vld [vmem:[%s476] sm:$0xff]
    %478 = vst [vmem:[%s475] sm:$0xff] %v477
    %s479 = scalar_lea.vmem %s448, 64
    %s480 = scalar_lea.vmem [#allocation3], 64
    %v481 = vld [vmem:[%s480] sm:$0xff]
    %482 = vst [vmem:[%s479] sm:$0xff] %v481
    %s483 = scalar_lea.vmem %s448, 72
    %s484 = scalar_lea.vmem [#allocation3], 72
    %v485 = vld [vmem:[%s484] sm:$0xff]
    %486 = vst [vmem:[%s483] sm:$0xff] %v485
    %s487 = scalar_lea.vmem %s448, 80
    %s488 = scalar_lea.vmem [#allocation3], 80
    %v489 = vld [vmem:[%s488] sm:$0xff]
    %490 = vst [vmem:[%s487] sm:$0xff] %v489
    %s491 = scalar_lea.vmem %s448, 88
    %s492 = scalar_lea.vmem [#allocation3], 88
    %v493 = vld [vmem:[%s492] sm:$0xff]
    %494 = vst [vmem:[%s491] sm:$0xff] %v493
    %s495 = scalar_lea.vmem %s448, 96
    %s496 = scalar_lea.vmem [#allocation3], 96
    %v497 = vld [vmem:[%s496] sm:$0xff]
    %498 = vst [vmem:[%s495] sm:$0xff] %v497
    %s499 = scalar_lea.vmem %s448, 104
    %s500 = scalar_lea.vmem [#allocation3], 104
    %v501 = vld [vmem:[%s500] sm:$0xff]
    %502 = vst [vmem:[%s499] sm:$0xff] %v501
    %s503 = scalar_lea.vmem %s448, 112
    %s504 = scalar_lea.vmem [#allocation3], 112
    %v505 = vld [vmem:[%s504] sm:$0xff]
    %506 = vst [vmem:[%s503] sm:$0xff] %v505
    %s507 = scalar_lea.vmem %s448, 120
    %s508 = scalar_lea.vmem [#allocation3], 120
    %v509 = vld [vmem:[%s508] sm:$0xff]
    %510 = vst [vmem:[%s507] sm:$0xff] %v509
    %511 = vst [vmem:[#allocation8] sm:$0xff] 0.0
    %s512 = scalar_lea.vmem [#allocation8], 8
    %513 = vst [vmem:[%s512] sm:$0xff] 0.0
    %s514 = scalar_lea.vmem [#allocation8], 16
    %515 = vst [vmem:[%s514] sm:$0xff] 0.0
    %s516 = scalar_lea.vmem [#allocation8], 24
    %517 = vst [vmem:[%s516] sm:$0xff] 0.0
    %s518 = scalar_lea.vmem [#allocation8], 32
    %519 = vst [vmem:[%s518] sm:$0xff] 0.0
    %s520 = scalar_lea.vmem [#allocation8], 40
    %521 = vst [vmem:[%s520] sm:$0xff] 0.0
    %s522 = scalar_lea.vmem [#allocation8], 48
    %523 = vst [vmem:[%s522] sm:$0xff] 0.0
    %s524 = scalar_lea.vmem [#allocation8], 56
    %525 = vst [vmem:[%s524] sm:$0xff] 0.0
    %s526 = scalar_lea.vmem [#allocation8], 64
    %527 = vst [vmem:[%s526] sm:$0xff] 0.0
    %s528 = scalar_lea.vmem [#allocation8], 72
    %529 = vst [vmem:[%s528] sm:$0xff] 0.0
    %s530 = scalar_lea.vmem [#allocation8], 80
    %531 = vst [vmem:[%s530] sm:$0xff] 0.0
    %s532 = scalar_lea.vmem [#allocation8], 88
    %533 = vst [vmem:[%s532] sm:$0xff] 0.0
    %s534 = scalar_lea.vmem [#allocation8], 96
    %535 = vst [vmem:[%s534] sm:$0xff] 0.0
    %s536 = scalar_lea.vmem [#allocation8], 104
    %537 = vst [vmem:[%s536] sm:$0xff] 0.0
    %s538 = scalar_lea.vmem [#allocation8], 112
    %539 = vst [vmem:[%s538] sm:$0xff] 0.0
    %s540 = scalar_lea.vmem [#allocation8], 120
    %541 = vst [vmem:[%s540] sm:$0xff] 0.0
    %542 = vst [vmem:[#allocation9] sm:$0xff] 0.0
    %s543 = scalar_lea.vmem [#allocation9], 8
    %544 = vst [vmem:[%s543] sm:$0xff] 0.0
    %s545 = scalar_lea.vmem [#allocation9], 16
    %546 = vst [vmem:[%s545] sm:$0xff] 0.0
    %s547 = scalar_lea.vmem [#allocation9], 24
    %548 = vst [vmem:[%s547] sm:$0xff] 0.0
    %s549 = scalar_lea.vmem [#allocation9], 32
    %550 = vst [vmem:[%s549] sm:$0xff] 0.0
    %s551 = scalar_lea.vmem [#allocation9], 40
    %552 = vst [vmem:[%s551] sm:$0xff] 0.0
    %s553 = scalar_lea.vmem [#allocation9], 48
    %554 = vst [vmem:[%s553] sm:$0xff] 0.0
    %s555 = scalar_lea.vmem [#allocation9], 56
    %556 = vst [vmem:[%s555] sm:$0xff] 0.0
    %s557 = scalar_lea.vmem [#allocation9], 64
    %558 = vst [vmem:[%s557] sm:$0xff] 0.0
    %s559 = scalar_lea.vmem [#allocation9], 72
    %560 = vst [vmem:[%s559] sm:$0xff] 0.0
    %s561 = scalar_lea.vmem [#allocation9], 80
    %562 = vst [vmem:[%s561] sm:$0xff] 0.0
    %s563 = scalar_lea.vmem [#allocation9], 88
    %564 = vst [vmem:[%s563] sm:$0xff] 0.0
    %s565 = scalar_lea.vmem [#allocation9], 96
    %566 = vst [vmem:[%s565] sm:$0xff] 0.0
    %s567 = scalar_lea.vmem [#allocation9], 104
    %568 = vst [vmem:[%s567] sm:$0xff] 0.0
    %s569 = scalar_lea.vmem [#allocation9], 112
    %570 = vst [vmem:[%s569] sm:$0xff] 0.0
    %s571 = scalar_lea.vmem [#allocation9], 120
    %572 = vst [vmem:[%s571] sm:$0xff] 0.0
    %573 = vst [vmem:[#allocation10] sm:$0xff] 0.0
    %s574 = scalar_lea.vmem [#allocation10], 8
    %575 = vst [vmem:[%s574] sm:$0xff] 0.0
    %s576 = scalar_lea.vmem [#allocation10], 16
    %577 = vst [vmem:[%s576] sm:$0xff] 0.0
    %s578 = scalar_lea.vmem [#allocation10], 24
    %579 = vst [vmem:[%s578] sm:$0xff] 0.0
    %s580 = scalar_lea.vmem [#allocation10], 32
    %581 = vst [vmem:[%s580] sm:$0xff] 0.0
    %s582 = scalar_lea.vmem [#allocation10], 40
    %583 = vst [vmem:[%s582] sm:$0xff] 0.0
    %s584 = scalar_lea.vmem [#allocation10], 48
    %585 = vst [vmem:[%s584] sm:$0xff] 0.0
    %s586 = scalar_lea.vmem [#allocation10], 56
    %587 = vst [vmem:[%s586] sm:$0xff] 0.0
    %s588 = scalar_lea.vmem [#allocation10], 64
    %589 = vst [vmem:[%s588] sm:$0xff] 0.0
    %s590 = scalar_lea.vmem [#allocation10], 72
    %591 = vst [vmem:[%s590] sm:$0xff] 0.0
    %s592 = scalar_lea.vmem [#allocation10], 80
    %593 = vst [vmem:[%s592] sm:$0xff] 0.0
    %s594 = scalar_lea.vmem [#allocation10], 88
    %595 = vst [vmem:[%s594] sm:$0xff] 0.0
    %s596 = scalar_lea.vmem [#allocation10], 96
    %597 = vst [vmem:[%s596] sm:$0xff] 0.0
    %s598 = scalar_lea.vmem [#allocation10], 104
    %599 = vst [vmem:[%s598] sm:$0xff] 0.0
    %s600 = scalar_lea.vmem [#allocation10], 112
    %601 = vst [vmem:[%s600] sm:$0xff] 0.0
    %s602 = scalar_lea.vmem [#allocation10], 120
    %603 = vst [vmem:[%s602] sm:$0xff] 0.0
    %604 = vst [vmem:[#allocation11] sm:$0xff] 0.0
    %s605 = scalar_lea.vmem [#allocation11], 8
    %606 = vst [vmem:[%s605] sm:$0xff] 0.0
    %s607 = scalar_lea.vmem [#allocation11], 16
    %608 = vst [vmem:[%s607] sm:$0xff] 0.0
    %s609 = scalar_lea.vmem [#allocation11], 24
    %610 = vst [vmem:[%s609] sm:$0xff] 0.0
    %s611 = scalar_lea.vmem [#allocation11], 32
    %612 = vst [vmem:[%s611] sm:$0xff] 0.0
    %s613 = scalar_lea.vmem [#allocation11], 40
    %614 = vst [vmem:[%s613] sm:$0xff] 0.0
    %s615 = scalar_lea.vmem [#allocation11], 48
    %616 = vst [vmem:[%s615] sm:$0xff] 0.0
    %s617 = scalar_lea.vmem [#allocation11], 56
    %618 = vst [vmem:[%s617] sm:$0xff] 0.0
    %s619 = scalar_lea.vmem [#allocation11], 64
    %620 = vst [vmem:[%s619] sm:$0xff] 0.0
    %s621 = scalar_lea.vmem [#allocation11], 72
    %622 = vst [vmem:[%s621] sm:$0xff] 0.0
    %s623 = scalar_lea.vmem [#allocation11], 80
    %624 = vst [vmem:[%s623] sm:$0xff] 0.0
    %s625 = scalar_lea.vmem [#allocation11], 88
    %626 = vst [vmem:[%s625] sm:$0xff] 0.0
    %s627 = scalar_lea.vmem [#allocation11], 96
    %628 = vst [vmem:[%s627] sm:$0xff] 0.0
    %s629 = scalar_lea.vmem [#allocation11], 104
    %630 = vst [vmem:[%s629] sm:$0xff] 0.0
    %s631 = scalar_lea.vmem [#allocation11], 112
    %632 = vst [vmem:[%s631] sm:$0xff] 0.0
    %s633 = scalar_lea.vmem [#allocation11], 120
    %634 = vst [vmem:[%s633] sm:$0xff] 0.0
    %s635 = smov [#allocation8]
    %v636 = vlaneseq
    %v637 = vand.u32 %v636, 127
    %v638 = vmov %v637
    %v639 = vlaneseq
    %v640 = vshrl.u32 %v639, 7
    %v641 = vmov %v640
    %v642 = vld [vmem:[%s635] sm:$0xff]
    %vm645 = vcmp.eq.s32.totalorder %v641, %v638
    %v646 = vsel %vm645, 1.0, %v642
    %647 = vst [vmem:[%s635] sm:$0xff] %v646
    %s648 = scalar_lea.vmem %s635, 8
    %v649 = vld [vmem:[%s648] sm:$0xff]
    %v651 = vadd.s32 %v641, 8
    %vm652 = vcmp.eq.s32.totalorder %v651, %v638
    %v653 = vsel %vm652, 1.0, %v649
    %654 = vst [vmem:[%s648] sm:$0xff] %v653
    %s655 = scalar_lea.vmem %s635, 16
    %v656 = vld [vmem:[%s655] sm:$0xff]
    %v658 = vadd.s32 %v641, 16
    %vm659 = vcmp.eq.s32.totalorder %v658, %v638
    %v660 = vsel %vm659, 1.0, %v656
    %661 = vst [vmem:[%s655] sm:$0xff] %v660
    %s662 = scalar_lea.vmem %s635, 24
    %v663 = vld [vmem:[%s662] sm:$0xff]
    %v665 = vadd.s32 %v641, 24
    %vm666 = vcmp.eq.s32.totalorder %v665, %v638
    %v667 = vsel %vm666, 1.0, %v663
    %668 = vst [vmem:[%s662] sm:$0xff] %v667
    %s669 = scalar_lea.vmem %s635, 32
    %v670 = vld [vmem:[%s669] sm:$0xff]
    %v672 = vadd.s32 %v641, 32
    %vm673 = vcmp.eq.s32.totalorder %v672, %v638
    %v674 = vsel %vm673, 1.0, %v670
    %675 = vst [vmem:[%s669] sm:$0xff] %v674
    %s676 = scalar_lea.vmem %s635, 40
    %v677 = vld [vmem:[%s676] sm:$0xff]
    %v679 = vadd.s32 %v641, 40
    %vm680 = vcmp.eq.s32.totalorder %v679, %v638
    %v681 = vsel %vm680, 1.0, %v677
    %682 = vst [vmem:[%s676] sm:$0xff] %v681
    %s683 = scalar_lea.vmem %s635, 48
    %v684 = vld [vmem:[%s683] sm:$0xff]
    %v686 = vadd.s32 %v641, 48
    %vm687 = vcmp.eq.s32.totalorder %v686, %v638
    %v688 = vsel %vm687, 1.0, %v684
    %689 = vst [vmem:[%s683] sm:$0xff] %v688
    %s690 = scalar_lea.vmem %s635, 56
    %v691 = vld [vmem:[%s690] sm:$0xff]
    %v693 = vadd.s32 %v641, 56
    %vm694 = vcmp.eq.s32.totalorder %v693, %v638
    %v695 = vsel %vm694, 1.0, %v691
    %696 = vst [vmem:[%s690] sm:$0xff] %v695
    %s697 = scalar_lea.vmem %s635, 64
    %v698 = vld [vmem:[%s697] sm:$0xff]
    %v700 = vadd.s32 %v641, 64
    %vm701 = vcmp.eq.s32.totalorder %v700, %v638
    %v702 = vsel %vm701, 1.0, %v698
    %703 = vst [vmem:[%s697] sm:$0xff] %v702
    %s704 = scalar_lea.vmem %s635, 72
    %v705 = vld [vmem:[%s704] sm:$0xff]
    %v707 = vadd.s32 %v641, 72
    %vm708 = vcmp.eq.s32.totalorder %v707, %v638
    %v709 = vsel %vm708, 1.0, %v705
    %710 = vst [vmem:[%s704] sm:$0xff] %v709
    %s711 = scalar_lea.vmem %s635, 80
    %v712 = vld [vmem:[%s711] sm:$0xff]
    %v714 = vadd.s32 %v641, 80
    %vm715 = vcmp.eq.s32.totalorder %v714, %v638
    %v716 = vsel %vm715, 1.0, %v712
    %717 = vst [vmem:[%s711] sm:$0xff] %v716
    %s718 = scalar_lea.vmem %s635, 88
    %v719 = vld [vmem:[%s718] sm:$0xff]
    %v721 = vadd.s32 %v641, 88
    %vm722 = vcmp.eq.s32.totalorder %v721, %v638
    %v723 = vsel %vm722, 1.0, %v719
    %724 = vst [vmem:[%s718] sm:$0xff] %v723
    %s725 = scalar_lea.vmem %s635, 96
    %v726 = vld [vmem:[%s725] sm:$0xff]
    %v728 = vadd.s32 %v641, 96
    %vm729 = vcmp.eq.s32.totalorder %v728, %v638
    %v730 = vsel %vm729, 1.0, %v726
    %731 = vst [vmem:[%s725] sm:$0xff] %v730
    %s732 = scalar_lea.vmem %s635, 104
    %v733 = vld [vmem:[%s732] sm:$0xff]
    %v735 = vadd.s32 %v641, 104
    %vm736 = vcmp.eq.s32.totalorder %v735, %v638
    %v737 = vsel %vm736, 1.0, %v733
    %738 = vst [vmem:[%s732] sm:$0xff] %v737
    %s739 = scalar_lea.vmem %s635, 112
    %v740 = vld [vmem:[%s739] sm:$0xff]
    %v742 = vadd.s32 %v641, 112
    %vm743 = vcmp.eq.s32.totalorder %v742, %v638
    %v744 = vsel %vm743, 1.0, %v740
    %745 = vst [vmem:[%s739] sm:$0xff] %v744
    %s746 = scalar_lea.vmem %s635, 120
    %v747 = vld [vmem:[%s746] sm:$0xff]
    %v749 = vadd.s32 %v641, 120
    %vm750 = vcmp.eq.s32.totalorder %v749, %v638
    %v751 = vsel %vm750, 1.0, %v747
    %752 = vst [vmem:[%s746] sm:$0xff] %v751
    %s753 = smov [#allocation11]
    %v754 = vlaneseq
    %v755 = vand.u32 %v754, 127
    %v756 = vmov %v755
    %v757 = vlaneseq
    %v758 = vshrl.u32 %v757, 7
    %v759 = vmov %v758
    %v760 = vld [vmem:[%s753] sm:$0xff]
    %vm763 = vcmp.eq.s32.totalorder %v759, %v756
    %v764 = vsel %vm763, 1.0, %v760
    %765 = vst [vmem:[%s753] sm:$0xff] %v764
    %s766 = scalar_lea.vmem %s753, 8
    %v767 = vld [vmem:[%s766] sm:$0xff]
    %v769 = vadd.s32 %v759, 8
    %vm770 = vcmp.eq.s32.totalorder %v769, %v756
    %v771 = vsel %vm770, 1.0, %v767
    %772 = vst [vmem:[%s766] sm:$0xff] %v771
    %s773 = scalar_lea.vmem %s753, 16
    %v774 = vld [vmem:[%s773] sm:$0xff]
    %v776 = vadd.s32 %v759, 16
    %vm777 = vcmp.eq.s32.totalorder %v776, %v756
    %v778 = vsel %vm777, 1.0, %v774
    %779 = vst [vmem:[%s773] sm:$0xff] %v778
    %s780 = scalar_lea.vmem %s753, 24
    %v781 = vld [vmem:[%s780] sm:$0xff]
    %v783 = vadd.s32 %v759, 24
    %vm784 = vcmp.eq.s32.totalorder %v783, %v756
    %v785 = vsel %vm784, 1.0, %v781
    %786 = vst [vmem:[%s780] sm:$0xff] %v785
    %s787 = scalar_lea.vmem %s753, 32
    %v788 = vld [vmem:[%s787] sm:$0xff]
    %v790 = vadd.s32 %v759, 32
    %vm791 = vcmp.eq.s32.totalorder %v790, %v756
    %v792 = vsel %vm791, 1.0, %v788
    %793 = vst [vmem:[%s787] sm:$0xff] %v792
    %s794 = scalar_lea.vmem %s753, 40
    %v795 = vld [vmem:[%s794] sm:$0xff]
    %v797 = vadd.s32 %v759, 40
    %vm798 = vcmp.eq.s32.totalorder %v797, %v756
    %v799 = vsel %vm798, 1.0, %v795
    %800 = vst [vmem:[%s794] sm:$0xff] %v799
    %s801 = scalar_lea.vmem %s753, 48
    %v802 = vld [vmem:[%s801] sm:$0xff]
    %v804 = vadd.s32 %v759, 48
    %vm805 = vcmp.eq.s32.totalorder %v804, %v756
    %v806 = vsel %vm805, 1.0, %v802
    %807 = vst [vmem:[%s801] sm:$0xff] %v806
    %s808 = scalar_lea.vmem %s753, 56
    %v809 = vld [vmem:[%s808] sm:$0xff]
    %v811 = vadd.s32 %v759, 56
    %vm812 = vcmp.eq.s32.totalorder %v811, %v756
    %v813 = vsel %vm812, 1.0, %v809
    %814 = vst [vmem:[%s808] sm:$0xff] %v813
    %s815 = scalar_lea.vmem %s753, 64
    %v816 = vld [vmem:[%s815] sm:$0xff]
    %v818 = vadd.s32 %v759, 64
    %vm819 = vcmp.eq.s32.totalorder %v818, %v756
    %v820 = vsel %vm819, 1.0, %v816
    %821 = vst [vmem:[%s815] sm:$0xff] %v820
    %s822 = scalar_lea.vmem %s753, 72
    %v823 = vld [vmem:[%s822] sm:$0xff]
    %v825 = vadd.s32 %v759, 72
    %vm826 = vcmp.eq.s32.totalorder %v825, %v756
    %v827 = vsel %vm826, 1.0, %v823
    %828 = vst [vmem:[%s822] sm:$0xff] %v827
    %s829 = scalar_lea.vmem %s753, 80
    %v830 = vld [vmem:[%s829] sm:$0xff]
    %v832 = vadd.s32 %v759, 80
    %vm833 = vcmp.eq.s32.totalorder %v832, %v756
    %v834 = vsel %vm833, 1.0, %v830
    %835 = vst [vmem:[%s829] sm:$0xff] %v834
    %s836 = scalar_lea.vmem %s753, 88
    %v837 = vld [vmem:[%s836] sm:$0xff]
    %v839 = vadd.s32 %v759, 88
    %vm840 = vcmp.eq.s32.totalorder %v839, %v756
    %v841 = vsel %vm840, 1.0, %v837
    %842 = vst [vmem:[%s836] sm:$0xff] %v841
    %s843 = scalar_lea.vmem %s753, 96
    %v844 = vld [vmem:[%s843] sm:$0xff]
    %v846 = vadd.s32 %v759, 96
    %vm847 = vcmp.eq.s32.totalorder %v846, %v756
    %v848 = vsel %vm847, 1.0, %v844
    %849 = vst [vmem:[%s843] sm:$0xff] %v848
    %s850 = scalar_lea.vmem %s753, 104
    %v851 = vld [vmem:[%s850] sm:$0xff]
    %v853 = vadd.s32 %v759, 104
    %vm854 = vcmp.eq.s32.totalorder %v853, %v756
    %v855 = vsel %vm854, 1.0, %v851
    %856 = vst [vmem:[%s850] sm:$0xff] %v855
    %s857 = scalar_lea.vmem %s753, 112
    %v858 = vld [vmem:[%s857] sm:$0xff]
    %v860 = vadd.s32 %v759, 112
    %vm861 = vcmp.eq.s32.totalorder %v860, %v756
    %v862 = vsel %vm861, 1.0, %v858
    %863 = vst [vmem:[%s857] sm:$0xff] %v862
    %s864 = scalar_lea.vmem %s753, 120
    %v865 = vld [vmem:[%s864] sm:$0xff]
    %v867 = vadd.s32 %v759, 120
    %vm868 = vcmp.eq.s32.totalorder %v867, %v756
    %v869 = vsel %vm868, 1.0, %v865
    %870 = vst [vmem:[%s864] sm:$0xff] %v869
    // While loop
    $region90: #{custom-call.2} parent=1 // loop_pre_header
      _
    $region91: #{custom-call.2} parent=1 // loop_header
      %s872 = sphi 0, %s6670
      %v873 = vlaneseq
      %v874 = vand.u32 %v873, 127
      %v875 = vmov %v874
      %v876 = vlaneseq
      %v877 = vshrl.u32 %v876, 7
      %v878 = vmov %v877
      %s879 = smov [#allocation12]
      %v880 = vld [vmem:[%s879] sm:$0xff]
      %v881 = vmul.f32 %v880, %v880
      %vm884 = vcmp.eq.s32.totalorder %v878, %v875
      %v885 = vsel %vm884, 0.0, %v881
      %s886 = scalar_lea.vmem %s879, 8
      %v887 = vld [vmem:[%s886] sm:$0xff]
      %v888 = vmul.f32 %v887, %v887
      %v890 = vadd.s32 %v878, 8
      %vm891 = vcmp.eq.s32.totalorder %v890, %v875
      %v892 = vsel %vm891, 0.0, %v888
      %v893 = vadd.f32 %v885, %v892
      %v894 = vadd.f32 %v881, %v888
      %s895 = scalar_lea.vmem %s879, 16
      %v896 = vld [vmem:[%s895] sm:$0xff]
      %v897 = vmul.f32 %v896, %v896
      %v899 = vadd.s32 %v878, 16
      %vm900 = vcmp.eq.s32.totalorder %v899, %v875
      %v901 = vsel %vm900, 0.0, %v897
      %v902 = vadd.f32 %v893, %v901
      %v903 = vadd.f32 %v894, %v897
      %s904 = scalar_lea.vmem %s879, 24
      %v905 = vld [vmem:[%s904] sm:$0xff]
      %v906 = vmul.f32 %v905, %v905
      %v908 = vadd.s32 %v878, 24
      %vm909 = vcmp.eq.s32.totalorder %v908, %v875
      %v910 = vsel %vm909, 0.0, %v906
      %v911 = vadd.f32 %v902, %v910
      %v912 = vadd.f32 %v903, %v906
      %s913 = scalar_lea.vmem %s879, 32
      %v914 = vld [vmem:[%s913] sm:$0xff]
      %v915 = vmul.f32 %v914, %v914
      %v917 = vadd.s32 %v878, 32
      %vm918 = vcmp.eq.s32.totalorder %v917, %v875
      %v919 = vsel %vm918, 0.0, %v915
      %v920 = vadd.f32 %v911, %v919
      %v921 = vadd.f32 %v912, %v915
      %s922 = scalar_lea.vmem %s879, 40
      %v923 = vld [vmem:[%s922] sm:$0xff]
      %v924 = vmul.f32 %v923, %v923
      %v926 = vadd.s32 %v878, 40
      %vm927 = vcmp.eq.s32.totalorder %v926, %v875
      %v928 = vsel %vm927, 0.0, %v924
      %v929 = vadd.f32 %v920, %v928
      %v930 = vadd.f32 %v921, %v924
      %s931 = scalar_lea.vmem %s879, 48
      %v932 = vld [vmem:[%s931] sm:$0xff]
      %v933 = vmul.f32 %v932, %v932
      %v935 = vadd.s32 %v878, 48
      %vm936 = vcmp.eq.s32.totalorder %v935, %v875
      %v937 = vsel %vm936, 0.0, %v933
      %v938 = vadd.f32 %v929, %v937
      %v939 = vadd.f32 %v930, %v933
      %s940 = scalar_lea.vmem %s879, 56
      %v941 = vld [vmem:[%s940] sm:$0xff]
      %v942 = vmul.f32 %v941, %v941
      %v944 = vadd.s32 %v878, 56
      %vm945 = vcmp.eq.s32.totalorder %v944, %v875
      %v946 = vsel %vm945, 0.0, %v942
      %v947 = vadd.f32 %v938, %v946
      %v948 = vadd.f32 %v939, %v942
      %s949 = scalar_lea.vmem %s879, 64
      %v950 = vld [vmem:[%s949] sm:$0xff]
      %v951 = vmul.f32 %v950, %v950
      %v953 = vadd.s32 %v878, 64
      %vm954 = vcmp.eq.s32.totalorder %v953, %v875
      %v955 = vsel %vm954, 0.0, %v951
      %v956 = vadd.f32 %v947, %v955
      %v957 = vadd.f32 %v948, %v951
      %s958 = scalar_lea.vmem %s879, 72
      %v959 = vld [vmem:[%s958] sm:$0xff]
      %v960 = vmul.f32 %v959, %v959
      %v962 = vadd.s32 %v878, 72
      %vm963 = vcmp.eq.s32.totalorder %v962, %v875
      %v964 = vsel %vm963, 0.0, %v960
      %v965 = vadd.f32 %v956, %v964
      %v966 = vadd.f32 %v957, %v960
      %s967 = scalar_lea.vmem %s879, 80
      %v968 = vld [vmem:[%s967] sm:$0xff]
      %v969 = vmul.f32 %v968, %v968
      %v971 = vadd.s32 %v878, 80
      %vm972 = vcmp.eq.s32.totalorder %v971, %v875
      %v973 = vsel %vm972, 0.0, %v969
      %v974 = vadd.f32 %v965, %v973
      %v975 = vadd.f32 %v966, %v969
      %s976 = scalar_lea.vmem %s879, 88
      %v977 = vld [vmem:[%s976] sm:$0xff]
      %v978 = vmul.f32 %v977, %v977
      %v980 = vadd.s32 %v878, 88
      %vm981 = vcmp.eq.s32.totalorder %v980, %v875
      %v982 = vsel %vm981, 0.0, %v978
      %v983 = vadd.f32 %v974, %v982
      %v984 = vadd.f32 %v975, %v978
      %s985 = scalar_lea.vmem %s879, 96
      %v986 = vld [vmem:[%s985] sm:$0xff]
      %v987 = vmul.f32 %v986, %v986
      %v989 = vadd.s32 %v878, 96
      %vm990 = vcmp.eq.s32.totalorder %v989, %v875
      %v991 = vsel %vm990, 0.0, %v987
      %v992 = vadd.f32 %v983, %v991
      %v993 = vadd.f32 %v984, %v987
      %s994 = scalar_lea.vmem %s879, 104
      %v995 = vld [vmem:[%s994] sm:$0xff]
      %v996 = vmul.f32 %v995, %v995
      %v998 = vadd.s32 %v878, 104
      %vm999 = vcmp.eq.s32.totalorder %v998, %v875
      %v1000 = vsel %vm999, 0.0, %v996
      %v1001 = vadd.f32 %v992, %v1000
      %v1002 = vadd.f32 %v993, %v996
      %s1003 = scalar_lea.vmem %s879, 112
      %v1004 = vld [vmem:[%s1003] sm:$0xff]
      %v1005 = vmul.f32 %v1004, %v1004
      %v1007 = vadd.s32 %v878, 112
      %vm1008 = vcmp.eq.s32.totalorder %v1007, %v875
      %v1009 = vsel %vm1008, 0.0, %v1005
      %v1010 = vadd.f32 %v1001, %v1009
      %v1011 = vadd.f32 %v1002, %v1005
      %s1012 = scalar_lea.vmem %s879, 120
      %v1013 = vld [vmem:[%s1012] sm:$0xff]
      %v1014 = vmul.f32 %v1013, %v1013
      %v1016 = vadd.s32 %v878, 120
      %vm1017 = vcmp.eq.s32.totalorder %v1016, %v875
      %v1018 = vsel %vm1017, 0.0, %v1014
      %v1019 = vadd.f32 %v1010, %v1018
      %v1020 = vadd.f32 %v1011, %v1014
      %v1021 = vlaneseq
      %v1022 = vand.u32 %v1021, 127
      %v1023 = vmov %v1022
      %v1024 = vlaneseq
      %v1025 = vshrl.u32 %v1024, 7
      %v1026 = vmov %v1025
      %s1027 = smov [#allocation13]
      %v1028 = vld [vmem:[%s1027] sm:$0xff]
      %v1029 = vmul.f32 %v1028, %v1028
      %v1030 = vadd.f32 %v1019, %v1029
      %v1031 = vadd.f32 %v1020, %v1029
      %s1032 = scalar_lea.vmem %s1027, 8
      %v1033 = vld [vmem:[%s1032] sm:$0xff]
      %v1034 = vmul.f32 %v1033, %v1033
      %v1035 = vadd.f32 %v1030, %v1034
      %v1036 = vadd.f32 %v1031, %v1034
      %s1037 = scalar_lea.vmem %s1027, 16
      %v1038 = vld [vmem:[%s1037] sm:$0xff]
      %v1039 = vmul.f32 %v1038, %v1038
      %v1040 = vadd.f32 %v1035, %v1039
      %v1041 = vadd.f32 %v1036, %v1039
      %s1042 = scalar_lea.vmem %s1027, 24
      %v1043 = vld [vmem:[%s1042] sm:$0xff]
      %v1044 = vmul.f32 %v1043, %v1043
      %v1045 = vadd.f32 %v1040, %v1044
      %v1046 = vadd.f32 %v1041, %v1044
      %s1047 = scalar_lea.vmem %s1027, 32
      %v1048 = vld [vmem:[%s1047] sm:$0xff]
      %v1049 = vmul.f32 %v1048, %v1048
      %v1050 = vadd.f32 %v1045, %v1049
      %v1051 = vadd.f32 %v1046, %v1049
      %s1052 = scalar_lea.vmem %s1027, 40
      %v1053 = vld [vmem:[%s1052] sm:$0xff]
      %v1054 = vmul.f32 %v1053, %v1053
      %v1055 = vadd.f32 %v1050, %v1054
      %v1056 = vadd.f32 %v1051, %v1054
      %s1057 = scalar_lea.vmem %s1027, 48
      %v1058 = vld [vmem:[%s1057] sm:$0xff]
      %v1059 = vmul.f32 %v1058, %v1058
      %v1060 = vadd.f32 %v1055, %v1059
      %v1061 = vadd.f32 %v1056, %v1059
      %s1062 = scalar_lea.vmem %s1027, 56
      %v1063 = vld [vmem:[%s1062] sm:$0xff]
      %v1064 = vmul.f32 %v1063, %v1063
      %v1065 = vadd.f32 %v1060, %v1064
      %v1066 = vadd.f32 %v1061, %v1064
      %s1067 = scalar_lea.vmem %s1027, 64
      %v1068 = vld [vmem:[%s1067] sm:$0xff]
      %v1069 = vmul.f32 %v1068, %v1068
      %v1070 = vadd.f32 %v1065, %v1069
      %v1071 = vadd.f32 %v1066, %v1069
      %s1072 = scalar_lea.vmem %s1027, 72
      %v1073 = vld [vmem:[%s1072] sm:$0xff]
      %v1074 = vmul.f32 %v1073, %v1073
      %v1075 = vadd.f32 %v1070, %v1074
      %v1076 = vadd.f32 %v1071, %v1074
      %s1077 = scalar_lea.vmem %s1027, 80
      %v1078 = vld [vmem:[%s1077] sm:$0xff]
      %v1079 = vmul.f32 %v1078, %v1078
      %v1080 = vadd.f32 %v1075, %v1079
      %v1081 = vadd.f32 %v1076, %v1079
      %s1082 = scalar_lea.vmem %s1027, 88
      %v1083 = vld [vmem:[%s1082] sm:$0xff]
      %v1084 = vmul.f32 %v1083, %v1083
      %v1085 = vadd.f32 %v1080, %v1084
      %v1086 = vadd.f32 %v1081, %v1084
      %s1087 = scalar_lea.vmem %s1027, 96
      %v1088 = vld [vmem:[%s1087] sm:$0xff]
      %v1089 = vmul.f32 %v1088, %v1088
      %v1090 = vadd.f32 %v1085, %v1089
      %v1091 = vadd.f32 %v1086, %v1089
      %s1092 = scalar_lea.vmem %s1027, 104
      %v1093 = vld [vmem:[%s1092] sm:$0xff]
      %v1094 = vmul.f32 %v1093, %v1093
      %v1095 = vadd.f32 %v1090, %v1094
      %v1096 = vadd.f32 %v1091, %v1094
      %s1097 = scalar_lea.vmem %s1027, 112
      %v1098 = vld [vmem:[%s1097] sm:$0xff]
      %v1099 = vmul.f32 %v1098, %v1098
      %v1100 = vadd.f32 %v1095, %v1099
      %v1101 = vadd.f32 %v1096, %v1099
      %s1102 = scalar_lea.vmem %s1027, 120
      %v1103 = vld [vmem:[%s1102] sm:$0xff]
      %v1104 = vmul.f32 %v1103, %v1103
      %v1105 = vadd.f32 %v1100, %v1104
      %v1106 = vadd.f32 %v1101, %v1104
      %v1107 = vlaneseq
      %v1108 = vand.u32 %v1107, 127
      %v1109 = vmov %v1108
      %v1110 = vlaneseq
      %v1111 = vshrl.u32 %v1110, 7
      %v1112 = vmov %v1111
      %s1113 = smov [#allocation14]
      %v1114 = vld [vmem:[%s1113] sm:$0xff]
      %v1115 = vmul.f32 %v1114, %v1114
      %v1116 = vadd.f32 %v1105, %v1115
      %v1117 = vadd.f32 %v1106, %v1115
      %s1118 = scalar_lea.vmem %s1113, 8
      %v1119 = vld [vmem:[%s1118] sm:$0xff]
      %v1120 = vmul.f32 %v1119, %v1119
      %v1121 = vadd.f32 %v1116, %v1120
      %v1122 = vadd.f32 %v1117, %v1120
      %s1123 = scalar_lea.vmem %s1113, 16
      %v1124 = vld [vmem:[%s1123] sm:$0xff]
      %v1125 = vmul.f32 %v1124, %v1124
      %v1126 = vadd.f32 %v1121, %v1125
      %v1127 = vadd.f32 %v1122, %v1125
      %s1128 = scalar_lea.vmem %s1113, 24
      %v1129 = vld [vmem:[%s1128] sm:$0xff]
      %v1130 = vmul.f32 %v1129, %v1129
      %v1131 = vadd.f32 %v1126, %v1130
      %v1132 = vadd.f32 %v1127, %v1130
      %s1133 = scalar_lea.vmem %s1113, 32
      %v1134 = vld [vmem:[%s1133] sm:$0xff]
      %v1135 = vmul.f32 %v1134, %v1134
      %v1136 = vadd.f32 %v1131, %v1135
      %v1137 = vadd.f32 %v1132, %v1135
      %s1138 = scalar_lea.vmem %s1113, 40
      %v1139 = vld [vmem:[%s1138] sm:$0xff]
      %v1140 = vmul.f32 %v1139, %v1139
      %v1141 = vadd.f32 %v1136, %v1140
      %v1142 = vadd.f32 %v1137, %v1140
      %s1143 = scalar_lea.vmem %s1113, 48
      %v1144 = vld [vmem:[%s1143] sm:$0xff]
      %v1145 = vmul.f32 %v1144, %v1144
      %v1146 = vadd.f32 %v1141, %v1145
      %v1147 = vadd.f32 %v1142, %v1145
      %s1148 = scalar_lea.vmem %s1113, 56
      %v1149 = vld [vmem:[%s1148] sm:$0xff]
      %v1150 = vmul.f32 %v1149, %v1149
      %v1151 = vadd.f32 %v1146, %v1150
      %v1152 = vadd.f32 %v1147, %v1150
      %s1153 = scalar_lea.vmem %s1113, 64
      %v1154 = vld [vmem:[%s1153] sm:$0xff]
      %v1155 = vmul.f32 %v1154, %v1154
      %v1156 = vadd.f32 %v1151, %v1155
      %v1157 = vadd.f32 %v1152, %v1155
      %s1158 = scalar_lea.vmem %s1113, 72
      %v1159 = vld [vmem:[%s1158] sm:$0xff]
      %v1160 = vmul.f32 %v1159, %v1159
      %v1161 = vadd.f32 %v1156, %v1160
      %v1162 = vadd.f32 %v1157, %v1160
      %s1163 = scalar_lea.vmem %s1113, 80
      %v1164 = vld [vmem:[%s1163] sm:$0xff]
      %v1165 = vmul.f32 %v1164, %v1164
      %v1166 = vadd.f32 %v1161, %v1165
      %v1167 = vadd.f32 %v1162, %v1165
      %s1168 = scalar_lea.vmem %s1113, 88
      %v1169 = vld [vmem:[%s1168] sm:$0xff]
      %v1170 = vmul.f32 %v1169, %v1169
      %v1171 = vadd.f32 %v1166, %v1170
      %v1172 = vadd.f32 %v1167, %v1170
      %s1173 = scalar_lea.vmem %s1113, 96
      %v1174 = vld [vmem:[%s1173] sm:$0xff]
      %v1175 = vmul.f32 %v1174, %v1174
      %v1176 = vadd.f32 %v1171, %v1175
      %v1177 = vadd.f32 %v1172, %v1175
      %s1178 = scalar_lea.vmem %s1113, 104
      %v1179 = vld [vmem:[%s1178] sm:$0xff]
      %v1180 = vmul.f32 %v1179, %v1179
      %v1181 = vadd.f32 %v1176, %v1180
      %v1182 = vadd.f32 %v1177, %v1180
      %s1183 = scalar_lea.vmem %s1113, 112
      %v1184 = vld [vmem:[%s1183] sm:$0xff]
      %v1185 = vmul.f32 %v1184, %v1184
      %v1186 = vadd.f32 %v1181, %v1185
      %v1187 = vadd.f32 %v1182, %v1185
      %s1188 = scalar_lea.vmem %s1113, 120
      %v1189 = vld [vmem:[%s1188] sm:$0xff]
      %v1190 = vmul.f32 %v1189, %v1189
      %v1191 = vadd.f32 %v1186, %v1190
      %v1192 = vadd.f32 %v1187, %v1190
      %v1193 = vlaneseq
      %v1194 = vand.u32 %v1193, 127
      %v1195 = vmov %v1194
      %v1196 = vlaneseq
      %v1197 = vshrl.u32 %v1196, 7
      %v1198 = vmov %v1197
      %s1199 = smov [#allocation15]
      %v1200 = vld [vmem:[%s1199] sm:$0xff]
      %v1201 = vmul.f32 %v1200, %v1200
      %vm1204 = vcmp.eq.s32.totalorder %v1198, %v1195
      %v1205 = vsel %vm1204, 0.0, %v1201
      %v1206 = vadd.f32 %v1191, %v1205
      %v1207 = vadd.f32 %v1192, %v1201
      %s1208 = scalar_lea.vmem %s1199, 8
      %v1209 = vld [vmem:[%s1208] sm:$0xff]
      %v1210 = vmul.f32 %v1209, %v1209
      %v1212 = vadd.s32 %v1198, 8
      %vm1213 = vcmp.eq.s32.totalorder %v1212, %v1195
      %v1214 = vsel %vm1213, 0.0, %v1210
      %v1215 = vadd.f32 %v1206, %v1214
      %v1216 = vadd.f32 %v1207, %v1210
      %s1217 = scalar_lea.vmem %s1199, 16
      %v1218 = vld [vmem:[%s1217] sm:$0xff]
      %v1219 = vmul.f32 %v1218, %v1218
      %v1221 = vadd.s32 %v1198, 16
      %vm1222 = vcmp.eq.s32.totalorder %v1221, %v1195
      %v1223 = vsel %vm1222, 0.0, %v1219
      %v1224 = vadd.f32 %v1215, %v1223
      %v1225 = vadd.f32 %v1216, %v1219
      %s1226 = scalar_lea.vmem %s1199, 24
      %v1227 = vld [vmem:[%s1226] sm:$0xff]
      %v1228 = vmul.f32 %v1227, %v1227
      %v1230 = vadd.s32 %v1198, 24
      %vm1231 = vcmp.eq.s32.totalorder %v1230, %v1195
      %v1232 = vsel %vm1231, 0.0, %v1228
      %v1233 = vadd.f32 %v1224, %v1232
      %v1234 = vadd.f32 %v1225, %v1228
      %s1235 = scalar_lea.vmem %s1199, 32
      %v1236 = vld [vmem:[%s1235] sm:$0xff]
      %v1237 = vmul.f32 %v1236, %v1236
      %v1239 = vadd.s32 %v1198, 32
      %vm1240 = vcmp.eq.s32.totalorder %v1239, %v1195
      %v1241 = vsel %vm1240, 0.0, %v1237
      %v1242 = vadd.f32 %v1233, %v1241
      %v1243 = vadd.f32 %v1234, %v1237
      %s1244 = scalar_lea.vmem %s1199, 40
      %v1245 = vld [vmem:[%s1244] sm:$0xff]
      %v1246 = vmul.f32 %v1245, %v1245
      %v1248 = vadd.s32 %v1198, 40
      %vm1249 = vcmp.eq.s32.totalorder %v1248, %v1195
      %v1250 = vsel %vm1249, 0.0, %v1246
      %v1251 = vadd.f32 %v1242, %v1250
      %v1252 = vadd.f32 %v1243, %v1246
      %s1253 = scalar_lea.vmem %s1199, 48
      %v1254 = vld [vmem:[%s1253] sm:$0xff]
      %v1255 = vmul.f32 %v1254, %v1254
      %v1257 = vadd.s32 %v1198, 48
      %vm1258 = vcmp.eq.s32.totalorder %v1257, %v1195
      %v1259 = vsel %vm1258, 0.0, %v1255
      %v1260 = vadd.f32 %v1251, %v1259
      %v1261 = vadd.f32 %v1252, %v1255
      %s1262 = scalar_lea.vmem %s1199, 56
      %v1263 = vld [vmem:[%s1262] sm:$0xff]
      %v1264 = vmul.f32 %v1263, %v1263
      %v1266 = vadd.s32 %v1198, 56
      %vm1267 = vcmp.eq.s32.totalorder %v1266, %v1195
      %v1268 = vsel %vm1267, 0.0, %v1264
      %v1269 = vadd.f32 %v1260, %v1268
      %v1270 = vadd.f32 %v1261, %v1264
      %s1271 = scalar_lea.vmem %s1199, 64
      %v1272 = vld [vmem:[%s1271] sm:$0xff]
      %v1273 = vmul.f32 %v1272, %v1272
      %v1275 = vadd.s32 %v1198, 64
      %vm1276 = vcmp.eq.s32.totalorder %v1275, %v1195
      %v1277 = vsel %vm1276, 0.0, %v1273
      %v1278 = vadd.f32 %v1269, %v1277
      %v1279 = vadd.f32 %v1270, %v1273
      %s1280 = scalar_lea.vmem %s1199, 72
      %v1281 = vld [vmem:[%s1280] sm:$0xff]
      %v1282 = vmul.f32 %v1281, %v1281
      %v1284 = vadd.s32 %v1198, 72
      %vm1285 = vcmp.eq.s32.totalorder %v1284, %v1195
      %v1286 = vsel %vm1285, 0.0, %v1282
      %v1287 = vadd.f32 %v1278, %v1286
      %v1288 = vadd.f32 %v1279, %v1282
      %s1289 = scalar_lea.vmem %s1199, 80
      %v1290 = vld [vmem:[%s1289] sm:$0xff]
      %v1291 = vmul.f32 %v1290, %v1290
      %v1293 = vadd.s32 %v1198, 80
      %vm1294 = vcmp.eq.s32.totalorder %v1293, %v1195
      %v1295 = vsel %vm1294, 0.0, %v1291
      %v1296 = vadd.f32 %v1287, %v1295
      %v1297 = vadd.f32 %v1288, %v1291
      %s1298 = scalar_lea.vmem %s1199, 88
      %v1299 = vld [vmem:[%s1298] sm:$0xff]
      %v1300 = vmul.f32 %v1299, %v1299
      %v1302 = vadd.s32 %v1198, 88
      %vm1303 = vcmp.eq.s32.totalorder %v1302, %v1195
      %v1304 = vsel %vm1303, 0.0, %v1300
      %v1305 = vadd.f32 %v1296, %v1304
      %v1306 = vadd.f32 %v1297, %v1300
      %s1307 = scalar_lea.vmem %s1199, 96
      %v1308 = vld [vmem:[%s1307] sm:$0xff]
      %v1309 = vmul.f32 %v1308, %v1308
      %v1311 = vadd.s32 %v1198, 96
      %vm1312 = vcmp.eq.s32.totalorder %v1311, %v1195
      %v1313 = vsel %vm1312, 0.0, %v1309
      %v1314 = vadd.f32 %v1305, %v1313
      %v1315 = vadd.f32 %v1306, %v1309
      %s1316 = scalar_lea.vmem %s1199, 104
      %v1317 = vld [vmem:[%s1316] sm:$0xff]
      %v1318 = vmul.f32 %v1317, %v1317
      %v1320 = vadd.s32 %v1198, 104
      %vm1321 = vcmp.eq.s32.totalorder %v1320, %v1195
      %v1322 = vsel %vm1321, 0.0, %v1318
      %v1323 = vadd.f32 %v1314, %v1322
      %v1324 = vadd.f32 %v1315, %v1318
      %s1325 = scalar_lea.vmem %s1199, 112
      %v1326 = vld [vmem:[%s1325] sm:$0xff]
      %v1327 = vmul.f32 %v1326, %v1326
      %v1329 = vadd.s32 %v1198, 112
      %vm1330 = vcmp.eq.s32.totalorder %v1329, %v1195
      %v1331 = vsel %vm1330, 0.0, %v1327
      %v1332 = vadd.f32 %v1323, %v1331
      %v1333 = vadd.f32 %v1324, %v1327
      %s1334 = scalar_lea.vmem %s1199, 120
      %v1335 = vld [vmem:[%s1334] sm:$0xff]
      %v1336 = vmul.f32 %v1335, %v1335
      %v1338 = vadd.s32 %v1198, 120
      %vm1339 = vcmp.eq.s32.totalorder %v1338, %v1195
      %v1340 = vsel %vm1339, 0.0, %v1336
      %v1341 = vadd.f32 %v1332, %v1340
      %v1342 = vadd.f32 %v1333, %v1336
      %1343 = vadd.xlane.f32.xlu0 %v1342
      %v1344 = vpop.xlane.xlu0 %1343
      %v1345 = vrot.slane %v1344, 4
      %v1346 = vadd.f32 %v1344, %v1345
      %v1347 = vrot.slane %v1346, 2
      %v1348 = vadd.f32 %v1346, %v1347
      %v1349 = vrot.slane %v1348, 1
      %v1350 = vadd.f32 %v1348, %v1349
      %1351 = vadd.xlane.f32.xlu0 %v1341
      %v1352 = vpop.xlane.xlu0 %1351
      %v1353 = vrot.slane %v1352, 4
      %v1354 = vadd.f32 %v1352, %v1353
      %v1355 = vrot.slane %v1354, 2
      %v1356 = vadd.f32 %v1354, %v1355
      %v1357 = vrot.slane %v1356, 1
      %v1358 = vadd.f32 %v1356, %v1357
      %s1359 = vtos %v1358
      %s1360 = vtos %v1350
      %s1361 = smul.f32 1e-10, %s1360
      %p1362 = scmp.le.f32.partialorder %s1359, %s1361
      %p1363 = scmp.ge.s32.totalorder %s872, 15
      %p1364 = por %p1362, %p1363
    $region92: #{custom-call.2} parent=1 // loop_header_branch
      %6672 = sbr.rel (%p1364) target = $region96
    $region93: #{custom-call.2} parent=1 // loop_body
      loop: start=0, step=1, limit=255
      $region97: #{custom-call.2} parent=93 // loop_pre_header
        _
      $region98: #{custom-call.2} parent=93 // loop_header
        %s1366 = sphi 0, %s1370
        %p1367 = scmp.ge.s32.totalorder %s1366, 255
      $region99: #{custom-call.2} parent=93 // loop_header_branch
        %1369 = sbr.rel (%p1367) target = $region103
      $region100: #{custom-call.2} parent=93 // loop_body
        #allocation16 [shape = 'f32[1024]{0}', space=vmem, size = 0x1000, scoped, tag = 'a_tl_diag vmem']
        #allocation17 [shape = 'f32[1024]{0}', space=vmem, size = 0x1000, scoped, tag = 'a_tr_diag vmem']
        #allocation18 [shape = 'f32[1024]{0}', space=vmem, size = 0x1000, scoped, tag = 'a_br_diag vmem']
        #allocation19 [shape = 'f32[1024]{0}', space=vmem, size = 0x1000, scoped, tag = 'rt1 vmem']
        #allocation20 [shape = 'f32[1024]{0}', space=vmem, size = 0x1000, scoped, tag = 'rt2 vmem']
        #allocation21 [shape = 'f32[1024]{0}', space=vmem, size = 0x1000, scoped, tag = 'c vmem']
        #allocation22 [shape = 'f32[1024]{0}', space=vmem, size = 0x1000, scoped, tag = 's vmem']
        #allocation23 [shape = 'f32[65536]{0}', space=vmem, size = 0x40000, scoped, tag = 'c broadcast']
        #allocation24 [shape = 'f32[65536]{0}', space=vmem, size = 0x40000, scoped, tag = 's broadcast']
        %s1371 = smov [#allocation12]
        %s1372 = smov [#allocation16]
        %v1373 = vlaneseq
        %v1374 = vand.u32 %v1373, 127
        %v1375 = vmov %v1374
        %v1376 = vlaneseq
        %v1377 = vshrl.u32 %v1376, 7
        %v1378 = vmov %v1377
        %v1379 = vld [vmem:[%s1371] sm:$0xff]
        %vm1382 = vcmp.eq.s32.totalorder %v1378, %v1375
        %v1383 = vsel %vm1382, %v1379, 0.0
        %s1384 = scalar_lea.vmem %s1371, 8
        %v1385 = vld [vmem:[%s1384] sm:$0xff]
        %v1387 = vadd.s32 %v1378, 8
        %vm1388 = vcmp.eq.s32.totalorder %v1387, %v1375
        %v1389 = vsel %vm1388, %v1385, %v1383
        %s1390 = scalar_lea.vmem %s1371, 16
        %v1391 = vld [vmem:[%s1390] sm:$0xff]
        %v1393 = vadd.s32 %v1378, 16
        %vm1394 = vcmp.eq.s32.totalorder %v1393, %v1375
        %v1395 = vsel %vm1394, %v1391, %v1389
        %s1396 = scalar_lea.vmem %s1371, 24
        %v1397 = vld [vmem:[%s1396] sm:$0xff]
        %v1399 = vadd.s32 %v1378, 24
        %vm1400 = vcmp.eq.s32.totalorder %v1399, %v1375
        %v1401 = vsel %vm1400, %v1397, %v1395
        %s1402 = scalar_lea.vmem %s1371, 32
        %v1403 = vld [vmem:[%s1402] sm:$0xff]
        %v1405 = vadd.s32 %v1378, 32
        %vm1406 = vcmp.eq.s32.totalorder %v1405, %v1375
        %v1407 = vsel %vm1406, %v1403, %v1401
        %s1408 = scalar_lea.vmem %s1371, 40
        %v1409 = vld [vmem:[%s1408] sm:$0xff]
        %v1411 = vadd.s32 %v1378, 40
        %vm1412 = vcmp.eq.s32.totalorder %v1411, %v1375
        %v1413 = vsel %vm1412, %v1409, %v1407
        %s1414 = scalar_lea.vmem %s1371, 48
        %v1415 = vld [vmem:[%s1414] sm:$0xff]
        %v1417 = vadd.s32 %v1378, 48
        %vm1418 = vcmp.eq.s32.totalorder %v1417, %v1375
        %v1419 = vsel %vm1418, %v1415, %v1413
        %s1420 = scalar_lea.vmem %s1371, 56
        %v1421 = vld [vmem:[%s1420] sm:$0xff]
        %v1423 = vadd.s32 %v1378, 56
        %vm1424 = vcmp.eq.s32.totalorder %v1423, %v1375
        %v1425 = vsel %vm1424, %v1421, %v1419
        %s1426 = scalar_lea.vmem %s1371, 64
        %v1427 = vld [vmem:[%s1426] sm:$0xff]
        %v1429 = vadd.s32 %v1378, 64
        %vm1430 = vcmp.eq.s32.totalorder %v1429, %v1375
        %v1431 = vsel %vm1430, %v1427, %v1425
        %s1432 = scalar_lea.vmem %s1371, 72
        %v1433 = vld [vmem:[%s1432] sm:$0xff]
        %v1435 = vadd.s32 %v1378, 72
        %vm1436 = vcmp.eq.s32.totalorder %v1435, %v1375
        %v1437 = vsel %vm1436, %v1433, %v1431
        %s1438 = scalar_lea.vmem %s1371, 80
        %v1439 = vld [vmem:[%s1438] sm:$0xff]
        %v1441 = vadd.s32 %v1378, 80
        %vm1442 = vcmp.eq.s32.totalorder %v1441, %v1375
        %v1443 = vsel %vm1442, %v1439, %v1437
        %s1444 = scalar_lea.vmem %s1371, 88
        %v1445 = vld [vmem:[%s1444] sm:$0xff]
        %v1447 = vadd.s32 %v1378, 88
        %vm1448 = vcmp.eq.s32.totalorder %v1447, %v1375
        %v1449 = vsel %vm1448, %v1445, %v1443
        %s1450 = scalar_lea.vmem %s1371, 96
        %v1451 = vld [vmem:[%s1450] sm:$0xff]
        %v1453 = vadd.s32 %v1378, 96
        %vm1454 = vcmp.eq.s32.totalorder %v1453, %v1375
        %v1455 = vsel %vm1454, %v1451, %v1449
        %s1456 = scalar_lea.vmem %s1371, 104
        %v1457 = vld [vmem:[%s1456] sm:$0xff]
        %v1459 = vadd.s32 %v1378, 104
        %vm1460 = vcmp.eq.s32.totalorder %v1459, %v1375
        %v1461 = vsel %vm1460, %v1457, %v1455
        %s1462 = scalar_lea.vmem %s1371, 112
        %v1463 = vld [vmem:[%s1462] sm:$0xff]
        %v1465 = vadd.s32 %v1378, 112
        %vm1466 = vcmp.eq.s32.totalorder %v1465, %v1375
        %v1467 = vsel %vm1466, %v1463, %v1461
        %s1468 = scalar_lea.vmem %s1371, 120
        %v1469 = vld [vmem:[%s1468] sm:$0xff]
        %v1471 = vadd.s32 %v1378, 120
        %vm1472 = vcmp.eq.s32.totalorder %v1471, %v1375
        %v1473 = vsel %vm1472, %v1469, %v1467
        %v1474 = vrot.slane %v1473, 4
        %v1475 = vadd.f32 %v1473, %v1474
        %v1476 = vrot.slane %v1475, 2
        %v1477 = vadd.f32 %v1475, %v1476
        %v1478 = vrot.slane %v1477, 1
        %v1479 = vadd.f32 %v1477, %v1478
        %1480 = vst [vmem:[%s1372] sm:$0x1] %v1479
        %s1481 = smov [#allocation13]
        %s1482 = smov [#allocation17]
        %v1483 = vlaneseq
        %v1484 = vand.u32 %v1483, 127
        %v1485 = vmov %v1484
        %v1486 = vlaneseq
        %v1487 = vshrl.u32 %v1486, 7
        %v1488 = vmov %v1487
        %v1489 = vld [vmem:[%s1481] sm:$0xff]
        %vm1492 = vcmp.eq.s32.totalorder %v1488, %v1485
        %v1493 = vsel %vm1492, %v1489, 0.0
        %s1494 = scalar_lea.vmem %s1481, 8
        %v1495 = vld [vmem:[%s1494] sm:$0xff]
        %v1497 = vadd.s32 %v1488, 8
        %vm1498 = vcmp.eq.s32.totalorder %v1497, %v1485
        %v1499 = vsel %vm1498, %v1495, %v1493
        %s1500 = scalar_lea.vmem %s1481, 16
        %v1501 = vld [vmem:[%s1500] sm:$0xff]
        %v1503 = vadd.s32 %v1488, 16
        %vm1504 = vcmp.eq.s32.totalorder %v1503, %v1485
        %v1505 = vsel %vm1504, %v1501, %v1499
        %s1506 = scalar_lea.vmem %s1481, 24
        %v1507 = vld [vmem:[%s1506] sm:$0xff]
        %v1509 = vadd.s32 %v1488, 24
        %vm1510 = vcmp.eq.s32.totalorder %v1509, %v1485
        %v1511 = vsel %vm1510, %v1507, %v1505
        %s1512 = scalar_lea.vmem %s1481, 32
        %v1513 = vld [vmem:[%s1512] sm:$0xff]
        %v1515 = vadd.s32 %v1488, 32
        %vm1516 = vcmp.eq.s32.totalorder %v1515, %v1485
        %v1517 = vsel %vm1516, %v1513, %v1511
        %s1518 = scalar_lea.vmem %s1481, 40
        %v1519 = vld [vmem:[%s1518] sm:$0xff]
        %v1521 = vadd.s32 %v1488, 40
        %vm1522 = vcmp.eq.s32.totalorder %v1521, %v1485
        %v1523 = vsel %vm1522, %v1519, %v1517
        %s1524 = scalar_lea.vmem %s1481, 48
        %v1525 = vld [vmem:[%s1524] sm:$0xff]
        %v1527 = vadd.s32 %v1488, 48
        %vm1528 = vcmp.eq.s32.totalorder %v1527, %v1485
        %v1529 = vsel %vm1528, %v1525, %v1523
        %s1530 = scalar_lea.vmem %s1481, 56
        %v1531 = vld [vmem:[%s1530] sm:$0xff]
        %v1533 = vadd.s32 %v1488, 56
        %vm1534 = vcmp.eq.s32.totalorder %v1533, %v1485
        %v1535 = vsel %vm1534, %v1531, %v1529
        %s1536 = scalar_lea.vmem %s1481, 64
        %v1537 = vld [vmem:[%s1536] sm:$0xff]
        %v1539 = vadd.s32 %v1488, 64
        %vm1540 = vcmp.eq.s32.totalorder %v1539, %v1485
        %v1541 = vsel %vm1540, %v1537, %v1535
        %s1542 = scalar_lea.vmem %s1481, 72
        %v1543 = vld [vmem:[%s1542] sm:$0xff]
        %v1545 = vadd.s32 %v1488, 72
        %vm1546 = vcmp.eq.s32.totalorder %v1545, %v1485
        %v1547 = vsel %vm1546, %v1543, %v1541
        %s1548 = scalar_lea.vmem %s1481, 80
        %v1549 = vld [vmem:[%s1548] sm:$0xff]
        %v1551 = vadd.s32 %v1488, 80
        %vm1552 = vcmp.eq.s32.totalorder %v1551, %v1485
        %v1553 = vsel %vm1552, %v1549, %v1547
        %s1554 = scalar_lea.vmem %s1481, 88
        %v1555 = vld [vmem:[%s1554] sm:$0xff]
        %v1557 = vadd.s32 %v1488, 88
        %vm1558 = vcmp.eq.s32.totalorder %v1557, %v1485
        %v1559 = vsel %vm1558, %v1555, %v1553
        %s1560 = scalar_lea.vmem %s1481, 96
        %v1561 = vld [vmem:[%s1560] sm:$0xff]
        %v1563 = vadd.s32 %v1488, 96
        %vm1564 = vcmp.eq.s32.totalorder %v1563, %v1485
        %v1565 = vsel %vm1564, %v1561, %v1559
        %s1566 = scalar_lea.vmem %s1481, 104
        %v1567 = vld [vmem:[%s1566] sm:$0xff]
        %v1569 = vadd.s32 %v1488, 104
        %vm1570 = vcmp.eq.s32.totalorder %v1569, %v1485
        %v1571 = vsel %vm1570, %v1567, %v1565
        %s1572 = scalar_lea.vmem %s1481, 112
        %v1573 = vld [vmem:[%s1572] sm:$0xff]
        %v1575 = vadd.s32 %v1488, 112
        %vm1576 = vcmp.eq.s32.totalorder %v1575, %v1485
        %v1577 = vsel %vm1576, %v1573, %v1571
        %s1578 = scalar_lea.vmem %s1481, 120
        %v1579 = vld [vmem:[%s1578] sm:$0xff]
        %v1581 = vadd.s32 %v1488, 120
        %vm1582 = vcmp.eq.s32.totalorder %v1581, %v1485
        %v1583 = vsel %vm1582, %v1579, %v1577
        %v1584 = vrot.slane %v1583, 4
        %v1585 = vadd.f32 %v1583, %v1584
        %v1586 = vrot.slane %v1585, 2
        %v1587 = vadd.f32 %v1585, %v1586
        %v1588 = vrot.slane %v1587, 1
        %v1589 = vadd.f32 %v1587, %v1588
        %1590 = vst [vmem:[%s1482] sm:$0x1] %v1589
        %s1591 = smov [#allocation15]
        %s1592 = smov [#allocation18]
        %v1593 = vlaneseq
        %v1594 = vand.u32 %v1593, 127
        %v1595 = vmov %v1594
        %v1596 = vlaneseq
        %v1597 = vshrl.u32 %v1596, 7
        %v1598 = vmov %v1597
        %v1599 = vld [vmem:[%s1591] sm:$0xff]
        %vm1602 = vcmp.eq.s32.totalorder %v1598, %v1595
        %v1603 = vsel %vm1602, %v1599, 0.0
        %s1604 = scalar_lea.vmem %s1591, 8
        %v1605 = vld [vmem:[%s1604] sm:$0xff]
        %v1607 = vadd.s32 %v1598, 8
        %vm1608 = vcmp.eq.s32.totalorder %v1607, %v1595
        %v1609 = vsel %vm1608, %v1605, %v1603
        %s1610 = scalar_lea.vmem %s1591, 16
        %v1611 = vld [vmem:[%s1610] sm:$0xff]
        %v1613 = vadd.s32 %v1598, 16
        %vm1614 = vcmp.eq.s32.totalorder %v1613, %v1595
        %v1615 = vsel %vm1614, %v1611, %v1609
        %s1616 = scalar_lea.vmem %s1591, 24
        %v1617 = vld [vmem:[%s1616] sm:$0xff]
        %v1619 = vadd.s32 %v1598, 24
        %vm1620 = vcmp.eq.s32.totalorder %v1619, %v1595
        %v1621 = vsel %vm1620, %v1617, %v1615
        %s1622 = scalar_lea.vmem %s1591, 32
        %v1623 = vld [vmem:[%s1622] sm:$0xff]
        %v1625 = vadd.s32 %v1598, 32
        %vm1626 = vcmp.eq.s32.totalorder %v1625, %v1595
        %v1627 = vsel %vm1626, %v1623, %v1621
        %s1628 = scalar_lea.vmem %s1591, 40
        %v1629 = vld [vmem:[%s1628] sm:$0xff]
        %v1631 = vadd.s32 %v1598, 40
        %vm1632 = vcmp.eq.s32.totalorder %v1631, %v1595
        %v1633 = vsel %vm1632, %v1629, %v1627
        %s1634 = scalar_lea.vmem %s1591, 48
        %v1635 = vld [vmem:[%s1634] sm:$0xff]
        %v1637 = vadd.s32 %v1598, 48
        %vm1638 = vcmp.eq.s32.totalorder %v1637, %v1595
        %v1639 = vsel %vm1638, %v1635, %v1633
        %s1640 = scalar_lea.vmem %s1591, 56
        %v1641 = vld [vmem:[%s1640] sm:$0xff]
        %v1643 = vadd.s32 %v1598, 56
        %vm1644 = vcmp.eq.s32.totalorder %v1643, %v1595
        %v1645 = vsel %vm1644, %v1641, %v1639
        %s1646 = scalar_lea.vmem %s1591, 64
        %v1647 = vld [vmem:[%s1646] sm:$0xff]
        %v1649 = vadd.s32 %v1598, 64
        %vm1650 = vcmp.eq.s32.totalorder %v1649, %v1595
        %v1651 = vsel %vm1650, %v1647, %v1645
        %s1652 = scalar_lea.vmem %s1591, 72
        %v1653 = vld [vmem:[%s1652] sm:$0xff]
        %v1655 = vadd.s32 %v1598, 72
        %vm1656 = vcmp.eq.s32.totalorder %v1655, %v1595
        %v1657 = vsel %vm1656, %v1653, %v1651
        %s1658 = scalar_lea.vmem %s1591, 80
        %v1659 = vld [vmem:[%s1658] sm:$0xff]
        %v1661 = vadd.s32 %v1598, 80
        %vm1662 = vcmp.eq.s32.totalorder %v1661, %v1595
        %v1663 = vsel %vm1662, %v1659, %v1657
        %s1664 = scalar_lea.vmem %s1591, 88
        %v1665 = vld [vmem:[%s1664] sm:$0xff]
        %v1667 = vadd.s32 %v1598, 88
        %vm1668 = vcmp.eq.s32.totalorder %v1667, %v1595
        %v1669 = vsel %vm1668, %v1665, %v1663
        %s1670 = scalar_lea.vmem %s1591, 96
        %v1671 = vld [vmem:[%s1670] sm:$0xff]
        %v1673 = vadd.s32 %v1598, 96
        %vm1674 = vcmp.eq.s32.totalorder %v1673, %v1595
        %v1675 = vsel %vm1674, %v1671, %v1669
        %s1676 = scalar_lea.vmem %s1591, 104
        %v1677 = vld [vmem:[%s1676] sm:$0xff]
        %v1679 = vadd.s32 %v1598, 104
        %vm1680 = vcmp.eq.s32.totalorder %v1679, %v1595
        %v1681 = vsel %vm1680, %v1677, %v1675
        %s1682 = scalar_lea.vmem %s1591, 112
        %v1683 = vld [vmem:[%s1682] sm:$0xff]
        %v1685 = vadd.s32 %v1598, 112
        %vm1686 = vcmp.eq.s32.totalorder %v1685, %v1595
        %v1687 = vsel %vm1686, %v1683, %v1681
        %s1688 = scalar_lea.vmem %s1591, 120
        %v1689 = vld [vmem:[%s1688] sm:$0xff]
        %v1691 = vadd.s32 %v1598, 120
        %vm1692 = vcmp.eq.s32.totalorder %v1691, %v1595
        %v1693 = vsel %vm1692, %v1689, %v1687
        %v1694 = vrot.slane %v1693, 4
        %v1695 = vadd.f32 %v1693, %v1694
        %v1696 = vrot.slane %v1695, 2
        %v1697 = vadd.f32 %v1695, %v1696
        %v1698 = vrot.slane %v1697, 1
        %v1699 = vadd.f32 %v1697, %v1698
        %1700 = vst [vmem:[%s1592] sm:$0x1] %v1699
        %s1701 = smov [#allocation21]
        %s1702 = smov [#allocation22]
        %s1703 = smov [#allocation16]
        %v1704 = vld [vmem:[%s1703] sm:$0xff]
        %s1705 = smov [#allocation17]
        %v1706 = vld [vmem:[%s1705] sm:$0xff]
        %s1707 = smov [#allocation18]
        %v1708 = vld [vmem:[%s1707] sm:$0xff]
        %v1709 = vsub.f32 %v1708, %v1704
        %v1710 = vmul.f32 2.0, %v1706
        %v1711 = vrcp.pop %v1710
        %v1712 = vmul.f32 %v1709, %v1711
        %vm1713 = vcmp.ge.f32.partialorder %v1712, 0.0
        %v1714 = vmul.f32 %v1712, %v1712
        %v1715 = vadd.f32 1.0, %v1714
        %v1716 = vrsqrt.pop %v1715
        %v1717 = vmul.f32 %v1715, %v1716
        %vm1718 = vcmp.eq.f32.partialorder %v1715, inf
        %v1719 = vsel %vm1718, %v1715, %v1717
        %vm1720 = vcmp.eq.f32.partialorder %v1715, 0.0
        %v1721 = vand.u32 %v1715, 2147483648
        %v1722 = vsel %vm1720, %v1721, %v1719
        %v1723 = vxor.u32 %v1722, 2147483648
        %v1724 = vsel %vm1713, %v1722, %v1723
        %v1725 = vadd.f32 %v1712, %v1724
        %v1726 = vrcp.pop %v1725
        %v1727 = vand.u32 2147483647, %v1704
        %v1728 = vand.u32 2147483647, %v1706
        %v1729 = vand.u32 2147483647, %v1708
        %v1730 = vmin.f32 %v1727, %v1729
        %v1731 = vmul.f32 1.1920929e-08, %v1730
        %vm1732 = vcmp.le.f32.partialorder %v1728, %v1731
        %v1733 = vsel %vm1732, 0.0, %v1726
        %v1734 = vmul.f32 %v1733, %v1733
        %v1735 = vadd.f32 1.0, %v1734
        %v1736 = vrsqrt.pop %v1735
        %v1737 = vmul.f32 %v1733, %v1736
        %v1738 = vmul.f32 %v1733, %v1706
        %v1739 = vsub.f32 %v1704, %v1738
        %v1740 = vmul.f32 %v1733, %v1706
        %v1741 = vadd.f32 %v1708, %v1740
        %s1742 = smov [#allocation19]
        %1743 = vst [vmem:[%s1742] sm:$0xff] %v1739
        %s1744 = smov [#allocation20]
        %1745 = vst [vmem:[%s1744] sm:$0xff] %v1741
        %s1746 = smov %s1701
        %1747 = vst [vmem:[%s1746] sm:$0xff] %v1736
        %s1748 = smov %s1702
        %1749 = vst [vmem:[%s1748] sm:$0xff] %v1737
        %s1750 = smov [#allocation21]
        %v1751 = vld [vmem:[%s1750] ss:$0 sm:$0xff]
        %v1752 = vlaneseq
        %v1753 = vand.u32 %v1752, 127
        %v1754 = vmov %v1753
        %v1755 = vlaneseq
        %v1756 = vshrl.u32 %v1755, 7
        %v1757 = vmov %v1756
        %vm1759 = vcmp.eq.s32.totalorder %v1757, %v1754
        %v1760 = vsel %vm1759, %v1751, 0.0
        %1761 = vadd.xlane.f32.xlu0 %v1760
        %v1762 = vpop.xlane.xlu0 %1761
        %s1763 = smov [#allocation23]
        %1764 = vst [vmem:[%s1763] sm:$0xff] %v1762
        %s1765 = smov [#allocation21]
        %v1766 = vld [vmem:[%s1765] ss:$0 sm:$0xff]
        %v1767 = vlaneseq
        %v1768 = vand.u32 %v1767, 127
        %v1769 = vmov %v1768
        %v1770 = vlaneseq
        %v1771 = vshrl.u32 %v1770, 7
        %v1772 = vmov %v1771
        %v1773 = vadd.s32 %v1772, 8
        %vm1774 = vcmp.eq.s32.totalorder %v1773, %v1769
        %v1775 = vsel %vm1774, %v1766, 0.0
        %1776 = vadd.xlane.f32.xlu0 %v1775
        %v1777 = vpop.xlane.xlu0 %1776
        %s1778 = smov [#allocation23]
        %s1779 = scalar_lea.vmem %s1778, 8
        %1780 = vst [vmem:[%s1779] sm:$0xff] %v1777
        %s1781 = smov [#allocation21]
        %v1782 = vld [vmem:[%s1781] ss:$0 sm:$0xff]
        %v1783 = vlaneseq
        %v1784 = vand.u32 %v1783, 127
        %v1785 = vmov %v1784
        %v1786 = vlaneseq
        %v1787 = vshrl.u32 %v1786, 7
        %v1788 = vmov %v1787
        %v1789 = vadd.s32 %v1788, 16
        %vm1790 = vcmp.eq.s32.totalorder %v1789, %v1785
        %v1791 = vsel %vm1790, %v1782, 0.0
        %1792 = vadd.xlane.f32.xlu0 %v1791
        %v1793 = vpop.xlane.xlu0 %1792
        %s1794 = smov [#allocation23]
        %s1795 = scalar_lea.vmem %s1794, 16
        %1796 = vst [vmem:[%s1795] sm:$0xff] %v1793
        %s1797 = smov [#allocation21]
        %v1798 = vld [vmem:[%s1797] ss:$0 sm:$0xff]
        %v1799 = vlaneseq
        %v1800 = vand.u32 %v1799, 127
        %v1801 = vmov %v1800
        %v1802 = vlaneseq
        %v1803 = vshrl.u32 %v1802, 7
        %v1804 = vmov %v1803
        %v1805 = vadd.s32 %v1804, 24
        %vm1806 = vcmp.eq.s32.totalorder %v1805, %v1801
        %v1807 = vsel %vm1806, %v1798, 0.0
        %1808 = vadd.xlane.f32.xlu0 %v1807
        %v1809 = vpop.xlane.xlu0 %1808
        %s1810 = smov [#allocation23]
        %s1811 = scalar_lea.vmem %s1810, 24
        %1812 = vst [vmem:[%s1811] sm:$0xff] %v1809
        %s1813 = smov [#allocation21]
        %v1814 = vld [vmem:[%s1813] ss:$0 sm:$0xff]
        %v1815 = vlaneseq
        %v1816 = vand.u32 %v1815, 127
        %v1817 = vmov %v1816
        %v1818 = vlaneseq
        %v1819 = vshrl.u32 %v1818, 7
        %v1820 = vmov %v1819
        %v1821 = vadd.s32 %v1820, 32
        %vm1822 = vcmp.eq.s32.totalorder %v1821, %v1817
        %v1823 = vsel %vm1822, %v1814, 0.0
        %1824 = vadd.xlane.f32.xlu0 %v1823
        %v1825 = vpop.xlane.xlu0 %1824
        %s1826 = smov [#allocation23]
        %s1827 = scalar_lea.vmem %s1826, 32
        %1828 = vst [vmem:[%s1827] sm:$0xff] %v1825
        %s1829 = smov [#allocation21]
        %v1830 = vld [vmem:[%s1829] ss:$0 sm:$0xff]
        %v1831 = vlaneseq
        %v1832 = vand.u32 %v1831, 127
        %v1833 = vmov %v1832
        %v1834 = vlaneseq
        %v1835 = vshrl.u32 %v1834, 7
        %v1836 = vmov %v1835
        %v1837 = vadd.s32 %v1836, 40
        %vm1838 = vcmp.eq.s32.totalorder %v1837, %v1833
        %v1839 = vsel %vm1838, %v1830, 0.0
        %1840 = vadd.xlane.f32.xlu0 %v1839
        %v1841 = vpop.xlane.xlu0 %1840
        %s1842 = smov [#allocation23]
        %s1843 = scalar_lea.vmem %s1842, 40
        %1844 = vst [vmem:[%s1843] sm:$0xff] %v1841
        %s1845 = smov [#allocation21]
        %v1846 = vld [vmem:[%s1845] ss:$0 sm:$0xff]
        %v1847 = vlaneseq
        %v1848 = vand.u32 %v1847, 127
        %v1849 = vmov %v1848
        %v1850 = vlaneseq
        %v1851 = vshrl.u32 %v1850, 7
        %v1852 = vmov %v1851
        %v1853 = vadd.s32 %v1852, 48
        %vm1854 = vcmp.eq.s32.totalorder %v1853, %v1849
        %v1855 = vsel %vm1854, %v1846, 0.0
        %1856 = vadd.xlane.f32.xlu0 %v1855
        %v1857 = vpop.xlane.xlu0 %1856
        %s1858 = smov [#allocation23]
        %s1859 = scalar_lea.vmem %s1858, 48
        %1860 = vst [vmem:[%s1859] sm:$0xff] %v1857
        %s1861 = smov [#allocation21]
        %v1862 = vld [vmem:[%s1861] ss:$0 sm:$0xff]
        %v1863 = vlaneseq
        %v1864 = vand.u32 %v1863, 127
        %v1865 = vmov %v1864
        %v1866 = vlaneseq
        %v1867 = vshrl.u32 %v1866, 7
        %v1868 = vmov %v1867
        %v1869 = vadd.s32 %v1868, 56
        %vm1870 = vcmp.eq.s32.totalorder %v1869, %v1865
        %v1871 = vsel %vm1870, %v1862, 0.0
        %1872 = vadd.xlane.f32.xlu0 %v1871
        %v1873 = vpop.xlane.xlu0 %1872
        %s1874 = smov [#allocation23]
        %s1875 = scalar_lea.vmem %s1874, 56
        %1876 = vst [vmem:[%s1875] sm:$0xff] %v1873
        %s1877 = smov [#allocation21]
        %v1878 = vld [vmem:[%s1877] ss:$0 sm:$0xff]
        %v1879 = vlaneseq
        %v1880 = vand.u32 %v1879, 127
        %v1881 = vmov %v1880
        %v1882 = vlaneseq
        %v1883 = vshrl.u32 %v1882, 7
        %v1884 = vmov %v1883
        %v1885 = vadd.s32 %v1884, 64
        %vm1886 = vcmp.eq.s32.totalorder %v1885, %v1881
        %v1887 = vsel %vm1886, %v1878, 0.0
        %1888 = vadd.xlane.f32.xlu0 %v1887
        %v1889 = vpop.xlane.xlu0 %1888
        %s1890 = smov [#allocation23]
        %s1891 = scalar_lea.vmem %s1890, 64
        %1892 = vst [vmem:[%s1891] sm:$0xff] %v1889
        %s1893 = smov [#allocation21]
        %v1894 = vld [vmem:[%s1893] ss:$0 sm:$0xff]
        %v1895 = vlaneseq
        %v1896 = vand.u32 %v1895, 127
        %v1897 = vmov %v1896
        %v1898 = vlaneseq
        %v1899 = vshrl.u32 %v1898, 7
        %v1900 = vmov %v1899
        %v1901 = vadd.s32 %v1900, 72
        %vm1902 = vcmp.eq.s32.totalorder %v1901, %v1897
        %v1903 = vsel %vm1902, %v1894, 0.0
        %1904 = vadd.xlane.f32.xlu0 %v1903
        %v1905 = vpop.xlane.xlu0 %1904
        %s1906 = smov [#allocation23]
        %s1907 = scalar_lea.vmem %s1906, 72
        %1908 = vst [vmem:[%s1907] sm:$0xff] %v1905
        %s1909 = smov [#allocation21]
        %v1910 = vld [vmem:[%s1909] ss:$0 sm:$0xff]
        %v1911 = vlaneseq
        %v1912 = vand.u32 %v1911, 127
        %v1913 = vmov %v1912
        %v1914 = vlaneseq
        %v1915 = vshrl.u32 %v1914, 7
        %v1916 = vmov %v1915
        %v1917 = vadd.s32 %v1916, 80
        %vm1918 = vcmp.eq.s32.totalorder %v1917, %v1913
        %v1919 = vsel %vm1918, %v1910, 0.0
        %1920 = vadd.xlane.f32.xlu0 %v1919
        %v1921 = vpop.xlane.xlu0 %1920
        %s1922 = smov [#allocation23]
        %s1923 = scalar_lea.vmem %s1922, 80
        %1924 = vst [vmem:[%s1923] sm:$0xff] %v1921
        %s1925 = smov [#allocation21]
        %v1926 = vld [vmem:[%s1925] ss:$0 sm:$0xff]
        %v1927 = vlaneseq
        %v1928 = vand.u32 %v1927, 127
        %v1929 = vmov %v1928
        %v1930 = vlaneseq
        %v1931 = vshrl.u32 %v1930, 7
        %v1932 = vmov %v1931
        %v1933 = vadd.s32 %v1932, 88
        %vm1934 = vcmp.eq.s32.totalorder %v1933, %v1929
        %v1935 = vsel %vm1934, %v1926, 0.0
        %1936 = vadd.xlane.f32.xlu0 %v1935
        %v1937 = vpop.xlane.xlu0 %1936
        %s1938 = smov [#allocation23]
        %s1939 = scalar_lea.vmem %s1938, 88
        %1940 = vst [vmem:[%s1939] sm:$0xff] %v1937
        %s1941 = smov [#allocation21]
        %v1942 = vld [vmem:[%s1941] ss:$0 sm:$0xff]
        %v1943 = vlaneseq
        %v1944 = vand.u32 %v1943, 127
        %v1945 = vmov %v1944
        %v1946 = vlaneseq
        %v1947 = vshrl.u32 %v1946, 7
        %v1948 = vmov %v1947
        %v1949 = vadd.s32 %v1948, 96
        %vm1950 = vcmp.eq.s32.totalorder %v1949, %v1945
        %v1951 = vsel %vm1950, %v1942, 0.0
        %1952 = vadd.xlane.f32.xlu0 %v1951
        %v1953 = vpop.xlane.xlu0 %1952
        %s1954 = smov [#allocation23]
        %s1955 = scalar_lea.vmem %s1954, 96
        %1956 = vst [vmem:[%s1955] sm:$0xff] %v1953
        %s1957 = smov [#allocation21]
        %v1958 = vld [vmem:[%s1957] ss:$0 sm:$0xff]
        %v1959 = vlaneseq
        %v1960 = vand.u32 %v1959, 127
        %v1961 = vmov %v1960
        %v1962 = vlaneseq
        %v1963 = vshrl.u32 %v1962, 7
        %v1964 = vmov %v1963
        %v1965 = vadd.s32 %v1964, 104
        %vm1966 = vcmp.eq.s32.totalorder %v1965, %v1961
        %v1967 = vsel %vm1966, %v1958, 0.0
        %1968 = vadd.xlane.f32.xlu0 %v1967
        %v1969 = vpop.xlane.xlu0 %1968
        %s1970 = smov [#allocation23]
        %s1971 = scalar_lea.vmem %s1970, 104
        %1972 = vst [vmem:[%s1971] sm:$0xff] %v1969
        %s1973 = smov [#allocation21]
        %v1974 = vld [vmem:[%s1973] ss:$0 sm:$0xff]
        %v1975 = vlaneseq
        %v1976 = vand.u32 %v1975, 127
        %v1977 = vmov %v1976
        %v1978 = vlaneseq
        %v1979 = vshrl.u32 %v1978, 7
        %v1980 = vmov %v1979
        %v1981 = vadd.s32 %v1980, 112
        %vm1982 = vcmp.eq.s32.totalorder %v1981, %v1977
        %v1983 = vsel %vm1982, %v1974, 0.0
        %1984 = vadd.xlane.f32.xlu0 %v1983
        %v1985 = vpop.xlane.xlu0 %1984
        %s1986 = smov [#allocation23]
        %s1987 = scalar_lea.vmem %s1986, 112
        %1988 = vst [vmem:[%s1987] sm:$0xff] %v1985
        %s1989 = smov [#allocation21]
        %v1990 = vld [vmem:[%s1989] ss:$0 sm:$0xff]
        %v1991 = vlaneseq
        %v1992 = vand.u32 %v1991, 127
        %v1993 = vmov %v1992
        %v1994 = vlaneseq
        %v1995 = vshrl.u32 %v1994, 7
        %v1996 = vmov %v1995
        %v1997 = vadd.s32 %v1996, 120
        %vm1998 = vcmp.eq.s32.totalorder %v1997, %v1993
        %v1999 = vsel %vm1998, %v1990, 0.0
        %2000 = vadd.xlane.f32.xlu0 %v1999
        %v2001 = vpop.xlane.xlu0 %2000
        %s2002 = smov [#allocation23]
        %s2003 = scalar_lea.vmem %s2002, 120
        %2004 = vst [vmem:[%s2003] sm:$0xff] %v2001
        %s2005 = smov [#allocation22]
        %v2006 = vld [vmem:[%s2005] ss:$0 sm:$0xff]
        %v2007 = vlaneseq
        %v2008 = vand.u32 %v2007, 127
        %v2009 = vmov %v2008
        %v2010 = vlaneseq
        %v2011 = vshrl.u32 %v2010, 7
        %v2012 = vmov %v2011
        %vm2014 = vcmp.eq.s32.totalorder %v2012, %v2009
        %v2015 = vsel %vm2014, %v2006, 0.0
        %2016 = vadd.xlane.f32.xlu0 %v2015
        %v2017 = vpop.xlane.xlu0 %2016
        %s2018 = smov [#allocation24]
        %2019 = vst [vmem:[%s2018] sm:$0xff] %v2017
        %s2020 = smov [#allocation22]
        %v2021 = vld [vmem:[%s2020] ss:$0 sm:$0xff]
        %v2022 = vlaneseq
        %v2023 = vand.u32 %v2022, 127
        %v2024 = vmov %v2023
        %v2025 = vlaneseq
        %v2026 = vshrl.u32 %v2025, 7
        %v2027 = vmov %v2026
        %v2028 = vadd.s32 %v2027, 8
        %vm2029 = vcmp.eq.s32.totalorder %v2028, %v2024
        %v2030 = vsel %vm2029, %v2021, 0.0
        %2031 = vadd.xlane.f32.xlu0 %v2030
        %v2032 = vpop.xlane.xlu0 %2031
        %s2033 = smov [#allocation24]
        %s2034 = scalar_lea.vmem %s2033, 8
        %2035 = vst [vmem:[%s2034] sm:$0xff] %v2032
        %s2036 = smov [#allocation22]
        %v2037 = vld [vmem:[%s2036] ss:$0 sm:$0xff]
        %v2038 = vlaneseq
        %v2039 = vand.u32 %v2038, 127
        %v2040 = vmov %v2039
        %v2041 = vlaneseq
        %v2042 = vshrl.u32 %v2041, 7
        %v2043 = vmov %v2042
        %v2044 = vadd.s32 %v2043, 16
        %vm2045 = vcmp.eq.s32.totalorder %v2044, %v2040
        %v2046 = vsel %vm2045, %v2037, 0.0
        %2047 = vadd.xlane.f32.xlu0 %v2046
        %v2048 = vpop.xlane.xlu0 %2047
        %s2049 = smov [#allocation24]
        %s2050 = scalar_lea.vmem %s2049, 16
        %2051 = vst [vmem:[%s2050] sm:$0xff] %v2048
        %s2052 = smov [#allocation22]
        %v2053 = vld [vmem:[%s2052] ss:$0 sm:$0xff]
        %v2054 = vlaneseq
        %v2055 = vand.u32 %v2054, 127
        %v2056 = vmov %v2055
        %v2057 = vlaneseq
        %v2058 = vshrl.u32 %v2057, 7
        %v2059 = vmov %v2058
        %v2060 = vadd.s32 %v2059, 24
        %vm2061 = vcmp.eq.s32.totalorder %v2060, %v2056
        %v2062 = vsel %vm2061, %v2053, 0.0
        %2063 = vadd.xlane.f32.xlu0 %v2062
        %v2064 = vpop.xlane.xlu0 %2063
        %s2065 = smov [#allocation24]
        %s2066 = scalar_lea.vmem %s2065, 24
        %2067 = vst [vmem:[%s2066] sm:$0xff] %v2064
        %s2068 = smov [#allocation22]
        %v2069 = vld [vmem:[%s2068] ss:$0 sm:$0xff]
        %v2070 = vlaneseq
        %v2071 = vand.u32 %v2070, 127
        %v2072 = vmov %v2071
        %v2073 = vlaneseq
        %v2074 = vshrl.u32 %v2073, 7
        %v2075 = vmov %v2074
        %v2076 = vadd.s32 %v2075, 32
        %vm2077 = vcmp.eq.s32.totalorder %v2076, %v2072
        %v2078 = vsel %vm2077, %v2069, 0.0
        %2079 = vadd.xlane.f32.xlu0 %v2078
        %v2080 = vpop.xlane.xlu0 %2079
        %s2081 = smov [#allocation24]
        %s2082 = scalar_lea.vmem %s2081, 32
        %2083 = vst [vmem:[%s2082] sm:$0xff] %v2080
        %s2084 = smov [#allocation22]
        %v2085 = vld [vmem:[%s2084] ss:$0 sm:$0xff]
        %v2086 = vlaneseq
        %v2087 = vand.u32 %v2086, 127
        %v2088 = vmov %v2087
        %v2089 = vlaneseq
        %v2090 = vshrl.u32 %v2089, 7
        %v2091 = vmov %v2090
        %v2092 = vadd.s32 %v2091, 40
        %vm2093 = vcmp.eq.s32.totalorder %v2092, %v2088
        %v2094 = vsel %vm2093, %v2085, 0.0
        %2095 = vadd.xlane.f32.xlu0 %v2094
        %v2096 = vpop.xlane.xlu0 %2095
        %s2097 = smov [#allocation24]
        %s2098 = scalar_lea.vmem %s2097, 40
        %2099 = vst [vmem:[%s2098] sm:$0xff] %v2096
        %s2100 = smov [#allocation22]
        %v2101 = vld [vmem:[%s2100] ss:$0 sm:$0xff]
        %v2102 = vlaneseq
        %v2103 = vand.u32 %v2102, 127
        %v2104 = vmov %v2103
        %v2105 = vlaneseq
        %v2106 = vshrl.u32 %v2105, 7
        %v2107 = vmov %v2106
        %v2108 = vadd.s32 %v2107, 48
        %vm2109 = vcmp.eq.s32.totalorder %v2108, %v2104
        %v2110 = vsel %vm2109, %v2101, 0.0
        %2111 = vadd.xlane.f32.xlu0 %v2110
        %v2112 = vpop.xlane.xlu0 %2111
        %s2113 = smov [#allocation24]
        %s2114 = scalar_lea.vmem %s2113, 48
        %2115 = vst [vmem:[%s2114] sm:$0xff] %v2112
        %s2116 = smov [#allocation22]
        %v2117 = vld [vmem:[%s2116] ss:$0 sm:$0xff]
        %v2118 = vlaneseq
        %v2119 = vand.u32 %v2118, 127
        %v2120 = vmov %v2119
        %v2121 = vlaneseq
        %v2122 = vshrl.u32 %v2121, 7
        %v2123 = vmov %v2122
        %v2124 = vadd.s32 %v2123, 56
        %vm2125 = vcmp.eq.s32.totalorder %v2124, %v2120
        %v2126 = vsel %vm2125, %v2117, 0.0
        %2127 = vadd.xlane.f32.xlu0 %v2126
        %v2128 = vpop.xlane.xlu0 %2127
        %s2129 = smov [#allocation24]
        %s2130 = scalar_lea.vmem %s2129, 56
        %2131 = vst [vmem:[%s2130] sm:$0xff] %v2128
        %s2132 = smov [#allocation22]
        %v2133 = vld [vmem:[%s2132] ss:$0 sm:$0xff]
        %v2134 = vlaneseq
        %v2135 = vand.u32 %v2134, 127
        %v2136 = vmov %v2135
        %v2137 = vlaneseq
        %v2138 = vshrl.u32 %v2137, 7
        %v2139 = vmov %v2138
        %v2140 = vadd.s32 %v2139, 64
        %vm2141 = vcmp.eq.s32.totalorder %v2140, %v2136
        %v2142 = vsel %vm2141, %v2133, 0.0
        %2143 = vadd.xlane.f32.xlu0 %v2142
        %v2144 = vpop.xlane.xlu0 %2143
        %s2145 = smov [#allocation24]
        %s2146 = scalar_lea.vmem %s2145, 64
        %2147 = vst [vmem:[%s2146] sm:$0xff] %v2144
        %s2148 = smov [#allocation22]
        %v2149 = vld [vmem:[%s2148] ss:$0 sm:$0xff]
        %v2150 = vlaneseq
        %v2151 = vand.u32 %v2150, 127
        %v2152 = vmov %v2151
        %v2153 = vlaneseq
        %v2154 = vshrl.u32 %v2153, 7
        %v2155 = vmov %v2154
        %v2156 = vadd.s32 %v2155, 72
        %vm2157 = vcmp.eq.s32.totalorder %v2156, %v2152
        %v2158 = vsel %vm2157, %v2149, 0.0
        %2159 = vadd.xlane.f32.xlu0 %v2158
        %v2160 = vpop.xlane.xlu0 %2159
        %s2161 = smov [#allocation24]
        %s2162 = scalar_lea.vmem %s2161, 72
        %2163 = vst [vmem:[%s2162] sm:$0xff] %v2160
        %s2164 = smov [#allocation22]
        %v2165 = vld [vmem:[%s2164] ss:$0 sm:$0xff]
        %v2166 = vlaneseq
        %v2167 = vand.u32 %v2166, 127
        %v2168 = vmov %v2167
        %v2169 = vlaneseq
        %v2170 = vshrl.u32 %v2169, 7
        %v2171 = vmov %v2170
        %v2172 = vadd.s32 %v2171, 80
        %vm2173 = vcmp.eq.s32.totalorder %v2172, %v2168
        %v2174 = vsel %vm2173, %v2165, 0.0
        %2175 = vadd.xlane.f32.xlu0 %v2174
        %v2176 = vpop.xlane.xlu0 %2175
        %s2177 = smov [#allocation24]
        %s2178 = scalar_lea.vmem %s2177, 80
        %2179 = vst [vmem:[%s2178] sm:$0xff] %v2176
        %s2180 = smov [#allocation22]
        %v2181 = vld [vmem:[%s2180] ss:$0 sm:$0xff]
        %v2182 = vlaneseq
        %v2183 = vand.u32 %v2182, 127
        %v2184 = vmov %v2183
        %v2185 = vlaneseq
        %v2186 = vshrl.u32 %v2185, 7
        %v2187 = vmov %v2186
        %v2188 = vadd.s32 %v2187, 88
        %vm2189 = vcmp.eq.s32.totalorder %v2188, %v2184
        %v2190 = vsel %vm2189, %v2181, 0.0
        %2191 = vadd.xlane.f32.xlu0 %v2190
        %v2192 = vpop.xlane.xlu0 %2191
        %s2193 = smov [#allocation24]
        %s2194 = scalar_lea.vmem %s2193, 88
        %2195 = vst [vmem:[%s2194] sm:$0xff] %v2192
        %s2196 = smov [#allocation22]
        %v2197 = vld [vmem:[%s2196] ss:$0 sm:$0xff]
        %v2198 = vlaneseq
        %v2199 = vand.u32 %v2198, 127
        %v2200 = vmov %v2199
        %v2201 = vlaneseq
        %v2202 = vshrl.u32 %v2201, 7
        %v2203 = vmov %v2202
        %v2204 = vadd.s32 %v2203, 96
        %vm2205 = vcmp.eq.s32.totalorder %v2204, %v2200
        %v2206 = vsel %vm2205, %v2197, 0.0
        %2207 = vadd.xlane.f32.xlu0 %v2206
        %v2208 = vpop.xlane.xlu0 %2207
        %s2209 = smov [#allocation24]
        %s2210 = scalar_lea.vmem %s2209, 96
        %2211 = vst [vmem:[%s2210] sm:$0xff] %v2208
        %s2212 = smov [#allocation22]
        %v2213 = vld [vmem:[%s2212] ss:$0 sm:$0xff]
        %v2214 = vlaneseq
        %v2215 = vand.u32 %v2214, 127
        %v2216 = vmov %v2215
        %v2217 = vlaneseq
        %v2218 = vshrl.u32 %v2217, 7
        %v2219 = vmov %v2218
        %v2220 = vadd.s32 %v2219, 104
        %vm2221 = vcmp.eq.s32.totalorder %v2220, %v2216
        %v2222 = vsel %vm2221, %v2213, 0.0
        %2223 = vadd.xlane.f32.xlu0 %v2222
        %v2224 = vpop.xlane.xlu0 %2223
        %s2225 = smov [#allocation24]
        %s2226 = scalar_lea.vmem %s2225, 104
        %2227 = vst [vmem:[%s2226] sm:$0xff] %v2224
        %s2228 = smov [#allocation22]
        %v2229 = vld [vmem:[%s2228] ss:$0 sm:$0xff]
        %v2230 = vlaneseq
        %v2231 = vand.u32 %v2230, 127
        %v2232 = vmov %v2231
        %v2233 = vlaneseq
        %v2234 = vshrl.u32 %v2233, 7
        %v2235 = vmov %v2234
        %v2236 = vadd.s32 %v2235, 112
        %vm2237 = vcmp.eq.s32.totalorder %v2236, %v2232
        %v2238 = vsel %vm2237, %v2229, 0.0
        %2239 = vadd.xlane.f32.xlu0 %v2238
        %v2240 = vpop.xlane.xlu0 %2239
        %s2241 = smov [#allocation24]
        %s2242 = scalar_lea.vmem %s2241, 112
        %2243 = vst [vmem:[%s2242] sm:$0xff] %v2240
        %s2244 = smov [#allocation22]
        %v2245 = vld [vmem:[%s2244] ss:$0 sm:$0xff]
        %v2246 = vlaneseq
        %v2247 = vand.u32 %v2246, 127
        %v2248 = vmov %v2247
        %v2249 = vlaneseq
        %v2250 = vshrl.u32 %v2249, 7
        %v2251 = vmov %v2250
        %v2252 = vadd.s32 %v2251, 120
        %vm2253 = vcmp.eq.s32.totalorder %v2252, %v2248
        %v2254 = vsel %vm2253, %v2245, 0.0
        %2255 = vadd.xlane.f32.xlu0 %v2254
        %v2256 = vpop.xlane.xlu0 %2255
        %s2257 = smov [#allocation24]
        %s2258 = scalar_lea.vmem %s2257, 120
        %2259 = vst [vmem:[%s2258] sm:$0xff] %v2256
        %s2260 = smov [#allocation23]
        %v2261 = vld [vmem:[%s2260] sm:$0xff]
        %s2262 = smov [#allocation24]
        %v2263 = vld [vmem:[%s2262] sm:$0xff]
        %s2264 = smov [#allocation12]
        %s2265 = smov [#allocation13]
        %s2266 = smov [#allocation14]
        %s2267 = smov [#allocation15]
        %v2268 = vld [vmem:[%s2264] sm:$0xff]
        %v2269 = vld [vmem:[%s2265] sm:$0xff]
        %v2270 = vld [vmem:[%s2266] sm:$0xff]
        %v2271 = vld [vmem:[%s2267] sm:$0xff]
        %v2272 = vmul.f32 %v2261, %v2268
        %v2273 = vmul.f32 %v2263, %v2270
        %v2274 = vsub.f32 %v2272, %v2273
        %v2275 = vmul.f32 %v2261, %v2269
        %v2276 = vmul.f32 %v2263, %v2271
        %v2277 = vsub.f32 %v2275, %v2276
        %v2278 = vmul.f32 %v2263, %v2268
        %v2279 = vmul.f32 %v2261, %v2270
        %v2280 = vadd.f32 %v2278, %v2279
        %v2281 = vmul.f32 %v2263, %v2269
        %v2282 = vmul.f32 %v2261, %v2271
        %v2283 = vadd.f32 %v2281, %v2282
        %2284 = vst [vmem:[%s2264] sm:$0xff] %v2274
        %2285 = vst [vmem:[%s2265] sm:$0xff] %v2277
        %2286 = vst [vmem:[%s2266] sm:$0xff] %v2280
        %2287 = vst [vmem:[%s2267] sm:$0xff] %v2283
        %s2288 = smov [#allocation23]
        %s2289 = scalar_lea.vmem %s2288, 8
        %v2290 = vld [vmem:[%s2289] sm:$0xff]
        %s2291 = smov [#allocation24]
        %s2292 = scalar_lea.vmem %s2291, 8
        %v2293 = vld [vmem:[%s2292] sm:$0xff]
        %s2294 = smov [#allocation12]
        %s2295 = scalar_lea.vmem %s2294, 8
        %s2296 = smov [#allocation13]
        %s2297 = scalar_lea.vmem %s2296, 8
        %s2298 = smov [#allocation14]
        %s2299 = scalar_lea.vmem %s2298, 8
        %s2300 = smov [#allocation15]
        %s2301 = scalar_lea.vmem %s2300, 8
        %v2302 = vld [vmem:[%s2295] sm:$0xff]
        %v2303 = vld [vmem:[%s2297] sm:$0xff]
        %v2304 = vld [vmem:[%s2299] sm:$0xff]
        %v2305 = vld [vmem:[%s2301] sm:$0xff]
        %v2306 = vmul.f32 %v2290, %v2302
        %v2307 = vmul.f32 %v2293, %v2304
        %v2308 = vsub.f32 %v2306, %v2307
        %v2309 = vmul.f32 %v2290, %v2303
        %v2310 = vmul.f32 %v2293, %v2305
        %v2311 = vsub.f32 %v2309, %v2310
        %v2312 = vmul.f32 %v2293, %v2302
        %v2313 = vmul.f32 %v2290, %v2304
        %v2314 = vadd.f32 %v2312, %v2313
        %v2315 = vmul.f32 %v2293, %v2303
        %v2316 = vmul.f32 %v2290, %v2305
        %v2317 = vadd.f32 %v2315, %v2316
        %2318 = vst [vmem:[%s2295] sm:$0xff] %v2308
        %2319 = vst [vmem:[%s2297] sm:$0xff] %v2311
        %2320 = vst [vmem:[%s2299] sm:$0xff] %v2314
        %2321 = vst [vmem:[%s2301] sm:$0xff] %v2317
        %s2322 = smov [#allocation23]
        %s2323 = scalar_lea.vmem %s2322, 16
        %v2324 = vld [vmem:[%s2323] sm:$0xff]
        %s2325 = smov [#allocation24]
        %s2326 = scalar_lea.vmem %s2325, 16
        %v2327 = vld [vmem:[%s2326] sm:$0xff]
        %s2328 = smov [#allocation12]
        %s2329 = scalar_lea.vmem %s2328, 16
        %s2330 = smov [#allocation13]
        %s2331 = scalar_lea.vmem %s2330, 16
        %s2332 = smov [#allocation14]
        %s2333 = scalar_lea.vmem %s2332, 16
        %s2334 = smov [#allocation15]
        %s2335 = scalar_lea.vmem %s2334, 16
        %v2336 = vld [vmem:[%s2329] sm:$0xff]
        %v2337 = vld [vmem:[%s2331] sm:$0xff]
        %v2338 = vld [vmem:[%s2333] sm:$0xff]
        %v2339 = vld [vmem:[%s2335] sm:$0xff]
        %v2340 = vmul.f32 %v2324, %v2336
        %v2341 = vmul.f32 %v2327, %v2338
        %v2342 = vsub.f32 %v2340, %v2341
        %v2343 = vmul.f32 %v2324, %v2337
        %v2344 = vmul.f32 %v2327, %v2339
        %v2345 = vsub.f32 %v2343, %v2344
        %v2346 = vmul.f32 %v2327, %v2336
        %v2347 = vmul.f32 %v2324, %v2338
        %v2348 = vadd.f32 %v2346, %v2347
        %v2349 = vmul.f32 %v2327, %v2337
        %v2350 = vmul.f32 %v2324, %v2339
        %v2351 = vadd.f32 %v2349, %v2350
        %2352 = vst [vmem:[%s2329] sm:$0xff] %v2342
        %2353 = vst [vmem:[%s2331] sm:$0xff] %v2345
        %2354 = vst [vmem:[%s2333] sm:$0xff] %v2348
        %2355 = vst [vmem:[%s2335] sm:$0xff] %v2351
        %s2356 = smov [#allocation23]
        %s2357 = scalar_lea.vmem %s2356, 24
        %v2358 = vld [vmem:[%s2357] sm:$0xff]
        %s2359 = smov [#allocation24]
        %s2360 = scalar_lea.vmem %s2359, 24
        %v2361 = vld [vmem:[%s2360] sm:$0xff]
        %s2362 = smov [#allocation12]
        %s2363 = scalar_lea.vmem %s2362, 24
        %s2364 = smov [#allocation13]
        %s2365 = scalar_lea.vmem %s2364, 24
        %s2366 = smov [#allocation14]
        %s2367 = scalar_lea.vmem %s2366, 24
        %s2368 = smov [#allocation15]
        %s2369 = scalar_lea.vmem %s2368, 24
        %v2370 = vld [vmem:[%s2363] sm:$0xff]
        %v2371 = vld [vmem:[%s2365] sm:$0xff]
        %v2372 = vld [vmem:[%s2367] sm:$0xff]
        %v2373 = vld [vmem:[%s2369] sm:$0xff]
        %v2374 = vmul.f32 %v2358, %v2370
        %v2375 = vmul.f32 %v2361, %v2372
        %v2376 = vsub.f32 %v2374, %v2375
        %v2377 = vmul.f32 %v2358, %v2371
        %v2378 = vmul.f32 %v2361, %v2373
        %v2379 = vsub.f32 %v2377, %v2378
        %v2380 = vmul.f32 %v2361, %v2370
        %v2381 = vmul.f32 %v2358, %v2372
        %v2382 = vadd.f32 %v2380, %v2381
        %v2383 = vmul.f32 %v2361, %v2371
        %v2384 = vmul.f32 %v2358, %v2373
        %v2385 = vadd.f32 %v2383, %v2384
        %2386 = vst [vmem:[%s2363] sm:$0xff] %v2376
        %2387 = vst [vmem:[%s2365] sm:$0xff] %v2379
        %2388 = vst [vmem:[%s2367] sm:$0xff] %v2382
        %2389 = vst [vmem:[%s2369] sm:$0xff] %v2385
        %s2390 = smov [#allocation23]
        %s2391 = scalar_lea.vmem %s2390, 32
        %v2392 = vld [vmem:[%s2391] sm:$0xff]
        %s2393 = smov [#allocation24]
        %s2394 = scalar_lea.vmem %s2393, 32
        %v2395 = vld [vmem:[%s2394] sm:$0xff]
        %s2396 = smov [#allocation12]
        %s2397 = scalar_lea.vmem %s2396, 32
        %s2398 = smov [#allocation13]
        %s2399 = scalar_lea.vmem %s2398, 32
        %s2400 = smov [#allocation14]
        %s2401 = scalar_lea.vmem %s2400, 32
        %s2402 = smov [#allocation15]
        %s2403 = scalar_lea.vmem %s2402, 32
        %v2404 = vld [vmem:[%s2397] sm:$0xff]
        %v2405 = vld [vmem:[%s2399] sm:$0xff]
        %v2406 = vld [vmem:[%s2401] sm:$0xff]
        %v2407 = vld [vmem:[%s2403] sm:$0xff]
        %v2408 = vmul.f32 %v2392, %v2404
        %v2409 = vmul.f32 %v2395, %v2406
        %v2410 = vsub.f32 %v2408, %v2409
        %v2411 = vmul.f32 %v2392, %v2405
        %v2412 = vmul.f32 %v2395, %v2407
        %v2413 = vsub.f32 %v2411, %v2412
        %v2414 = vmul.f32 %v2395, %v2404
        %v2415 = vmul.f32 %v2392, %v2406
        %v2416 = vadd.f32 %v2414, %v2415
        %v2417 = vmul.f32 %v2395, %v2405
        %v2418 = vmul.f32 %v2392, %v2407
        %v2419 = vadd.f32 %v2417, %v2418
        %2420 = vst [vmem:[%s2397] sm:$0xff] %v2410
        %2421 = vst [vmem:[%s2399] sm:$0xff] %v2413
        %2422 = vst [vmem:[%s2401] sm:$0xff] %v2416
        %2423 = vst [vmem:[%s2403] sm:$0xff] %v2419
        %s2424 = smov [#allocation23]
        %s2425 = scalar_lea.vmem %s2424, 40
        %v2426 = vld [vmem:[%s2425] sm:$0xff]
        %s2427 = smov [#allocation24]
        %s2428 = scalar_lea.vmem %s2427, 40
        %v2429 = vld [vmem:[%s2428] sm:$0xff]
        %s2430 = smov [#allocation12]
        %s2431 = scalar_lea.vmem %s2430, 40
        %s2432 = smov [#allocation13]
        %s2433 = scalar_lea.vmem %s2432, 40
        %s2434 = smov [#allocation14]
        %s2435 = scalar_lea.vmem %s2434, 40
        %s2436 = smov [#allocation15]
        %s2437 = scalar_lea.vmem %s2436, 40
        %v2438 = vld [vmem:[%s2431] sm:$0xff]
        %v2439 = vld [vmem:[%s2433] sm:$0xff]
        %v2440 = vld [vmem:[%s2435] sm:$0xff]
        %v2441 = vld [vmem:[%s2437] sm:$0xff]
        %v2442 = vmul.f32 %v2426, %v2438
        %v2443 = vmul.f32 %v2429, %v2440
        %v2444 = vsub.f32 %v2442, %v2443
        %v2445 = vmul.f32 %v2426, %v2439
        %v2446 = vmul.f32 %v2429, %v2441
        %v2447 = vsub.f32 %v2445, %v2446
        %v2448 = vmul.f32 %v2429, %v2438
        %v2449 = vmul.f32 %v2426, %v2440
        %v2450 = vadd.f32 %v2448, %v2449
        %v2451 = vmul.f32 %v2429, %v2439
        %v2452 = vmul.f32 %v2426, %v2441
        %v2453 = vadd.f32 %v2451, %v2452
        %2454 = vst [vmem:[%s2431] sm:$0xff] %v2444
        %2455 = vst [vmem:[%s2433] sm:$0xff] %v2447
        %2456 = vst [vmem:[%s2435] sm:$0xff] %v2450
        %2457 = vst [vmem:[%s2437] sm:$0xff] %v2453
        %s2458 = smov [#allocation23]
        %s2459 = scalar_lea.vmem %s2458, 48
        %v2460 = vld [vmem:[%s2459] sm:$0xff]
        %s2461 = smov [#allocation24]
        %s2462 = scalar_lea.vmem %s2461, 48
        %v2463 = vld [vmem:[%s2462] sm:$0xff]
        %s2464 = smov [#allocation12]
        %s2465 = scalar_lea.vmem %s2464, 48
        %s2466 = smov [#allocation13]
        %s2467 = scalar_lea.vmem %s2466, 48
        %s2468 = smov [#allocation14]
        %s2469 = scalar_lea.vmem %s2468, 48
        %s2470 = smov [#allocation15]
        %s2471 = scalar_lea.vmem %s2470, 48
        %v2472 = vld [vmem:[%s2465] sm:$0xff]
        %v2473 = vld [vmem:[%s2467] sm:$0xff]
        %v2474 = vld [vmem:[%s2469] sm:$0xff]
        %v2475 = vld [vmem:[%s2471] sm:$0xff]
        %v2476 = vmul.f32 %v2460, %v2472
        %v2477 = vmul.f32 %v2463, %v2474
        %v2478 = vsub.f32 %v2476, %v2477
        %v2479 = vmul.f32 %v2460, %v2473
        %v2480 = vmul.f32 %v2463, %v2475
        %v2481 = vsub.f32 %v2479, %v2480
        %v2482 = vmul.f32 %v2463, %v2472
        %v2483 = vmul.f32 %v2460, %v2474
        %v2484 = vadd.f32 %v2482, %v2483
        %v2485 = vmul.f32 %v2463, %v2473
        %v2486 = vmul.f32 %v2460, %v2475
        %v2487 = vadd.f32 %v2485, %v2486
        %2488 = vst [vmem:[%s2465] sm:$0xff] %v2478
        %2489 = vst [vmem:[%s2467] sm:$0xff] %v2481
        %2490 = vst [vmem:[%s2469] sm:$0xff] %v2484
        %2491 = vst [vmem:[%s2471] sm:$0xff] %v2487
        %s2492 = smov [#allocation23]
        %s2493 = scalar_lea.vmem %s2492, 56
        %v2494 = vld [vmem:[%s2493] sm:$0xff]
        %s2495 = smov [#allocation24]
        %s2496 = scalar_lea.vmem %s2495, 56
        %v2497 = vld [vmem:[%s2496] sm:$0xff]
        %s2498 = smov [#allocation12]
        %s2499 = scalar_lea.vmem %s2498, 56
        %s2500 = smov [#allocation13]
        %s2501 = scalar_lea.vmem %s2500, 56
        %s2502 = smov [#allocation14]
        %s2503 = scalar_lea.vmem %s2502, 56
        %s2504 = smov [#allocation15]
        %s2505 = scalar_lea.vmem %s2504, 56
        %v2506 = vld [vmem:[%s2499] sm:$0xff]
        %v2507 = vld [vmem:[%s2501] sm:$0xff]
        %v2508 = vld [vmem:[%s2503] sm:$0xff]
        %v2509 = vld [vmem:[%s2505] sm:$0xff]
        %v2510 = vmul.f32 %v2494, %v2506
        %v2511 = vmul.f32 %v2497, %v2508
        %v2512 = vsub.f32 %v2510, %v2511
        %v2513 = vmul.f32 %v2494, %v2507
        %v2514 = vmul.f32 %v2497, %v2509
        %v2515 = vsub.f32 %v2513, %v2514
        %v2516 = vmul.f32 %v2497, %v2506
        %v2517 = vmul.f32 %v2494, %v2508
        %v2518 = vadd.f32 %v2516, %v2517
        %v2519 = vmul.f32 %v2497, %v2507
        %v2520 = vmul.f32 %v2494, %v2509
        %v2521 = vadd.f32 %v2519, %v2520
        %2522 = vst [vmem:[%s2499] sm:$0xff] %v2512
        %2523 = vst [vmem:[%s2501] sm:$0xff] %v2515
        %2524 = vst [vmem:[%s2503] sm:$0xff] %v2518
        %2525 = vst [vmem:[%s2505] sm:$0xff] %v2521
        %s2526 = smov [#allocation23]
        %s2527 = scalar_lea.vmem %s2526, 64
        %v2528 = vld [vmem:[%s2527] sm:$0xff]
        %s2529 = smov [#allocation24]
        %s2530 = scalar_lea.vmem %s2529, 64
        %v2531 = vld [vmem:[%s2530] sm:$0xff]
        %s2532 = smov [#allocation12]
        %s2533 = scalar_lea.vmem %s2532, 64
        %s2534 = smov [#allocation13]
        %s2535 = scalar_lea.vmem %s2534, 64
        %s2536 = smov [#allocation14]
        %s2537 = scalar_lea.vmem %s2536, 64
        %s2538 = smov [#allocation15]
        %s2539 = scalar_lea.vmem %s2538, 64
        %v2540 = vld [vmem:[%s2533] sm:$0xff]
        %v2541 = vld [vmem:[%s2535] sm:$0xff]
        %v2542 = vld [vmem:[%s2537] sm:$0xff]
        %v2543 = vld [vmem:[%s2539] sm:$0xff]
        %v2544 = vmul.f32 %v2528, %v2540
        %v2545 = vmul.f32 %v2531, %v2542
        %v2546 = vsub.f32 %v2544, %v2545
        %v2547 = vmul.f32 %v2528, %v2541
        %v2548 = vmul.f32 %v2531, %v2543
        %v2549 = vsub.f32 %v2547, %v2548
        %v2550 = vmul.f32 %v2531, %v2540
        %v2551 = vmul.f32 %v2528, %v2542
        %v2552 = vadd.f32 %v2550, %v2551
        %v2553 = vmul.f32 %v2531, %v2541
        %v2554 = vmul.f32 %v2528, %v2543
        %v2555 = vadd.f32 %v2553, %v2554
        %2556 = vst [vmem:[%s2533] sm:$0xff] %v2546
        %2557 = vst [vmem:[%s2535] sm:$0xff] %v2549
        %2558 = vst [vmem:[%s2537] sm:$0xff] %v2552
        %2559 = vst [vmem:[%s2539] sm:$0xff] %v2555
        %s2560 = smov [#allocation23]
        %s2561 = scalar_lea.vmem %s2560, 72
        %v2562 = vld [vmem:[%s2561] sm:$0xff]
        %s2563 = smov [#allocation24]
        %s2564 = scalar_lea.vmem %s2563, 72
        %v2565 = vld [vmem:[%s2564] sm:$0xff]
        %s2566 = smov [#allocation12]
        %s2567 = scalar_lea.vmem %s2566, 72
        %s2568 = smov [#allocation13]
        %s2569 = scalar_lea.vmem %s2568, 72
        %s2570 = smov [#allocation14]
        %s2571 = scalar_lea.vmem %s2570, 72
        %s2572 = smov [#allocation15]
        %s2573 = scalar_lea.vmem %s2572, 72
        %v2574 = vld [vmem:[%s2567] sm:$0xff]
        %v2575 = vld [vmem:[%s2569] sm:$0xff]
        %v2576 = vld [vmem:[%s2571] sm:$0xff]
        %v2577 = vld [vmem:[%s2573] sm:$0xff]
        %v2578 = vmul.f32 %v2562, %v2574
        %v2579 = vmul.f32 %v2565, %v2576
        %v2580 = vsub.f32 %v2578, %v2579
        %v2581 = vmul.f32 %v2562, %v2575
        %v2582 = vmul.f32 %v2565, %v2577
        %v2583 = vsub.f32 %v2581, %v2582
        %v2584 = vmul.f32 %v2565, %v2574
        %v2585 = vmul.f32 %v2562, %v2576
        %v2586 = vadd.f32 %v2584, %v2585
        %v2587 = vmul.f32 %v2565, %v2575
        %v2588 = vmul.f32 %v2562, %v2577
        %v2589 = vadd.f32 %v2587, %v2588
        %2590 = vst [vmem:[%s2567] sm:$0xff] %v2580
        %2591 = vst [vmem:[%s2569] sm:$0xff] %v2583
        %2592 = vst [vmem:[%s2571] sm:$0xff] %v2586
        %2593 = vst [vmem:[%s2573] sm:$0xff] %v2589
        %s2594 = smov [#allocation23]
        %s2595 = scalar_lea.vmem %s2594, 80
        %v2596 = vld [vmem:[%s2595] sm:$0xff]
        %s2597 = smov [#allocation24]
        %s2598 = scalar_lea.vmem %s2597, 80
        %v2599 = vld [vmem:[%s2598] sm:$0xff]
        %s2600 = smov [#allocation12]
        %s2601 = scalar_lea.vmem %s2600, 80
        %s2602 = smov [#allocation13]
        %s2603 = scalar_lea.vmem %s2602, 80
        %s2604 = smov [#allocation14]
        %s2605 = scalar_lea.vmem %s2604, 80
        %s2606 = smov [#allocation15]
        %s2607 = scalar_lea.vmem %s2606, 80
        %v2608 = vld [vmem:[%s2601] sm:$0xff]
        %v2609 = vld [vmem:[%s2603] sm:$0xff]
        %v2610 = vld [vmem:[%s2605] sm:$0xff]
        %v2611 = vld [vmem:[%s2607] sm:$0xff]
        %v2612 = vmul.f32 %v2596, %v2608
        %v2613 = vmul.f32 %v2599, %v2610
        %v2614 = vsub.f32 %v2612, %v2613
        %v2615 = vmul.f32 %v2596, %v2609
        %v2616 = vmul.f32 %v2599, %v2611
        %v2617 = vsub.f32 %v2615, %v2616
        %v2618 = vmul.f32 %v2599, %v2608
        %v2619 = vmul.f32 %v2596, %v2610
        %v2620 = vadd.f32 %v2618, %v2619
        %v2621 = vmul.f32 %v2599, %v2609
        %v2622 = vmul.f32 %v2596, %v2611
        %v2623 = vadd.f32 %v2621, %v2622
        %2624 = vst [vmem:[%s2601] sm:$0xff] %v2614
        %2625 = vst [vmem:[%s2603] sm:$0xff] %v2617
        %2626 = vst [vmem:[%s2605] sm:$0xff] %v2620
        %2627 = vst [vmem:[%s2607] sm:$0xff] %v2623
        %s2628 = smov [#allocation23]
        %s2629 = scalar_lea.vmem %s2628, 88
        %v2630 = vld [vmem:[%s2629] sm:$0xff]
        %s2631 = smov [#allocation24]
        %s2632 = scalar_lea.vmem %s2631, 88
        %v2633 = vld [vmem:[%s2632] sm:$0xff]
        %s2634 = smov [#allocation12]
        %s2635 = scalar_lea.vmem %s2634, 88
        %s2636 = smov [#allocation13]
        %s2637 = scalar_lea.vmem %s2636, 88
        %s2638 = smov [#allocation14]
        %s2639 = scalar_lea.vmem %s2638, 88
        %s2640 = smov [#allocation15]
        %s2641 = scalar_lea.vmem %s2640, 88
        %v2642 = vld [vmem:[%s2635] sm:$0xff]
        %v2643 = vld [vmem:[%s2637] sm:$0xff]
        %v2644 = vld [vmem:[%s2639] sm:$0xff]
        %v2645 = vld [vmem:[%s2641] sm:$0xff]
        %v2646 = vmul.f32 %v2630, %v2642
        %v2647 = vmul.f32 %v2633, %v2644
        %v2648 = vsub.f32 %v2646, %v2647
        %v2649 = vmul.f32 %v2630, %v2643
        %v2650 = vmul.f32 %v2633, %v2645
        %v2651 = vsub.f32 %v2649, %v2650
        %v2652 = vmul.f32 %v2633, %v2642
        %v2653 = vmul.f32 %v2630, %v2644
        %v2654 = vadd.f32 %v2652, %v2653
        %v2655 = vmul.f32 %v2633, %v2643
        %v2656 = vmul.f32 %v2630, %v2645
        %v2657 = vadd.f32 %v2655, %v2656
        %2658 = vst [vmem:[%s2635] sm:$0xff] %v2648
        %2659 = vst [vmem:[%s2637] sm:$0xff] %v2651
        %2660 = vst [vmem:[%s2639] sm:$0xff] %v2654
        %2661 = vst [vmem:[%s2641] sm:$0xff] %v2657
        %s2662 = smov [#allocation23]
        %s2663 = scalar_lea.vmem %s2662, 96
        %v2664 = vld [vmem:[%s2663] sm:$0xff]
        %s2665 = smov [#allocation24]
        %s2666 = scalar_lea.vmem %s2665, 96
        %v2667 = vld [vmem:[%s2666] sm:$0xff]
        %s2668 = smov [#allocation12]
        %s2669 = scalar_lea.vmem %s2668, 96
        %s2670 = smov [#allocation13]
        %s2671 = scalar_lea.vmem %s2670, 96
        %s2672 = smov [#allocation14]
        %s2673 = scalar_lea.vmem %s2672, 96
        %s2674 = smov [#allocation15]
        %s2675 = scalar_lea.vmem %s2674, 96
        %v2676 = vld [vmem:[%s2669] sm:$0xff]
        %v2677 = vld [vmem:[%s2671] sm:$0xff]
        %v2678 = vld [vmem:[%s2673] sm:$0xff]
        %v2679 = vld [vmem:[%s2675] sm:$0xff]
        %v2680 = vmul.f32 %v2664, %v2676
        %v2681 = vmul.f32 %v2667, %v2678
        %v2682 = vsub.f32 %v2680, %v2681
        %v2683 = vmul.f32 %v2664, %v2677
        %v2684 = vmul.f32 %v2667, %v2679
        %v2685 = vsub.f32 %v2683, %v2684
        %v2686 = vmul.f32 %v2667, %v2676
        %v2687 = vmul.f32 %v2664, %v2678
        %v2688 = vadd.f32 %v2686, %v2687
        %v2689 = vmul.f32 %v2667, %v2677
        %v2690 = vmul.f32 %v2664, %v2679
        %v2691 = vadd.f32 %v2689, %v2690
        %2692 = vst [vmem:[%s2669] sm:$0xff] %v2682
        %2693 = vst [vmem:[%s2671] sm:$0xff] %v2685
        %2694 = vst [vmem:[%s2673] sm:$0xff] %v2688
        %2695 = vst [vmem:[%s2675] sm:$0xff] %v2691
        %s2696 = smov [#allocation23]
        %s2697 = scalar_lea.vmem %s2696, 104
        %v2698 = vld [vmem:[%s2697] sm:$0xff]
        %s2699 = smov [#allocation24]
        %s2700 = scalar_lea.vmem %s2699, 104
        %v2701 = vld [vmem:[%s2700] sm:$0xff]
        %s2702 = smov [#allocation12]
        %s2703 = scalar_lea.vmem %s2702, 104
        %s2704 = smov [#allocation13]
        %s2705 = scalar_lea.vmem %s2704, 104
        %s2706 = smov [#allocation14]
        %s2707 = scalar_lea.vmem %s2706, 104
        %s2708 = smov [#allocation15]
        %s2709 = scalar_lea.vmem %s2708, 104
        %v2710 = vld [vmem:[%s2703] sm:$0xff]
        %v2711 = vld [vmem:[%s2705] sm:$0xff]
        %v2712 = vld [vmem:[%s2707] sm:$0xff]
        %v2713 = vld [vmem:[%s2709] sm:$0xff]
        %v2714 = vmul.f32 %v2698, %v2710
        %v2715 = vmul.f32 %v2701, %v2712
        %v2716 = vsub.f32 %v2714, %v2715
        %v2717 = vmul.f32 %v2698, %v2711
        %v2718 = vmul.f32 %v2701, %v2713
        %v2719 = vsub.f32 %v2717, %v2718
        %v2720 = vmul.f32 %v2701, %v2710
        %v2721 = vmul.f32 %v2698, %v2712
        %v2722 = vadd.f32 %v2720, %v2721
        %v2723 = vmul.f32 %v2701, %v2711
        %v2724 = vmul.f32 %v2698, %v2713
        %v2725 = vadd.f32 %v2723, %v2724
        %2726 = vst [vmem:[%s2703] sm:$0xff] %v2716
        %2727 = vst [vmem:[%s2705] sm:$0xff] %v2719
        %2728 = vst [vmem:[%s2707] sm:$0xff] %v2722
        %2729 = vst [vmem:[%s2709] sm:$0xff] %v2725
        %s2730 = smov [#allocation23]
        %s2731 = scalar_lea.vmem %s2730, 112
        %v2732 = vld [vmem:[%s2731] sm:$0xff]
        %s2733 = smov [#allocation24]
        %s2734 = scalar_lea.vmem %s2733, 112
        %v2735 = vld [vmem:[%s2734] sm:$0xff]
        %s2736 = smov [#allocation12]
        %s2737 = scalar_lea.vmem %s2736, 112
        %s2738 = smov [#allocation13]
        %s2739 = scalar_lea.vmem %s2738, 112
        %s2740 = smov [#allocation14]
        %s2741 = scalar_lea.vmem %s2740, 112
        %s2742 = smov [#allocation15]
        %s2743 = scalar_lea.vmem %s2742, 112
        %v2744 = vld [vmem:[%s2737] sm:$0xff]
        %v2745 = vld [vmem:[%s2739] sm:$0xff]
        %v2746 = vld [vmem:[%s2741] sm:$0xff]
        %v2747 = vld [vmem:[%s2743] sm:$0xff]
        %v2748 = vmul.f32 %v2732, %v2744
        %v2749 = vmul.f32 %v2735, %v2746
        %v2750 = vsub.f32 %v2748, %v2749
        %v2751 = vmul.f32 %v2732, %v2745
        %v2752 = vmul.f32 %v2735, %v2747
        %v2753 = vsub.f32 %v2751, %v2752
        %v2754 = vmul.f32 %v2735, %v2744
        %v2755 = vmul.f32 %v2732, %v2746
        %v2756 = vadd.f32 %v2754, %v2755
        %v2757 = vmul.f32 %v2735, %v2745
        %v2758 = vmul.f32 %v2732, %v2747
        %v2759 = vadd.f32 %v2757, %v2758
        %2760 = vst [vmem:[%s2737] sm:$0xff] %v2750
        %2761 = vst [vmem:[%s2739] sm:$0xff] %v2753
        %2762 = vst [vmem:[%s2741] sm:$0xff] %v2756
        %2763 = vst [vmem:[%s2743] sm:$0xff] %v2759
        %s2764 = smov [#allocation23]
        %s2765 = scalar_lea.vmem %s2764, 120
        %v2766 = vld [vmem:[%s2765] sm:$0xff]
        %s2767 = smov [#allocation24]
        %s2768 = scalar_lea.vmem %s2767, 120
        %v2769 = vld [vmem:[%s2768] sm:$0xff]
        %s2770 = smov [#allocation12]
        %s2771 = scalar_lea.vmem %s2770, 120
        %s2772 = smov [#allocation13]
        %s2773 = scalar_lea.vmem %s2772, 120
        %s2774 = smov [#allocation14]
        %s2775 = scalar_lea.vmem %s2774, 120
        %s2776 = smov [#allocation15]
        %s2777 = scalar_lea.vmem %s2776, 120
        %v2778 = vld [vmem:[%s2771] sm:$0xff]
        %v2779 = vld [vmem:[%s2773] sm:$0xff]
        %v2780 = vld [vmem:[%s2775] sm:$0xff]
        %v2781 = vld [vmem:[%s2777] sm:$0xff]
        %v2782 = vmul.f32 %v2766, %v2778
        %v2783 = vmul.f32 %v2769, %v2780
        %v2784 = vsub.f32 %v2782, %v2783
        %v2785 = vmul.f32 %v2766, %v2779
        %v2786 = vmul.f32 %v2769, %v2781
        %v2787 = vsub.f32 %v2785, %v2786
        %v2788 = vmul.f32 %v2769, %v2778
        %v2789 = vmul.f32 %v2766, %v2780
        %v2790 = vadd.f32 %v2788, %v2789
        %v2791 = vmul.f32 %v2769, %v2779
        %v2792 = vmul.f32 %v2766, %v2781
        %v2793 = vadd.f32 %v2791, %v2792
        %2794 = vst [vmem:[%s2771] sm:$0xff] %v2784
        %2795 = vst [vmem:[%s2773] sm:$0xff] %v2787
        %2796 = vst [vmem:[%s2775] sm:$0xff] %v2790
        %2797 = vst [vmem:[%s2777] sm:$0xff] %v2793
        %s2798 = smov [#allocation21]
        %v2799 = vld [vmem:[%s2798] ss:$0 sm:$0xff]
        %s2800 = smov [#allocation22]
        %v2801 = vld [vmem:[%s2800] ss:$0 sm:$0xff]
        %s2802 = smov [#allocation12]
        %s2803 = smov [#allocation13]
        %s2804 = smov [#allocation14]
        %s2805 = smov [#allocation15]
        %v2806 = vld [vmem:[%s2802] sm:$0xff]
        %v2807 = vld [vmem:[%s2803] sm:$0xff]
        %v2808 = vld [vmem:[%s2804] sm:$0xff]
        %v2809 = vld [vmem:[%s2805] sm:$0xff]
        %v2810 = vmul.f32 %v2799, %v2806
        %v2811 = vmul.f32 %v2801, %v2807
        %v2812 = vsub.f32 %v2810, %v2811
        %v2813 = vmul.f32 %v2801, %v2806
        %v2814 = vmul.f32 %v2799, %v2807
        %v2815 = vadd.f32 %v2813, %v2814
        %v2816 = vmul.f32 %v2799, %v2808
        %v2817 = vmul.f32 %v2801, %v2809
        %v2818 = vsub.f32 %v2816, %v2817
        %v2819 = vmul.f32 %v2801, %v2808
        %v2820 = vmul.f32 %v2799, %v2809
        %v2821 = vadd.f32 %v2819, %v2820
        %2822 = vst [vmem:[%s2802] sm:$0xff] %v2812
        %2823 = vst [vmem:[%s2803] sm:$0xff] %v2815
        %2824 = vst [vmem:[%s2804] sm:$0xff] %v2818
        %2825 = vst [vmem:[%s2805] sm:$0xff] %v2821
        %s2826 = smov [#allocation12]
        %s2827 = scalar_lea.vmem %s2826, 8
        %s2828 = smov [#allocation13]
        %s2829 = scalar_lea.vmem %s2828, 8
        %s2830 = smov [#allocation14]
        %s2831 = scalar_lea.vmem %s2830, 8
        %s2832 = smov [#allocation15]
        %s2833 = scalar_lea.vmem %s2832, 8
        %v2834 = vld [vmem:[%s2827] sm:$0xff]
        %v2835 = vld [vmem:[%s2829] sm:$0xff]
        %v2836 = vld [vmem:[%s2831] sm:$0xff]
        %v2837 = vld [vmem:[%s2833] sm:$0xff]
        %v2838 = vmul.f32 %v2799, %v2834
        %v2839 = vmul.f32 %v2801, %v2835
        %v2840 = vsub.f32 %v2838, %v2839
        %v2841 = vmul.f32 %v2801, %v2834
        %v2842 = vmul.f32 %v2799, %v2835
        %v2843 = vadd.f32 %v2841, %v2842
        %v2844 = vmul.f32 %v2799, %v2836
        %v2845 = vmul.f32 %v2801, %v2837
        %v2846 = vsub.f32 %v2844, %v2845
        %v2847 = vmul.f32 %v2801, %v2836
        %v2848 = vmul.f32 %v2799, %v2837
        %v2849 = vadd.f32 %v2847, %v2848
        %2850 = vst [vmem:[%s2827] sm:$0xff] %v2840
        %2851 = vst [vmem:[%s2829] sm:$0xff] %v2843
        %2852 = vst [vmem:[%s2831] sm:$0xff] %v2846
        %2853 = vst [vmem:[%s2833] sm:$0xff] %v2849
        %s2854 = smov [#allocation12]
        %s2855 = scalar_lea.vmem %s2854, 16
        %s2856 = smov [#allocation13]
        %s2857 = scalar_lea.vmem %s2856, 16
        %s2858 = smov [#allocation14]
        %s2859 = scalar_lea.vmem %s2858, 16
        %s2860 = smov [#allocation15]
        %s2861 = scalar_lea.vmem %s2860, 16
        %v2862 = vld [vmem:[%s2855] sm:$0xff]
        %v2863 = vld [vmem:[%s2857] sm:$0xff]
        %v2864 = vld [vmem:[%s2859] sm:$0xff]
        %v2865 = vld [vmem:[%s2861] sm:$0xff]
        %v2866 = vmul.f32 %v2799, %v2862
        %v2867 = vmul.f32 %v2801, %v2863
        %v2868 = vsub.f32 %v2866, %v2867
        %v2869 = vmul.f32 %v2801, %v2862
        %v2870 = vmul.f32 %v2799, %v2863
        %v2871 = vadd.f32 %v2869, %v2870
        %v2872 = vmul.f32 %v2799, %v2864
        %v2873 = vmul.f32 %v2801, %v2865
        %v2874 = vsub.f32 %v2872, %v2873
        %v2875 = vmul.f32 %v2801, %v2864
        %v2876 = vmul.f32 %v2799, %v2865
        %v2877 = vadd.f32 %v2875, %v2876
        %2878 = vst [vmem:[%s2855] sm:$0xff] %v2868
        %2879 = vst [vmem:[%s2857] sm:$0xff] %v2871
        %2880 = vst [vmem:[%s2859] sm:$0xff] %v2874
        %2881 = vst [vmem:[%s2861] sm:$0xff] %v2877
        %s2882 = smov [#allocation12]
        %s2883 = scalar_lea.vmem %s2882, 24
        %s2884 = smov [#allocation13]
        %s2885 = scalar_lea.vmem %s2884, 24
        %s2886 = smov [#allocation14]
        %s2887 = scalar_lea.vmem %s2886, 24
        %s2888 = smov [#allocation15]
        %s2889 = scalar_lea.vmem %s2888, 24
        %v2890 = vld [vmem:[%s2883] sm:$0xff]
        %v2891 = vld [vmem:[%s2885] sm:$0xff]
        %v2892 = vld [vmem:[%s2887] sm:$0xff]
        %v2893 = vld [vmem:[%s2889] sm:$0xff]
        %v2894 = vmul.f32 %v2799, %v2890
        %v2895 = vmul.f32 %v2801, %v2891
        %v2896 = vsub.f32 %v2894, %v2895
        %v2897 = vmul.f32 %v2801, %v2890
        %v2898 = vmul.f32 %v2799, %v2891
        %v2899 = vadd.f32 %v2897, %v2898
        %v2900 = vmul.f32 %v2799, %v2892
        %v2901 = vmul.f32 %v2801, %v2893
        %v2902 = vsub.f32 %v2900, %v2901
        %v2903 = vmul.f32 %v2801, %v2892
        %v2904 = vmul.f32 %v2799, %v2893
        %v2905 = vadd.f32 %v2903, %v2904
        %2906 = vst [vmem:[%s2883] sm:$0xff] %v2896
        %2907 = vst [vmem:[%s2885] sm:$0xff] %v2899
        %2908 = vst [vmem:[%s2887] sm:$0xff] %v2902
        %2909 = vst [vmem:[%s2889] sm:$0xff] %v2905
        %s2910 = smov [#allocation12]
        %s2911 = scalar_lea.vmem %s2910, 32
        %s2912 = smov [#allocation13]
        %s2913 = scalar_lea.vmem %s2912, 32
        %s2914 = smov [#allocation14]
        %s2915 = scalar_lea.vmem %s2914, 32
        %s2916 = smov [#allocation15]
        %s2917 = scalar_lea.vmem %s2916, 32
        %v2918 = vld [vmem:[%s2911] sm:$0xff]
        %v2919 = vld [vmem:[%s2913] sm:$0xff]
        %v2920 = vld [vmem:[%s2915] sm:$0xff]
        %v2921 = vld [vmem:[%s2917] sm:$0xff]
        %v2922 = vmul.f32 %v2799, %v2918
        %v2923 = vmul.f32 %v2801, %v2919
        %v2924 = vsub.f32 %v2922, %v2923
        %v2925 = vmul.f32 %v2801, %v2918
        %v2926 = vmul.f32 %v2799, %v2919
        %v2927 = vadd.f32 %v2925, %v2926
        %v2928 = vmul.f32 %v2799, %v2920
        %v2929 = vmul.f32 %v2801, %v2921
        %v2930 = vsub.f32 %v2928, %v2929
        %v2931 = vmul.f32 %v2801, %v2920
        %v2932 = vmul.f32 %v2799, %v2921
        %v2933 = vadd.f32 %v2931, %v2932
        %2934 = vst [vmem:[%s2911] sm:$0xff] %v2924
        %2935 = vst [vmem:[%s2913] sm:$0xff] %v2927
        %2936 = vst [vmem:[%s2915] sm:$0xff] %v2930
        %2937 = vst [vmem:[%s2917] sm:$0xff] %v2933
        %s2938 = smov [#allocation12]
        %s2939 = scalar_lea.vmem %s2938, 40
        %s2940 = smov [#allocation13]
        %s2941 = scalar_lea.vmem %s2940, 40
        %s2942 = smov [#allocation14]
        %s2943 = scalar_lea.vmem %s2942, 40
        %s2944 = smov [#allocation15]
        %s2945 = scalar_lea.vmem %s2944, 40
        %v2946 = vld [vmem:[%s2939] sm:$0xff]
        %v2947 = vld [vmem:[%s2941] sm:$0xff]
        %v2948 = vld [vmem:[%s2943] sm:$0xff]
        %v2949 = vld [vmem:[%s2945] sm:$0xff]
        %v2950 = vmul.f32 %v2799, %v2946
        %v2951 = vmul.f32 %v2801, %v2947
        %v2952 = vsub.f32 %v2950, %v2951
        %v2953 = vmul.f32 %v2801, %v2946
        %v2954 = vmul.f32 %v2799, %v2947
        %v2955 = vadd.f32 %v2953, %v2954
        %v2956 = vmul.f32 %v2799, %v2948
        %v2957 = vmul.f32 %v2801, %v2949
        %v2958 = vsub.f32 %v2956, %v2957
        %v2959 = vmul.f32 %v2801, %v2948
        %v2960 = vmul.f32 %v2799, %v2949
        %v2961 = vadd.f32 %v2959, %v2960
        %2962 = vst [vmem:[%s2939] sm:$0xff] %v2952
        %2963 = vst [vmem:[%s2941] sm:$0xff] %v2955
        %2964 = vst [vmem:[%s2943] sm:$0xff] %v2958
        %2965 = vst [vmem:[%s2945] sm:$0xff] %v2961
        %s2966 = smov [#allocation12]
        %s2967 = scalar_lea.vmem %s2966, 48
        %s2968 = smov [#allocation13]
        %s2969 = scalar_lea.vmem %s2968, 48
        %s2970 = smov [#allocation14]
        %s2971 = scalar_lea.vmem %s2970, 48
        %s2972 = smov [#allocation15]
        %s2973 = scalar_lea.vmem %s2972, 48
        %v2974 = vld [vmem:[%s2967] sm:$0xff]
        %v2975 = vld [vmem:[%s2969] sm:$0xff]
        %v2976 = vld [vmem:[%s2971] sm:$0xff]
        %v2977 = vld [vmem:[%s2973] sm:$0xff]
        %v2978 = vmul.f32 %v2799, %v2974
        %v2979 = vmul.f32 %v2801, %v2975
        %v2980 = vsub.f32 %v2978, %v2979
        %v2981 = vmul.f32 %v2801, %v2974
        %v2982 = vmul.f32 %v2799, %v2975
        %v2983 = vadd.f32 %v2981, %v2982
        %v2984 = vmul.f32 %v2799, %v2976
        %v2985 = vmul.f32 %v2801, %v2977
        %v2986 = vsub.f32 %v2984, %v2985
        %v2987 = vmul.f32 %v2801, %v2976
        %v2988 = vmul.f32 %v2799, %v2977
        %v2989 = vadd.f32 %v2987, %v2988
        %2990 = vst [vmem:[%s2967] sm:$0xff] %v2980
        %2991 = vst [vmem:[%s2969] sm:$0xff] %v2983
        %2992 = vst [vmem:[%s2971] sm:$0xff] %v2986
        %2993 = vst [vmem:[%s2973] sm:$0xff] %v2989
        %s2994 = smov [#allocation12]
        %s2995 = scalar_lea.vmem %s2994, 56
        %s2996 = smov [#allocation13]
        %s2997 = scalar_lea.vmem %s2996, 56
        %s2998 = smov [#allocation14]
        %s2999 = scalar_lea.vmem %s2998, 56
        %s3000 = smov [#allocation15]
        %s3001 = scalar_lea.vmem %s3000, 56
        %v3002 = vld [vmem:[%s2995] sm:$0xff]
        %v3003 = vld [vmem:[%s2997] sm:$0xff]
        %v3004 = vld [vmem:[%s2999] sm:$0xff]
        %v3005 = vld [vmem:[%s3001] sm:$0xff]
        %v3006 = vmul.f32 %v2799, %v3002
        %v3007 = vmul.f32 %v2801, %v3003
        %v3008 = vsub.f32 %v3006, %v3007
        %v3009 = vmul.f32 %v2801, %v3002
        %v3010 = vmul.f32 %v2799, %v3003
        %v3011 = vadd.f32 %v3009, %v3010
        %v3012 = vmul.f32 %v2799, %v3004
        %v3013 = vmul.f32 %v2801, %v3005
        %v3014 = vsub.f32 %v3012, %v3013
        %v3015 = vmul.f32 %v2801, %v3004
        %v3016 = vmul.f32 %v2799, %v3005
        %v3017 = vadd.f32 %v3015, %v3016
        %3018 = vst [vmem:[%s2995] sm:$0xff] %v3008
        %3019 = vst [vmem:[%s2997] sm:$0xff] %v3011
        %3020 = vst [vmem:[%s2999] sm:$0xff] %v3014
        %3021 = vst [vmem:[%s3001] sm:$0xff] %v3017
        %s3022 = smov [#allocation12]
        %s3023 = scalar_lea.vmem %s3022, 64
        %s3024 = smov [#allocation13]
        %s3025 = scalar_lea.vmem %s3024, 64
        %s3026 = smov [#allocation14]
        %s3027 = scalar_lea.vmem %s3026, 64
        %s3028 = smov [#allocation15]
        %s3029 = scalar_lea.vmem %s3028, 64
        %v3030 = vld [vmem:[%s3023] sm:$0xff]
        %v3031 = vld [vmem:[%s3025] sm:$0xff]
        %v3032 = vld [vmem:[%s3027] sm:$0xff]
        %v3033 = vld [vmem:[%s3029] sm:$0xff]
        %v3034 = vmul.f32 %v2799, %v3030
        %v3035 = vmul.f32 %v2801, %v3031
        %v3036 = vsub.f32 %v3034, %v3035
        %v3037 = vmul.f32 %v2801, %v3030
        %v3038 = vmul.f32 %v2799, %v3031
        %v3039 = vadd.f32 %v3037, %v3038
        %v3040 = vmul.f32 %v2799, %v3032
        %v3041 = vmul.f32 %v2801, %v3033
        %v3042 = vsub.f32 %v3040, %v3041
        %v3043 = vmul.f32 %v2801, %v3032
        %v3044 = vmul.f32 %v2799, %v3033
        %v3045 = vadd.f32 %v3043, %v3044
        %3046 = vst [vmem:[%s3023] sm:$0xff] %v3036
        %3047 = vst [vmem:[%s3025] sm:$0xff] %v3039
        %3048 = vst [vmem:[%s3027] sm:$0xff] %v3042
        %3049 = vst [vmem:[%s3029] sm:$0xff] %v3045
        %s3050 = smov [#allocation12]
        %s3051 = scalar_lea.vmem %s3050, 72
        %s3052 = smov [#allocation13]
        %s3053 = scalar_lea.vmem %s3052, 72
        %s3054 = smov [#allocation14]
        %s3055 = scalar_lea.vmem %s3054, 72
        %s3056 = smov [#allocation15]
        %s3057 = scalar_lea.vmem %s3056, 72
        %v3058 = vld [vmem:[%s3051] sm:$0xff]
        %v3059 = vld [vmem:[%s3053] sm:$0xff]
        %v3060 = vld [vmem:[%s3055] sm:$0xff]
        %v3061 = vld [vmem:[%s3057] sm:$0xff]
        %v3062 = vmul.f32 %v2799, %v3058
        %v3063 = vmul.f32 %v2801, %v3059
        %v3064 = vsub.f32 %v3062, %v3063
        %v3065 = vmul.f32 %v2801, %v3058
        %v3066 = vmul.f32 %v2799, %v3059
        %v3067 = vadd.f32 %v3065, %v3066
        %v3068 = vmul.f32 %v2799, %v3060
        %v3069 = vmul.f32 %v2801, %v3061
        %v3070 = vsub.f32 %v3068, %v3069
        %v3071 = vmul.f32 %v2801, %v3060
        %v3072 = vmul.f32 %v2799, %v3061
        %v3073 = vadd.f32 %v3071, %v3072
        %3074 = vst [vmem:[%s3051] sm:$0xff] %v3064
        %3075 = vst [vmem:[%s3053] sm:$0xff] %v3067
        %3076 = vst [vmem:[%s3055] sm:$0xff] %v3070
        %3077 = vst [vmem:[%s3057] sm:$0xff] %v3073
        %s3078 = smov [#allocation12]
        %s3079 = scalar_lea.vmem %s3078, 80
        %s3080 = smov [#allocation13]
        %s3081 = scalar_lea.vmem %s3080, 80
        %s3082 = smov [#allocation14]
        %s3083 = scalar_lea.vmem %s3082, 80
        %s3084 = smov [#allocation15]
        %s3085 = scalar_lea.vmem %s3084, 80
        %v3086 = vld [vmem:[%s3079] sm:$0xff]
        %v3087 = vld [vmem:[%s3081] sm:$0xff]
        %v3088 = vld [vmem:[%s3083] sm:$0xff]
        %v3089 = vld [vmem:[%s3085] sm:$0xff]
        %v3090 = vmul.f32 %v2799, %v3086
        %v3091 = vmul.f32 %v2801, %v3087
        %v3092 = vsub.f32 %v3090, %v3091
        %v3093 = vmul.f32 %v2801, %v3086
        %v3094 = vmul.f32 %v2799, %v3087
        %v3095 = vadd.f32 %v3093, %v3094
        %v3096 = vmul.f32 %v2799, %v3088
        %v3097 = vmul.f32 %v2801, %v3089
        %v3098 = vsub.f32 %v3096, %v3097
        %v3099 = vmul.f32 %v2801, %v3088
        %v3100 = vmul.f32 %v2799, %v3089
        %v3101 = vadd.f32 %v3099, %v3100
        %3102 = vst [vmem:[%s3079] sm:$0xff] %v3092
        %3103 = vst [vmem:[%s3081] sm:$0xff] %v3095
        %3104 = vst [vmem:[%s3083] sm:$0xff] %v3098
        %3105 = vst [vmem:[%s3085] sm:$0xff] %v3101
        %s3106 = smov [#allocation12]
        %s3107 = scalar_lea.vmem %s3106, 88
        %s3108 = smov [#allocation13]
        %s3109 = scalar_lea.vmem %s3108, 88
        %s3110 = smov [#allocation14]
        %s3111 = scalar_lea.vmem %s3110, 88
        %s3112 = smov [#allocation15]
        %s3113 = scalar_lea.vmem %s3112, 88
        %v3114 = vld [vmem:[%s3107] sm:$0xff]
        %v3115 = vld [vmem:[%s3109] sm:$0xff]
        %v3116 = vld [vmem:[%s3111] sm:$0xff]
        %v3117 = vld [vmem:[%s3113] sm:$0xff]
        %v3118 = vmul.f32 %v2799, %v3114
        %v3119 = vmul.f32 %v2801, %v3115
        %v3120 = vsub.f32 %v3118, %v3119
        %v3121 = vmul.f32 %v2801, %v3114
        %v3122 = vmul.f32 %v2799, %v3115
        %v3123 = vadd.f32 %v3121, %v3122
        %v3124 = vmul.f32 %v2799, %v3116
        %v3125 = vmul.f32 %v2801, %v3117
        %v3126 = vsub.f32 %v3124, %v3125
        %v3127 = vmul.f32 %v2801, %v3116
        %v3128 = vmul.f32 %v2799, %v3117
        %v3129 = vadd.f32 %v3127, %v3128
        %3130 = vst [vmem:[%s3107] sm:$0xff] %v3120
        %3131 = vst [vmem:[%s3109] sm:$0xff] %v3123
        %3132 = vst [vmem:[%s3111] sm:$0xff] %v3126
        %3133 = vst [vmem:[%s3113] sm:$0xff] %v3129
        %s3134 = smov [#allocation12]
        %s3135 = scalar_lea.vmem %s3134, 96
        %s3136 = smov [#allocation13]
        %s3137 = scalar_lea.vmem %s3136, 96
        %s3138 = smov [#allocation14]
        %s3139 = scalar_lea.vmem %s3138, 96
        %s3140 = smov [#allocation15]
        %s3141 = scalar_lea.vmem %s3140, 96
        %v3142 = vld [vmem:[%s3135] sm:$0xff]
        %v3143 = vld [vmem:[%s3137] sm:$0xff]
        %v3144 = vld [vmem:[%s3139] sm:$0xff]
        %v3145 = vld [vmem:[%s3141] sm:$0xff]
        %v3146 = vmul.f32 %v2799, %v3142
        %v3147 = vmul.f32 %v2801, %v3143
        %v3148 = vsub.f32 %v3146, %v3147
        %v3149 = vmul.f32 %v2801, %v3142
        %v3150 = vmul.f32 %v2799, %v3143
        %v3151 = vadd.f32 %v3149, %v3150
        %v3152 = vmul.f32 %v2799, %v3144
        %v3153 = vmul.f32 %v2801, %v3145
        %v3154 = vsub.f32 %v3152, %v3153
        %v3155 = vmul.f32 %v2801, %v3144
        %v3156 = vmul.f32 %v2799, %v3145
        %v3157 = vadd.f32 %v3155, %v3156
        %3158 = vst [vmem:[%s3135] sm:$0xff] %v3148
        %3159 = vst [vmem:[%s3137] sm:$0xff] %v3151
        %3160 = vst [vmem:[%s3139] sm:$0xff] %v3154
        %3161 = vst [vmem:[%s3141] sm:$0xff] %v3157
        %s3162 = smov [#allocation12]
        %s3163 = scalar_lea.vmem %s3162, 104
        %s3164 = smov [#allocation13]
        %s3165 = scalar_lea.vmem %s3164, 104
        %s3166 = smov [#allocation14]
        %s3167 = scalar_lea.vmem %s3166, 104
        %s3168 = smov [#allocation15]
        %s3169 = scalar_lea.vmem %s3168, 104
        %v3170 = vld [vmem:[%s3163] sm:$0xff]
        %v3171 = vld [vmem:[%s3165] sm:$0xff]
        %v3172 = vld [vmem:[%s3167] sm:$0xff]
        %v3173 = vld [vmem:[%s3169] sm:$0xff]
        %v3174 = vmul.f32 %v2799, %v3170
        %v3175 = vmul.f32 %v2801, %v3171
        %v3176 = vsub.f32 %v3174, %v3175
        %v3177 = vmul.f32 %v2801, %v3170
        %v3178 = vmul.f32 %v2799, %v3171
        %v3179 = vadd.f32 %v3177, %v3178
        %v3180 = vmul.f32 %v2799, %v3172
        %v3181 = vmul.f32 %v2801, %v3173
        %v3182 = vsub.f32 %v3180, %v3181
        %v3183 = vmul.f32 %v2801, %v3172
        %v3184 = vmul.f32 %v2799, %v3173
        %v3185 = vadd.f32 %v3183, %v3184
        %3186 = vst [vmem:[%s3163] sm:$0xff] %v3176
        %3187 = vst [vmem:[%s3165] sm:$0xff] %v3179
        %3188 = vst [vmem:[%s3167] sm:$0xff] %v3182
        %3189 = vst [vmem:[%s3169] sm:$0xff] %v3185
        %s3190 = smov [#allocation12]
        %s3191 = scalar_lea.vmem %s3190, 112
        %s3192 = smov [#allocation13]
        %s3193 = scalar_lea.vmem %s3192, 112
        %s3194 = smov [#allocation14]
        %s3195 = scalar_lea.vmem %s3194, 112
        %s3196 = smov [#allocation15]
        %s3197 = scalar_lea.vmem %s3196, 112
        %v3198 = vld [vmem:[%s3191] sm:$0xff]
        %v3199 = vld [vmem:[%s3193] sm:$0xff]
        %v3200 = vld [vmem:[%s3195] sm:$0xff]
        %v3201 = vld [vmem:[%s3197] sm:$0xff]
        %v3202 = vmul.f32 %v2799, %v3198
        %v3203 = vmul.f32 %v2801, %v3199
        %v3204 = vsub.f32 %v3202, %v3203
        %v3205 = vmul.f32 %v2801, %v3198
        %v3206 = vmul.f32 %v2799, %v3199
        %v3207 = vadd.f32 %v3205, %v3206
        %v3208 = vmul.f32 %v2799, %v3200
        %v3209 = vmul.f32 %v2801, %v3201
        %v3210 = vsub.f32 %v3208, %v3209
        %v3211 = vmul.f32 %v2801, %v3200
        %v3212 = vmul.f32 %v2799, %v3201
        %v3213 = vadd.f32 %v3211, %v3212
        %3214 = vst [vmem:[%s3191] sm:$0xff] %v3204
        %3215 = vst [vmem:[%s3193] sm:$0xff] %v3207
        %3216 = vst [vmem:[%s3195] sm:$0xff] %v3210
        %3217 = vst [vmem:[%s3197] sm:$0xff] %v3213
        %s3218 = smov [#allocation12]
        %s3219 = scalar_lea.vmem %s3218, 120
        %s3220 = smov [#allocation13]
        %s3221 = scalar_lea.vmem %s3220, 120
        %s3222 = smov [#allocation14]
        %s3223 = scalar_lea.vmem %s3222, 120
        %s3224 = smov [#allocation15]
        %s3225 = scalar_lea.vmem %s3224, 120
        %v3226 = vld [vmem:[%s3219] sm:$0xff]
        %v3227 = vld [vmem:[%s3221] sm:$0xff]
        %v3228 = vld [vmem:[%s3223] sm:$0xff]
        %v3229 = vld [vmem:[%s3225] sm:$0xff]
        %v3230 = vmul.f32 %v2799, %v3226
        %v3231 = vmul.f32 %v2801, %v3227
        %v3232 = vsub.f32 %v3230, %v3231
        %v3233 = vmul.f32 %v2801, %v3226
        %v3234 = vmul.f32 %v2799, %v3227
        %v3235 = vadd.f32 %v3233, %v3234
        %v3236 = vmul.f32 %v2799, %v3228
        %v3237 = vmul.f32 %v2801, %v3229
        %v3238 = vsub.f32 %v3236, %v3237
        %v3239 = vmul.f32 %v2801, %v3228
        %v3240 = vmul.f32 %v2799, %v3229
        %v3241 = vadd.f32 %v3239, %v3240
        %3242 = vst [vmem:[%s3219] sm:$0xff] %v3232
        %3243 = vst [vmem:[%s3221] sm:$0xff] %v3235
        %3244 = vst [vmem:[%s3223] sm:$0xff] %v3238
        %3245 = vst [vmem:[%s3225] sm:$0xff] %v3241
        %s3246 = smov [#allocation12]
        %s3247 = smov [#allocation19]
        %v3248 = vlaneseq
        %v3249 = vand.u32 %v3248, 127
        %v3250 = vmov %v3249
        %v3251 = vlaneseq
        %v3252 = vshrl.u32 %v3251, 7
        %v3253 = vmov %v3252
        %v3254 = vld [vmem:[%s3247] ss:$0 sm:$0xff]
        %v3255 = vld [vmem:[%s3246] sm:$0xff]
        %vm3258 = vcmp.eq.s32.totalorder %v3253, %v3250
        %v3259 = vsel %vm3258, %v3254, %v3255
        %3260 = vst [vmem:[%s3246] sm:$0xff] %v3259
        %v3261 = vld [vmem:[%s3247] ss:$0 sm:$0xff]
        %s3262 = scalar_lea.vmem %s3246, 8
        %v3263 = vld [vmem:[%s3262] sm:$0xff]
        %v3265 = vadd.s32 %v3253, 8
        %vm3266 = vcmp.eq.s32.totalorder %v3265, %v3250
        %v3267 = vsel %vm3266, %v3261, %v3263
        %3268 = vst [vmem:[%s3262] sm:$0xff] %v3267
        %v3269 = vld [vmem:[%s3247] ss:$0 sm:$0xff]
        %s3270 = scalar_lea.vmem %s3246, 16
        %v3271 = vld [vmem:[%s3270] sm:$0xff]
        %v3273 = vadd.s32 %v3253, 16
        %vm3274 = vcmp.eq.s32.totalorder %v3273, %v3250
        %v3275 = vsel %vm3274, %v3269, %v3271
        %3276 = vst [vmem:[%s3270] sm:$0xff] %v3275
        %v3277 = vld [vmem:[%s3247] ss:$0 sm:$0xff]
        %s3278 = scalar_lea.vmem %s3246, 24
        %v3279 = vld [vmem:[%s3278] sm:$0xff]
        %v3281 = vadd.s32 %v3253, 24
        %vm3282 = vcmp.eq.s32.totalorder %v3281, %v3250
        %v3283 = vsel %vm3282, %v3277, %v3279
        %3284 = vst [vmem:[%s3278] sm:$0xff] %v3283
        %v3285 = vld [vmem:[%s3247] ss:$0 sm:$0xff]
        %s3286 = scalar_lea.vmem %s3246, 32
        %v3287 = vld [vmem:[%s3286] sm:$0xff]
        %v3289 = vadd.s32 %v3253, 32
        %vm3290 = vcmp.eq.s32.totalorder %v3289, %v3250
        %v3291 = vsel %vm3290, %v3285, %v3287
        %3292 = vst [vmem:[%s3286] sm:$0xff] %v3291
        %v3293 = vld [vmem:[%s3247] ss:$0 sm:$0xff]
        %s3294 = scalar_lea.vmem %s3246, 40
        %v3295 = vld [vmem:[%s3294] sm:$0xff]
        %v3297 = vadd.s32 %v3253, 40
        %vm3298 = vcmp.eq.s32.totalorder %v3297, %v3250
        %v3299 = vsel %vm3298, %v3293, %v3295
        %3300 = vst [vmem:[%s3294] sm:$0xff] %v3299
        %v3301 = vld [vmem:[%s3247] ss:$0 sm:$0xff]
        %s3302 = scalar_lea.vmem %s3246, 48
        %v3303 = vld [vmem:[%s3302] sm:$0xff]
        %v3305 = vadd.s32 %v3253, 48
        %vm3306 = vcmp.eq.s32.totalorder %v3305, %v3250
        %v3307 = vsel %vm3306, %v3301, %v3303
        %3308 = vst [vmem:[%s3302] sm:$0xff] %v3307
        %v3309 = vld [vmem:[%s3247] ss:$0 sm:$0xff]
        %s3310 = scalar_lea.vmem %s3246, 56
        %v3311 = vld [vmem:[%s3310] sm:$0xff]
        %v3313 = vadd.s32 %v3253, 56
        %vm3314 = vcmp.eq.s32.totalorder %v3313, %v3250
        %v3315 = vsel %vm3314, %v3309, %v3311
        %3316 = vst [vmem:[%s3310] sm:$0xff] %v3315
        %v3317 = vld [vmem:[%s3247] ss:$0 sm:$0xff]
        %s3318 = scalar_lea.vmem %s3246, 64
        %v3319 = vld [vmem:[%s3318] sm:$0xff]
        %v3321 = vadd.s32 %v3253, 64
        %vm3322 = vcmp.eq.s32.totalorder %v3321, %v3250
        %v3323 = vsel %vm3322, %v3317, %v3319
        %3324 = vst [vmem:[%s3318] sm:$0xff] %v3323
        %v3325 = vld [vmem:[%s3247] ss:$0 sm:$0xff]
        %s3326 = scalar_lea.vmem %s3246, 72
        %v3327 = vld [vmem:[%s3326] sm:$0xff]
        %v3329 = vadd.s32 %v3253, 72
        %vm3330 = vcmp.eq.s32.totalorder %v3329, %v3250
        %v3331 = vsel %vm3330, %v3325, %v3327
        %3332 = vst [vmem:[%s3326] sm:$0xff] %v3331
        %v3333 = vld [vmem:[%s3247] ss:$0 sm:$0xff]
        %s3334 = scalar_lea.vmem %s3246, 80
        %v3335 = vld [vmem:[%s3334] sm:$0xff]
        %v3337 = vadd.s32 %v3253, 80
        %vm3338 = vcmp.eq.s32.totalorder %v3337, %v3250
        %v3339 = vsel %vm3338, %v3333, %v3335
        %3340 = vst [vmem:[%s3334] sm:$0xff] %v3339
        %v3341 = vld [vmem:[%s3247] ss:$0 sm:$0xff]
        %s3342 = scalar_lea.vmem %s3246, 88
        %v3343 = vld [vmem:[%s3342] sm:$0xff]
        %v3345 = vadd.s32 %v3253, 88
        %vm3346 = vcmp.eq.s32.totalorder %v3345, %v3250
        %v3347 = vsel %vm3346, %v3341, %v3343
        %3348 = vst [vmem:[%s3342] sm:$0xff] %v3347
        %v3349 = vld [vmem:[%s3247] ss:$0 sm:$0xff]
        %s3350 = scalar_lea.vmem %s3246, 96
        %v3351 = vld [vmem:[%s3350] sm:$0xff]
        %v3353 = vadd.s32 %v3253, 96
        %vm3354 = vcmp.eq.s32.totalorder %v3353, %v3250
        %v3355 = vsel %vm3354, %v3349, %v3351
        %3356 = vst [vmem:[%s3350] sm:$0xff] %v3355
        %v3357 = vld [vmem:[%s3247] ss:$0 sm:$0xff]
        %s3358 = scalar_lea.vmem %s3246, 104
        %v3359 = vld [vmem:[%s3358] sm:$0xff]
        %v3361 = vadd.s32 %v3253, 104
        %vm3362 = vcmp.eq.s32.totalorder %v3361, %v3250
        %v3363 = vsel %vm3362, %v3357, %v3359
        %3364 = vst [vmem:[%s3358] sm:$0xff] %v3363
        %v3365 = vld [vmem:[%s3247] ss:$0 sm:$0xff]
        %s3366 = scalar_lea.vmem %s3246, 112
        %v3367 = vld [vmem:[%s3366] sm:$0xff]
        %v3369 = vadd.s32 %v3253, 112
        %vm3370 = vcmp.eq.s32.totalorder %v3369, %v3250
        %v3371 = vsel %vm3370, %v3365, %v3367
        %3372 = vst [vmem:[%s3366] sm:$0xff] %v3371
        %v3373 = vld [vmem:[%s3247] ss:$0 sm:$0xff]
        %s3374 = scalar_lea.vmem %s3246, 120
        %v3375 = vld [vmem:[%s3374] sm:$0xff]
        %v3377 = vadd.s32 %v3253, 120
        %vm3378 = vcmp.eq.s32.totalorder %v3377, %v3250
        %v3379 = vsel %vm3378, %v3373, %v3375
        %3380 = vst [vmem:[%s3374] sm:$0xff] %v3379
        %s3381 = smov [#allocation13]
        %v3382 = vlaneseq
        %v3383 = vand.u32 %v3382, 127
        %v3384 = vmov %v3383
        %v3385 = vlaneseq
        %v3386 = vshrl.u32 %v3385, 7
        %v3387 = vmov %v3386
        %v3388 = vld [vmem:[%s3381] sm:$0xff]
        %vm3391 = vcmp.eq.s32.totalorder %v3387, %v3384
        %v3392 = vsel %vm3391, 0.0, %v3388
        %3393 = vst [vmem:[%s3381] sm:$0xff] %v3392
        %s3394 = scalar_lea.vmem %s3381, 8
        %v3395 = vld [vmem:[%s3394] sm:$0xff]
        %v3397 = vadd.s32 %v3387, 8
        %vm3398 = vcmp.eq.s32.totalorder %v3397, %v3384
        %v3399 = vsel %vm3398, 0.0, %v3395
        %3400 = vst [vmem:[%s3394] sm:$0xff] %v3399
        %s3401 = scalar_lea.vmem %s3381, 16
        %v3402 = vld [vmem:[%s3401] sm:$0xff]
        %v3404 = vadd.s32 %v3387, 16
        %vm3405 = vcmp.eq.s32.totalorder %v3404, %v3384
        %v3406 = vsel %vm3405, 0.0, %v3402
        %3407 = vst [vmem:[%s3401] sm:$0xff] %v3406
        %s3408 = scalar_lea.vmem %s3381, 24
        %v3409 = vld [vmem:[%s3408] sm:$0xff]
        %v3411 = vadd.s32 %v3387, 24
        %vm3412 = vcmp.eq.s32.totalorder %v3411, %v3384
        %v3413 = vsel %vm3412, 0.0, %v3409
        %3414 = vst [vmem:[%s3408] sm:$0xff] %v3413
        %s3415 = scalar_lea.vmem %s3381, 32
        %v3416 = vld [vmem:[%s3415] sm:$0xff]
        %v3418 = vadd.s32 %v3387, 32
        %vm3419 = vcmp.eq.s32.totalorder %v3418, %v3384
        %v3420 = vsel %vm3419, 0.0, %v3416
        %3421 = vst [vmem:[%s3415] sm:$0xff] %v3420
        %s3422 = scalar_lea.vmem %s3381, 40
        %v3423 = vld [vmem:[%s3422] sm:$0xff]
        %v3425 = vadd.s32 %v3387, 40
        %vm3426 = vcmp.eq.s32.totalorder %v3425, %v3384
        %v3427 = vsel %vm3426, 0.0, %v3423
        %3428 = vst [vmem:[%s3422] sm:$0xff] %v3427
        %s3429 = scalar_lea.vmem %s3381, 48
        %v3430 = vld [vmem:[%s3429] sm:$0xff]
        %v3432 = vadd.s32 %v3387, 48
        %vm3433 = vcmp.eq.s32.totalorder %v3432, %v3384
        %v3434 = vsel %vm3433, 0.0, %v3430
        %3435 = vst [vmem:[%s3429] sm:$0xff] %v3434
        %s3436 = scalar_lea.vmem %s3381, 56
        %v3437 = vld [vmem:[%s3436] sm:$0xff]
        %v3439 = vadd.s32 %v3387, 56
        %vm3440 = vcmp.eq.s32.totalorder %v3439, %v3384
        %v3441 = vsel %vm3440, 0.0, %v3437
        %3442 = vst [vmem:[%s3436] sm:$0xff] %v3441
        %s3443 = scalar_lea.vmem %s3381, 64
        %v3444 = vld [vmem:[%s3443] sm:$0xff]
        %v3446 = vadd.s32 %v3387, 64
        %vm3447 = vcmp.eq.s32.totalorder %v3446, %v3384
        %v3448 = vsel %vm3447, 0.0, %v3444
        %3449 = vst [vmem:[%s3443] sm:$0xff] %v3448
        %s3450 = scalar_lea.vmem %s3381, 72
        %v3451 = vld [vmem:[%s3450] sm:$0xff]
        %v3453 = vadd.s32 %v3387, 72
        %vm3454 = vcmp.eq.s32.totalorder %v3453, %v3384
        %v3455 = vsel %vm3454, 0.0, %v3451
        %3456 = vst [vmem:[%s3450] sm:$0xff] %v3455
        %s3457 = scalar_lea.vmem %s3381, 80
        %v3458 = vld [vmem:[%s3457] sm:$0xff]
        %v3460 = vadd.s32 %v3387, 80
        %vm3461 = vcmp.eq.s32.totalorder %v3460, %v3384
        %v3462 = vsel %vm3461, 0.0, %v3458
        %3463 = vst [vmem:[%s3457] sm:$0xff] %v3462
        %s3464 = scalar_lea.vmem %s3381, 88
        %v3465 = vld [vmem:[%s3464] sm:$0xff]
        %v3467 = vadd.s32 %v3387, 88
        %vm3468 = vcmp.eq.s32.totalorder %v3467, %v3384
        %v3469 = vsel %vm3468, 0.0, %v3465
        %3470 = vst [vmem:[%s3464] sm:$0xff] %v3469
        %s3471 = scalar_lea.vmem %s3381, 96
        %v3472 = vld [vmem:[%s3471] sm:$0xff]
        %v3474 = vadd.s32 %v3387, 96
        %vm3475 = vcmp.eq.s32.totalorder %v3474, %v3384
        %v3476 = vsel %vm3475, 0.0, %v3472
        %3477 = vst [vmem:[%s3471] sm:$0xff] %v3476
        %s3478 = scalar_lea.vmem %s3381, 104
        %v3479 = vld [vmem:[%s3478] sm:$0xff]
        %v3481 = vadd.s32 %v3387, 104
        %vm3482 = vcmp.eq.s32.totalorder %v3481, %v3384
        %v3483 = vsel %vm3482, 0.0, %v3479
        %3484 = vst [vmem:[%s3478] sm:$0xff] %v3483
        %s3485 = scalar_lea.vmem %s3381, 112
        %v3486 = vld [vmem:[%s3485] sm:$0xff]
        %v3488 = vadd.s32 %v3387, 112
        %vm3489 = vcmp.eq.s32.totalorder %v3488, %v3384
        %v3490 = vsel %vm3489, 0.0, %v3486
        %3491 = vst [vmem:[%s3485] sm:$0xff] %v3490
        %s3492 = scalar_lea.vmem %s3381, 120
        %v3493 = vld [vmem:[%s3492] sm:$0xff]
        %v3495 = vadd.s32 %v3387, 120
        %vm3496 = vcmp.eq.s32.totalorder %v3495, %v3384
        %v3497 = vsel %vm3496, 0.0, %v3493
        %3498 = vst [vmem:[%s3492] sm:$0xff] %v3497
        %s3499 = smov [#allocation14]
        %v3500 = vlaneseq
        %v3501 = vand.u32 %v3500, 127
        %v3502 = vmov %v3501
        %v3503 = vlaneseq
        %v3504 = vshrl.u32 %v3503, 7
        %v3505 = vmov %v3504
        %v3506 = vld [vmem:[%s3499] sm:$0xff]
        %vm3509 = vcmp.eq.s32.totalorder %v3505, %v3502
        %v3510 = vsel %vm3509, 0.0, %v3506
        %3511 = vst [vmem:[%s3499] sm:$0xff] %v3510
        %s3512 = scalar_lea.vmem %s3499, 8
        %v3513 = vld [vmem:[%s3512] sm:$0xff]
        %v3515 = vadd.s32 %v3505, 8
        %vm3516 = vcmp.eq.s32.totalorder %v3515, %v3502
        %v3517 = vsel %vm3516, 0.0, %v3513
        %3518 = vst [vmem:[%s3512] sm:$0xff] %v3517
        %s3519 = scalar_lea.vmem %s3499, 16
        %v3520 = vld [vmem:[%s3519] sm:$0xff]
        %v3522 = vadd.s32 %v3505, 16
        %vm3523 = vcmp.eq.s32.totalorder %v3522, %v3502
        %v3524 = vsel %vm3523, 0.0, %v3520
        %3525 = vst [vmem:[%s3519] sm:$0xff] %v3524
        %s3526 = scalar_lea.vmem %s3499, 24
        %v3527 = vld [vmem:[%s3526] sm:$0xff]
        %v3529 = vadd.s32 %v3505, 24
        %vm3530 = vcmp.eq.s32.totalorder %v3529, %v3502
        %v3531 = vsel %vm3530, 0.0, %v3527
        %3532 = vst [vmem:[%s3526] sm:$0xff] %v3531
        %s3533 = scalar_lea.vmem %s3499, 32
        %v3534 = vld [vmem:[%s3533] sm:$0xff]
        %v3536 = vadd.s32 %v3505, 32
        %vm3537 = vcmp.eq.s32.totalorder %v3536, %v3502
        %v3538 = vsel %vm3537, 0.0, %v3534
        %3539 = vst [vmem:[%s3533] sm:$0xff] %v3538
        %s3540 = scalar_lea.vmem %s3499, 40
        %v3541 = vld [vmem:[%s3540] sm:$0xff]
        %v3543 = vadd.s32 %v3505, 40
        %vm3544 = vcmp.eq.s32.totalorder %v3543, %v3502
        %v3545 = vsel %vm3544, 0.0, %v3541
        %3546 = vst [vmem:[%s3540] sm:$0xff] %v3545
        %s3547 = scalar_lea.vmem %s3499, 48
        %v3548 = vld [vmem:[%s3547] sm:$0xff]
        %v3550 = vadd.s32 %v3505, 48
        %vm3551 = vcmp.eq.s32.totalorder %v3550, %v3502
        %v3552 = vsel %vm3551, 0.0, %v3548
        %3553 = vst [vmem:[%s3547] sm:$0xff] %v3552
        %s3554 = scalar_lea.vmem %s3499, 56
        %v3555 = vld [vmem:[%s3554] sm:$0xff]
        %v3557 = vadd.s32 %v3505, 56
        %vm3558 = vcmp.eq.s32.totalorder %v3557, %v3502
        %v3559 = vsel %vm3558, 0.0, %v3555
        %3560 = vst [vmem:[%s3554] sm:$0xff] %v3559
        %s3561 = scalar_lea.vmem %s3499, 64
        %v3562 = vld [vmem:[%s3561] sm:$0xff]
        %v3564 = vadd.s32 %v3505, 64
        %vm3565 = vcmp.eq.s32.totalorder %v3564, %v3502
        %v3566 = vsel %vm3565, 0.0, %v3562
        %3567 = vst [vmem:[%s3561] sm:$0xff] %v3566
        %s3568 = scalar_lea.vmem %s3499, 72
        %v3569 = vld [vmem:[%s3568] sm:$0xff]
        %v3571 = vadd.s32 %v3505, 72
        %vm3572 = vcmp.eq.s32.totalorder %v3571, %v3502
        %v3573 = vsel %vm3572, 0.0, %v3569
        %3574 = vst [vmem:[%s3568] sm:$0xff] %v3573
        %s3575 = scalar_lea.vmem %s3499, 80
        %v3576 = vld [vmem:[%s3575] sm:$0xff]
        %v3578 = vadd.s32 %v3505, 80
        %vm3579 = vcmp.eq.s32.totalorder %v3578, %v3502
        %v3580 = vsel %vm3579, 0.0, %v3576
        %3581 = vst [vmem:[%s3575] sm:$0xff] %v3580
        %s3582 = scalar_lea.vmem %s3499, 88
        %v3583 = vld [vmem:[%s3582] sm:$0xff]
        %v3585 = vadd.s32 %v3505, 88
        %vm3586 = vcmp.eq.s32.totalorder %v3585, %v3502
        %v3587 = vsel %vm3586, 0.0, %v3583
        %3588 = vst [vmem:[%s3582] sm:$0xff] %v3587
        %s3589 = scalar_lea.vmem %s3499, 96
        %v3590 = vld [vmem:[%s3589] sm:$0xff]
        %v3592 = vadd.s32 %v3505, 96
        %vm3593 = vcmp.eq.s32.totalorder %v3592, %v3502
        %v3594 = vsel %vm3593, 0.0, %v3590
        %3595 = vst [vmem:[%s3589] sm:$0xff] %v3594
        %s3596 = scalar_lea.vmem %s3499, 104
        %v3597 = vld [vmem:[%s3596] sm:$0xff]
        %v3599 = vadd.s32 %v3505, 104
        %vm3600 = vcmp.eq.s32.totalorder %v3599, %v3502
        %v3601 = vsel %vm3600, 0.0, %v3597
        %3602 = vst [vmem:[%s3596] sm:$0xff] %v3601
        %s3603 = scalar_lea.vmem %s3499, 112
        %v3604 = vld [vmem:[%s3603] sm:$0xff]
        %v3606 = vadd.s32 %v3505, 112
        %vm3607 = vcmp.eq.s32.totalorder %v3606, %v3502
        %v3608 = vsel %vm3607, 0.0, %v3604
        %3609 = vst [vmem:[%s3603] sm:$0xff] %v3608
        %s3610 = scalar_lea.vmem %s3499, 120
        %v3611 = vld [vmem:[%s3610] sm:$0xff]
        %v3613 = vadd.s32 %v3505, 120
        %vm3614 = vcmp.eq.s32.totalorder %v3613, %v3502
        %v3615 = vsel %vm3614, 0.0, %v3611
        %3616 = vst [vmem:[%s3610] sm:$0xff] %v3615
        %s3617 = smov [#allocation15]
        %s3618 = smov [#allocation20]
        %v3619 = vlaneseq
        %v3620 = vand.u32 %v3619, 127
        %v3621 = vmov %v3620
        %v3622 = vlaneseq
        %v3623 = vshrl.u32 %v3622, 7
        %v3624 = vmov %v3623
        %v3625 = vld [vmem:[%s3618] ss:$0 sm:$0xff]
        %v3626 = vld [vmem:[%s3617] sm:$0xff]
        %vm3629 = vcmp.eq.s32.totalorder %v3624, %v3621
        %v3630 = vsel %vm3629, %v3625, %v3626
        %3631 = vst [vmem:[%s3617] sm:$0xff] %v3630
        %v3632 = vld [vmem:[%s3618] ss:$0 sm:$0xff]
        %s3633 = scalar_lea.vmem %s3617, 8
        %v3634 = vld [vmem:[%s3633] sm:$0xff]
        %v3636 = vadd.s32 %v3624, 8
        %vm3637 = vcmp.eq.s32.totalorder %v3636, %v3621
        %v3638 = vsel %vm3637, %v3632, %v3634
        %3639 = vst [vmem:[%s3633] sm:$0xff] %v3638
        %v3640 = vld [vmem:[%s3618] ss:$0 sm:$0xff]
        %s3641 = scalar_lea.vmem %s3617, 16
        %v3642 = vld [vmem:[%s3641] sm:$0xff]
        %v3644 = vadd.s32 %v3624, 16
        %vm3645 = vcmp.eq.s32.totalorder %v3644, %v3621
        %v3646 = vsel %vm3645, %v3640, %v3642
        %3647 = vst [vmem:[%s3641] sm:$0xff] %v3646
        %v3648 = vld [vmem:[%s3618] ss:$0 sm:$0xff]
        %s3649 = scalar_lea.vmem %s3617, 24
        %v3650 = vld [vmem:[%s3649] sm:$0xff]
        %v3652 = vadd.s32 %v3624, 24
        %vm3653 = vcmp.eq.s32.totalorder %v3652, %v3621
        %v3654 = vsel %vm3653, %v3648, %v3650
        %3655 = vst [vmem:[%s3649] sm:$0xff] %v3654
        %v3656 = vld [vmem:[%s3618] ss:$0 sm:$0xff]
        %s3657 = scalar_lea.vmem %s3617, 32
        %v3658 = vld [vmem:[%s3657] sm:$0xff]
        %v3660 = vadd.s32 %v3624, 32
        %vm3661 = vcmp.eq.s32.totalorder %v3660, %v3621
        %v3662 = vsel %vm3661, %v3656, %v3658
        %3663 = vst [vmem:[%s3657] sm:$0xff] %v3662
        %v3664 = vld [vmem:[%s3618] ss:$0 sm:$0xff]
        %s3665 = scalar_lea.vmem %s3617, 40
        %v3666 = vld [vmem:[%s3665] sm:$0xff]
        %v3668 = vadd.s32 %v3624, 40
        %vm3669 = vcmp.eq.s32.totalorder %v3668, %v3621
        %v3670 = vsel %vm3669, %v3664, %v3666
        %3671 = vst [vmem:[%s3665] sm:$0xff] %v3670
        %v3672 = vld [vmem:[%s3618] ss:$0 sm:$0xff]
        %s3673 = scalar_lea.vmem %s3617, 48
        %v3674 = vld [vmem:[%s3673] sm:$0xff]
        %v3676 = vadd.s32 %v3624, 48
        %vm3677 = vcmp.eq.s32.totalorder %v3676, %v3621
        %v3678 = vsel %vm3677, %v3672, %v3674
        %3679 = vst [vmem:[%s3673] sm:$0xff] %v3678
        %v3680 = vld [vmem:[%s3618] ss:$0 sm:$0xff]
        %s3681 = scalar_lea.vmem %s3617, 56
        %v3682 = vld [vmem:[%s3681] sm:$0xff]
        %v3684 = vadd.s32 %v3624, 56
        %vm3685 = vcmp.eq.s32.totalorder %v3684, %v3621
        %v3686 = vsel %vm3685, %v3680, %v3682
        %3687 = vst [vmem:[%s3681] sm:$0xff] %v3686
        %v3688 = vld [vmem:[%s3618] ss:$0 sm:$0xff]
        %s3689 = scalar_lea.vmem %s3617, 64
        %v3690 = vld [vmem:[%s3689] sm:$0xff]
        %v3692 = vadd.s32 %v3624, 64
        %vm3693 = vcmp.eq.s32.totalorder %v3692, %v3621
        %v3694 = vsel %vm3693, %v3688, %v3690
        %3695 = vst [vmem:[%s3689] sm:$0xff] %v3694
        %v3696 = vld [vmem:[%s3618] ss:$0 sm:$0xff]
        %s3697 = scalar_lea.vmem %s3617, 72
        %v3698 = vld [vmem:[%s3697] sm:$0xff]
        %v3700 = vadd.s32 %v3624, 72
        %vm3701 = vcmp.eq.s32.totalorder %v3700, %v3621
        %v3702 = vsel %vm3701, %v3696, %v3698
        %3703 = vst [vmem:[%s3697] sm:$0xff] %v3702
        %v3704 = vld [vmem:[%s3618] ss:$0 sm:$0xff]
        %s3705 = scalar_lea.vmem %s3617, 80
        %v3706 = vld [vmem:[%s3705] sm:$0xff]
        %v3708 = vadd.s32 %v3624, 80
        %vm3709 = vcmp.eq.s32.totalorder %v3708, %v3621
        %v3710 = vsel %vm3709, %v3704, %v3706
        %3711 = vst [vmem:[%s3705] sm:$0xff] %v3710
        %v3712 = vld [vmem:[%s3618] ss:$0 sm:$0xff]
        %s3713 = scalar_lea.vmem %s3617, 88
        %v3714 = vld [vmem:[%s3713] sm:$0xff]
        %v3716 = vadd.s32 %v3624, 88
        %vm3717 = vcmp.eq.s32.totalorder %v3716, %v3621
        %v3718 = vsel %vm3717, %v3712, %v3714
        %3719 = vst [vmem:[%s3713] sm:$0xff] %v3718
        %v3720 = vld [vmem:[%s3618] ss:$0 sm:$0xff]
        %s3721 = scalar_lea.vmem %s3617, 96
        %v3722 = vld [vmem:[%s3721] sm:$0xff]
        %v3724 = vadd.s32 %v3624, 96
        %vm3725 = vcmp.eq.s32.totalorder %v3724, %v3621
        %v3726 = vsel %vm3725, %v3720, %v3722
        %3727 = vst [vmem:[%s3721] sm:$0xff] %v3726
        %v3728 = vld [vmem:[%s3618] ss:$0 sm:$0xff]
        %s3729 = scalar_lea.vmem %s3617, 104
        %v3730 = vld [vmem:[%s3729] sm:$0xff]
        %v3732 = vadd.s32 %v3624, 104
        %vm3733 = vcmp.eq.s32.totalorder %v3732, %v3621
        %v3734 = vsel %vm3733, %v3728, %v3730
        %3735 = vst [vmem:[%s3729] sm:$0xff] %v3734
        %v3736 = vld [vmem:[%s3618] ss:$0 sm:$0xff]
        %s3737 = scalar_lea.vmem %s3617, 112
        %v3738 = vld [vmem:[%s3737] sm:$0xff]
        %v3740 = vadd.s32 %v3624, 112
        %vm3741 = vcmp.eq.s32.totalorder %v3740, %v3621
        %v3742 = vsel %vm3741, %v3736, %v3738
        %3743 = vst [vmem:[%s3737] sm:$0xff] %v3742
        %v3744 = vld [vmem:[%s3618] ss:$0 sm:$0xff]
        %s3745 = scalar_lea.vmem %s3617, 120
        %v3746 = vld [vmem:[%s3745] sm:$0xff]
        %v3748 = vadd.s32 %v3624, 120
        %vm3749 = vcmp.eq.s32.totalorder %v3748, %v3621
        %v3750 = vsel %vm3749, %v3744, %v3746
        %3751 = vst [vmem:[%s3745] sm:$0xff] %v3750
        %s3752 = smov [#allocation12]
        %s3753 = smov [#allocation13]
        %v3754 = vld [vmem:[%s3753] sm:$0xff]
        %3755 = vrot.lane.b32.xlu0 %v3754, 1
        %v3756 = vpop.permute.xlu0 %3755
        %v3757 = vld [vmem:[%s3752] sm:$0xff]
        %v3758 = vld [vmem:[%s3752] sm:$0xff]
        %3759 = vrot.lane.b32.xlu0 %v3758, 1
        %v3760 = vpop.permute.xlu0 %3759
        %v3761 = vlaneseq
        %v3762 = vand.u32 %v3761, 127
        %vm3763 = vcmp.eq.s32.totalorder %v3762, 0
        %v3764 = vsel %vm3763, %v3758, %v3760
        %v3765 = vlaneseq
        %v3766 = vand.u32 %v3765, 127
        %vm3767 = vcmp.eq.s32.totalorder %v3766, 1
        %v3768 = vsel %vm3767, %v3756, %v3764
        %v3769 = vlaneseq
        %v3770 = vand.u32 %v3769, 127
        %vm3771 = vcmp.ge.s32.totalorder %v3770, 0
        %vm3772 = vcmp.lt.s32.totalorder %v3770, 128
        %vm3773 = vmand %vm3771, %vm3772
        %v3774 = vsel %vm3773, %v3768, 0.0
        %v3775 = vld [vmem:[%s3753] sm:$0xff]
        %3776 = vrot.lane.b32.xlu0 %v3775, 127
        %v3777 = vpop.permute.xlu0 %3776
        %v3778 = vlaneseq
        %v3779 = vand.u32 %v3778, 127
        %vm3780 = vcmp.eq.s32.totalorder %v3779, 127
        %v3781 = vsel %vm3780, %v3757, %v3777
        %s3782 = smov [#allocation12]
        %s3783 = scalar_lea.vmem %s3782, 8
        %s3784 = smov [#allocation13]
        %s3785 = scalar_lea.vmem %s3784, 8
        %v3786 = vld [vmem:[%s3785] sm:$0xff]
        %3787 = vrot.lane.b32.xlu0 %v3786, 1
        %v3788 = vpop.permute.xlu0 %3787
        %v3789 = vld [vmem:[%s3783] sm:$0xff]
        %v3790 = vld [vmem:[%s3783] sm:$0xff]
        %3791 = vrot.lane.b32.xlu0 %v3790, 1
        %v3792 = vpop.permute.xlu0 %3791
        %v3793 = vlaneseq
        %v3794 = vand.u32 %v3793, 127
        %vm3795 = vcmp.eq.s32.totalorder %v3794, 0
        %v3796 = vsel %vm3795, %v3790, %v3792
        %v3797 = vlaneseq
        %v3798 = vand.u32 %v3797, 127
        %vm3799 = vcmp.eq.s32.totalorder %v3798, 1
        %v3800 = vsel %vm3799, %v3788, %v3796
        %v3801 = vlaneseq
        %v3802 = vand.u32 %v3801, 127
        %vm3803 = vcmp.ge.s32.totalorder %v3802, 0
        %vm3804 = vcmp.lt.s32.totalorder %v3802, 128
        %vm3805 = vmand %vm3803, %vm3804
        %v3806 = vsel %vm3805, %v3800, 0.0
        %v3807 = vld [vmem:[%s3785] sm:$0xff]
        %3808 = vrot.lane.b32.xlu0 %v3807, 127
        %v3809 = vpop.permute.xlu0 %3808
        %v3810 = vlaneseq
        %v3811 = vand.u32 %v3810, 127
        %vm3812 = vcmp.eq.s32.totalorder %v3811, 127
        %v3813 = vsel %vm3812, %v3789, %v3809
        %s3814 = smov [#allocation12]
        %s3815 = scalar_lea.vmem %s3814, 16
        %s3816 = smov [#allocation13]
        %s3817 = scalar_lea.vmem %s3816, 16
        %v3818 = vld [vmem:[%s3817] sm:$0xff]
        %3819 = vrot.lane.b32.xlu0 %v3818, 1
        %v3820 = vpop.permute.xlu0 %3819
        %v3821 = vld [vmem:[%s3815] sm:$0xff]
        %v3822 = vld [vmem:[%s3815] sm:$0xff]
        %3823 = vrot.lane.b32.xlu0 %v3822, 1
        %v3824 = vpop.permute.xlu0 %3823
        %v3825 = vlaneseq
        %v3826 = vand.u32 %v3825, 127
        %vm3827 = vcmp.eq.s32.totalorder %v3826, 0
        %v3828 = vsel %vm3827, %v3822, %v3824
        %v3829 = vlaneseq
        %v3830 = vand.u32 %v3829, 127
        %vm3831 = vcmp.eq.s32.totalorder %v3830, 1
        %v3832 = vsel %vm3831, %v3820, %v3828
        %v3833 = vlaneseq
        %v3834 = vand.u32 %v3833, 127
        %vm3835 = vcmp.ge.s32.totalorder %v3834, 0
        %vm3836 = vcmp.lt.s32.totalorder %v3834, 128
        %vm3837 = vmand %vm3835, %vm3836
        %v3838 = vsel %vm3837, %v3832, 0.0
        %v3839 = vld [vmem:[%s3817] sm:$0xff]
        %3840 = vrot.lane.b32.xlu0 %v3839, 127
        %v3841 = vpop.permute.xlu0 %3840
        %v3842 = vlaneseq
        %v3843 = vand.u32 %v3842, 127
        %vm3844 = vcmp.eq.s32.totalorder %v3843, 127
        %v3845 = vsel %vm3844, %v3821, %v3841
        %s3846 = smov [#allocation12]
        %s3847 = scalar_lea.vmem %s3846, 24
        %s3848 = smov [#allocation13]
        %s3849 = scalar_lea.vmem %s3848, 24
        %v3850 = vld [vmem:[%s3849] sm:$0xff]
        %3851 = vrot.lane.b32.xlu0 %v3850, 1
        %v3852 = vpop.permute.xlu0 %3851
        %v3853 = vld [vmem:[%s3847] sm:$0xff]
        %v3854 = vld [vmem:[%s3847] sm:$0xff]
        %3855 = vrot.lane.b32.xlu0 %v3854, 1
        %v3856 = vpop.permute.xlu0 %3855
        %v3857 = vlaneseq
        %v3858 = vand.u32 %v3857, 127
        %vm3859 = vcmp.eq.s32.totalorder %v3858, 0
        %v3860 = vsel %vm3859, %v3854, %v3856
        %v3861 = vlaneseq
        %v3862 = vand.u32 %v3861, 127
        %vm3863 = vcmp.eq.s32.totalorder %v3862, 1
        %v3864 = vsel %vm3863, %v3852, %v3860
        %v3865 = vlaneseq
        %v3866 = vand.u32 %v3865, 127
        %vm3867 = vcmp.ge.s32.totalorder %v3866, 0
        %vm3868 = vcmp.lt.s32.totalorder %v3866, 128
        %vm3869 = vmand %vm3867, %vm3868
        %v3870 = vsel %vm3869, %v3864, 0.0
        %v3871 = vld [vmem:[%s3849] sm:$0xff]
        %3872 = vrot.lane.b32.xlu0 %v3871, 127
        %v3873 = vpop.permute.xlu0 %3872
        %v3874 = vlaneseq
        %v3875 = vand.u32 %v3874, 127
        %vm3876 = vcmp.eq.s32.totalorder %v3875, 127
        %v3877 = vsel %vm3876, %v3853, %v3873
        %s3878 = smov [#allocation12]
        %s3879 = scalar_lea.vmem %s3878, 32
        %s3880 = smov [#allocation13]
        %s3881 = scalar_lea.vmem %s3880, 32
        %v3882 = vld [vmem:[%s3881] sm:$0xff]
        %3883 = vrot.lane.b32.xlu0 %v3882, 1
        %v3884 = vpop.permute.xlu0 %3883
        %v3885 = vld [vmem:[%s3879] sm:$0xff]
        %v3886 = vld [vmem:[%s3879] sm:$0xff]
        %3887 = vrot.lane.b32.xlu0 %v3886, 1
        %v3888 = vpop.permute.xlu0 %3887
        %v3889 = vlaneseq
        %v3890 = vand.u32 %v3889, 127
        %vm3891 = vcmp.eq.s32.totalorder %v3890, 0
        %v3892 = vsel %vm3891, %v3886, %v3888
        %v3893 = vlaneseq
        %v3894 = vand.u32 %v3893, 127
        %vm3895 = vcmp.eq.s32.totalorder %v3894, 1
        %v3896 = vsel %vm3895, %v3884, %v3892
        %v3897 = vlaneseq
        %v3898 = vand.u32 %v3897, 127
        %vm3899 = vcmp.ge.s32.totalorder %v3898, 0
        %vm3900 = vcmp.lt.s32.totalorder %v3898, 128
        %vm3901 = vmand %vm3899, %vm3900
        %v3902 = vsel %vm3901, %v3896, 0.0
        %v3903 = vld [vmem:[%s3881] sm:$0xff]
        %3904 = vrot.lane.b32.xlu0 %v3903, 127
        %v3905 = vpop.permute.xlu0 %3904
        %v3906 = vlaneseq
        %v3907 = vand.u32 %v3906, 127
        %vm3908 = vcmp.eq.s32.totalorder %v3907, 127
        %v3909 = vsel %vm3908, %v3885, %v3905
        %s3910 = smov [#allocation12]
        %s3911 = scalar_lea.vmem %s3910, 40
        %s3912 = smov [#allocation13]
        %s3913 = scalar_lea.vmem %s3912, 40
        %v3914 = vld [vmem:[%s3913] sm:$0xff]
        %3915 = vrot.lane.b32.xlu0 %v3914, 1
        %v3916 = vpop.permute.xlu0 %3915
        %v3917 = vld [vmem:[%s3911] sm:$0xff]
        %v3918 = vld [vmem:[%s3911] sm:$0xff]
        %3919 = vrot.lane.b32.xlu0 %v3918, 1
        %v3920 = vpop.permute.xlu0 %3919
        %v3921 = vlaneseq
        %v3922 = vand.u32 %v3921, 127
        %vm3923 = vcmp.eq.s32.totalorder %v3922, 0
        %v3924 = vsel %vm3923, %v3918, %v3920
        %v3925 = vlaneseq
        %v3926 = vand.u32 %v3925, 127
        %vm3927 = vcmp.eq.s32.totalorder %v3926, 1
        %v3928 = vsel %vm3927, %v3916, %v3924
        %v3929 = vlaneseq
        %v3930 = vand.u32 %v3929, 127
        %vm3931 = vcmp.ge.s32.totalorder %v3930, 0
        %vm3932 = vcmp.lt.s32.totalorder %v3930, 128
        %vm3933 = vmand %vm3931, %vm3932
        %v3934 = vsel %vm3933, %v3928, 0.0
        %v3935 = vld [vmem:[%s3913] sm:$0xff]
        %3936 = vrot.lane.b32.xlu0 %v3935, 127
        %v3937 = vpop.permute.xlu0 %3936
        %v3938 = vlaneseq
        %v3939 = vand.u32 %v3938, 127
        %vm3940 = vcmp.eq.s32.totalorder %v3939, 127
        %v3941 = vsel %vm3940, %v3917, %v3937
        %s3942 = smov [#allocation12]
        %s3943 = scalar_lea.vmem %s3942, 48
        %s3944 = smov [#allocation13]
        %s3945 = scalar_lea.vmem %s3944, 48
        %v3946 = vld [vmem:[%s3945] sm:$0xff]
        %3947 = vrot.lane.b32.xlu0 %v3946, 1
        %v3948 = vpop.permute.xlu0 %3947
        %v3949 = vld [vmem:[%s3943] sm:$0xff]
        %v3950 = vld [vmem:[%s3943] sm:$0xff]
        %3951 = vrot.lane.b32.xlu0 %v3950, 1
        %v3952 = vpop.permute.xlu0 %3951
        %v3953 = vlaneseq
        %v3954 = vand.u32 %v3953, 127
        %vm3955 = vcmp.eq.s32.totalorder %v3954, 0
        %v3956 = vsel %vm3955, %v3950, %v3952
        %v3957 = vlaneseq
        %v3958 = vand.u32 %v3957, 127
        %vm3959 = vcmp.eq.s32.totalorder %v3958, 1
        %v3960 = vsel %vm3959, %v3948, %v3956
        %v3961 = vlaneseq
        %v3962 = vand.u32 %v3961, 127
        %vm3963 = vcmp.ge.s32.totalorder %v3962, 0
        %vm3964 = vcmp.lt.s32.totalorder %v3962, 128
        %vm3965 = vmand %vm3963, %vm3964
        %v3966 = vsel %vm3965, %v3960, 0.0
        %v3967 = vld [vmem:[%s3945] sm:$0xff]
        %3968 = vrot.lane.b32.xlu0 %v3967, 127
        %v3969 = vpop.permute.xlu0 %3968
        %v3970 = vlaneseq
        %v3971 = vand.u32 %v3970, 127
        %vm3972 = vcmp.eq.s32.totalorder %v3971, 127
        %v3973 = vsel %vm3972, %v3949, %v3969
        %s3974 = smov [#allocation12]
        %s3975 = scalar_lea.vmem %s3974, 56
        %s3976 = smov [#allocation13]
        %s3977 = scalar_lea.vmem %s3976, 56
        %v3978 = vld [vmem:[%s3977] sm:$0xff]
        %3979 = vrot.lane.b32.xlu0 %v3978, 1
        %v3980 = vpop.permute.xlu0 %3979
        %v3981 = vld [vmem:[%s3975] sm:$0xff]
        %v3982 = vld [vmem:[%s3975] sm:$0xff]
        %3983 = vrot.lane.b32.xlu0 %v3982, 1
        %v3984 = vpop.permute.xlu0 %3983
        %v3985 = vlaneseq
        %v3986 = vand.u32 %v3985, 127
        %vm3987 = vcmp.eq.s32.totalorder %v3986, 0
        %v3988 = vsel %vm3987, %v3982, %v3984
        %v3989 = vlaneseq
        %v3990 = vand.u32 %v3989, 127
        %vm3991 = vcmp.eq.s32.totalorder %v3990, 1
        %v3992 = vsel %vm3991, %v3980, %v3988
        %v3993 = vlaneseq
        %v3994 = vand.u32 %v3993, 127
        %vm3995 = vcmp.ge.s32.totalorder %v3994, 0
        %vm3996 = vcmp.lt.s32.totalorder %v3994, 128
        %vm3997 = vmand %vm3995, %vm3996
        %v3998 = vsel %vm3997, %v3992, 0.0
        %v3999 = vld [vmem:[%s3977] sm:$0xff]
        %4000 = vrot.lane.b32.xlu0 %v3999, 127
        %v4001 = vpop.permute.xlu0 %4000
        %v4002 = vlaneseq
        %v4003 = vand.u32 %v4002, 127
        %vm4004 = vcmp.eq.s32.totalorder %v4003, 127
        %v4005 = vsel %vm4004, %v3981, %v4001
        %s4006 = smov [#allocation12]
        %s4007 = scalar_lea.vmem %s4006, 64
        %s4008 = smov [#allocation13]
        %s4009 = scalar_lea.vmem %s4008, 64
        %v4010 = vld [vmem:[%s4009] sm:$0xff]
        %4011 = vrot.lane.b32.xlu0 %v4010, 1
        %v4012 = vpop.permute.xlu0 %4011
        %v4013 = vld [vmem:[%s4007] sm:$0xff]
        %v4014 = vld [vmem:[%s4007] sm:$0xff]
        %4015 = vrot.lane.b32.xlu0 %v4014, 1
        %v4016 = vpop.permute.xlu0 %4015
        %v4017 = vlaneseq
        %v4018 = vand.u32 %v4017, 127
        %vm4019 = vcmp.eq.s32.totalorder %v4018, 0
        %v4020 = vsel %vm4019, %v4014, %v4016
        %v4021 = vlaneseq
        %v4022 = vand.u32 %v4021, 127
        %vm4023 = vcmp.eq.s32.totalorder %v4022, 1
        %v4024 = vsel %vm4023, %v4012, %v4020
        %v4025 = vlaneseq
        %v4026 = vand.u32 %v4025, 127
        %vm4027 = vcmp.ge.s32.totalorder %v4026, 0
        %vm4028 = vcmp.lt.s32.totalorder %v4026, 128
        %vm4029 = vmand %vm4027, %vm4028
        %v4030 = vsel %vm4029, %v4024, 0.0
        %v4031 = vld [vmem:[%s4009] sm:$0xff]
        %4032 = vrot.lane.b32.xlu0 %v4031, 127
        %v4033 = vpop.permute.xlu0 %4032
        %v4034 = vlaneseq
        %v4035 = vand.u32 %v4034, 127
        %vm4036 = vcmp.eq.s32.totalorder %v4035, 127
        %v4037 = vsel %vm4036, %v4013, %v4033
        %s4038 = smov [#allocation12]
        %s4039 = scalar_lea.vmem %s4038, 72
        %s4040 = smov [#allocation13]
        %s4041 = scalar_lea.vmem %s4040, 72
        %v4042 = vld [vmem:[%s4041] sm:$0xff]
        %4043 = vrot.lane.b32.xlu0 %v4042, 1
        %v4044 = vpop.permute.xlu0 %4043
        %v4045 = vld [vmem:[%s4039] sm:$0xff]
        %v4046 = vld [vmem:[%s4039] sm:$0xff]
        %4047 = vrot.lane.b32.xlu0 %v4046, 1
        %v4048 = vpop.permute.xlu0 %4047
        %v4049 = vlaneseq
        %v4050 = vand.u32 %v4049, 127
        %vm4051 = vcmp.eq.s32.totalorder %v4050, 0
        %v4052 = vsel %vm4051, %v4046, %v4048
        %v4053 = vlaneseq
        %v4054 = vand.u32 %v4053, 127
        %vm4055 = vcmp.eq.s32.totalorder %v4054, 1
        %v4056 = vsel %vm4055, %v4044, %v4052
        %v4057 = vlaneseq
        %v4058 = vand.u32 %v4057, 127
        %vm4059 = vcmp.ge.s32.totalorder %v4058, 0
        %vm4060 = vcmp.lt.s32.totalorder %v4058, 128
        %vm4061 = vmand %vm4059, %vm4060
        %v4062 = vsel %vm4061, %v4056, 0.0
        %v4063 = vld [vmem:[%s4041] sm:$0xff]
        %4064 = vrot.lane.b32.xlu0 %v4063, 127
        %v4065 = vpop.permute.xlu0 %4064
        %v4066 = vlaneseq
        %v4067 = vand.u32 %v4066, 127
        %vm4068 = vcmp.eq.s32.totalorder %v4067, 127
        %v4069 = vsel %vm4068, %v4045, %v4065
        %s4070 = smov [#allocation12]
        %s4071 = scalar_lea.vmem %s4070, 80
        %s4072 = smov [#allocation13]
        %s4073 = scalar_lea.vmem %s4072, 80
        %v4074 = vld [vmem:[%s4073] sm:$0xff]
        %4075 = vrot.lane.b32.xlu0 %v4074, 1
        %v4076 = vpop.permute.xlu0 %4075
        %v4077 = vld [vmem:[%s4071] sm:$0xff]
        %v4078 = vld [vmem:[%s4071] sm:$0xff]
        %4079 = vrot.lane.b32.xlu0 %v4078, 1
        %v4080 = vpop.permute.xlu0 %4079
        %v4081 = vlaneseq
        %v4082 = vand.u32 %v4081, 127
        %vm4083 = vcmp.eq.s32.totalorder %v4082, 0
        %v4084 = vsel %vm4083, %v4078, %v4080
        %v4085 = vlaneseq
        %v4086 = vand.u32 %v4085, 127
        %vm4087 = vcmp.eq.s32.totalorder %v4086, 1
        %v4088 = vsel %vm4087, %v4076, %v4084
        %v4089 = vlaneseq
        %v4090 = vand.u32 %v4089, 127
        %vm4091 = vcmp.ge.s32.totalorder %v4090, 0
        %vm4092 = vcmp.lt.s32.totalorder %v4090, 128
        %vm4093 = vmand %vm4091, %vm4092
        %v4094 = vsel %vm4093, %v4088, 0.0
        %v4095 = vld [vmem:[%s4073] sm:$0xff]
        %4096 = vrot.lane.b32.xlu0 %v4095, 127
        %v4097 = vpop.permute.xlu0 %4096
        %v4098 = vlaneseq
        %v4099 = vand.u32 %v4098, 127
        %vm4100 = vcmp.eq.s32.totalorder %v4099, 127
        %v4101 = vsel %vm4100, %v4077, %v4097
        %s4102 = smov [#allocation12]
        %s4103 = scalar_lea.vmem %s4102, 88
        %s4104 = smov [#allocation13]
        %s4105 = scalar_lea.vmem %s4104, 88
        %v4106 = vld [vmem:[%s4105] sm:$0xff]
        %4107 = vrot.lane.b32.xlu0 %v4106, 1
        %v4108 = vpop.permute.xlu0 %4107
        %v4109 = vld [vmem:[%s4103] sm:$0xff]
        %v4110 = vld [vmem:[%s4103] sm:$0xff]
        %4111 = vrot.lane.b32.xlu0 %v4110, 1
        %v4112 = vpop.permute.xlu0 %4111
        %v4113 = vlaneseq
        %v4114 = vand.u32 %v4113, 127
        %vm4115 = vcmp.eq.s32.totalorder %v4114, 0
        %v4116 = vsel %vm4115, %v4110, %v4112
        %v4117 = vlaneseq
        %v4118 = vand.u32 %v4117, 127
        %vm4119 = vcmp.eq.s32.totalorder %v4118, 1
        %v4120 = vsel %vm4119, %v4108, %v4116
        %v4121 = vlaneseq
        %v4122 = vand.u32 %v4121, 127
        %vm4123 = vcmp.ge.s32.totalorder %v4122, 0
        %vm4124 = vcmp.lt.s32.totalorder %v4122, 128
        %vm4125 = vmand %vm4123, %vm4124
        %v4126 = vsel %vm4125, %v4120, 0.0
        %v4127 = vld [vmem:[%s4105] sm:$0xff]
        %4128 = vrot.lane.b32.xlu0 %v4127, 127
        %v4129 = vpop.permute.xlu0 %4128
        %v4130 = vlaneseq
        %v4131 = vand.u32 %v4130, 127
        %vm4132 = vcmp.eq.s32.totalorder %v4131, 127
        %v4133 = vsel %vm4132, %v4109, %v4129
        %s4134 = smov [#allocation12]
        %s4135 = scalar_lea.vmem %s4134, 96
        %s4136 = smov [#allocation13]
        %s4137 = scalar_lea.vmem %s4136, 96
        %v4138 = vld [vmem:[%s4137] sm:$0xff]
        %4139 = vrot.lane.b32.xlu0 %v4138, 1
        %v4140 = vpop.permute.xlu0 %4139
        %v4141 = vld [vmem:[%s4135] sm:$0xff]
        %v4142 = vld [vmem:[%s4135] sm:$0xff]
        %4143 = vrot.lane.b32.xlu0 %v4142, 1
        %v4144 = vpop.permute.xlu0 %4143
        %v4145 = vlaneseq
        %v4146 = vand.u32 %v4145, 127
        %vm4147 = vcmp.eq.s32.totalorder %v4146, 0
        %v4148 = vsel %vm4147, %v4142, %v4144
        %v4149 = vlaneseq
        %v4150 = vand.u32 %v4149, 127
        %vm4151 = vcmp.eq.s32.totalorder %v4150, 1
        %v4152 = vsel %vm4151, %v4140, %v4148
        %v4153 = vlaneseq
        %v4154 = vand.u32 %v4153, 127
        %vm4155 = vcmp.ge.s32.totalorder %v4154, 0
        %vm4156 = vcmp.lt.s32.totalorder %v4154, 128
        %vm4157 = vmand %vm4155, %vm4156
        %v4158 = vsel %vm4157, %v4152, 0.0
        %v4159 = vld [vmem:[%s4137] sm:$0xff]
        %4160 = vrot.lane.b32.xlu0 %v4159, 127
        %v4161 = vpop.permute.xlu0 %4160
        %v4162 = vlaneseq
        %v4163 = vand.u32 %v4162, 127
        %vm4164 = vcmp.eq.s32.totalorder %v4163, 127
        %v4165 = vsel %vm4164, %v4141, %v4161
        %s4166 = smov [#allocation12]
        %s4167 = scalar_lea.vmem %s4166, 104
        %s4168 = smov [#allocation13]
        %s4169 = scalar_lea.vmem %s4168, 104
        %v4170 = vld [vmem:[%s4169] sm:$0xff]
        %4171 = vrot.lane.b32.xlu0 %v4170, 1
        %v4172 = vpop.permute.xlu0 %4171
        %v4173 = vld [vmem:[%s4167] sm:$0xff]
        %v4174 = vld [vmem:[%s4167] sm:$0xff]
        %4175 = vrot.lane.b32.xlu0 %v4174, 1
        %v4176 = vpop.permute.xlu0 %4175
        %v4177 = vlaneseq
        %v4178 = vand.u32 %v4177, 127
        %vm4179 = vcmp.eq.s32.totalorder %v4178, 0
        %v4180 = vsel %vm4179, %v4174, %v4176
        %v4181 = vlaneseq
        %v4182 = vand.u32 %v4181, 127
        %vm4183 = vcmp.eq.s32.totalorder %v4182, 1
        %v4184 = vsel %vm4183, %v4172, %v4180
        %v4185 = vlaneseq
        %v4186 = vand.u32 %v4185, 127
        %vm4187 = vcmp.ge.s32.totalorder %v4186, 0
        %vm4188 = vcmp.lt.s32.totalorder %v4186, 128
        %vm4189 = vmand %vm4187, %vm4188
        %v4190 = vsel %vm4189, %v4184, 0.0
        %v4191 = vld [vmem:[%s4169] sm:$0xff]
        %4192 = vrot.lane.b32.xlu0 %v4191, 127
        %v4193 = vpop.permute.xlu0 %4192
        %v4194 = vlaneseq
        %v4195 = vand.u32 %v4194, 127
        %vm4196 = vcmp.eq.s32.totalorder %v4195, 127
        %v4197 = vsel %vm4196, %v4173, %v4193
        %s4198 = smov [#allocation12]
        %s4199 = scalar_lea.vmem %s4198, 112
        %s4200 = smov [#allocation13]
        %s4201 = scalar_lea.vmem %s4200, 112
        %v4202 = vld [vmem:[%s4201] sm:$0xff]
        %4203 = vrot.lane.b32.xlu0 %v4202, 1
        %v4204 = vpop.permute.xlu0 %4203
        %v4205 = vld [vmem:[%s4199] sm:$0xff]
        %v4206 = vld [vmem:[%s4199] sm:$0xff]
        %4207 = vrot.lane.b32.xlu0 %v4206, 1
        %v4208 = vpop.permute.xlu0 %4207
        %v4209 = vlaneseq
        %v4210 = vand.u32 %v4209, 127
        %vm4211 = vcmp.eq.s32.totalorder %v4210, 0
        %v4212 = vsel %vm4211, %v4206, %v4208
        %v4213 = vlaneseq
        %v4214 = vand.u32 %v4213, 127
        %vm4215 = vcmp.eq.s32.totalorder %v4214, 1
        %v4216 = vsel %vm4215, %v4204, %v4212
        %v4217 = vlaneseq
        %v4218 = vand.u32 %v4217, 127
        %vm4219 = vcmp.ge.s32.totalorder %v4218, 0
        %vm4220 = vcmp.lt.s32.totalorder %v4218, 128
        %vm4221 = vmand %vm4219, %vm4220
        %v4222 = vsel %vm4221, %v4216, 0.0
        %v4223 = vld [vmem:[%s4201] sm:$0xff]
        %4224 = vrot.lane.b32.xlu0 %v4223, 127
        %v4225 = vpop.permute.xlu0 %4224
        %v4226 = vlaneseq
        %v4227 = vand.u32 %v4226, 127
        %vm4228 = vcmp.eq.s32.totalorder %v4227, 127
        %v4229 = vsel %vm4228, %v4205, %v4225
        %s4230 = smov [#allocation12]
        %s4231 = scalar_lea.vmem %s4230, 120
        %s4232 = smov [#allocation13]
        %s4233 = scalar_lea.vmem %s4232, 120
        %v4234 = vld [vmem:[%s4233] sm:$0xff]
        %4235 = vrot.lane.b32.xlu0 %v4234, 1
        %v4236 = vpop.permute.xlu0 %4235
        %v4237 = vld [vmem:[%s4231] sm:$0xff]
        %v4238 = vld [vmem:[%s4231] sm:$0xff]
        %4239 = vrot.lane.b32.xlu0 %v4238, 1
        %v4240 = vpop.permute.xlu0 %4239
        %v4241 = vlaneseq
        %v4242 = vand.u32 %v4241, 127
        %vm4243 = vcmp.eq.s32.totalorder %v4242, 0
        %v4244 = vsel %vm4243, %v4238, %v4240
        %v4245 = vlaneseq
        %v4246 = vand.u32 %v4245, 127
        %vm4247 = vcmp.eq.s32.totalorder %v4246, 1
        %v4248 = vsel %vm4247, %v4236, %v4244
        %v4249 = vlaneseq
        %v4250 = vand.u32 %v4249, 127
        %vm4251 = vcmp.ge.s32.totalorder %v4250, 0
        %vm4252 = vcmp.lt.s32.totalorder %v4250, 128
        %vm4253 = vmand %vm4251, %vm4252
        %v4254 = vsel %vm4253, %v4248, 0.0
        %v4255 = vld [vmem:[%s4233] sm:$0xff]
        %4256 = vrot.lane.b32.xlu0 %v4255, 127
        %v4257 = vpop.permute.xlu0 %4256
        %v4258 = vlaneseq
        %v4259 = vand.u32 %v4258, 127
        %vm4260 = vcmp.eq.s32.totalorder %v4259, 127
        %v4261 = vsel %vm4260, %v4237, %v4257
        %4262 = vst [vmem:[%s3752] sm:$0xff] %v3774
        %4263 = vst [vmem:[%s3753] sm:$0xff] %v3781
        %4264 = vst [vmem:[%s3783] sm:$0xff] %v3806
        %4265 = vst [vmem:[%s3785] sm:$0xff] %v3813
        %4266 = vst [vmem:[%s3815] sm:$0xff] %v3838
        %4267 = vst [vmem:[%s3817] sm:$0xff] %v3845
        %4268 = vst [vmem:[%s3847] sm:$0xff] %v3870
        %4269 = vst [vmem:[%s3849] sm:$0xff] %v3877
        %4270 = vst [vmem:[%s3879] sm:$0xff] %v3902
        %4271 = vst [vmem:[%s3881] sm:$0xff] %v3909
        %4272 = vst [vmem:[%s3911] sm:$0xff] %v3934
        %4273 = vst [vmem:[%s3913] sm:$0xff] %v3941
        %4274 = vst [vmem:[%s3943] sm:$0xff] %v3966
        %4275 = vst [vmem:[%s3945] sm:$0xff] %v3973
        %4276 = vst [vmem:[%s3975] sm:$0xff] %v3998
        %4277 = vst [vmem:[%s3977] sm:$0xff] %v4005
        %4278 = vst [vmem:[%s4007] sm:$0xff] %v4030
        %4279 = vst [vmem:[%s4009] sm:$0xff] %v4037
        %4280 = vst [vmem:[%s4039] sm:$0xff] %v4062
        %4281 = vst [vmem:[%s4041] sm:$0xff] %v4069
        %4282 = vst [vmem:[%s4071] sm:$0xff] %v4094
        %4283 = vst [vmem:[%s4073] sm:$0xff] %v4101
        %4284 = vst [vmem:[%s4103] sm:$0xff] %v4126
        %4285 = vst [vmem:[%s4105] sm:$0xff] %v4133
        %4286 = vst [vmem:[%s4135] sm:$0xff] %v4158
        %4287 = vst [vmem:[%s4137] sm:$0xff] %v4165
        %4288 = vst [vmem:[%s4167] sm:$0xff] %v4190
        %4289 = vst [vmem:[%s4169] sm:$0xff] %v4197
        %4290 = vst [vmem:[%s4199] sm:$0xff] %v4222
        %4291 = vst [vmem:[%s4201] sm:$0xff] %v4229
        %4292 = vst [vmem:[%s4231] sm:$0xff] %v4254
        %4293 = vst [vmem:[%s4233] sm:$0xff] %v4261
        %s4294 = smov [#allocation14]
        %s4295 = smov [#allocation15]
        %v4296 = vld [vmem:[%s4295] sm:$0xff]
        %4297 = vrot.lane.b32.xlu0 %v4296, 1
        %v4298 = vpop.permute.xlu0 %4297
        %v4299 = vld [vmem:[%s4294] sm:$0xff]
        %v4300 = vld [vmem:[%s4294] sm:$0xff]
        %4301 = vrot.lane.b32.xlu0 %v4300, 1
        %v4302 = vpop.permute.xlu0 %4301
        %v4303 = vlaneseq
        %v4304 = vand.u32 %v4303, 127
        %vm4305 = vcmp.eq.s32.totalorder %v4304, 0
        %v4306 = vsel %vm4305, %v4300, %v4302
        %v4307 = vlaneseq
        %v4308 = vand.u32 %v4307, 127
        %vm4309 = vcmp.eq.s32.totalorder %v4308, 1
        %v4310 = vsel %vm4309, %v4298, %v4306
        %v4311 = vlaneseq
        %v4312 = vand.u32 %v4311, 127
        %vm4313 = vcmp.ge.s32.totalorder %v4312, 0
        %vm4314 = vcmp.lt.s32.totalorder %v4312, 128
        %vm4315 = vmand %vm4313, %vm4314
        %v4316 = vsel %vm4315, %v4310, 0.0
        %v4317 = vld [vmem:[%s4295] sm:$0xff]
        %4318 = vrot.lane.b32.xlu0 %v4317, 127
        %v4319 = vpop.permute.xlu0 %4318
        %v4320 = vlaneseq
        %v4321 = vand.u32 %v4320, 127
        %vm4322 = vcmp.eq.s32.totalorder %v4321, 127
        %v4323 = vsel %vm4322, %v4299, %v4319
        %s4324 = smov [#allocation14]
        %s4325 = scalar_lea.vmem %s4324, 8
        %s4326 = smov [#allocation15]
        %s4327 = scalar_lea.vmem %s4326, 8
        %v4328 = vld [vmem:[%s4327] sm:$0xff]
        %4329 = vrot.lane.b32.xlu0 %v4328, 1
        %v4330 = vpop.permute.xlu0 %4329
        %v4331 = vld [vmem:[%s4325] sm:$0xff]
        %v4332 = vld [vmem:[%s4325] sm:$0xff]
        %4333 = vrot.lane.b32.xlu0 %v4332, 1
        %v4334 = vpop.permute.xlu0 %4333
        %v4335 = vlaneseq
        %v4336 = vand.u32 %v4335, 127
        %vm4337 = vcmp.eq.s32.totalorder %v4336, 0
        %v4338 = vsel %vm4337, %v4332, %v4334
        %v4339 = vlaneseq
        %v4340 = vand.u32 %v4339, 127
        %vm4341 = vcmp.eq.s32.totalorder %v4340, 1
        %v4342 = vsel %vm4341, %v4330, %v4338
        %v4343 = vlaneseq
        %v4344 = vand.u32 %v4343, 127
        %vm4345 = vcmp.ge.s32.totalorder %v4344, 0
        %vm4346 = vcmp.lt.s32.totalorder %v4344, 128
        %vm4347 = vmand %vm4345, %vm4346
        %v4348 = vsel %vm4347, %v4342, 0.0
        %v4349 = vld [vmem:[%s4327] sm:$0xff]
        %4350 = vrot.lane.b32.xlu0 %v4349, 127
        %v4351 = vpop.permute.xlu0 %4350
        %v4352 = vlaneseq
        %v4353 = vand.u32 %v4352, 127
        %vm4354 = vcmp.eq.s32.totalorder %v4353, 127
        %v4355 = vsel %vm4354, %v4331, %v4351
        %s4356 = smov [#allocation14]
        %s4357 = scalar_lea.vmem %s4356, 16
        %s4358 = smov [#allocation15]
        %s4359 = scalar_lea.vmem %s4358, 16
        %v4360 = vld [vmem:[%s4359] sm:$0xff]
        %4361 = vrot.lane.b32.xlu0 %v4360, 1
        %v4362 = vpop.permute.xlu0 %4361
        %v4363 = vld [vmem:[%s4357] sm:$0xff]
        %v4364 = vld [vmem:[%s4357] sm:$0xff]
        %4365 = vrot.lane.b32.xlu0 %v4364, 1
        %v4366 = vpop.permute.xlu0 %4365
        %v4367 = vlaneseq
        %v4368 = vand.u32 %v4367, 127
        %vm4369 = vcmp.eq.s32.totalorder %v4368, 0
        %v4370 = vsel %vm4369, %v4364, %v4366
        %v4371 = vlaneseq
        %v4372 = vand.u32 %v4371, 127
        %vm4373 = vcmp.eq.s32.totalorder %v4372, 1
        %v4374 = vsel %vm4373, %v4362, %v4370
        %v4375 = vlaneseq
        %v4376 = vand.u32 %v4375, 127
        %vm4377 = vcmp.ge.s32.totalorder %v4376, 0
        %vm4378 = vcmp.lt.s32.totalorder %v4376, 128
        %vm4379 = vmand %vm4377, %vm4378
        %v4380 = vsel %vm4379, %v4374, 0.0
        %v4381 = vld [vmem:[%s4359] sm:$0xff]
        %4382 = vrot.lane.b32.xlu0 %v4381, 127
        %v4383 = vpop.permute.xlu0 %4382
        %v4384 = vlaneseq
        %v4385 = vand.u32 %v4384, 127
        %vm4386 = vcmp.eq.s32.totalorder %v4385, 127
        %v4387 = vsel %vm4386, %v4363, %v4383
        %s4388 = smov [#allocation14]
        %s4389 = scalar_lea.vmem %s4388, 24
        %s4390 = smov [#allocation15]
        %s4391 = scalar_lea.vmem %s4390, 24
        %v4392 = vld [vmem:[%s4391] sm:$0xff]
        %4393 = vrot.lane.b32.xlu0 %v4392, 1
        %v4394 = vpop.permute.xlu0 %4393
        %v4395 = vld [vmem:[%s4389] sm:$0xff]
        %v4396 = vld [vmem:[%s4389] sm:$0xff]
        %4397 = vrot.lane.b32.xlu0 %v4396, 1
        %v4398 = vpop.permute.xlu0 %4397
        %v4399 = vlaneseq
        %v4400 = vand.u32 %v4399, 127
        %vm4401 = vcmp.eq.s32.totalorder %v4400, 0
        %v4402 = vsel %vm4401, %v4396, %v4398
        %v4403 = vlaneseq
        %v4404 = vand.u32 %v4403, 127
        %vm4405 = vcmp.eq.s32.totalorder %v4404, 1
        %v4406 = vsel %vm4405, %v4394, %v4402
        %v4407 = vlaneseq
        %v4408 = vand.u32 %v4407, 127
        %vm4409 = vcmp.ge.s32.totalorder %v4408, 0
        %vm4410 = vcmp.lt.s32.totalorder %v4408, 128
        %vm4411 = vmand %vm4409, %vm4410
        %v4412 = vsel %vm4411, %v4406, 0.0
        %v4413 = vld [vmem:[%s4391] sm:$0xff]
        %4414 = vrot.lane.b32.xlu0 %v4413, 127
        %v4415 = vpop.permute.xlu0 %4414
        %v4416 = vlaneseq
        %v4417 = vand.u32 %v4416, 127
        %vm4418 = vcmp.eq.s32.totalorder %v4417, 127
        %v4419 = vsel %vm4418, %v4395, %v4415
        %s4420 = smov [#allocation14]
        %s4421 = scalar_lea.vmem %s4420, 32
        %s4422 = smov [#allocation15]
        %s4423 = scalar_lea.vmem %s4422, 32
        %v4424 = vld [vmem:[%s4423] sm:$0xff]
        %4425 = vrot.lane.b32.xlu0 %v4424, 1
        %v4426 = vpop.permute.xlu0 %4425
        %v4427 = vld [vmem:[%s4421] sm:$0xff]
        %v4428 = vld [vmem:[%s4421] sm:$0xff]
        %4429 = vrot.lane.b32.xlu0 %v4428, 1
        %v4430 = vpop.permute.xlu0 %4429
        %v4431 = vlaneseq
        %v4432 = vand.u32 %v4431, 127
        %vm4433 = vcmp.eq.s32.totalorder %v4432, 0
        %v4434 = vsel %vm4433, %v4428, %v4430
        %v4435 = vlaneseq
        %v4436 = vand.u32 %v4435, 127
        %vm4437 = vcmp.eq.s32.totalorder %v4436, 1
        %v4438 = vsel %vm4437, %v4426, %v4434
        %v4439 = vlaneseq
        %v4440 = vand.u32 %v4439, 127
        %vm4441 = vcmp.ge.s32.totalorder %v4440, 0
        %vm4442 = vcmp.lt.s32.totalorder %v4440, 128
        %vm4443 = vmand %vm4441, %vm4442
        %v4444 = vsel %vm4443, %v4438, 0.0
        %v4445 = vld [vmem:[%s4423] sm:$0xff]
        %4446 = vrot.lane.b32.xlu0 %v4445, 127
        %v4447 = vpop.permute.xlu0 %4446
        %v4448 = vlaneseq
        %v4449 = vand.u32 %v4448, 127
        %vm4450 = vcmp.eq.s32.totalorder %v4449, 127
        %v4451 = vsel %vm4450, %v4427, %v4447
        %s4452 = smov [#allocation14]
        %s4453 = scalar_lea.vmem %s4452, 40
        %s4454 = smov [#allocation15]
        %s4455 = scalar_lea.vmem %s4454, 40
        %v4456 = vld [vmem:[%s4455] sm:$0xff]
        %4457 = vrot.lane.b32.xlu0 %v4456, 1
        %v4458 = vpop.permute.xlu0 %4457
        %v4459 = vld [vmem:[%s4453] sm:$0xff]
        %v4460 = vld [vmem:[%s4453] sm:$0xff]
        %4461 = vrot.lane.b32.xlu0 %v4460, 1
        %v4462 = vpop.permute.xlu0 %4461
        %v4463 = vlaneseq
        %v4464 = vand.u32 %v4463, 127
        %vm4465 = vcmp.eq.s32.totalorder %v4464, 0
        %v4466 = vsel %vm4465, %v4460, %v4462
        %v4467 = vlaneseq
        %v4468 = vand.u32 %v4467, 127
        %vm4469 = vcmp.eq.s32.totalorder %v4468, 1
        %v4470 = vsel %vm4469, %v4458, %v4466
        %v4471 = vlaneseq
        %v4472 = vand.u32 %v4471, 127
        %vm4473 = vcmp.ge.s32.totalorder %v4472, 0
        %vm4474 = vcmp.lt.s32.totalorder %v4472, 128
        %vm4475 = vmand %vm4473, %vm4474
        %v4476 = vsel %vm4475, %v4470, 0.0
        %v4477 = vld [vmem:[%s4455] sm:$0xff]
        %4478 = vrot.lane.b32.xlu0 %v4477, 127
        %v4479 = vpop.permute.xlu0 %4478
        %v4480 = vlaneseq
        %v4481 = vand.u32 %v4480, 127
        %vm4482 = vcmp.eq.s32.totalorder %v4481, 127
        %v4483 = vsel %vm4482, %v4459, %v4479
        %s4484 = smov [#allocation14]
        %s4485 = scalar_lea.vmem %s4484, 48
        %s4486 = smov [#allocation15]
        %s4487 = scalar_lea.vmem %s4486, 48
        %v4488 = vld [vmem:[%s4487] sm:$0xff]
        %4489 = vrot.lane.b32.xlu0 %v4488, 1
        %v4490 = vpop.permute.xlu0 %4489
        %v4491 = vld [vmem:[%s4485] sm:$0xff]
        %v4492 = vld [vmem:[%s4485] sm:$0xff]
        %4493 = vrot.lane.b32.xlu0 %v4492, 1
        %v4494 = vpop.permute.xlu0 %4493
        %v4495 = vlaneseq
        %v4496 = vand.u32 %v4495, 127
        %vm4497 = vcmp.eq.s32.totalorder %v4496, 0
        %v4498 = vsel %vm4497, %v4492, %v4494
        %v4499 = vlaneseq
        %v4500 = vand.u32 %v4499, 127
        %vm4501 = vcmp.eq.s32.totalorder %v4500, 1
        %v4502 = vsel %vm4501, %v4490, %v4498
        %v4503 = vlaneseq
        %v4504 = vand.u32 %v4503, 127
        %vm4505 = vcmp.ge.s32.totalorder %v4504, 0
        %vm4506 = vcmp.lt.s32.totalorder %v4504, 128
        %vm4507 = vmand %vm4505, %vm4506
        %v4508 = vsel %vm4507, %v4502, 0.0
        %v4509 = vld [vmem:[%s4487] sm:$0xff]
        %4510 = vrot.lane.b32.xlu0 %v4509, 127
        %v4511 = vpop.permute.xlu0 %4510
        %v4512 = vlaneseq
        %v4513 = vand.u32 %v4512, 127
        %vm4514 = vcmp.eq.s32.totalorder %v4513, 127
        %v4515 = vsel %vm4514, %v4491, %v4511
        %s4516 = smov [#allocation14]
        %s4517 = scalar_lea.vmem %s4516, 56
        %s4518 = smov [#allocation15]
        %s4519 = scalar_lea.vmem %s4518, 56
        %v4520 = vld [vmem:[%s4519] sm:$0xff]
        %4521 = vrot.lane.b32.xlu0 %v4520, 1
        %v4522 = vpop.permute.xlu0 %4521
        %v4523 = vld [vmem:[%s4517] sm:$0xff]
        %v4524 = vld [vmem:[%s4517] sm:$0xff]
        %4525 = vrot.lane.b32.xlu0 %v4524, 1
        %v4526 = vpop.permute.xlu0 %4525
        %v4527 = vlaneseq
        %v4528 = vand.u32 %v4527, 127
        %vm4529 = vcmp.eq.s32.totalorder %v4528, 0
        %v4530 = vsel %vm4529, %v4524, %v4526
        %v4531 = vlaneseq
        %v4532 = vand.u32 %v4531, 127
        %vm4533 = vcmp.eq.s32.totalorder %v4532, 1
        %v4534 = vsel %vm4533, %v4522, %v4530
        %v4535 = vlaneseq
        %v4536 = vand.u32 %v4535, 127
        %vm4537 = vcmp.ge.s32.totalorder %v4536, 0
        %vm4538 = vcmp.lt.s32.totalorder %v4536, 128
        %vm4539 = vmand %vm4537, %vm4538
        %v4540 = vsel %vm4539, %v4534, 0.0
        %v4541 = vld [vmem:[%s4519] sm:$0xff]
        %4542 = vrot.lane.b32.xlu0 %v4541, 127
        %v4543 = vpop.permute.xlu0 %4542
        %v4544 = vlaneseq
        %v4545 = vand.u32 %v4544, 127
        %vm4546 = vcmp.eq.s32.totalorder %v4545, 127
        %v4547 = vsel %vm4546, %v4523, %v4543
        %s4548 = smov [#allocation14]
        %s4549 = scalar_lea.vmem %s4548, 64
        %s4550 = smov [#allocation15]
        %s4551 = scalar_lea.vmem %s4550, 64
        %v4552 = vld [vmem:[%s4551] sm:$0xff]
        %4553 = vrot.lane.b32.xlu0 %v4552, 1
        %v4554 = vpop.permute.xlu0 %4553
        %v4555 = vld [vmem:[%s4549] sm:$0xff]
        %v4556 = vld [vmem:[%s4549] sm:$0xff]
        %4557 = vrot.lane.b32.xlu0 %v4556, 1
        %v4558 = vpop.permute.xlu0 %4557
        %v4559 = vlaneseq
        %v4560 = vand.u32 %v4559, 127
        %vm4561 = vcmp.eq.s32.totalorder %v4560, 0
        %v4562 = vsel %vm4561, %v4556, %v4558
        %v4563 = vlaneseq
        %v4564 = vand.u32 %v4563, 127
        %vm4565 = vcmp.eq.s32.totalorder %v4564, 1
        %v4566 = vsel %vm4565, %v4554, %v4562
        %v4567 = vlaneseq
        %v4568 = vand.u32 %v4567, 127
        %vm4569 = vcmp.ge.s32.totalorder %v4568, 0
        %vm4570 = vcmp.lt.s32.totalorder %v4568, 128
        %vm4571 = vmand %vm4569, %vm4570
        %v4572 = vsel %vm4571, %v4566, 0.0
        %v4573 = vld [vmem:[%s4551] sm:$0xff]
        %4574 = vrot.lane.b32.xlu0 %v4573, 127
        %v4575 = vpop.permute.xlu0 %4574
        %v4576 = vlaneseq
        %v4577 = vand.u32 %v4576, 127
        %vm4578 = vcmp.eq.s32.totalorder %v4577, 127
        %v4579 = vsel %vm4578, %v4555, %v4575
        %s4580 = smov [#allocation14]
        %s4581 = scalar_lea.vmem %s4580, 72
        %s4582 = smov [#allocation15]
        %s4583 = scalar_lea.vmem %s4582, 72
        %v4584 = vld [vmem:[%s4583] sm:$0xff]
        %4585 = vrot.lane.b32.xlu0 %v4584, 1
        %v4586 = vpop.permute.xlu0 %4585
        %v4587 = vld [vmem:[%s4581] sm:$0xff]
        %v4588 = vld [vmem:[%s4581] sm:$0xff]
        %4589 = vrot.lane.b32.xlu0 %v4588, 1
        %v4590 = vpop.permute.xlu0 %4589
        %v4591 = vlaneseq
        %v4592 = vand.u32 %v4591, 127
        %vm4593 = vcmp.eq.s32.totalorder %v4592, 0
        %v4594 = vsel %vm4593, %v4588, %v4590
        %v4595 = vlaneseq
        %v4596 = vand.u32 %v4595, 127
        %vm4597 = vcmp.eq.s32.totalorder %v4596, 1
        %v4598 = vsel %vm4597, %v4586, %v4594
        %v4599 = vlaneseq
        %v4600 = vand.u32 %v4599, 127
        %vm4601 = vcmp.ge.s32.totalorder %v4600, 0
        %vm4602 = vcmp.lt.s32.totalorder %v4600, 128
        %vm4603 = vmand %vm4601, %vm4602
        %v4604 = vsel %vm4603, %v4598, 0.0
        %v4605 = vld [vmem:[%s4583] sm:$0xff]
        %4606 = vrot.lane.b32.xlu0 %v4605, 127
        %v4607 = vpop.permute.xlu0 %4606
        %v4608 = vlaneseq
        %v4609 = vand.u32 %v4608, 127
        %vm4610 = vcmp.eq.s32.totalorder %v4609, 127
        %v4611 = vsel %vm4610, %v4587, %v4607
        %s4612 = smov [#allocation14]
        %s4613 = scalar_lea.vmem %s4612, 80
        %s4614 = smov [#allocation15]
        %s4615 = scalar_lea.vmem %s4614, 80
        %v4616 = vld [vmem:[%s4615] sm:$0xff]
        %4617 = vrot.lane.b32.xlu0 %v4616, 1
        %v4618 = vpop.permute.xlu0 %4617
        %v4619 = vld [vmem:[%s4613] sm:$0xff]
        %v4620 = vld [vmem:[%s4613] sm:$0xff]
        %4621 = vrot.lane.b32.xlu0 %v4620, 1
        %v4622 = vpop.permute.xlu0 %4621
        %v4623 = vlaneseq
        %v4624 = vand.u32 %v4623, 127
        %vm4625 = vcmp.eq.s32.totalorder %v4624, 0
        %v4626 = vsel %vm4625, %v4620, %v4622
        %v4627 = vlaneseq
        %v4628 = vand.u32 %v4627, 127
        %vm4629 = vcmp.eq.s32.totalorder %v4628, 1
        %v4630 = vsel %vm4629, %v4618, %v4626
        %v4631 = vlaneseq
        %v4632 = vand.u32 %v4631, 127
        %vm4633 = vcmp.ge.s32.totalorder %v4632, 0
        %vm4634 = vcmp.lt.s32.totalorder %v4632, 128
        %vm4635 = vmand %vm4633, %vm4634
        %v4636 = vsel %vm4635, %v4630, 0.0
        %v4637 = vld [vmem:[%s4615] sm:$0xff]
        %4638 = vrot.lane.b32.xlu0 %v4637, 127
        %v4639 = vpop.permute.xlu0 %4638
        %v4640 = vlaneseq
        %v4641 = vand.u32 %v4640, 127
        %vm4642 = vcmp.eq.s32.totalorder %v4641, 127
        %v4643 = vsel %vm4642, %v4619, %v4639
        %s4644 = smov [#allocation14]
        %s4645 = scalar_lea.vmem %s4644, 88
        %s4646 = smov [#allocation15]
        %s4647 = scalar_lea.vmem %s4646, 88
        %v4648 = vld [vmem:[%s4647] sm:$0xff]
        %4649 = vrot.lane.b32.xlu0 %v4648, 1
        %v4650 = vpop.permute.xlu0 %4649
        %v4651 = vld [vmem:[%s4645] sm:$0xff]
        %v4652 = vld [vmem:[%s4645] sm:$0xff]
        %4653 = vrot.lane.b32.xlu0 %v4652, 1
        %v4654 = vpop.permute.xlu0 %4653
        %v4655 = vlaneseq
        %v4656 = vand.u32 %v4655, 127
        %vm4657 = vcmp.eq.s32.totalorder %v4656, 0
        %v4658 = vsel %vm4657, %v4652, %v4654
        %v4659 = vlaneseq
        %v4660 = vand.u32 %v4659, 127
        %vm4661 = vcmp.eq.s32.totalorder %v4660, 1
        %v4662 = vsel %vm4661, %v4650, %v4658
        %v4663 = vlaneseq
        %v4664 = vand.u32 %v4663, 127
        %vm4665 = vcmp.ge.s32.totalorder %v4664, 0
        %vm4666 = vcmp.lt.s32.totalorder %v4664, 128
        %vm4667 = vmand %vm4665, %vm4666
        %v4668 = vsel %vm4667, %v4662, 0.0
        %v4669 = vld [vmem:[%s4647] sm:$0xff]
        %4670 = vrot.lane.b32.xlu0 %v4669, 127
        %v4671 = vpop.permute.xlu0 %4670
        %v4672 = vlaneseq
        %v4673 = vand.u32 %v4672, 127
        %vm4674 = vcmp.eq.s32.totalorder %v4673, 127
        %v4675 = vsel %vm4674, %v4651, %v4671
        %s4676 = smov [#allocation14]
        %s4677 = scalar_lea.vmem %s4676, 96
        %s4678 = smov [#allocation15]
        %s4679 = scalar_lea.vmem %s4678, 96
        %v4680 = vld [vmem:[%s4679] sm:$0xff]
        %4681 = vrot.lane.b32.xlu0 %v4680, 1
        %v4682 = vpop.permute.xlu0 %4681
        %v4683 = vld [vmem:[%s4677] sm:$0xff]
        %v4684 = vld [vmem:[%s4677] sm:$0xff]
        %4685 = vrot.lane.b32.xlu0 %v4684, 1
        %v4686 = vpop.permute.xlu0 %4685
        %v4687 = vlaneseq
        %v4688 = vand.u32 %v4687, 127
        %vm4689 = vcmp.eq.s32.totalorder %v4688, 0
        %v4690 = vsel %vm4689, %v4684, %v4686
        %v4691 = vlaneseq
        %v4692 = vand.u32 %v4691, 127
        %vm4693 = vcmp.eq.s32.totalorder %v4692, 1
        %v4694 = vsel %vm4693, %v4682, %v4690
        %v4695 = vlaneseq
        %v4696 = vand.u32 %v4695, 127
        %vm4697 = vcmp.ge.s32.totalorder %v4696, 0
        %vm4698 = vcmp.lt.s32.totalorder %v4696, 128
        %vm4699 = vmand %vm4697, %vm4698
        %v4700 = vsel %vm4699, %v4694, 0.0
        %v4701 = vld [vmem:[%s4679] sm:$0xff]
        %4702 = vrot.lane.b32.xlu0 %v4701, 127
        %v4703 = vpop.permute.xlu0 %4702
        %v4704 = vlaneseq
        %v4705 = vand.u32 %v4704, 127
        %vm4706 = vcmp.eq.s32.totalorder %v4705, 127
        %v4707 = vsel %vm4706, %v4683, %v4703
        %s4708 = smov [#allocation14]
        %s4709 = scalar_lea.vmem %s4708, 104
        %s4710 = smov [#allocation15]
        %s4711 = scalar_lea.vmem %s4710, 104
        %v4712 = vld [vmem:[%s4711] sm:$0xff]
        %4713 = vrot.lane.b32.xlu0 %v4712, 1
        %v4714 = vpop.permute.xlu0 %4713
        %v4715 = vld [vmem:[%s4709] sm:$0xff]
        %v4716 = vld [vmem:[%s4709] sm:$0xff]
        %4717 = vrot.lane.b32.xlu0 %v4716, 1
        %v4718 = vpop.permute.xlu0 %4717
        %v4719 = vlaneseq
        %v4720 = vand.u32 %v4719, 127
        %vm4721 = vcmp.eq.s32.totalorder %v4720, 0
        %v4722 = vsel %vm4721, %v4716, %v4718
        %v4723 = vlaneseq
        %v4724 = vand.u32 %v4723, 127
        %vm4725 = vcmp.eq.s32.totalorder %v4724, 1
        %v4726 = vsel %vm4725, %v4714, %v4722
        %v4727 = vlaneseq
        %v4728 = vand.u32 %v4727, 127
        %vm4729 = vcmp.ge.s32.totalorder %v4728, 0
        %vm4730 = vcmp.lt.s32.totalorder %v4728, 128
        %vm4731 = vmand %vm4729, %vm4730
        %v4732 = vsel %vm4731, %v4726, 0.0
        %v4733 = vld [vmem:[%s4711] sm:$0xff]
        %4734 = vrot.lane.b32.xlu0 %v4733, 127
        %v4735 = vpop.permute.xlu0 %4734
        %v4736 = vlaneseq
        %v4737 = vand.u32 %v4736, 127
        %vm4738 = vcmp.eq.s32.totalorder %v4737, 127
        %v4739 = vsel %vm4738, %v4715, %v4735
        %s4740 = smov [#allocation14]
        %s4741 = scalar_lea.vmem %s4740, 112
        %s4742 = smov [#allocation15]
        %s4743 = scalar_lea.vmem %s4742, 112
        %v4744 = vld [vmem:[%s4743] sm:$0xff]
        %4745 = vrot.lane.b32.xlu0 %v4744, 1
        %v4746 = vpop.permute.xlu0 %4745
        %v4747 = vld [vmem:[%s4741] sm:$0xff]
        %v4748 = vld [vmem:[%s4741] sm:$0xff]
        %4749 = vrot.lane.b32.xlu0 %v4748, 1
        %v4750 = vpop.permute.xlu0 %4749
        %v4751 = vlaneseq
        %v4752 = vand.u32 %v4751, 127
        %vm4753 = vcmp.eq.s32.totalorder %v4752, 0
        %v4754 = vsel %vm4753, %v4748, %v4750
        %v4755 = vlaneseq
        %v4756 = vand.u32 %v4755, 127
        %vm4757 = vcmp.eq.s32.totalorder %v4756, 1
        %v4758 = vsel %vm4757, %v4746, %v4754
        %v4759 = vlaneseq
        %v4760 = vand.u32 %v4759, 127
        %vm4761 = vcmp.ge.s32.totalorder %v4760, 0
        %vm4762 = vcmp.lt.s32.totalorder %v4760, 128
        %vm4763 = vmand %vm4761, %vm4762
        %v4764 = vsel %vm4763, %v4758, 0.0
        %v4765 = vld [vmem:[%s4743] sm:$0xff]
        %4766 = vrot.lane.b32.xlu0 %v4765, 127
        %v4767 = vpop.permute.xlu0 %4766
        %v4768 = vlaneseq
        %v4769 = vand.u32 %v4768, 127
        %vm4770 = vcmp.eq.s32.totalorder %v4769, 127
        %v4771 = vsel %vm4770, %v4747, %v4767
        %s4772 = smov [#allocation14]
        %s4773 = scalar_lea.vmem %s4772, 120
        %s4774 = smov [#allocation15]
        %s4775 = scalar_lea.vmem %s4774, 120
        %v4776 = vld [vmem:[%s4775] sm:$0xff]
        %4777 = vrot.lane.b32.xlu0 %v4776, 1
        %v4778 = vpop.permute.xlu0 %4777
        %v4779 = vld [vmem:[%s4773] sm:$0xff]
        %v4780 = vld [vmem:[%s4773] sm:$0xff]
        %4781 = vrot.lane.b32.xlu0 %v4780, 1
        %v4782 = vpop.permute.xlu0 %4781
        %v4783 = vlaneseq
        %v4784 = vand.u32 %v4783, 127
        %vm4785 = vcmp.eq.s32.totalorder %v4784, 0
        %v4786 = vsel %vm4785, %v4780, %v4782
        %v4787 = vlaneseq
        %v4788 = vand.u32 %v4787, 127
        %vm4789 = vcmp.eq.s32.totalorder %v4788, 1
        %v4790 = vsel %vm4789, %v4778, %v4786
        %v4791 = vlaneseq
        %v4792 = vand.u32 %v4791, 127
        %vm4793 = vcmp.ge.s32.totalorder %v4792, 0
        %vm4794 = vcmp.lt.s32.totalorder %v4792, 128
        %vm4795 = vmand %vm4793, %vm4794
        %v4796 = vsel %vm4795, %v4790, 0.0
        %v4797 = vld [vmem:[%s4775] sm:$0xff]
        %4798 = vrot.lane.b32.xlu0 %v4797, 127
        %v4799 = vpop.permute.xlu0 %4798
        %v4800 = vlaneseq
        %v4801 = vand.u32 %v4800, 127
        %vm4802 = vcmp.eq.s32.totalorder %v4801, 127
        %v4803 = vsel %vm4802, %v4779, %v4799
        %4804 = vst [vmem:[%s4294] sm:$0xff] %v4316
        %4805 = vst [vmem:[%s4295] sm:$0xff] %v4323
        %4806 = vst [vmem:[%s4325] sm:$0xff] %v4348
        %4807 = vst [vmem:[%s4327] sm:$0xff] %v4355
        %4808 = vst [vmem:[%s4357] sm:$0xff] %v4380
        %4809 = vst [vmem:[%s4359] sm:$0xff] %v4387
        %4810 = vst [vmem:[%s4389] sm:$0xff] %v4412
        %4811 = vst [vmem:[%s4391] sm:$0xff] %v4419
        %4812 = vst [vmem:[%s4421] sm:$0xff] %v4444
        %4813 = vst [vmem:[%s4423] sm:$0xff] %v4451
        %4814 = vst [vmem:[%s4453] sm:$0xff] %v4476
        %4815 = vst [vmem:[%s4455] sm:$0xff] %v4483
        %4816 = vst [vmem:[%s4485] sm:$0xff] %v4508
        %4817 = vst [vmem:[%s4487] sm:$0xff] %v4515
        %4818 = vst [vmem:[%s4517] sm:$0xff] %v4540
        %4819 = vst [vmem:[%s4519] sm:$0xff] %v4547
        %4820 = vst [vmem:[%s4549] sm:$0xff] %v4572
        %4821 = vst [vmem:[%s4551] sm:$0xff] %v4579
        %4822 = vst [vmem:[%s4581] sm:$0xff] %v4604
        %4823 = vst [vmem:[%s4583] sm:$0xff] %v4611
        %4824 = vst [vmem:[%s4613] sm:$0xff] %v4636
        %4825 = vst [vmem:[%s4615] sm:$0xff] %v4643
        %4826 = vst [vmem:[%s4645] sm:$0xff] %v4668
        %4827 = vst [vmem:[%s4647] sm:$0xff] %v4675
        %4828 = vst [vmem:[%s4677] sm:$0xff] %v4700
        %4829 = vst [vmem:[%s4679] sm:$0xff] %v4707
        %4830 = vst [vmem:[%s4709] sm:$0xff] %v4732
        %4831 = vst [vmem:[%s4711] sm:$0xff] %v4739
        %4832 = vst [vmem:[%s4741] sm:$0xff] %v4764
        %4833 = vst [vmem:[%s4743] sm:$0xff] %v4771
        %4834 = vst [vmem:[%s4773] sm:$0xff] %v4796
        %4835 = vst [vmem:[%s4775] sm:$0xff] %v4803
        %s4836 = smov [#allocation12]
        %s4837 = smov [#allocation14]
        %v4838 = vld [vmem:[%s4836] ss:$0 sm:$0xff]
        %s4840 = scalar_lea.vmem %s4836, 4294967295
        %v4841 = vld [vmem:[%s4840] sm:$0xfe]
        %v4842 = vlaneseq
        %v4843 = vshrl.u32 %v4842, 7
        %vm4844 = vcmp.eq.s32.totalorder %v4843, 0
        %v4845 = vsel %vm4844, %v4838, %v4841
        %s4846 = scalar_lea.vmem %s4836, 7
        %v4847 = vld [vmem:[%s4846] ss:$0 sm:$0xff]
        %4848 = vst [vmem:[%s4836] sm:$0xff] %v4845
        %s4849 = scalar_lea.vmem %s4836, 8
        %s4851 = scalar_lea.vmem %s4849, 4294967295
        %v4852 = vld [vmem:[%s4851] sm:$0xfe]
        %v4853 = vlaneseq
        %v4854 = vshrl.u32 %v4853, 7
        %vm4855 = vcmp.eq.s32.totalorder %v4854, 0
        %v4856 = vsel %vm4855, %v4847, %v4852
        %s4857 = scalar_lea.vmem %s4849, 7
        %v4858 = vld [vmem:[%s4857] ss:$0 sm:$0xff]
        %4859 = vst [vmem:[%s4849] sm:$0xff] %v4856
        %s4860 = scalar_lea.vmem %s4836, 16
        %s4862 = scalar_lea.vmem %s4860, 4294967295
        %v4863 = vld [vmem:[%s4862] sm:$0xfe]
        %v4864 = vlaneseq
        %v4865 = vshrl.u32 %v4864, 7
        %vm4866 = vcmp.eq.s32.totalorder %v4865, 0
        %v4867 = vsel %vm4866, %v4858, %v4863
        %s4868 = scalar_lea.vmem %s4860, 7
        %v4869 = vld [vmem:[%s4868] ss:$0 sm:$0xff]
        %4870 = vst [vmem:[%s4860] sm:$0xff] %v4867
        %s4871 = scalar_lea.vmem %s4836, 24
        %s4873 = scalar_lea.vmem %s4871, 4294967295
        %v4874 = vld [vmem:[%s4873] sm:$0xfe]
        %v4875 = vlaneseq
        %v4876 = vshrl.u32 %v4875, 7
        %vm4877 = vcmp.eq.s32.totalorder %v4876, 0
        %v4878 = vsel %vm4877, %v4869, %v4874
        %s4879 = scalar_lea.vmem %s4871, 7
        %v4880 = vld [vmem:[%s4879] ss:$0 sm:$0xff]
        %4881 = vst [vmem:[%s4871] sm:$0xff] %v4878
        %s4882 = scalar_lea.vmem %s4836, 32
        %s4884 = scalar_lea.vmem %s4882, 4294967295
        %v4885 = vld [vmem:[%s4884] sm:$0xfe]
        %v4886 = vlaneseq
        %v4887 = vshrl.u32 %v4886, 7
        %vm4888 = vcmp.eq.s32.totalorder %v4887, 0
        %v4889 = vsel %vm4888, %v4880, %v4885
        %s4890 = scalar_lea.vmem %s4882, 7
        %v4891 = vld [vmem:[%s4890] ss:$0 sm:$0xff]
        %4892 = vst [vmem:[%s4882] sm:$0xff] %v4889
        %s4893 = scalar_lea.vmem %s4836, 40
        %s4895 = scalar_lea.vmem %s4893, 4294967295
        %v4896 = vld [vmem:[%s4895] sm:$0xfe]
        %v4897 = vlaneseq
        %v4898 = vshrl.u32 %v4897, 7
        %vm4899 = vcmp.eq.s32.totalorder %v4898, 0
        %v4900 = vsel %vm4899, %v4891, %v4896
        %s4901 = scalar_lea.vmem %s4893, 7
        %v4902 = vld [vmem:[%s4901] ss:$0 sm:$0xff]
        %4903 = vst [vmem:[%s4893] sm:$0xff] %v4900
        %s4904 = scalar_lea.vmem %s4836, 48
        %s4906 = scalar_lea.vmem %s4904, 4294967295
        %v4907 = vld [vmem:[%s4906] sm:$0xfe]
        %v4908 = vlaneseq
        %v4909 = vshrl.u32 %v4908, 7
        %vm4910 = vcmp.eq.s32.totalorder %v4909, 0
        %v4911 = vsel %vm4910, %v4902, %v4907
        %s4912 = scalar_lea.vmem %s4904, 7
        %v4913 = vld [vmem:[%s4912] ss:$0 sm:$0xff]
        %4914 = vst [vmem:[%s4904] sm:$0xff] %v4911
        %s4915 = scalar_lea.vmem %s4836, 56
        %s4917 = scalar_lea.vmem %s4915, 4294967295
        %v4918 = vld [vmem:[%s4917] sm:$0xfe]
        %v4919 = vlaneseq
        %v4920 = vshrl.u32 %v4919, 7
        %vm4921 = vcmp.eq.s32.totalorder %v4920, 0
        %v4922 = vsel %vm4921, %v4913, %v4918
        %s4923 = scalar_lea.vmem %s4915, 7
        %v4924 = vld [vmem:[%s4923] ss:$0 sm:$0xff]
        %4925 = vst [vmem:[%s4915] sm:$0xff] %v4922
        %s4926 = scalar_lea.vmem %s4836, 64
        %s4928 = scalar_lea.vmem %s4926, 4294967295
        %v4929 = vld [vmem:[%s4928] sm:$0xfe]
        %v4930 = vlaneseq
        %v4931 = vshrl.u32 %v4930, 7
        %vm4932 = vcmp.eq.s32.totalorder %v4931, 0
        %v4933 = vsel %vm4932, %v4924, %v4929
        %s4934 = scalar_lea.vmem %s4926, 7
        %v4935 = vld [vmem:[%s4934] ss:$0 sm:$0xff]
        %4936 = vst [vmem:[%s4926] sm:$0xff] %v4933
        %s4937 = scalar_lea.vmem %s4836, 72
        %s4939 = scalar_lea.vmem %s4937, 4294967295
        %v4940 = vld [vmem:[%s4939] sm:$0xfe]
        %v4941 = vlaneseq
        %v4942 = vshrl.u32 %v4941, 7
        %vm4943 = vcmp.eq.s32.totalorder %v4942, 0
        %v4944 = vsel %vm4943, %v4935, %v4940
        %s4945 = scalar_lea.vmem %s4937, 7
        %v4946 = vld [vmem:[%s4945] ss:$0 sm:$0xff]
        %4947 = vst [vmem:[%s4937] sm:$0xff] %v4944
        %s4948 = scalar_lea.vmem %s4836, 80
        %s4950 = scalar_lea.vmem %s4948, 4294967295
        %v4951 = vld [vmem:[%s4950] sm:$0xfe]
        %v4952 = vlaneseq
        %v4953 = vshrl.u32 %v4952, 7
        %vm4954 = vcmp.eq.s32.totalorder %v4953, 0
        %v4955 = vsel %vm4954, %v4946, %v4951
        %s4956 = scalar_lea.vmem %s4948, 7
        %v4957 = vld [vmem:[%s4956] ss:$0 sm:$0xff]
        %4958 = vst [vmem:[%s4948] sm:$0xff] %v4955
        %s4959 = scalar_lea.vmem %s4836, 88
        %s4961 = scalar_lea.vmem %s4959, 4294967295
        %v4962 = vld [vmem:[%s4961] sm:$0xfe]
        %v4963 = vlaneseq
        %v4964 = vshrl.u32 %v4963, 7
        %vm4965 = vcmp.eq.s32.totalorder %v4964, 0
        %v4966 = vsel %vm4965, %v4957, %v4962
        %s4967 = scalar_lea.vmem %s4959, 7
        %v4968 = vld [vmem:[%s4967] ss:$0 sm:$0xff]
        %4969 = vst [vmem:[%s4959] sm:$0xff] %v4966
        %s4970 = scalar_lea.vmem %s4836, 96
        %s4972 = scalar_lea.vmem %s4970, 4294967295
        %v4973 = vld [vmem:[%s4972] sm:$0xfe]
        %v4974 = vlaneseq
        %v4975 = vshrl.u32 %v4974, 7
        %vm4976 = vcmp.eq.s32.totalorder %v4975, 0
        %v4977 = vsel %vm4976, %v4968, %v4973
        %s4978 = scalar_lea.vmem %s4970, 7
        %v4979 = vld [vmem:[%s4978] ss:$0 sm:$0xff]
        %4980 = vst [vmem:[%s4970] sm:$0xff] %v4977
        %s4981 = scalar_lea.vmem %s4836, 104
        %s4983 = scalar_lea.vmem %s4981, 4294967295
        %v4984 = vld [vmem:[%s4983] sm:$0xfe]
        %v4985 = vlaneseq
        %v4986 = vshrl.u32 %v4985, 7
        %vm4987 = vcmp.eq.s32.totalorder %v4986, 0
        %v4988 = vsel %vm4987, %v4979, %v4984
        %s4989 = scalar_lea.vmem %s4981, 7
        %v4990 = vld [vmem:[%s4989] ss:$0 sm:$0xff]
        %4991 = vst [vmem:[%s4981] sm:$0xff] %v4988
        %s4992 = scalar_lea.vmem %s4836, 112
        %s4994 = scalar_lea.vmem %s4992, 4294967295
        %v4995 = vld [vmem:[%s4994] sm:$0xfe]
        %v4996 = vlaneseq
        %v4997 = vshrl.u32 %v4996, 7
        %vm4998 = vcmp.eq.s32.totalorder %v4997, 0
        %v4999 = vsel %vm4998, %v4990, %v4995
        %s5000 = scalar_lea.vmem %s4992, 7
        %v5001 = vld [vmem:[%s5000] ss:$0 sm:$0xff]
        %5002 = vst [vmem:[%s4992] sm:$0xff] %v4999
        %s5003 = scalar_lea.vmem %s4836, 120
        %s5005 = scalar_lea.vmem %s5003, 4294967295
        %v5006 = vld [vmem:[%s5005] sm:$0xfe]
        %v5007 = vlaneseq
        %v5008 = vshrl.u32 %v5007, 7
        %vm5009 = vcmp.eq.s32.totalorder %v5008, 0
        %v5010 = vsel %vm5009, %v5001, %v5006
        %s5011 = scalar_lea.vmem %s5003, 7
        %v5012 = vld [vmem:[%s5011] ss:$0 sm:$0xff]
        %5013 = vst [vmem:[%s5003] sm:$0xff] %v5010
        %v5014 = vld [vmem:[%s4837] ss:$0 sm:$0xff]
        %s5015 = scalar_lea.vmem %s4836, 1
        %5016 = vst [vmem:[%s5015] sm:$0x1] %v5014
        %s5017 = scalar_lea.vmem %s4837, 120
        %s5018 = scalar_lea.vmem %s5017, 1
        %v5019 = vld [vmem:[%s5018] sm:$0x7f]
        %v5020 = vlaneseq
        %v5021 = vshrl.u32 %v5020, 7
        %vm5022 = vcmp.eq.s32.totalorder %v5021, 7
        %v5023 = vsel %vm5022, %v5012, %v5019
        %v5024 = vld [vmem:[%s5017] ss:$0 sm:$0xff]
        %5025 = vst [vmem:[%s5017] sm:$0xff] %v5023
        %s5026 = scalar_lea.vmem %s4837, 112
        %s5027 = scalar_lea.vmem %s5026, 1
        %v5028 = vld [vmem:[%s5027] sm:$0x7f]
        %v5029 = vlaneseq
        %v5030 = vshrl.u32 %v5029, 7
        %vm5031 = vcmp.eq.s32.totalorder %v5030, 7
        %v5032 = vsel %vm5031, %v5024, %v5028
        %v5033 = vld [vmem:[%s5026] ss:$0 sm:$0xff]
        %5034 = vst [vmem:[%s5026] sm:$0xff] %v5032
        %s5035 = scalar_lea.vmem %s4837, 104
        %s5036 = scalar_lea.vmem %s5035, 1
        %v5037 = vld [vmem:[%s5036] sm:$0x7f]
        %v5038 = vlaneseq
        %v5039 = vshrl.u32 %v5038, 7
        %vm5040 = vcmp.eq.s32.totalorder %v5039, 7
        %v5041 = vsel %vm5040, %v5033, %v5037
        %v5042 = vld [vmem:[%s5035] ss:$0 sm:$0xff]
        %5043 = vst [vmem:[%s5035] sm:$0xff] %v5041
        %s5044 = scalar_lea.vmem %s4837, 96
        %s5045 = scalar_lea.vmem %s5044, 1
        %v5046 = vld [vmem:[%s5045] sm:$0x7f]
        %v5047 = vlaneseq
        %v5048 = vshrl.u32 %v5047, 7
        %vm5049 = vcmp.eq.s32.totalorder %v5048, 7
        %v5050 = vsel %vm5049, %v5042, %v5046
        %v5051 = vld [vmem:[%s5044] ss:$0 sm:$0xff]
        %5052 = vst [vmem:[%s5044] sm:$0xff] %v5050
        %s5053 = scalar_lea.vmem %s4837, 88
        %s5054 = scalar_lea.vmem %s5053, 1
        %v5055 = vld [vmem:[%s5054] sm:$0x7f]
        %v5056 = vlaneseq
        %v5057 = vshrl.u32 %v5056, 7
        %vm5058 = vcmp.eq.s32.totalorder %v5057, 7
        %v5059 = vsel %vm5058, %v5051, %v5055
        %v5060 = vld [vmem:[%s5053] ss:$0 sm:$0xff]
        %5061 = vst [vmem:[%s5053] sm:$0xff] %v5059
        %s5062 = scalar_lea.vmem %s4837, 80
        %s5063 = scalar_lea.vmem %s5062, 1
        %v5064 = vld [vmem:[%s5063] sm:$0x7f]
        %v5065 = vlaneseq
        %v5066 = vshrl.u32 %v5065, 7
        %vm5067 = vcmp.eq.s32.totalorder %v5066, 7
        %v5068 = vsel %vm5067, %v5060, %v5064
        %v5069 = vld [vmem:[%s5062] ss:$0 sm:$0xff]
        %5070 = vst [vmem:[%s5062] sm:$0xff] %v5068
        %s5071 = scalar_lea.vmem %s4837, 72
        %s5072 = scalar_lea.vmem %s5071, 1
        %v5073 = vld [vmem:[%s5072] sm:$0x7f]
        %v5074 = vlaneseq
        %v5075 = vshrl.u32 %v5074, 7
        %vm5076 = vcmp.eq.s32.totalorder %v5075, 7
        %v5077 = vsel %vm5076, %v5069, %v5073
        %v5078 = vld [vmem:[%s5071] ss:$0 sm:$0xff]
        %5079 = vst [vmem:[%s5071] sm:$0xff] %v5077
        %s5080 = scalar_lea.vmem %s4837, 64
        %s5081 = scalar_lea.vmem %s5080, 1
        %v5082 = vld [vmem:[%s5081] sm:$0x7f]
        %v5083 = vlaneseq
        %v5084 = vshrl.u32 %v5083, 7
        %vm5085 = vcmp.eq.s32.totalorder %v5084, 7
        %v5086 = vsel %vm5085, %v5078, %v5082
        %v5087 = vld [vmem:[%s5080] ss:$0 sm:$0xff]
        %5088 = vst [vmem:[%s5080] sm:$0xff] %v5086
        %s5089 = scalar_lea.vmem %s4837, 56
        %s5090 = scalar_lea.vmem %s5089, 1
        %v5091 = vld [vmem:[%s5090] sm:$0x7f]
        %v5092 = vlaneseq
        %v5093 = vshrl.u32 %v5092, 7
        %vm5094 = vcmp.eq.s32.totalorder %v5093, 7
        %v5095 = vsel %vm5094, %v5087, %v5091
        %v5096 = vld [vmem:[%s5089] ss:$0 sm:$0xff]
        %5097 = vst [vmem:[%s5089] sm:$0xff] %v5095
        %s5098 = scalar_lea.vmem %s4837, 48
        %s5099 = scalar_lea.vmem %s5098, 1
        %v5100 = vld [vmem:[%s5099] sm:$0x7f]
        %v5101 = vlaneseq
        %v5102 = vshrl.u32 %v5101, 7
        %vm5103 = vcmp.eq.s32.totalorder %v5102, 7
        %v5104 = vsel %vm5103, %v5096, %v5100
        %v5105 = vld [vmem:[%s5098] ss:$0 sm:$0xff]
        %5106 = vst [vmem:[%s5098] sm:$0xff] %v5104
        %s5107 = scalar_lea.vmem %s4837, 40
        %s5108 = scalar_lea.vmem %s5107, 1
        %v5109 = vld [vmem:[%s5108] sm:$0x7f]
        %v5110 = vlaneseq
        %v5111 = vshrl.u32 %v5110, 7
        %vm5112 = vcmp.eq.s32.totalorder %v5111, 7
        %v5113 = vsel %vm5112, %v5105, %v5109
        %v5114 = vld [vmem:[%s5107] ss:$0 sm:$0xff]
        %5115 = vst [vmem:[%s5107] sm:$0xff] %v5113
        %s5116 = scalar_lea.vmem %s4837, 32
        %s5117 = scalar_lea.vmem %s5116, 1
        %v5118 = vld [vmem:[%s5117] sm:$0x7f]
        %v5119 = vlaneseq
        %v5120 = vshrl.u32 %v5119, 7
        %vm5121 = vcmp.eq.s32.totalorder %v5120, 7
        %v5122 = vsel %vm5121, %v5114, %v5118
        %v5123 = vld [vmem:[%s5116] ss:$0 sm:$0xff]
        %5124 = vst [vmem:[%s5116] sm:$0xff] %v5122
        %s5125 = scalar_lea.vmem %s4837, 24
        %s5126 = scalar_lea.vmem %s5125, 1
        %v5127 = vld [vmem:[%s5126] sm:$0x7f]
        %v5128 = vlaneseq
        %v5129 = vshrl.u32 %v5128, 7
        %vm5130 = vcmp.eq.s32.totalorder %v5129, 7
        %v5131 = vsel %vm5130, %v5123, %v5127
        %v5132 = vld [vmem:[%s5125] ss:$0 sm:$0xff]
        %5133 = vst [vmem:[%s5125] sm:$0xff] %v5131
        %s5134 = scalar_lea.vmem %s4837, 16
        %s5135 = scalar_lea.vmem %s5134, 1
        %v5136 = vld [vmem:[%s5135] sm:$0x7f]
        %v5137 = vlaneseq
        %v5138 = vshrl.u32 %v5137, 7
        %vm5139 = vcmp.eq.s32.totalorder %v5138, 7
        %v5140 = vsel %vm5139, %v5132, %v5136
        %v5141 = vld [vmem:[%s5134] ss:$0 sm:$0xff]
        %5142 = vst [vmem:[%s5134] sm:$0xff] %v5140
        %s5143 = scalar_lea.vmem %s4837, 8
        %s5144 = scalar_lea.vmem %s5143, 1
        %v5145 = vld [vmem:[%s5144] sm:$0x7f]
        %v5146 = vlaneseq
        %v5147 = vshrl.u32 %v5146, 7
        %vm5148 = vcmp.eq.s32.totalorder %v5147, 7
        %v5149 = vsel %vm5148, %v5141, %v5145
        %v5150 = vld [vmem:[%s5143] ss:$0 sm:$0xff]
        %5151 = vst [vmem:[%s5143] sm:$0xff] %v5149
        %s5152 = scalar_lea.vmem %s4837, 1
        %v5153 = vld [vmem:[%s5152] sm:$0x7f]
        %v5154 = vlaneseq
        %v5155 = vshrl.u32 %v5154, 7
        %vm5156 = vcmp.eq.s32.totalorder %v5155, 7
        %v5157 = vsel %vm5156, %v5150, %v5153
        %v5158 = vld [vmem:[%s4837] ss:$0 sm:$0xff]
        %5159 = vst [vmem:[%s4837] sm:$0xff] %v5157
        %s5160 = smov [#allocation13]
        %s5161 = smov [#allocation15]
        %v5162 = vld [vmem:[%s5160] ss:$0 sm:$0xff]
        %s5164 = scalar_lea.vmem %s5160, 4294967295
        %v5165 = vld [vmem:[%s5164] sm:$0xfe]
        %v5166 = vlaneseq
        %v5167 = vshrl.u32 %v5166, 7
        %vm5168 = vcmp.eq.s32.totalorder %v5167, 0
        %v5169 = vsel %vm5168, %v5162, %v5165
        %s5170 = scalar_lea.vmem %s5160, 7
        %v5171 = vld [vmem:[%s5170] ss:$0 sm:$0xff]
        %5172 = vst [vmem:[%s5160] sm:$0xff] %v5169
        %s5173 = scalar_lea.vmem %s5160, 8
        %s5175 = scalar_lea.vmem %s5173, 4294967295
        %v5176 = vld [vmem:[%s5175] sm:$0xfe]
        %v5177 = vlaneseq
        %v5178 = vshrl.u32 %v5177, 7
        %vm5179 = vcmp.eq.s32.totalorder %v5178, 0
        %v5180 = vsel %vm5179, %v5171, %v5176
        %s5181 = scalar_lea.vmem %s5173, 7
        %v5182 = vld [vmem:[%s5181] ss:$0 sm:$0xff]
        %5183 = vst [vmem:[%s5173] sm:$0xff] %v5180
        %s5184 = scalar_lea.vmem %s5160, 16
        %s5186 = scalar_lea.vmem %s5184, 4294967295
        %v5187 = vld [vmem:[%s5186] sm:$0xfe]
        %v5188 = vlaneseq
        %v5189 = vshrl.u32 %v5188, 7
        %vm5190 = vcmp.eq.s32.totalorder %v5189, 0
        %v5191 = vsel %vm5190, %v5182, %v5187
        %s5192 = scalar_lea.vmem %s5184, 7
        %v5193 = vld [vmem:[%s5192] ss:$0 sm:$0xff]
        %5194 = vst [vmem:[%s5184] sm:$0xff] %v5191
        %s5195 = scalar_lea.vmem %s5160, 24
        %s5197 = scalar_lea.vmem %s5195, 4294967295
        %v5198 = vld [vmem:[%s5197] sm:$0xfe]
        %v5199 = vlaneseq
        %v5200 = vshrl.u32 %v5199, 7
        %vm5201 = vcmp.eq.s32.totalorder %v5200, 0
        %v5202 = vsel %vm5201, %v5193, %v5198
        %s5203 = scalar_lea.vmem %s5195, 7
        %v5204 = vld [vmem:[%s5203] ss:$0 sm:$0xff]
        %5205 = vst [vmem:[%s5195] sm:$0xff] %v5202
        %s5206 = scalar_lea.vmem %s5160, 32
        %s5208 = scalar_lea.vmem %s5206, 4294967295
        %v5209 = vld [vmem:[%s5208] sm:$0xfe]
        %v5210 = vlaneseq
        %v5211 = vshrl.u32 %v5210, 7
        %vm5212 = vcmp.eq.s32.totalorder %v5211, 0
        %v5213 = vsel %vm5212, %v5204, %v5209
        %s5214 = scalar_lea.vmem %s5206, 7
        %v5215 = vld [vmem:[%s5214] ss:$0 sm:$0xff]
        %5216 = vst [vmem:[%s5206] sm:$0xff] %v5213
        %s5217 = scalar_lea.vmem %s5160, 40
        %s5219 = scalar_lea.vmem %s5217, 4294967295
        %v5220 = vld [vmem:[%s5219] sm:$0xfe]
        %v5221 = vlaneseq
        %v5222 = vshrl.u32 %v5221, 7
        %vm5223 = vcmp.eq.s32.totalorder %v5222, 0
        %v5224 = vsel %vm5223, %v5215, %v5220
        %s5225 = scalar_lea.vmem %s5217, 7
        %v5226 = vld [vmem:[%s5225] ss:$0 sm:$0xff]
        %5227 = vst [vmem:[%s5217] sm:$0xff] %v5224
        %s5228 = scalar_lea.vmem %s5160, 48
        %s5230 = scalar_lea.vmem %s5228, 4294967295
        %v5231 = vld [vmem:[%s5230] sm:$0xfe]
        %v5232 = vlaneseq
        %v5233 = vshrl.u32 %v5232, 7
        %vm5234 = vcmp.eq.s32.totalorder %v5233, 0
        %v5235 = vsel %vm5234, %v5226, %v5231
        %s5236 = scalar_lea.vmem %s5228, 7
        %v5237 = vld [vmem:[%s5236] ss:$0 sm:$0xff]
        %5238 = vst [vmem:[%s5228] sm:$0xff] %v5235
        %s5239 = scalar_lea.vmem %s5160, 56
        %s5241 = scalar_lea.vmem %s5239, 4294967295
        %v5242 = vld [vmem:[%s5241] sm:$0xfe]
        %v5243 = vlaneseq
        %v5244 = vshrl.u32 %v5243, 7
        %vm5245 = vcmp.eq.s32.totalorder %v5244, 0
        %v5246 = vsel %vm5245, %v5237, %v5242
        %s5247 = scalar_lea.vmem %s5239, 7
        %v5248 = vld [vmem:[%s5247] ss:$0 sm:$0xff]
        %5249 = vst [vmem:[%s5239] sm:$0xff] %v5246
        %s5250 = scalar_lea.vmem %s5160, 64
        %s5252 = scalar_lea.vmem %s5250, 4294967295
        %v5253 = vld [vmem:[%s5252] sm:$0xfe]
        %v5254 = vlaneseq
        %v5255 = vshrl.u32 %v5254, 7
        %vm5256 = vcmp.eq.s32.totalorder %v5255, 0
        %v5257 = vsel %vm5256, %v5248, %v5253
        %s5258 = scalar_lea.vmem %s5250, 7
        %v5259 = vld [vmem:[%s5258] ss:$0 sm:$0xff]
        %5260 = vst [vmem:[%s5250] sm:$0xff] %v5257
        %s5261 = scalar_lea.vmem %s5160, 72
        %s5263 = scalar_lea.vmem %s5261, 4294967295
        %v5264 = vld [vmem:[%s5263] sm:$0xfe]
        %v5265 = vlaneseq
        %v5266 = vshrl.u32 %v5265, 7
        %vm5267 = vcmp.eq.s32.totalorder %v5266, 0
        %v5268 = vsel %vm5267, %v5259, %v5264
        %s5269 = scalar_lea.vmem %s5261, 7
        %v5270 = vld [vmem:[%s5269] ss:$0 sm:$0xff]
        %5271 = vst [vmem:[%s5261] sm:$0xff] %v5268
        %s5272 = scalar_lea.vmem %s5160, 80
        %s5274 = scalar_lea.vmem %s5272, 4294967295
        %v5275 = vld [vmem:[%s5274] sm:$0xfe]
        %v5276 = vlaneseq
        %v5277 = vshrl.u32 %v5276, 7
        %vm5278 = vcmp.eq.s32.totalorder %v5277, 0
        %v5279 = vsel %vm5278, %v5270, %v5275
        %s5280 = scalar_lea.vmem %s5272, 7
        %v5281 = vld [vmem:[%s5280] ss:$0 sm:$0xff]
        %5282 = vst [vmem:[%s5272] sm:$0xff] %v5279
        %s5283 = scalar_lea.vmem %s5160, 88
        %s5285 = scalar_lea.vmem %s5283, 4294967295
        %v5286 = vld [vmem:[%s5285] sm:$0xfe]
        %v5287 = vlaneseq
        %v5288 = vshrl.u32 %v5287, 7
        %vm5289 = vcmp.eq.s32.totalorder %v5288, 0
        %v5290 = vsel %vm5289, %v5281, %v5286
        %s5291 = scalar_lea.vmem %s5283, 7
        %v5292 = vld [vmem:[%s5291] ss:$0 sm:$0xff]
        %5293 = vst [vmem:[%s5283] sm:$0xff] %v5290
        %s5294 = scalar_lea.vmem %s5160, 96
        %s5296 = scalar_lea.vmem %s5294, 4294967295
        %v5297 = vld [vmem:[%s5296] sm:$0xfe]
        %v5298 = vlaneseq
        %v5299 = vshrl.u32 %v5298, 7
        %vm5300 = vcmp.eq.s32.totalorder %v5299, 0
        %v5301 = vsel %vm5300, %v5292, %v5297
        %s5302 = scalar_lea.vmem %s5294, 7
        %v5303 = vld [vmem:[%s5302] ss:$0 sm:$0xff]
        %5304 = vst [vmem:[%s5294] sm:$0xff] %v5301
        %s5305 = scalar_lea.vmem %s5160, 104
        %s5307 = scalar_lea.vmem %s5305, 4294967295
        %v5308 = vld [vmem:[%s5307] sm:$0xfe]
        %v5309 = vlaneseq
        %v5310 = vshrl.u32 %v5309, 7
        %vm5311 = vcmp.eq.s32.totalorder %v5310, 0
        %v5312 = vsel %vm5311, %v5303, %v5308
        %s5313 = scalar_lea.vmem %s5305, 7
        %v5314 = vld [vmem:[%s5313] ss:$0 sm:$0xff]
        %5315 = vst [vmem:[%s5305] sm:$0xff] %v5312
        %s5316 = scalar_lea.vmem %s5160, 112
        %s5318 = scalar_lea.vmem %s5316, 4294967295
        %v5319 = vld [vmem:[%s5318] sm:$0xfe]
        %v5320 = vlaneseq
        %v5321 = vshrl.u32 %v5320, 7
        %vm5322 = vcmp.eq.s32.totalorder %v5321, 0
        %v5323 = vsel %vm5322, %v5314, %v5319
        %s5324 = scalar_lea.vmem %s5316, 7
        %v5325 = vld [vmem:[%s5324] ss:$0 sm:$0xff]
        %5326 = vst [vmem:[%s5316] sm:$0xff] %v5323
        %s5327 = scalar_lea.vmem %s5160, 120
        %s5329 = scalar_lea.vmem %s5327, 4294967295
        %v5330 = vld [vmem:[%s5329] sm:$0xfe]
        %v5331 = vlaneseq
        %v5332 = vshrl.u32 %v5331, 7
        %vm5333 = vcmp.eq.s32.totalorder %v5332, 0
        %v5334 = vsel %vm5333, %v5325, %v5330
        %s5335 = scalar_lea.vmem %s5327, 7
        %v5336 = vld [vmem:[%s5335] ss:$0 sm:$0xff]
        %5337 = vst [vmem:[%s5327] sm:$0xff] %v5334
        %v5338 = vld [vmem:[%s5161] ss:$0 sm:$0xff]
        %s5339 = scalar_lea.vmem %s5160, 1
        %5340 = vst [vmem:[%s5339] sm:$0x1] %v5338
        %s5341 = scalar_lea.vmem %s5161, 120
        %s5342 = scalar_lea.vmem %s5341, 1
        %v5343 = vld [vmem:[%s5342] sm:$0x7f]
        %v5344 = vlaneseq
        %v5345 = vshrl.u32 %v5344, 7
        %vm5346 = vcmp.eq.s32.totalorder %v5345, 7
        %v5347 = vsel %vm5346, %v5336, %v5343
        %v5348 = vld [vmem:[%s5341] ss:$0 sm:$0xff]
        %5349 = vst [vmem:[%s5341] sm:$0xff] %v5347
        %s5350 = scalar_lea.vmem %s5161, 112
        %s5351 = scalar_lea.vmem %s5350, 1
        %v5352 = vld [vmem:[%s5351] sm:$0x7f]
        %v5353 = vlaneseq
        %v5354 = vshrl.u32 %v5353, 7
        %vm5355 = vcmp.eq.s32.totalorder %v5354, 7
        %v5356 = vsel %vm5355, %v5348, %v5352
        %v5357 = vld [vmem:[%s5350] ss:$0 sm:$0xff]
        %5358 = vst [vmem:[%s5350] sm:$0xff] %v5356
        %s5359 = scalar_lea.vmem %s5161, 104
        %s5360 = scalar_lea.vmem %s5359, 1
        %v5361 = vld [vmem:[%s5360] sm:$0x7f]
        %v5362 = vlaneseq
        %v5363 = vshrl.u32 %v5362, 7
        %vm5364 = vcmp.eq.s32.totalorder %v5363, 7
        %v5365 = vsel %vm5364, %v5357, %v5361
        %v5366 = vld [vmem:[%s5359] ss:$0 sm:$0xff]
        %5367 = vst [vmem:[%s5359] sm:$0xff] %v5365
        %s5368 = scalar_lea.vmem %s5161, 96
        %s5369 = scalar_lea.vmem %s5368, 1
        %v5370 = vld [vmem:[%s5369] sm:$0x7f]
        %v5371 = vlaneseq
        %v5372 = vshrl.u32 %v5371, 7
        %vm5373 = vcmp.eq.s32.totalorder %v5372, 7
        %v5374 = vsel %vm5373, %v5366, %v5370
        %v5375 = vld [vmem:[%s5368] ss:$0 sm:$0xff]
        %5376 = vst [vmem:[%s5368] sm:$0xff] %v5374
        %s5377 = scalar_lea.vmem %s5161, 88
        %s5378 = scalar_lea.vmem %s5377, 1
        %v5379 = vld [vmem:[%s5378] sm:$0x7f]
        %v5380 = vlaneseq
        %v5381 = vshrl.u32 %v5380, 7
        %vm5382 = vcmp.eq.s32.totalorder %v5381, 7
        %v5383 = vsel %vm5382, %v5375, %v5379
        %v5384 = vld [vmem:[%s5377] ss:$0 sm:$0xff]
        %5385 = vst [vmem:[%s5377] sm:$0xff] %v5383
        %s5386 = scalar_lea.vmem %s5161, 80
        %s5387 = scalar_lea.vmem %s5386, 1
        %v5388 = vld [vmem:[%s5387] sm:$0x7f]
        %v5389 = vlaneseq
        %v5390 = vshrl.u32 %v5389, 7
        %vm5391 = vcmp.eq.s32.totalorder %v5390, 7
        %v5392 = vsel %vm5391, %v5384, %v5388
        %v5393 = vld [vmem:[%s5386] ss:$0 sm:$0xff]
        %5394 = vst [vmem:[%s5386] sm:$0xff] %v5392
        %s5395 = scalar_lea.vmem %s5161, 72
        %s5396 = scalar_lea.vmem %s5395, 1
        %v5397 = vld [vmem:[%s5396] sm:$0x7f]
        %v5398 = vlaneseq
        %v5399 = vshrl.u32 %v5398, 7
        %vm5400 = vcmp.eq.s32.totalorder %v5399, 7
        %v5401 = vsel %vm5400, %v5393, %v5397
        %v5402 = vld [vmem:[%s5395] ss:$0 sm:$0xff]
        %5403 = vst [vmem:[%s5395] sm:$0xff] %v5401
        %s5404 = scalar_lea.vmem %s5161, 64
        %s5405 = scalar_lea.vmem %s5404, 1
        %v5406 = vld [vmem:[%s5405] sm:$0x7f]
        %v5407 = vlaneseq
        %v5408 = vshrl.u32 %v5407, 7
        %vm5409 = vcmp.eq.s32.totalorder %v5408, 7
        %v5410 = vsel %vm5409, %v5402, %v5406
        %v5411 = vld [vmem:[%s5404] ss:$0 sm:$0xff]
        %5412 = vst [vmem:[%s5404] sm:$0xff] %v5410
        %s5413 = scalar_lea.vmem %s5161, 56
        %s5414 = scalar_lea.vmem %s5413, 1
        %v5415 = vld [vmem:[%s5414] sm:$0x7f]
        %v5416 = vlaneseq
        %v5417 = vshrl.u32 %v5416, 7
        %vm5418 = vcmp.eq.s32.totalorder %v5417, 7
        %v5419 = vsel %vm5418, %v5411, %v5415
        %v5420 = vld [vmem:[%s5413] ss:$0 sm:$0xff]
        %5421 = vst [vmem:[%s5413] sm:$0xff] %v5419
        %s5422 = scalar_lea.vmem %s5161, 48
        %s5423 = scalar_lea.vmem %s5422, 1
        %v5424 = vld [vmem:[%s5423] sm:$0x7f]
        %v5425 = vlaneseq
        %v5426 = vshrl.u32 %v5425, 7
        %vm5427 = vcmp.eq.s32.totalorder %v5426, 7
        %v5428 = vsel %vm5427, %v5420, %v5424
        %v5429 = vld [vmem:[%s5422] ss:$0 sm:$0xff]
        %5430 = vst [vmem:[%s5422] sm:$0xff] %v5428
        %s5431 = scalar_lea.vmem %s5161, 40
        %s5432 = scalar_lea.vmem %s5431, 1
        %v5433 = vld [vmem:[%s5432] sm:$0x7f]
        %v5434 = vlaneseq
        %v5435 = vshrl.u32 %v5434, 7
        %vm5436 = vcmp.eq.s32.totalorder %v5435, 7
        %v5437 = vsel %vm5436, %v5429, %v5433
        %v5438 = vld [vmem:[%s5431] ss:$0 sm:$0xff]
        %5439 = vst [vmem:[%s5431] sm:$0xff] %v5437
        %s5440 = scalar_lea.vmem %s5161, 32
        %s5441 = scalar_lea.vmem %s5440, 1
        %v5442 = vld [vmem:[%s5441] sm:$0x7f]
        %v5443 = vlaneseq
        %v5444 = vshrl.u32 %v5443, 7
        %vm5445 = vcmp.eq.s32.totalorder %v5444, 7
        %v5446 = vsel %vm5445, %v5438, %v5442
        %v5447 = vld [vmem:[%s5440] ss:$0 sm:$0xff]
        %5448 = vst [vmem:[%s5440] sm:$0xff] %v5446
        %s5449 = scalar_lea.vmem %s5161, 24
        %s5450 = scalar_lea.vmem %s5449, 1
        %v5451 = vld [vmem:[%s5450] sm:$0x7f]
        %v5452 = vlaneseq
        %v5453 = vshrl.u32 %v5452, 7
        %vm5454 = vcmp.eq.s32.totalorder %v5453, 7
        %v5455 = vsel %vm5454, %v5447, %v5451
        %v5456 = vld [vmem:[%s5449] ss:$0 sm:$0xff]
        %5457 = vst [vmem:[%s5449] sm:$0xff] %v5455
        %s5458 = scalar_lea.vmem %s5161, 16
        %s5459 = scalar_lea.vmem %s5458, 1
        %v5460 = vld [vmem:[%s5459] sm:$0x7f]
        %v5461 = vlaneseq
        %v5462 = vshrl.u32 %v5461, 7
        %vm5463 = vcmp.eq.s32.totalorder %v5462, 7
        %v5464 = vsel %vm5463, %v5456, %v5460
        %v5465 = vld [vmem:[%s5458] ss:$0 sm:$0xff]
        %5466 = vst [vmem:[%s5458] sm:$0xff] %v5464
        %s5467 = scalar_lea.vmem %s5161, 8
        %s5468 = scalar_lea.vmem %s5467, 1
        %v5469 = vld [vmem:[%s5468] sm:$0x7f]
        %v5470 = vlaneseq
        %v5471 = vshrl.u32 %v5470, 7
        %vm5472 = vcmp.eq.s32.totalorder %v5471, 7
        %v5473 = vsel %vm5472, %v5465, %v5469
        %v5474 = vld [vmem:[%s5467] ss:$0 sm:$0xff]
        %5475 = vst [vmem:[%s5467] sm:$0xff] %v5473
        %s5476 = scalar_lea.vmem %s5161, 1
        %v5477 = vld [vmem:[%s5476] sm:$0x7f]
        %v5478 = vlaneseq
        %v5479 = vshrl.u32 %v5478, 7
        %vm5480 = vcmp.eq.s32.totalorder %v5479, 7
        %v5481 = vsel %vm5480, %v5474, %v5477
        %v5482 = vld [vmem:[%s5161] ss:$0 sm:$0xff]
        %5483 = vst [vmem:[%s5161] sm:$0xff] %v5481
        %s5484 = smov [#allocation23]
        %v5485 = vld [vmem:[%s5484] sm:$0xff]
        %s5486 = smov [#allocation24]
        %v5487 = vld [vmem:[%s5486] sm:$0xff]
        %s5488 = smov [#allocation8]
        %s5489 = smov [#allocation9]
        %s5490 = smov [#allocation10]
        %s5491 = smov [#allocation11]
        %v5492 = vld [vmem:[%s5488] sm:$0xff]
        %v5493 = vld [vmem:[%s5489] sm:$0xff]
        %v5494 = vld [vmem:[%s5490] sm:$0xff]
        %v5495 = vld [vmem:[%s5491] sm:$0xff]
        %v5496 = vmul.f32 %v5485, %v5492
        %v5497 = vmul.f32 %v5487, %v5494
        %v5498 = vsub.f32 %v5496, %v5497
        %v5499 = vmul.f32 %v5485, %v5493
        %v5500 = vmul.f32 %v5487, %v5495
        %v5501 = vsub.f32 %v5499, %v5500
        %v5502 = vmul.f32 %v5487, %v5492
        %v5503 = vmul.f32 %v5485, %v5494
        %v5504 = vadd.f32 %v5502, %v5503
        %v5505 = vmul.f32 %v5487, %v5493
        %v5506 = vmul.f32 %v5485, %v5495
        %v5507 = vadd.f32 %v5505, %v5506
        %5508 = vst [vmem:[%s5488] sm:$0xff] %v5498
        %5509 = vst [vmem:[%s5489] sm:$0xff] %v5501
        %5510 = vst [vmem:[%s5490] sm:$0xff] %v5504
        %5511 = vst [vmem:[%s5491] sm:$0xff] %v5507
        %s5512 = smov [#allocation23]
        %s5513 = scalar_lea.vmem %s5512, 8
        %v5514 = vld [vmem:[%s5513] sm:$0xff]
        %s5515 = smov [#allocation24]
        %s5516 = scalar_lea.vmem %s5515, 8
        %v5517 = vld [vmem:[%s5516] sm:$0xff]
        %s5518 = smov [#allocation8]
        %s5519 = scalar_lea.vmem %s5518, 8
        %s5520 = smov [#allocation9]
        %s5521 = scalar_lea.vmem %s5520, 8
        %s5522 = smov [#allocation10]
        %s5523 = scalar_lea.vmem %s5522, 8
        %s5524 = smov [#allocation11]
        %s5525 = scalar_lea.vmem %s5524, 8
        %v5526 = vld [vmem:[%s5519] sm:$0xff]
        %v5527 = vld [vmem:[%s5521] sm:$0xff]
        %v5528 = vld [vmem:[%s5523] sm:$0xff]
        %v5529 = vld [vmem:[%s5525] sm:$0xff]
        %v5530 = vmul.f32 %v5514, %v5526
        %v5531 = vmul.f32 %v5517, %v5528
        %v5532 = vsub.f32 %v5530, %v5531
        %v5533 = vmul.f32 %v5514, %v5527
        %v5534 = vmul.f32 %v5517, %v5529
        %v5535 = vsub.f32 %v5533, %v5534
        %v5536 = vmul.f32 %v5517, %v5526
        %v5537 = vmul.f32 %v5514, %v5528
        %v5538 = vadd.f32 %v5536, %v5537
        %v5539 = vmul.f32 %v5517, %v5527
        %v5540 = vmul.f32 %v5514, %v5529
        %v5541 = vadd.f32 %v5539, %v5540
        %5542 = vst [vmem:[%s5519] sm:$0xff] %v5532
        %5543 = vst [vmem:[%s5521] sm:$0xff] %v5535
        %5544 = vst [vmem:[%s5523] sm:$0xff] %v5538
        %5545 = vst [vmem:[%s5525] sm:$0xff] %v5541
        %s5546 = smov [#allocation23]
        %s5547 = scalar_lea.vmem %s5546, 16
        %v5548 = vld [vmem:[%s5547] sm:$0xff]
        %s5549 = smov [#allocation24]
        %s5550 = scalar_lea.vmem %s5549, 16
        %v5551 = vld [vmem:[%s5550] sm:$0xff]
        %s5552 = smov [#allocation8]
        %s5553 = scalar_lea.vmem %s5552, 16
        %s5554 = smov [#allocation9]
        %s5555 = scalar_lea.vmem %s5554, 16
        %s5556 = smov [#allocation10]
        %s5557 = scalar_lea.vmem %s5556, 16
        %s5558 = smov [#allocation11]
        %s5559 = scalar_lea.vmem %s5558, 16
        %v5560 = vld [vmem:[%s5553] sm:$0xff]
        %v5561 = vld [vmem:[%s5555] sm:$0xff]
        %v5562 = vld [vmem:[%s5557] sm:$0xff]
        %v5563 = vld [vmem:[%s5559] sm:$0xff]
        %v5564 = vmul.f32 %v5548, %v5560
        %v5565 = vmul.f32 %v5551, %v5562
        %v5566 = vsub.f32 %v5564, %v5565
        %v5567 = vmul.f32 %v5548, %v5561
        %v5568 = vmul.f32 %v5551, %v5563
        %v5569 = vsub.f32 %v5567, %v5568
        %v5570 = vmul.f32 %v5551, %v5560
        %v5571 = vmul.f32 %v5548, %v5562
        %v5572 = vadd.f32 %v5570, %v5571
        %v5573 = vmul.f32 %v5551, %v5561
        %v5574 = vmul.f32 %v5548, %v5563
        %v5575 = vadd.f32 %v5573, %v5574
        %5576 = vst [vmem:[%s5553] sm:$0xff] %v5566
        %5577 = vst [vmem:[%s5555] sm:$0xff] %v5569
        %5578 = vst [vmem:[%s5557] sm:$0xff] %v5572
        %5579 = vst [vmem:[%s5559] sm:$0xff] %v5575
        %s5580 = smov [#allocation23]
        %s5581 = scalar_lea.vmem %s5580, 24
        %v5582 = vld [vmem:[%s5581] sm:$0xff]
        %s5583 = smov [#allocation24]
        %s5584 = scalar_lea.vmem %s5583, 24
        %v5585 = vld [vmem:[%s5584] sm:$0xff]
        %s5586 = smov [#allocation8]
        %s5587 = scalar_lea.vmem %s5586, 24
        %s5588 = smov [#allocation9]
        %s5589 = scalar_lea.vmem %s5588, 24
        %s5590 = smov [#allocation10]
        %s5591 = scalar_lea.vmem %s5590, 24
        %s5592 = smov [#allocation11]
        %s5593 = scalar_lea.vmem %s5592, 24
        %v5594 = vld [vmem:[%s5587] sm:$0xff]
        %v5595 = vld [vmem:[%s5589] sm:$0xff]
        %v5596 = vld [vmem:[%s5591] sm:$0xff]
        %v5597 = vld [vmem:[%s5593] sm:$0xff]
        %v5598 = vmul.f32 %v5582, %v5594
        %v5599 = vmul.f32 %v5585, %v5596
        %v5600 = vsub.f32 %v5598, %v5599
        %v5601 = vmul.f32 %v5582, %v5595
        %v5602 = vmul.f32 %v5585, %v5597
        %v5603 = vsub.f32 %v5601, %v5602
        %v5604 = vmul.f32 %v5585, %v5594
        %v5605 = vmul.f32 %v5582, %v5596
        %v5606 = vadd.f32 %v5604, %v5605
        %v5607 = vmul.f32 %v5585, %v5595
        %v5608 = vmul.f32 %v5582, %v5597
        %v5609 = vadd.f32 %v5607, %v5608
        %5610 = vst [vmem:[%s5587] sm:$0xff] %v5600
        %5611 = vst [vmem:[%s5589] sm:$0xff] %v5603
        %5612 = vst [vmem:[%s5591] sm:$0xff] %v5606
        %5613 = vst [vmem:[%s5593] sm:$0xff] %v5609
        %s5614 = smov [#allocation23]
        %s5615 = scalar_lea.vmem %s5614, 32
        %v5616 = vld [vmem:[%s5615] sm:$0xff]
        %s5617 = smov [#allocation24]
        %s5618 = scalar_lea.vmem %s5617, 32
        %v5619 = vld [vmem:[%s5618] sm:$0xff]
        %s5620 = smov [#allocation8]
        %s5621 = scalar_lea.vmem %s5620, 32
        %s5622 = smov [#allocation9]
        %s5623 = scalar_lea.vmem %s5622, 32
        %s5624 = smov [#allocation10]
        %s5625 = scalar_lea.vmem %s5624, 32
        %s5626 = smov [#allocation11]
        %s5627 = scalar_lea.vmem %s5626, 32
        %v5628 = vld [vmem:[%s5621] sm:$0xff]
        %v5629 = vld [vmem:[%s5623] sm:$0xff]
        %v5630 = vld [vmem:[%s5625] sm:$0xff]
        %v5631 = vld [vmem:[%s5627] sm:$0xff]
        %v5632 = vmul.f32 %v5616, %v5628
        %v5633 = vmul.f32 %v5619, %v5630
        %v5634 = vsub.f32 %v5632, %v5633
        %v5635 = vmul.f32 %v5616, %v5629
        %v5636 = vmul.f32 %v5619, %v5631
        %v5637 = vsub.f32 %v5635, %v5636
        %v5638 = vmul.f32 %v5619, %v5628
        %v5639 = vmul.f32 %v5616, %v5630
        %v5640 = vadd.f32 %v5638, %v5639
        %v5641 = vmul.f32 %v5619, %v5629
        %v5642 = vmul.f32 %v5616, %v5631
        %v5643 = vadd.f32 %v5641, %v5642
        %5644 = vst [vmem:[%s5621] sm:$0xff] %v5634
        %5645 = vst [vmem:[%s5623] sm:$0xff] %v5637
        %5646 = vst [vmem:[%s5625] sm:$0xff] %v5640
        %5647 = vst [vmem:[%s5627] sm:$0xff] %v5643
        %s5648 = smov [#allocation23]
        %s5649 = scalar_lea.vmem %s5648, 40
        %v5650 = vld [vmem:[%s5649] sm:$0xff]
        %s5651 = smov [#allocation24]
        %s5652 = scalar_lea.vmem %s5651, 40
        %v5653 = vld [vmem:[%s5652] sm:$0xff]
        %s5654 = smov [#allocation8]
        %s5655 = scalar_lea.vmem %s5654, 40
        %s5656 = smov [#allocation9]
        %s5657 = scalar_lea.vmem %s5656, 40
        %s5658 = smov [#allocation10]
        %s5659 = scalar_lea.vmem %s5658, 40
        %s5660 = smov [#allocation11]
        %s5661 = scalar_lea.vmem %s5660, 40
        %v5662 = vld [vmem:[%s5655] sm:$0xff]
        %v5663 = vld [vmem:[%s5657] sm:$0xff]
        %v5664 = vld [vmem:[%s5659] sm:$0xff]
        %v5665 = vld [vmem:[%s5661] sm:$0xff]
        %v5666 = vmul.f32 %v5650, %v5662
        %v5667 = vmul.f32 %v5653, %v5664
        %v5668 = vsub.f32 %v5666, %v5667
        %v5669 = vmul.f32 %v5650, %v5663
        %v5670 = vmul.f32 %v5653, %v5665
        %v5671 = vsub.f32 %v5669, %v5670
        %v5672 = vmul.f32 %v5653, %v5662
        %v5673 = vmul.f32 %v5650, %v5664
        %v5674 = vadd.f32 %v5672, %v5673
        %v5675 = vmul.f32 %v5653, %v5663
        %v5676 = vmul.f32 %v5650, %v5665
        %v5677 = vadd.f32 %v5675, %v5676
        %5678 = vst [vmem:[%s5655] sm:$0xff] %v5668
        %5679 = vst [vmem:[%s5657] sm:$0xff] %v5671
        %5680 = vst [vmem:[%s5659] sm:$0xff] %v5674
        %5681 = vst [vmem:[%s5661] sm:$0xff] %v5677
        %s5682 = smov [#allocation23]
        %s5683 = scalar_lea.vmem %s5682, 48
        %v5684 = vld [vmem:[%s5683] sm:$0xff]
        %s5685 = smov [#allocation24]
        %s5686 = scalar_lea.vmem %s5685, 48
        %v5687 = vld [vmem:[%s5686] sm:$0xff]
        %s5688 = smov [#allocation8]
        %s5689 = scalar_lea.vmem %s5688, 48
        %s5690 = smov [#allocation9]
        %s5691 = scalar_lea.vmem %s5690, 48
        %s5692 = smov [#allocation10]
        %s5693 = scalar_lea.vmem %s5692, 48
        %s5694 = smov [#allocation11]
        %s5695 = scalar_lea.vmem %s5694, 48
        %v5696 = vld [vmem:[%s5689] sm:$0xff]
        %v5697 = vld [vmem:[%s5691] sm:$0xff]
        %v5698 = vld [vmem:[%s5693] sm:$0xff]
        %v5699 = vld [vmem:[%s5695] sm:$0xff]
        %v5700 = vmul.f32 %v5684, %v5696
        %v5701 = vmul.f32 %v5687, %v5698
        %v5702 = vsub.f32 %v5700, %v5701
        %v5703 = vmul.f32 %v5684, %v5697
        %v5704 = vmul.f32 %v5687, %v5699
        %v5705 = vsub.f32 %v5703, %v5704
        %v5706 = vmul.f32 %v5687, %v5696
        %v5707 = vmul.f32 %v5684, %v5698
        %v5708 = vadd.f32 %v5706, %v5707
        %v5709 = vmul.f32 %v5687, %v5697
        %v5710 = vmul.f32 %v5684, %v5699
        %v5711 = vadd.f32 %v5709, %v5710
        %5712 = vst [vmem:[%s5689] sm:$0xff] %v5702
        %5713 = vst [vmem:[%s5691] sm:$0xff] %v5705
        %5714 = vst [vmem:[%s5693] sm:$0xff] %v5708
        %5715 = vst [vmem:[%s5695] sm:$0xff] %v5711
        %s5716 = smov [#allocation23]
        %s5717 = scalar_lea.vmem %s5716, 56
        %v5718 = vld [vmem:[%s5717] sm:$0xff]
        %s5719 = smov [#allocation24]
        %s5720 = scalar_lea.vmem %s5719, 56
        %v5721 = vld [vmem:[%s5720] sm:$0xff]
        %s5722 = smov [#allocation8]
        %s5723 = scalar_lea.vmem %s5722, 56
        %s5724 = smov [#allocation9]
        %s5725 = scalar_lea.vmem %s5724, 56
        %s5726 = smov [#allocation10]
        %s5727 = scalar_lea.vmem %s5726, 56
        %s5728 = smov [#allocation11]
        %s5729 = scalar_lea.vmem %s5728, 56
        %v5730 = vld [vmem:[%s5723] sm:$0xff]
        %v5731 = vld [vmem:[%s5725] sm:$0xff]
        %v5732 = vld [vmem:[%s5727] sm:$0xff]
        %v5733 = vld [vmem:[%s5729] sm:$0xff]
        %v5734 = vmul.f32 %v5718, %v5730
        %v5735 = vmul.f32 %v5721, %v5732
        %v5736 = vsub.f32 %v5734, %v5735
        %v5737 = vmul.f32 %v5718, %v5731
        %v5738 = vmul.f32 %v5721, %v5733
        %v5739 = vsub.f32 %v5737, %v5738
        %v5740 = vmul.f32 %v5721, %v5730
        %v5741 = vmul.f32 %v5718, %v5732
        %v5742 = vadd.f32 %v5740, %v5741
        %v5743 = vmul.f32 %v5721, %v5731
        %v5744 = vmul.f32 %v5718, %v5733
        %v5745 = vadd.f32 %v5743, %v5744
        %5746 = vst [vmem:[%s5723] sm:$0xff] %v5736
        %5747 = vst [vmem:[%s5725] sm:$0xff] %v5739
        %5748 = vst [vmem:[%s5727] sm:$0xff] %v5742
        %5749 = vst [vmem:[%s5729] sm:$0xff] %v5745
        %s5750 = smov [#allocation23]
        %s5751 = scalar_lea.vmem %s5750, 64
        %v5752 = vld [vmem:[%s5751] sm:$0xff]
        %s5753 = smov [#allocation24]
        %s5754 = scalar_lea.vmem %s5753, 64
        %v5755 = vld [vmem:[%s5754] sm:$0xff]
        %s5756 = smov [#allocation8]
        %s5757 = scalar_lea.vmem %s5756, 64
        %s5758 = smov [#allocation9]
        %s5759 = scalar_lea.vmem %s5758, 64
        %s5760 = smov [#allocation10]
        %s5761 = scalar_lea.vmem %s5760, 64
        %s5762 = smov [#allocation11]
        %s5763 = scalar_lea.vmem %s5762, 64
        %v5764 = vld [vmem:[%s5757] sm:$0xff]
        %v5765 = vld [vmem:[%s5759] sm:$0xff]
        %v5766 = vld [vmem:[%s5761] sm:$0xff]
        %v5767 = vld [vmem:[%s5763] sm:$0xff]
        %v5768 = vmul.f32 %v5752, %v5764
        %v5769 = vmul.f32 %v5755, %v5766
        %v5770 = vsub.f32 %v5768, %v5769
        %v5771 = vmul.f32 %v5752, %v5765
        %v5772 = vmul.f32 %v5755, %v5767
        %v5773 = vsub.f32 %v5771, %v5772
        %v5774 = vmul.f32 %v5755, %v5764
        %v5775 = vmul.f32 %v5752, %v5766
        %v5776 = vadd.f32 %v5774, %v5775
        %v5777 = vmul.f32 %v5755, %v5765
        %v5778 = vmul.f32 %v5752, %v5767
        %v5779 = vadd.f32 %v5777, %v5778
        %5780 = vst [vmem:[%s5757] sm:$0xff] %v5770
        %5781 = vst [vmem:[%s5759] sm:$0xff] %v5773
        %5782 = vst [vmem:[%s5761] sm:$0xff] %v5776
        %5783 = vst [vmem:[%s5763] sm:$0xff] %v5779
        %s5784 = smov [#allocation23]
        %s5785 = scalar_lea.vmem %s5784, 72
        %v5786 = vld [vmem:[%s5785] sm:$0xff]
        %s5787 = smov [#allocation24]
        %s5788 = scalar_lea.vmem %s5787, 72
        %v5789 = vld [vmem:[%s5788] sm:$0xff]
        %s5790 = smov [#allocation8]
        %s5791 = scalar_lea.vmem %s5790, 72
        %s5792 = smov [#allocation9]
        %s5793 = scalar_lea.vmem %s5792, 72
        %s5794 = smov [#allocation10]
        %s5795 = scalar_lea.vmem %s5794, 72
        %s5796 = smov [#allocation11]
        %s5797 = scalar_lea.vmem %s5796, 72
        %v5798 = vld [vmem:[%s5791] sm:$0xff]
        %v5799 = vld [vmem:[%s5793] sm:$0xff]
        %v5800 = vld [vmem:[%s5795] sm:$0xff]
        %v5801 = vld [vmem:[%s5797] sm:$0xff]
        %v5802 = vmul.f32 %v5786, %v5798
        %v5803 = vmul.f32 %v5789, %v5800
        %v5804 = vsub.f32 %v5802, %v5803
        %v5805 = vmul.f32 %v5786, %v5799
        %v5806 = vmul.f32 %v5789, %v5801
        %v5807 = vsub.f32 %v5805, %v5806
        %v5808 = vmul.f32 %v5789, %v5798
        %v5809 = vmul.f32 %v5786, %v5800
        %v5810 = vadd.f32 %v5808, %v5809
        %v5811 = vmul.f32 %v5789, %v5799
        %v5812 = vmul.f32 %v5786, %v5801
        %v5813 = vadd.f32 %v5811, %v5812
        %5814 = vst [vmem:[%s5791] sm:$0xff] %v5804
        %5815 = vst [vmem:[%s5793] sm:$0xff] %v5807
        %5816 = vst [vmem:[%s5795] sm:$0xff] %v5810
        %5817 = vst [vmem:[%s5797] sm:$0xff] %v5813
        %s5818 = smov [#allocation23]
        %s5819 = scalar_lea.vmem %s5818, 80
        %v5820 = vld [vmem:[%s5819] sm:$0xff]
        %s5821 = smov [#allocation24]
        %s5822 = scalar_lea.vmem %s5821, 80
        %v5823 = vld [vmem:[%s5822] sm:$0xff]
        %s5824 = smov [#allocation8]
        %s5825 = scalar_lea.vmem %s5824, 80
        %s5826 = smov [#allocation9]
        %s5827 = scalar_lea.vmem %s5826, 80
        %s5828 = smov [#allocation10]
        %s5829 = scalar_lea.vmem %s5828, 80
        %s5830 = smov [#allocation11]
        %s5831 = scalar_lea.vmem %s5830, 80
        %v5832 = vld [vmem:[%s5825] sm:$0xff]
        %v5833 = vld [vmem:[%s5827] sm:$0xff]
        %v5834 = vld [vmem:[%s5829] sm:$0xff]
        %v5835 = vld [vmem:[%s5831] sm:$0xff]
        %v5836 = vmul.f32 %v5820, %v5832
        %v5837 = vmul.f32 %v5823, %v5834
        %v5838 = vsub.f32 %v5836, %v5837
        %v5839 = vmul.f32 %v5820, %v5833
        %v5840 = vmul.f32 %v5823, %v5835
        %v5841 = vsub.f32 %v5839, %v5840
        %v5842 = vmul.f32 %v5823, %v5832
        %v5843 = vmul.f32 %v5820, %v5834
        %v5844 = vadd.f32 %v5842, %v5843
        %v5845 = vmul.f32 %v5823, %v5833
        %v5846 = vmul.f32 %v5820, %v5835
        %v5847 = vadd.f32 %v5845, %v5846
        %5848 = vst [vmem:[%s5825] sm:$0xff] %v5838
        %5849 = vst [vmem:[%s5827] sm:$0xff] %v5841
        %5850 = vst [vmem:[%s5829] sm:$0xff] %v5844
        %5851 = vst [vmem:[%s5831] sm:$0xff] %v5847
        %s5852 = smov [#allocation23]
        %s5853 = scalar_lea.vmem %s5852, 88
        %v5854 = vld [vmem:[%s5853] sm:$0xff]
        %s5855 = smov [#allocation24]
        %s5856 = scalar_lea.vmem %s5855, 88
        %v5857 = vld [vmem:[%s5856] sm:$0xff]
        %s5858 = smov [#allocation8]
        %s5859 = scalar_lea.vmem %s5858, 88
        %s5860 = smov [#allocation9]
        %s5861 = scalar_lea.vmem %s5860, 88
        %s5862 = smov [#allocation10]
        %s5863 = scalar_lea.vmem %s5862, 88
        %s5864 = smov [#allocation11]
        %s5865 = scalar_lea.vmem %s5864, 88
        %v5866 = vld [vmem:[%s5859] sm:$0xff]
        %v5867 = vld [vmem:[%s5861] sm:$0xff]
        %v5868 = vld [vmem:[%s5863] sm:$0xff]
        %v5869 = vld [vmem:[%s5865] sm:$0xff]
        %v5870 = vmul.f32 %v5854, %v5866
        %v5871 = vmul.f32 %v5857, %v5868
        %v5872 = vsub.f32 %v5870, %v5871
        %v5873 = vmul.f32 %v5854, %v5867
        %v5874 = vmul.f32 %v5857, %v5869
        %v5875 = vsub.f32 %v5873, %v5874
        %v5876 = vmul.f32 %v5857, %v5866
        %v5877 = vmul.f32 %v5854, %v5868
        %v5878 = vadd.f32 %v5876, %v5877
        %v5879 = vmul.f32 %v5857, %v5867
        %v5880 = vmul.f32 %v5854, %v5869
        %v5881 = vadd.f32 %v5879, %v5880
        %5882 = vst [vmem:[%s5859] sm:$0xff] %v5872
        %5883 = vst [vmem:[%s5861] sm:$0xff] %v5875
        %5884 = vst [vmem:[%s5863] sm:$0xff] %v5878
        %5885 = vst [vmem:[%s5865] sm:$0xff] %v5881
        %s5886 = smov [#allocation23]
        %s5887 = scalar_lea.vmem %s5886, 96
        %v5888 = vld [vmem:[%s5887] sm:$0xff]
        %s5889 = smov [#allocation24]
        %s5890 = scalar_lea.vmem %s5889, 96
        %v5891 = vld [vmem:[%s5890] sm:$0xff]
        %s5892 = smov [#allocation8]
        %s5893 = scalar_lea.vmem %s5892, 96
        %s5894 = smov [#allocation9]
        %s5895 = scalar_lea.vmem %s5894, 96
        %s5896 = smov [#allocation10]
        %s5897 = scalar_lea.vmem %s5896, 96
        %s5898 = smov [#allocation11]
        %s5899 = scalar_lea.vmem %s5898, 96
        %v5900 = vld [vmem:[%s5893] sm:$0xff]
        %v5901 = vld [vmem:[%s5895] sm:$0xff]
        %v5902 = vld [vmem:[%s5897] sm:$0xff]
        %v5903 = vld [vmem:[%s5899] sm:$0xff]
        %v5904 = vmul.f32 %v5888, %v5900
        %v5905 = vmul.f32 %v5891, %v5902
        %v5906 = vsub.f32 %v5904, %v5905
        %v5907 = vmul.f32 %v5888, %v5901
        %v5908 = vmul.f32 %v5891, %v5903
        %v5909 = vsub.f32 %v5907, %v5908
        %v5910 = vmul.f32 %v5891, %v5900
        %v5911 = vmul.f32 %v5888, %v5902
        %v5912 = vadd.f32 %v5910, %v5911
        %v5913 = vmul.f32 %v5891, %v5901
        %v5914 = vmul.f32 %v5888, %v5903
        %v5915 = vadd.f32 %v5913, %v5914
        %5916 = vst [vmem:[%s5893] sm:$0xff] %v5906
        %5917 = vst [vmem:[%s5895] sm:$0xff] %v5909
        %5918 = vst [vmem:[%s5897] sm:$0xff] %v5912
        %5919 = vst [vmem:[%s5899] sm:$0xff] %v5915
        %s5920 = smov [#allocation23]
        %s5921 = scalar_lea.vmem %s5920, 104
        %v5922 = vld [vmem:[%s5921] sm:$0xff]
        %s5923 = smov [#allocation24]
        %s5924 = scalar_lea.vmem %s5923, 104
        %v5925 = vld [vmem:[%s5924] sm:$0xff]
        %s5926 = smov [#allocation8]
        %s5927 = scalar_lea.vmem %s5926, 104
        %s5928 = smov [#allocation9]
        %s5929 = scalar_lea.vmem %s5928, 104
        %s5930 = smov [#allocation10]
        %s5931 = scalar_lea.vmem %s5930, 104
        %s5932 = smov [#allocation11]
        %s5933 = scalar_lea.vmem %s5932, 104
        %v5934 = vld [vmem:[%s5927] sm:$0xff]
        %v5935 = vld [vmem:[%s5929] sm:$0xff]
        %v5936 = vld [vmem:[%s5931] sm:$0xff]
        %v5937 = vld [vmem:[%s5933] sm:$0xff]
        %v5938 = vmul.f32 %v5922, %v5934
        %v5939 = vmul.f32 %v5925, %v5936
        %v5940 = vsub.f32 %v5938, %v5939
        %v5941 = vmul.f32 %v5922, %v5935
        %v5942 = vmul.f32 %v5925, %v5937
        %v5943 = vsub.f32 %v5941, %v5942
        %v5944 = vmul.f32 %v5925, %v5934
        %v5945 = vmul.f32 %v5922, %v5936
        %v5946 = vadd.f32 %v5944, %v5945
        %v5947 = vmul.f32 %v5925, %v5935
        %v5948 = vmul.f32 %v5922, %v5937
        %v5949 = vadd.f32 %v5947, %v5948
        %5950 = vst [vmem:[%s5927] sm:$0xff] %v5940
        %5951 = vst [vmem:[%s5929] sm:$0xff] %v5943
        %5952 = vst [vmem:[%s5931] sm:$0xff] %v5946
        %5953 = vst [vmem:[%s5933] sm:$0xff] %v5949
        %s5954 = smov [#allocation23]
        %s5955 = scalar_lea.vmem %s5954, 112
        %v5956 = vld [vmem:[%s5955] sm:$0xff]
        %s5957 = smov [#allocation24]
        %s5958 = scalar_lea.vmem %s5957, 112
        %v5959 = vld [vmem:[%s5958] sm:$0xff]
        %s5960 = smov [#allocation8]
        %s5961 = scalar_lea.vmem %s5960, 112
        %s5962 = smov [#allocation9]
        %s5963 = scalar_lea.vmem %s5962, 112
        %s5964 = smov [#allocation10]
        %s5965 = scalar_lea.vmem %s5964, 112
        %s5966 = smov [#allocation11]
        %s5967 = scalar_lea.vmem %s5966, 112
        %v5968 = vld [vmem:[%s5961] sm:$0xff]
        %v5969 = vld [vmem:[%s5963] sm:$0xff]
        %v5970 = vld [vmem:[%s5965] sm:$0xff]
        %v5971 = vld [vmem:[%s5967] sm:$0xff]
        %v5972 = vmul.f32 %v5956, %v5968
        %v5973 = vmul.f32 %v5959, %v5970
        %v5974 = vsub.f32 %v5972, %v5973
        %v5975 = vmul.f32 %v5956, %v5969
        %v5976 = vmul.f32 %v5959, %v5971
        %v5977 = vsub.f32 %v5975, %v5976
        %v5978 = vmul.f32 %v5959, %v5968
        %v5979 = vmul.f32 %v5956, %v5970
        %v5980 = vadd.f32 %v5978, %v5979
        %v5981 = vmul.f32 %v5959, %v5969
        %v5982 = vmul.f32 %v5956, %v5971
        %v5983 = vadd.f32 %v5981, %v5982
        %5984 = vst [vmem:[%s5961] sm:$0xff] %v5974
        %5985 = vst [vmem:[%s5963] sm:$0xff] %v5977
        %5986 = vst [vmem:[%s5965] sm:$0xff] %v5980
        %5987 = vst [vmem:[%s5967] sm:$0xff] %v5983
        %s5988 = smov [#allocation23]
        %s5989 = scalar_lea.vmem %s5988, 120
        %v5990 = vld [vmem:[%s5989] sm:$0xff]
        %s5991 = smov [#allocation24]
        %s5992 = scalar_lea.vmem %s5991, 120
        %v5993 = vld [vmem:[%s5992] sm:$0xff]
        %s5994 = smov [#allocation8]
        %s5995 = scalar_lea.vmem %s5994, 120
        %s5996 = smov [#allocation9]
        %s5997 = scalar_lea.vmem %s5996, 120
        %s5998 = smov [#allocation10]
        %s5999 = scalar_lea.vmem %s5998, 120
        %s6000 = smov [#allocation11]
        %s6001 = scalar_lea.vmem %s6000, 120
        %v6002 = vld [vmem:[%s5995] sm:$0xff]
        %v6003 = vld [vmem:[%s5997] sm:$0xff]
        %v6004 = vld [vmem:[%s5999] sm:$0xff]
        %v6005 = vld [vmem:[%s6001] sm:$0xff]
        %v6006 = vmul.f32 %v5990, %v6002
        %v6007 = vmul.f32 %v5993, %v6004
        %v6008 = vsub.f32 %v6006, %v6007
        %v6009 = vmul.f32 %v5990, %v6003
        %v6010 = vmul.f32 %v5993, %v6005
        %v6011 = vsub.f32 %v6009, %v6010
        %v6012 = vmul.f32 %v5993, %v6002
        %v6013 = vmul.f32 %v5990, %v6004
        %v6014 = vadd.f32 %v6012, %v6013
        %v6015 = vmul.f32 %v5993, %v6003
        %v6016 = vmul.f32 %v5990, %v6005
        %v6017 = vadd.f32 %v6015, %v6016
        %6018 = vst [vmem:[%s5995] sm:$0xff] %v6008
        %6019 = vst [vmem:[%s5997] sm:$0xff] %v6011
        %6020 = vst [vmem:[%s5999] sm:$0xff] %v6014
        %6021 = vst [vmem:[%s6001] sm:$0xff] %v6017
        %s6022 = smov [#allocation8]
        %s6023 = smov [#allocation10]
        %v6024 = vld [vmem:[%s6022] ss:$0 sm:$0xff]
        %s6026 = scalar_lea.vmem %s6022, 4294967295
        %v6027 = vld [vmem:[%s6026] sm:$0xfe]
        %v6028 = vlaneseq
        %v6029 = vshrl.u32 %v6028, 7
        %vm6030 = vcmp.eq.s32.totalorder %v6029, 0
        %v6031 = vsel %vm6030, %v6024, %v6027
        %s6032 = scalar_lea.vmem %s6022, 7
        %v6033 = vld [vmem:[%s6032] ss:$0 sm:$0xff]
        %6034 = vst [vmem:[%s6022] sm:$0xff] %v6031
        %s6035 = scalar_lea.vmem %s6022, 8
        %s6037 = scalar_lea.vmem %s6035, 4294967295
        %v6038 = vld [vmem:[%s6037] sm:$0xfe]
        %v6039 = vlaneseq
        %v6040 = vshrl.u32 %v6039, 7
        %vm6041 = vcmp.eq.s32.totalorder %v6040, 0
        %v6042 = vsel %vm6041, %v6033, %v6038
        %s6043 = scalar_lea.vmem %s6035, 7
        %v6044 = vld [vmem:[%s6043] ss:$0 sm:$0xff]
        %6045 = vst [vmem:[%s6035] sm:$0xff] %v6042
        %s6046 = scalar_lea.vmem %s6022, 16
        %s6048 = scalar_lea.vmem %s6046, 4294967295
        %v6049 = vld [vmem:[%s6048] sm:$0xfe]
        %v6050 = vlaneseq
        %v6051 = vshrl.u32 %v6050, 7
        %vm6052 = vcmp.eq.s32.totalorder %v6051, 0
        %v6053 = vsel %vm6052, %v6044, %v6049
        %s6054 = scalar_lea.vmem %s6046, 7
        %v6055 = vld [vmem:[%s6054] ss:$0 sm:$0xff]
        %6056 = vst [vmem:[%s6046] sm:$0xff] %v6053
        %s6057 = scalar_lea.vmem %s6022, 24
        %s6059 = scalar_lea.vmem %s6057, 4294967295
        %v6060 = vld [vmem:[%s6059] sm:$0xfe]
        %v6061 = vlaneseq
        %v6062 = vshrl.u32 %v6061, 7
        %vm6063 = vcmp.eq.s32.totalorder %v6062, 0
        %v6064 = vsel %vm6063, %v6055, %v6060
        %s6065 = scalar_lea.vmem %s6057, 7
        %v6066 = vld [vmem:[%s6065] ss:$0 sm:$0xff]
        %6067 = vst [vmem:[%s6057] sm:$0xff] %v6064
        %s6068 = scalar_lea.vmem %s6022, 32
        %s6070 = scalar_lea.vmem %s6068, 4294967295
        %v6071 = vld [vmem:[%s6070] sm:$0xfe]
        %v6072 = vlaneseq
        %v6073 = vshrl.u32 %v6072, 7
        %vm6074 = vcmp.eq.s32.totalorder %v6073, 0
        %v6075 = vsel %vm6074, %v6066, %v6071
        %s6076 = scalar_lea.vmem %s6068, 7
        %v6077 = vld [vmem:[%s6076] ss:$0 sm:$0xff]
        %6078 = vst [vmem:[%s6068] sm:$0xff] %v6075
        %s6079 = scalar_lea.vmem %s6022, 40
        %s6081 = scalar_lea.vmem %s6079, 4294967295
        %v6082 = vld [vmem:[%s6081] sm:$0xfe]
        %v6083 = vlaneseq
        %v6084 = vshrl.u32 %v6083, 7
        %vm6085 = vcmp.eq.s32.totalorder %v6084, 0
        %v6086 = vsel %vm6085, %v6077, %v6082
        %s6087 = scalar_lea.vmem %s6079, 7
        %v6088 = vld [vmem:[%s6087] ss:$0 sm:$0xff]
        %6089 = vst [vmem:[%s6079] sm:$0xff] %v6086
        %s6090 = scalar_lea.vmem %s6022, 48
        %s6092 = scalar_lea.vmem %s6090, 4294967295
        %v6093 = vld [vmem:[%s6092] sm:$0xfe]
        %v6094 = vlaneseq
        %v6095 = vshrl.u32 %v6094, 7
        %vm6096 = vcmp.eq.s32.totalorder %v6095, 0
        %v6097 = vsel %vm6096, %v6088, %v6093
        %s6098 = scalar_lea.vmem %s6090, 7
        %v6099 = vld [vmem:[%s6098] ss:$0 sm:$0xff]
        %6100 = vst [vmem:[%s6090] sm:$0xff] %v6097
        %s6101 = scalar_lea.vmem %s6022, 56
        %s6103 = scalar_lea.vmem %s6101, 4294967295
        %v6104 = vld [vmem:[%s6103] sm:$0xfe]
        %v6105 = vlaneseq
        %v6106 = vshrl.u32 %v6105, 7
        %vm6107 = vcmp.eq.s32.totalorder %v6106, 0
        %v6108 = vsel %vm6107, %v6099, %v6104
        %s6109 = scalar_lea.vmem %s6101, 7
        %v6110 = vld [vmem:[%s6109] ss:$0 sm:$0xff]
        %6111 = vst [vmem:[%s6101] sm:$0xff] %v6108
        %s6112 = scalar_lea.vmem %s6022, 64
        %s6114 = scalar_lea.vmem %s6112, 4294967295
        %v6115 = vld [vmem:[%s6114] sm:$0xfe]
        %v6116 = vlaneseq
        %v6117 = vshrl.u32 %v6116, 7
        %vm6118 = vcmp.eq.s32.totalorder %v6117, 0
        %v6119 = vsel %vm6118, %v6110, %v6115
        %s6120 = scalar_lea.vmem %s6112, 7
        %v6121 = vld [vmem:[%s6120] ss:$0 sm:$0xff]
        %6122 = vst [vmem:[%s6112] sm:$0xff] %v6119
        %s6123 = scalar_lea.vmem %s6022, 72
        %s6125 = scalar_lea.vmem %s6123, 4294967295
        %v6126 = vld [vmem:[%s6125] sm:$0xfe]
        %v6127 = vlaneseq
        %v6128 = vshrl.u32 %v6127, 7
        %vm6129 = vcmp.eq.s32.totalorder %v6128, 0
        %v6130 = vsel %vm6129, %v6121, %v6126
        %s6131 = scalar_lea.vmem %s6123, 7
        %v6132 = vld [vmem:[%s6131] ss:$0 sm:$0xff]
        %6133 = vst [vmem:[%s6123] sm:$0xff] %v6130
        %s6134 = scalar_lea.vmem %s6022, 80
        %s6136 = scalar_lea.vmem %s6134, 4294967295
        %v6137 = vld [vmem:[%s6136] sm:$0xfe]
        %v6138 = vlaneseq
        %v6139 = vshrl.u32 %v6138, 7
        %vm6140 = vcmp.eq.s32.totalorder %v6139, 0
        %v6141 = vsel %vm6140, %v6132, %v6137
        %s6142 = scalar_lea.vmem %s6134, 7
        %v6143 = vld [vmem:[%s6142] ss:$0 sm:$0xff]
        %6144 = vst [vmem:[%s6134] sm:$0xff] %v6141
        %s6145 = scalar_lea.vmem %s6022, 88
        %s6147 = scalar_lea.vmem %s6145, 4294967295
        %v6148 = vld [vmem:[%s6147] sm:$0xfe]
        %v6149 = vlaneseq
        %v6150 = vshrl.u32 %v6149, 7
        %vm6151 = vcmp.eq.s32.totalorder %v6150, 0
        %v6152 = vsel %vm6151, %v6143, %v6148
        %s6153 = scalar_lea.vmem %s6145, 7
        %v6154 = vld [vmem:[%s6153] ss:$0 sm:$0xff]
        %6155 = vst [vmem:[%s6145] sm:$0xff] %v6152
        %s6156 = scalar_lea.vmem %s6022, 96
        %s6158 = scalar_lea.vmem %s6156, 4294967295
        %v6159 = vld [vmem:[%s6158] sm:$0xfe]
        %v6160 = vlaneseq
        %v6161 = vshrl.u32 %v6160, 7
        %vm6162 = vcmp.eq.s32.totalorder %v6161, 0
        %v6163 = vsel %vm6162, %v6154, %v6159
        %s6164 = scalar_lea.vmem %s6156, 7
        %v6165 = vld [vmem:[%s6164] ss:$0 sm:$0xff]
        %6166 = vst [vmem:[%s6156] sm:$0xff] %v6163
        %s6167 = scalar_lea.vmem %s6022, 104
        %s6169 = scalar_lea.vmem %s6167, 4294967295
        %v6170 = vld [vmem:[%s6169] sm:$0xfe]
        %v6171 = vlaneseq
        %v6172 = vshrl.u32 %v6171, 7
        %vm6173 = vcmp.eq.s32.totalorder %v6172, 0
        %v6174 = vsel %vm6173, %v6165, %v6170
        %s6175 = scalar_lea.vmem %s6167, 7
        %v6176 = vld [vmem:[%s6175] ss:$0 sm:$0xff]
        %6177 = vst [vmem:[%s6167] sm:$0xff] %v6174
        %s6178 = scalar_lea.vmem %s6022, 112
        %s6180 = scalar_lea.vmem %s6178, 4294967295
        %v6181 = vld [vmem:[%s6180] sm:$0xfe]
        %v6182 = vlaneseq
        %v6183 = vshrl.u32 %v6182, 7
        %vm6184 = vcmp.eq.s32.totalorder %v6183, 0
        %v6185 = vsel %vm6184, %v6176, %v6181
        %s6186 = scalar_lea.vmem %s6178, 7
        %v6187 = vld [vmem:[%s6186] ss:$0 sm:$0xff]
        %6188 = vst [vmem:[%s6178] sm:$0xff] %v6185
        %s6189 = scalar_lea.vmem %s6022, 120
        %s6191 = scalar_lea.vmem %s6189, 4294967295
        %v6192 = vld [vmem:[%s6191] sm:$0xfe]
        %v6193 = vlaneseq
        %v6194 = vshrl.u32 %v6193, 7
        %vm6195 = vcmp.eq.s32.totalorder %v6194, 0
        %v6196 = vsel %vm6195, %v6187, %v6192
        %s6197 = scalar_lea.vmem %s6189, 7
        %v6198 = vld [vmem:[%s6197] ss:$0 sm:$0xff]
        %6199 = vst [vmem:[%s6189] sm:$0xff] %v6196
        %v6200 = vld [vmem:[%s6023] ss:$0 sm:$0xff]
        %s6201 = scalar_lea.vmem %s6022, 1
        %6202 = vst [vmem:[%s6201] sm:$0x1] %v6200
        %s6203 = scalar_lea.vmem %s6023, 120
        %s6204 = scalar_lea.vmem %s6203, 1
        %v6205 = vld [vmem:[%s6204] sm:$0x7f]
        %v6206 = vlaneseq
        %v6207 = vshrl.u32 %v6206, 7
        %vm6208 = vcmp.eq.s32.totalorder %v6207, 7
        %v6209 = vsel %vm6208, %v6198, %v6205
        %v6210 = vld [vmem:[%s6203] ss:$0 sm:$0xff]
        %6211 = vst [vmem:[%s6203] sm:$0xff] %v6209
        %s6212 = scalar_lea.vmem %s6023, 112
        %s6213 = scalar_lea.vmem %s6212, 1
        %v6214 = vld [vmem:[%s6213] sm:$0x7f]
        %v6215 = vlaneseq
        %v6216 = vshrl.u32 %v6215, 7
        %vm6217 = vcmp.eq.s32.totalorder %v6216, 7
        %v6218 = vsel %vm6217, %v6210, %v6214
        %v6219 = vld [vmem:[%s6212] ss:$0 sm:$0xff]
        %6220 = vst [vmem:[%s6212] sm:$0xff] %v6218
        %s6221 = scalar_lea.vmem %s6023, 104
        %s6222 = scalar_lea.vmem %s6221, 1
        %v6223 = vld [vmem:[%s6222] sm:$0x7f]
        %v6224 = vlaneseq
        %v6225 = vshrl.u32 %v6224, 7
        %vm6226 = vcmp.eq.s32.totalorder %v6225, 7
        %v6227 = vsel %vm6226, %v6219, %v6223
        %v6228 = vld [vmem:[%s6221] ss:$0 sm:$0xff]
        %6229 = vst [vmem:[%s6221] sm:$0xff] %v6227
        %s6230 = scalar_lea.vmem %s6023, 96
        %s6231 = scalar_lea.vmem %s6230, 1
        %v6232 = vld [vmem:[%s6231] sm:$0x7f]
        %v6233 = vlaneseq
        %v6234 = vshrl.u32 %v6233, 7
        %vm6235 = vcmp.eq.s32.totalorder %v6234, 7
        %v6236 = vsel %vm6235, %v6228, %v6232
        %v6237 = vld [vmem:[%s6230] ss:$0 sm:$0xff]
        %6238 = vst [vmem:[%s6230] sm:$0xff] %v6236
        %s6239 = scalar_lea.vmem %s6023, 88
        %s6240 = scalar_lea.vmem %s6239, 1
        %v6241 = vld [vmem:[%s6240] sm:$0x7f]
        %v6242 = vlaneseq
        %v6243 = vshrl.u32 %v6242, 7
        %vm6244 = vcmp.eq.s32.totalorder %v6243, 7
        %v6245 = vsel %vm6244, %v6237, %v6241
        %v6246 = vld [vmem:[%s6239] ss:$0 sm:$0xff]
        %6247 = vst [vmem:[%s6239] sm:$0xff] %v6245
        %s6248 = scalar_lea.vmem %s6023, 80
        %s6249 = scalar_lea.vmem %s6248, 1
        %v6250 = vld [vmem:[%s6249] sm:$0x7f]
        %v6251 = vlaneseq
        %v6252 = vshrl.u32 %v6251, 7
        %vm6253 = vcmp.eq.s32.totalorder %v6252, 7
        %v6254 = vsel %vm6253, %v6246, %v6250
        %v6255 = vld [vmem:[%s6248] ss:$0 sm:$0xff]
        %6256 = vst [vmem:[%s6248] sm:$0xff] %v6254
        %s6257 = scalar_lea.vmem %s6023, 72
        %s6258 = scalar_lea.vmem %s6257, 1
        %v6259 = vld [vmem:[%s6258] sm:$0x7f]
        %v6260 = vlaneseq
        %v6261 = vshrl.u32 %v6260, 7
        %vm6262 = vcmp.eq.s32.totalorder %v6261, 7
        %v6263 = vsel %vm6262, %v6255, %v6259
        %v6264 = vld [vmem:[%s6257] ss:$0 sm:$0xff]
        %6265 = vst [vmem:[%s6257] sm:$0xff] %v6263
        %s6266 = scalar_lea.vmem %s6023, 64
        %s6267 = scalar_lea.vmem %s6266, 1
        %v6268 = vld [vmem:[%s6267] sm:$0x7f]
        %v6269 = vlaneseq
        %v6270 = vshrl.u32 %v6269, 7
        %vm6271 = vcmp.eq.s32.totalorder %v6270, 7
        %v6272 = vsel %vm6271, %v6264, %v6268
        %v6273 = vld [vmem:[%s6266] ss:$0 sm:$0xff]
        %6274 = vst [vmem:[%s6266] sm:$0xff] %v6272
        %s6275 = scalar_lea.vmem %s6023, 56
        %s6276 = scalar_lea.vmem %s6275, 1
        %v6277 = vld [vmem:[%s6276] sm:$0x7f]
        %v6278 = vlaneseq
        %v6279 = vshrl.u32 %v6278, 7
        %vm6280 = vcmp.eq.s32.totalorder %v6279, 7
        %v6281 = vsel %vm6280, %v6273, %v6277
        %v6282 = vld [vmem:[%s6275] ss:$0 sm:$0xff]
        %6283 = vst [vmem:[%s6275] sm:$0xff] %v6281
        %s6284 = scalar_lea.vmem %s6023, 48
        %s6285 = scalar_lea.vmem %s6284, 1
        %v6286 = vld [vmem:[%s6285] sm:$0x7f]
        %v6287 = vlaneseq
        %v6288 = vshrl.u32 %v6287, 7
        %vm6289 = vcmp.eq.s32.totalorder %v6288, 7
        %v6290 = vsel %vm6289, %v6282, %v6286
        %v6291 = vld [vmem:[%s6284] ss:$0 sm:$0xff]
        %6292 = vst [vmem:[%s6284] sm:$0xff] %v6290
        %s6293 = scalar_lea.vmem %s6023, 40
        %s6294 = scalar_lea.vmem %s6293, 1
        %v6295 = vld [vmem:[%s6294] sm:$0x7f]
        %v6296 = vlaneseq
        %v6297 = vshrl.u32 %v6296, 7
        %vm6298 = vcmp.eq.s32.totalorder %v6297, 7
        %v6299 = vsel %vm6298, %v6291, %v6295
        %v6300 = vld [vmem:[%s6293] ss:$0 sm:$0xff]
        %6301 = vst [vmem:[%s6293] sm:$0xff] %v6299
        %s6302 = scalar_lea.vmem %s6023, 32
        %s6303 = scalar_lea.vmem %s6302, 1
        %v6304 = vld [vmem:[%s6303] sm:$0x7f]
        %v6305 = vlaneseq
        %v6306 = vshrl.u32 %v6305, 7
        %vm6307 = vcmp.eq.s32.totalorder %v6306, 7
        %v6308 = vsel %vm6307, %v6300, %v6304
        %v6309 = vld [vmem:[%s6302] ss:$0 sm:$0xff]
        %6310 = vst [vmem:[%s6302] sm:$0xff] %v6308
        %s6311 = scalar_lea.vmem %s6023, 24
        %s6312 = scalar_lea.vmem %s6311, 1
        %v6313 = vld [vmem:[%s6312] sm:$0x7f]
        %v6314 = vlaneseq
        %v6315 = vshrl.u32 %v6314, 7
        %vm6316 = vcmp.eq.s32.totalorder %v6315, 7
        %v6317 = vsel %vm6316, %v6309, %v6313
        %v6318 = vld [vmem:[%s6311] ss:$0 sm:$0xff]
        %6319 = vst [vmem:[%s6311] sm:$0xff] %v6317
        %s6320 = scalar_lea.vmem %s6023, 16
        %s6321 = scalar_lea.vmem %s6320, 1
        %v6322 = vld [vmem:[%s6321] sm:$0x7f]
        %v6323 = vlaneseq
        %v6324 = vshrl.u32 %v6323, 7
        %vm6325 = vcmp.eq.s32.totalorder %v6324, 7
        %v6326 = vsel %vm6325, %v6318, %v6322
        %v6327 = vld [vmem:[%s6320] ss:$0 sm:$0xff]
        %6328 = vst [vmem:[%s6320] sm:$0xff] %v6326
        %s6329 = scalar_lea.vmem %s6023, 8
        %s6330 = scalar_lea.vmem %s6329, 1
        %v6331 = vld [vmem:[%s6330] sm:$0x7f]
        %v6332 = vlaneseq
        %v6333 = vshrl.u32 %v6332, 7
        %vm6334 = vcmp.eq.s32.totalorder %v6333, 7
        %v6335 = vsel %vm6334, %v6327, %v6331
        %v6336 = vld [vmem:[%s6329] ss:$0 sm:$0xff]
        %6337 = vst [vmem:[%s6329] sm:$0xff] %v6335
        %s6338 = scalar_lea.vmem %s6023, 1
        %v6339 = vld [vmem:[%s6338] sm:$0x7f]
        %v6340 = vlaneseq
        %v6341 = vshrl.u32 %v6340, 7
        %vm6342 = vcmp.eq.s32.totalorder %v6341, 7
        %v6343 = vsel %vm6342, %v6336, %v6339
        %v6344 = vld [vmem:[%s6023] ss:$0 sm:$0xff]
        %6345 = vst [vmem:[%s6023] sm:$0xff] %v6343
        %s6346 = smov [#allocation9]
        %s6347 = smov [#allocation11]
        %v6348 = vld [vmem:[%s6346] ss:$0 sm:$0xff]
        %s6350 = scalar_lea.vmem %s6346, 4294967295
        %v6351 = vld [vmem:[%s6350] sm:$0xfe]
        %v6352 = vlaneseq
        %v6353 = vshrl.u32 %v6352, 7
        %vm6354 = vcmp.eq.s32.totalorder %v6353, 0
        %v6355 = vsel %vm6354, %v6348, %v6351
        %s6356 = scalar_lea.vmem %s6346, 7
        %v6357 = vld [vmem:[%s6356] ss:$0 sm:$0xff]
        %6358 = vst [vmem:[%s6346] sm:$0xff] %v6355
        %s6359 = scalar_lea.vmem %s6346, 8
        %s6361 = scalar_lea.vmem %s6359, 4294967295
        %v6362 = vld [vmem:[%s6361] sm:$0xfe]
        %v6363 = vlaneseq
        %v6364 = vshrl.u32 %v6363, 7
        %vm6365 = vcmp.eq.s32.totalorder %v6364, 0
        %v6366 = vsel %vm6365, %v6357, %v6362
        %s6367 = scalar_lea.vmem %s6359, 7
        %v6368 = vld [vmem:[%s6367] ss:$0 sm:$0xff]
        %6369 = vst [vmem:[%s6359] sm:$0xff] %v6366
        %s6370 = scalar_lea.vmem %s6346, 16
        %s6372 = scalar_lea.vmem %s6370, 4294967295
        %v6373 = vld [vmem:[%s6372] sm:$0xfe]
        %v6374 = vlaneseq
        %v6375 = vshrl.u32 %v6374, 7
        %vm6376 = vcmp.eq.s32.totalorder %v6375, 0
        %v6377 = vsel %vm6376, %v6368, %v6373
        %s6378 = scalar_lea.vmem %s6370, 7
        %v6379 = vld [vmem:[%s6378] ss:$0 sm:$0xff]
        %6380 = vst [vmem:[%s6370] sm:$0xff] %v6377
        %s6381 = scalar_lea.vmem %s6346, 24
        %s6383 = scalar_lea.vmem %s6381, 4294967295
        %v6384 = vld [vmem:[%s6383] sm:$0xfe]
        %v6385 = vlaneseq
        %v6386 = vshrl.u32 %v6385, 7
        %vm6387 = vcmp.eq.s32.totalorder %v6386, 0
        %v6388 = vsel %vm6387, %v6379, %v6384
        %s6389 = scalar_lea.vmem %s6381, 7
        %v6390 = vld [vmem:[%s6389] ss:$0 sm:$0xff]
        %6391 = vst [vmem:[%s6381] sm:$0xff] %v6388
        %s6392 = scalar_lea.vmem %s6346, 32
        %s6394 = scalar_lea.vmem %s6392, 4294967295
        %v6395 = vld [vmem:[%s6394] sm:$0xfe]
        %v6396 = vlaneseq
        %v6397 = vshrl.u32 %v6396, 7
        %vm6398 = vcmp.eq.s32.totalorder %v6397, 0
        %v6399 = vsel %vm6398, %v6390, %v6395
        %s6400 = scalar_lea.vmem %s6392, 7
        %v6401 = vld [vmem:[%s6400] ss:$0 sm:$0xff]
        %6402 = vst [vmem:[%s6392] sm:$0xff] %v6399
        %s6403 = scalar_lea.vmem %s6346, 40
        %s6405 = scalar_lea.vmem %s6403, 4294967295
        %v6406 = vld [vmem:[%s6405] sm:$0xfe]
        %v6407 = vlaneseq
        %v6408 = vshrl.u32 %v6407, 7
        %vm6409 = vcmp.eq.s32.totalorder %v6408, 0
        %v6410 = vsel %vm6409, %v6401, %v6406
        %s6411 = scalar_lea.vmem %s6403, 7
        %v6412 = vld [vmem:[%s6411] ss:$0 sm:$0xff]
        %6413 = vst [vmem:[%s6403] sm:$0xff] %v6410
        %s6414 = scalar_lea.vmem %s6346, 48
        %s6416 = scalar_lea.vmem %s6414, 4294967295
        %v6417 = vld [vmem:[%s6416] sm:$0xfe]
        %v6418 = vlaneseq
        %v6419 = vshrl.u32 %v6418, 7
        %vm6420 = vcmp.eq.s32.totalorder %v6419, 0
        %v6421 = vsel %vm6420, %v6412, %v6417
        %s6422 = scalar_lea.vmem %s6414, 7
        %v6423 = vld [vmem:[%s6422] ss:$0 sm:$0xff]
        %6424 = vst [vmem:[%s6414] sm:$0xff] %v6421
        %s6425 = scalar_lea.vmem %s6346, 56
        %s6427 = scalar_lea.vmem %s6425, 4294967295
        %v6428 = vld [vmem:[%s6427] sm:$0xfe]
        %v6429 = vlaneseq
        %v6430 = vshrl.u32 %v6429, 7
        %vm6431 = vcmp.eq.s32.totalorder %v6430, 0
        %v6432 = vsel %vm6431, %v6423, %v6428
        %s6433 = scalar_lea.vmem %s6425, 7
        %v6434 = vld [vmem:[%s6433] ss:$0 sm:$0xff]
        %6435 = vst [vmem:[%s6425] sm:$0xff] %v6432
        %s6436 = scalar_lea.vmem %s6346, 64
        %s6438 = scalar_lea.vmem %s6436, 4294967295
        %v6439 = vld [vmem:[%s6438] sm:$0xfe]
        %v6440 = vlaneseq
        %v6441 = vshrl.u32 %v6440, 7
        %vm6442 = vcmp.eq.s32.totalorder %v6441, 0
        %v6443 = vsel %vm6442, %v6434, %v6439
        %s6444 = scalar_lea.vmem %s6436, 7
        %v6445 = vld [vmem:[%s6444] ss:$0 sm:$0xff]
        %6446 = vst [vmem:[%s6436] sm:$0xff] %v6443
        %s6447 = scalar_lea.vmem %s6346, 72
        %s6449 = scalar_lea.vmem %s6447, 4294967295
        %v6450 = vld [vmem:[%s6449] sm:$0xfe]
        %v6451 = vlaneseq
        %v6452 = vshrl.u32 %v6451, 7
        %vm6453 = vcmp.eq.s32.totalorder %v6452, 0
        %v6454 = vsel %vm6453, %v6445, %v6450
        %s6455 = scalar_lea.vmem %s6447, 7
        %v6456 = vld [vmem:[%s6455] ss:$0 sm:$0xff]
        %6457 = vst [vmem:[%s6447] sm:$0xff] %v6454
        %s6458 = scalar_lea.vmem %s6346, 80
        %s6460 = scalar_lea.vmem %s6458, 4294967295
        %v6461 = vld [vmem:[%s6460] sm:$0xfe]
        %v6462 = vlaneseq
        %v6463 = vshrl.u32 %v6462, 7
        %vm6464 = vcmp.eq.s32.totalorder %v6463, 0
        %v6465 = vsel %vm6464, %v6456, %v6461
        %s6466 = scalar_lea.vmem %s6458, 7
        %v6467 = vld [vmem:[%s6466] ss:$0 sm:$0xff]
        %6468 = vst [vmem:[%s6458] sm:$0xff] %v6465
        %s6469 = scalar_lea.vmem %s6346, 88
        %s6471 = scalar_lea.vmem %s6469, 4294967295
        %v6472 = vld [vmem:[%s6471] sm:$0xfe]
        %v6473 = vlaneseq
        %v6474 = vshrl.u32 %v6473, 7
        %vm6475 = vcmp.eq.s32.totalorder %v6474, 0
        %v6476 = vsel %vm6475, %v6467, %v6472
        %s6477 = scalar_lea.vmem %s6469, 7
        %v6478 = vld [vmem:[%s6477] ss:$0 sm:$0xff]
        %6479 = vst [vmem:[%s6469] sm:$0xff] %v6476
        %s6480 = scalar_lea.vmem %s6346, 96
        %s6482 = scalar_lea.vmem %s6480, 4294967295
        %v6483 = vld [vmem:[%s6482] sm:$0xfe]
        %v6484 = vlaneseq
        %v6485 = vshrl.u32 %v6484, 7
        %vm6486 = vcmp.eq.s32.totalorder %v6485, 0
        %v6487 = vsel %vm6486, %v6478, %v6483
        %s6488 = scalar_lea.vmem %s6480, 7
        %v6489 = vld [vmem:[%s6488] ss:$0 sm:$0xff]
        %6490 = vst [vmem:[%s6480] sm:$0xff] %v6487
        %s6491 = scalar_lea.vmem %s6346, 104
        %s6493 = scalar_lea.vmem %s6491, 4294967295
        %v6494 = vld [vmem:[%s6493] sm:$0xfe]
        %v6495 = vlaneseq
        %v6496 = vshrl.u32 %v6495, 7
        %vm6497 = vcmp.eq.s32.totalorder %v6496, 0
        %v6498 = vsel %vm6497, %v6489, %v6494
        %s6499 = scalar_lea.vmem %s6491, 7
        %v6500 = vld [vmem:[%s6499] ss:$0 sm:$0xff]
        %6501 = vst [vmem:[%s6491] sm:$0xff] %v6498
        %s6502 = scalar_lea.vmem %s6346, 112
        %s6504 = scalar_lea.vmem %s6502, 4294967295
        %v6505 = vld [vmem:[%s6504] sm:$0xfe]
        %v6506 = vlaneseq
        %v6507 = vshrl.u32 %v6506, 7
        %vm6508 = vcmp.eq.s32.totalorder %v6507, 0
        %v6509 = vsel %vm6508, %v6500, %v6505
        %s6510 = scalar_lea.vmem %s6502, 7
        %v6511 = vld [vmem:[%s6510] ss:$0 sm:$0xff]
        %6512 = vst [vmem:[%s6502] sm:$0xff] %v6509
        %s6513 = scalar_lea.vmem %s6346, 120
        %s6515 = scalar_lea.vmem %s6513, 4294967295
        %v6516 = vld [vmem:[%s6515] sm:$0xfe]
        %v6517 = vlaneseq
        %v6518 = vshrl.u32 %v6517, 7
        %vm6519 = vcmp.eq.s32.totalorder %v6518, 0
        %v6520 = vsel %vm6519, %v6511, %v6516
        %s6521 = scalar_lea.vmem %s6513, 7
        %v6522 = vld [vmem:[%s6521] ss:$0 sm:$0xff]
        %6523 = vst [vmem:[%s6513] sm:$0xff] %v6520
        %v6524 = vld [vmem:[%s6347] ss:$0 sm:$0xff]
        %s6525 = scalar_lea.vmem %s6346, 1
        %6526 = vst [vmem:[%s6525] sm:$0x1] %v6524
        %s6527 = scalar_lea.vmem %s6347, 120
        %s6528 = scalar_lea.vmem %s6527, 1
        %v6529 = vld [vmem:[%s6528] sm:$0x7f]
        %v6530 = vlaneseq
        %v6531 = vshrl.u32 %v6530, 7
        %vm6532 = vcmp.eq.s32.totalorder %v6531, 7
        %v6533 = vsel %vm6532, %v6522, %v6529
        %v6534 = vld [vmem:[%s6527] ss:$0 sm:$0xff]
        %6535 = vst [vmem:[%s6527] sm:$0xff] %v6533
        %s6536 = scalar_lea.vmem %s6347, 112
        %s6537 = scalar_lea.vmem %s6536, 1
        %v6538 = vld [vmem:[%s6537] sm:$0x7f]
        %v6539 = vlaneseq
        %v6540 = vshrl.u32 %v6539, 7
        %vm6541 = vcmp.eq.s32.totalorder %v6540, 7
        %v6542 = vsel %vm6541, %v6534, %v6538
        %v6543 = vld [vmem:[%s6536] ss:$0 sm:$0xff]
        %6544 = vst [vmem:[%s6536] sm:$0xff] %v6542
        %s6545 = scalar_lea.vmem %s6347, 104
        %s6546 = scalar_lea.vmem %s6545, 1
        %v6547 = vld [vmem:[%s6546] sm:$0x7f]
        %v6548 = vlaneseq
        %v6549 = vshrl.u32 %v6548, 7
        %vm6550 = vcmp.eq.s32.totalorder %v6549, 7
        %v6551 = vsel %vm6550, %v6543, %v6547
        %v6552 = vld [vmem:[%s6545] ss:$0 sm:$0xff]
        %6553 = vst [vmem:[%s6545] sm:$0xff] %v6551
        %s6554 = scalar_lea.vmem %s6347, 96
        %s6555 = scalar_lea.vmem %s6554, 1
        %v6556 = vld [vmem:[%s6555] sm:$0x7f]
        %v6557 = vlaneseq
        %v6558 = vshrl.u32 %v6557, 7
        %vm6559 = vcmp.eq.s32.totalorder %v6558, 7
        %v6560 = vsel %vm6559, %v6552, %v6556
        %v6561 = vld [vmem:[%s6554] ss:$0 sm:$0xff]
        %6562 = vst [vmem:[%s6554] sm:$0xff] %v6560
        %s6563 = scalar_lea.vmem %s6347, 88
        %s6564 = scalar_lea.vmem %s6563, 1
        %v6565 = vld [vmem:[%s6564] sm:$0x7f]
        %v6566 = vlaneseq
        %v6567 = vshrl.u32 %v6566, 7
        %vm6568 = vcmp.eq.s32.totalorder %v6567, 7
        %v6569 = vsel %vm6568, %v6561, %v6565
        %v6570 = vld [vmem:[%s6563] ss:$0 sm:$0xff]
        %6571 = vst [vmem:[%s6563] sm:$0xff] %v6569
        %s6572 = scalar_lea.vmem %s6347, 80
        %s6573 = scalar_lea.vmem %s6572, 1
        %v6574 = vld [vmem:[%s6573] sm:$0x7f]
        %v6575 = vlaneseq
        %v6576 = vshrl.u32 %v6575, 7
        %vm6577 = vcmp.eq.s32.totalorder %v6576, 7
        %v6578 = vsel %vm6577, %v6570, %v6574
        %v6579 = vld [vmem:[%s6572] ss:$0 sm:$0xff]
        %6580 = vst [vmem:[%s6572] sm:$0xff] %v6578
        %s6581 = scalar_lea.vmem %s6347, 72
        %s6582 = scalar_lea.vmem %s6581, 1
        %v6583 = vld [vmem:[%s6582] sm:$0x7f]
        %v6584 = vlaneseq
        %v6585 = vshrl.u32 %v6584, 7
        %vm6586 = vcmp.eq.s32.totalorder %v6585, 7
        %v6587 = vsel %vm6586, %v6579, %v6583
        %v6588 = vld [vmem:[%s6581] ss:$0 sm:$0xff]
        %6589 = vst [vmem:[%s6581] sm:$0xff] %v6587
        %s6590 = scalar_lea.vmem %s6347, 64
        %s6591 = scalar_lea.vmem %s6590, 1
        %v6592 = vld [vmem:[%s6591] sm:$0x7f]
        %v6593 = vlaneseq
        %v6594 = vshrl.u32 %v6593, 7
        %vm6595 = vcmp.eq.s32.totalorder %v6594, 7
        %v6596 = vsel %vm6595, %v6588, %v6592
        %v6597 = vld [vmem:[%s6590] ss:$0 sm:$0xff]
        %6598 = vst [vmem:[%s6590] sm:$0xff] %v6596
        %s6599 = scalar_lea.vmem %s6347, 56
        %s6600 = scalar_lea.vmem %s6599, 1
        %v6601 = vld [vmem:[%s6600] sm:$0x7f]
        %v6602 = vlaneseq
        %v6603 = vshrl.u32 %v6602, 7
        %vm6604 = vcmp.eq.s32.totalorder %v6603, 7
        %v6605 = vsel %vm6604, %v6597, %v6601
        %v6606 = vld [vmem:[%s6599] ss:$0 sm:$0xff]
        %6607 = vst [vmem:[%s6599] sm:$0xff] %v6605
        %s6608 = scalar_lea.vmem %s6347, 48
        %s6609 = scalar_lea.vmem %s6608, 1
        %v6610 = vld [vmem:[%s6609] sm:$0x7f]
        %v6611 = vlaneseq
        %v6612 = vshrl.u32 %v6611, 7
        %vm6613 = vcmp.eq.s32.totalorder %v6612, 7
        %v6614 = vsel %vm6613, %v6606, %v6610
        %v6615 = vld [vmem:[%s6608] ss:$0 sm:$0xff]
        %6616 = vst [vmem:[%s6608] sm:$0xff] %v6614
        %s6617 = scalar_lea.vmem %s6347, 40
        %s6618 = scalar_lea.vmem %s6617, 1
        %v6619 = vld [vmem:[%s6618] sm:$0x7f]
        %v6620 = vlaneseq
        %v6621 = vshrl.u32 %v6620, 7
        %vm6622 = vcmp.eq.s32.totalorder %v6621, 7
        %v6623 = vsel %vm6622, %v6615, %v6619
        %v6624 = vld [vmem:[%s6617] ss:$0 sm:$0xff]
        %6625 = vst [vmem:[%s6617] sm:$0xff] %v6623
        %s6626 = scalar_lea.vmem %s6347, 32
        %s6627 = scalar_lea.vmem %s6626, 1
        %v6628 = vld [vmem:[%s6627] sm:$0x7f]
        %v6629 = vlaneseq
        %v6630 = vshrl.u32 %v6629, 7
        %vm6631 = vcmp.eq.s32.totalorder %v6630, 7
        %v6632 = vsel %vm6631, %v6624, %v6628
        %v6633 = vld [vmem:[%s6626] ss:$0 sm:$0xff]
        %6634 = vst [vmem:[%s6626] sm:$0xff] %v6632
        %s6635 = scalar_lea.vmem %s6347, 24
        %s6636 = scalar_lea.vmem %s6635, 1
        %v6637 = vld [vmem:[%s6636] sm:$0x7f]
        %v6638 = vlaneseq
        %v6639 = vshrl.u32 %v6638, 7
        %vm6640 = vcmp.eq.s32.totalorder %v6639, 7
        %v6641 = vsel %vm6640, %v6633, %v6637
        %v6642 = vld [vmem:[%s6635] ss:$0 sm:$0xff]
        %6643 = vst [vmem:[%s6635] sm:$0xff] %v6641
        %s6644 = scalar_lea.vmem %s6347, 16
        %s6645 = scalar_lea.vmem %s6644, 1
        %v6646 = vld [vmem:[%s6645] sm:$0x7f]
        %v6647 = vlaneseq
        %v6648 = vshrl.u32 %v6647, 7
        %vm6649 = vcmp.eq.s32.totalorder %v6648, 7
        %v6650 = vsel %vm6649, %v6642, %v6646
        %v6651 = vld [vmem:[%s6644] ss:$0 sm:$0xff]
        %6652 = vst [vmem:[%s6644] sm:$0xff] %v6650
        %s6653 = scalar_lea.vmem %s6347, 8
        %s6654 = scalar_lea.vmem %s6653, 1
        %v6655 = vld [vmem:[%s6654] sm:$0x7f]
        %v6656 = vlaneseq
        %v6657 = vshrl.u32 %v6656, 7
        %vm6658 = vcmp.eq.s32.totalorder %v6657, 7
        %v6659 = vsel %vm6658, %v6651, %v6655
        %v6660 = vld [vmem:[%s6653] ss:$0 sm:$0xff]
        %6661 = vst [vmem:[%s6653] sm:$0xff] %v6659
        %s6662 = scalar_lea.vmem %s6347, 1
        %v6663 = vld [vmem:[%s6662] sm:$0x7f]
        %v6664 = vlaneseq
        %v6665 = vshrl.u32 %v6664, 7
        %vm6666 = vcmp.eq.s32.totalorder %v6665, 7
        %v6667 = vsel %vm6666, %v6660, %v6663
        %v6668 = vld [vmem:[%s6347] ss:$0 sm:$0xff]
        %6669 = vst [vmem:[%s6347] sm:$0xff] %v6667
      $region101: #{custom-call.2} parent=93 // loop_footer
        %s1370 = sadd.s32 1, %s1366
      $region102: #{custom-call.2} parent=93 // loop_footer_branch
        %1365 = sbr.rel target = $region98
      $region103: #{custom-call.2} parent=93 // loop_exit
        _
      %s6670 = sadd.s32 %s872, 1
    $region94: #{custom-call.2} parent=1 // loop_footer
      _
    $region95: #{custom-call.2} parent=1 // loop_footer_branch
      %871 = sbr.rel target = $region91
    $region96: #{custom-call.2} parent=1 // loop_exit
      _
    %s6673 = smov [#allocation12]
    %s6674 = smov [#allocation4]
    %v6675 = vlaneseq
    %v6676 = vand.u32 %v6675, 127
    %v6677 = vmov %v6676
    %v6678 = vlaneseq
    %v6679 = vshrl.u32 %v6678, 7
    %v6680 = vmov %v6679
    %v6681 = vld [vmem:[%s6673] sm:$0xff]
    %vm6684 = vcmp.eq.s32.totalorder %v6680, %v6677
    %v6685 = vsel %vm6684, %v6681, 0.0
    %s6686 = scalar_lea.vmem %s6673, 8
    %v6687 = vld [vmem:[%s6686] sm:$0xff]
    %v6689 = vadd.s32 %v6680, 8
    %vm6690 = vcmp.eq.s32.totalorder %v6689, %v6677
    %v6691 = vsel %vm6690, %v6687, %v6685
    %s6692 = scalar_lea.vmem %s6673, 16
    %v6693 = vld [vmem:[%s6692] sm:$0xff]
    %v6695 = vadd.s32 %v6680, 16
    %vm6696 = vcmp.eq.s32.totalorder %v6695, %v6677
    %v6697 = vsel %vm6696, %v6693, %v6691
    %s6698 = scalar_lea.vmem %s6673, 24
    %v6699 = vld [vmem:[%s6698] sm:$0xff]
    %v6701 = vadd.s32 %v6680, 24
    %vm6702 = vcmp.eq.s32.totalorder %v6701, %v6677
    %v6703 = vsel %vm6702, %v6699, %v6697
    %s6704 = scalar_lea.vmem %s6673, 32
    %v6705 = vld [vmem:[%s6704] sm:$0xff]
    %v6707 = vadd.s32 %v6680, 32
    %vm6708 = vcmp.eq.s32.totalorder %v6707, %v6677
    %v6709 = vsel %vm6708, %v6705, %v6703
    %s6710 = scalar_lea.vmem %s6673, 40
    %v6711 = vld [vmem:[%s6710] sm:$0xff]
    %v6713 = vadd.s32 %v6680, 40
    %vm6714 = vcmp.eq.s32.totalorder %v6713, %v6677
    %v6715 = vsel %vm6714, %v6711, %v6709
    %s6716 = scalar_lea.vmem %s6673, 48
    %v6717 = vld [vmem:[%s6716] sm:$0xff]
    %v6719 = vadd.s32 %v6680, 48
    %vm6720 = vcmp.eq.s32.totalorder %v6719, %v6677
    %v6721 = vsel %vm6720, %v6717, %v6715
    %s6722 = scalar_lea.vmem %s6673, 56
    %v6723 = vld [vmem:[%s6722] sm:$0xff]
    %v6725 = vadd.s32 %v6680, 56
    %vm6726 = vcmp.eq.s32.totalorder %v6725, %v6677
    %v6727 = vsel %vm6726, %v6723, %v6721
    %s6728 = scalar_lea.vmem %s6673, 64
    %v6729 = vld [vmem:[%s6728] sm:$0xff]
    %v6731 = vadd.s32 %v6680, 64
    %vm6732 = vcmp.eq.s32.totalorder %v6731, %v6677
    %v6733 = vsel %vm6732, %v6729, %v6727
    %s6734 = scalar_lea.vmem %s6673, 72
    %v6735 = vld [vmem:[%s6734] sm:$0xff]
    %v6737 = vadd.s32 %v6680, 72
    %vm6738 = vcmp.eq.s32.totalorder %v6737, %v6677
    %v6739 = vsel %vm6738, %v6735, %v6733
    %s6740 = scalar_lea.vmem %s6673, 80
    %v6741 = vld [vmem:[%s6740] sm:$0xff]
    %v6743 = vadd.s32 %v6680, 80
    %vm6744 = vcmp.eq.s32.totalorder %v6743, %v6677
    %v6745 = vsel %vm6744, %v6741, %v6739
    %s6746 = scalar_lea.vmem %s6673, 88
    %v6747 = vld [vmem:[%s6746] sm:$0xff]
    %v6749 = vadd.s32 %v6680, 88
    %vm6750 = vcmp.eq.s32.totalorder %v6749, %v6677
    %v6751 = vsel %vm6750, %v6747, %v6745
    %s6752 = scalar_lea.vmem %s6673, 96
    %v6753 = vld [vmem:[%s6752] sm:$0xff]
    %v6755 = vadd.s32 %v6680, 96
    %vm6756 = vcmp.eq.s32.totalorder %v6755, %v6677
    %v6757 = vsel %vm6756, %v6753, %v6751
    %s6758 = scalar_lea.vmem %s6673, 104
    %v6759 = vld [vmem:[%s6758] sm:$0xff]
    %v6761 = vadd.s32 %v6680, 104
    %vm6762 = vcmp.eq.s32.totalorder %v6761, %v6677
    %v6763 = vsel %vm6762, %v6759, %v6757
    %s6764 = scalar_lea.vmem %s6673, 112
    %v6765 = vld [vmem:[%s6764] sm:$0xff]
    %v6767 = vadd.s32 %v6680, 112
    %vm6768 = vcmp.eq.s32.totalorder %v6767, %v6677
    %v6769 = vsel %vm6768, %v6765, %v6763
    %s6770 = scalar_lea.vmem %s6673, 120
    %v6771 = vld [vmem:[%s6770] sm:$0xff]
    %v6773 = vadd.s32 %v6680, 120
    %vm6774 = vcmp.eq.s32.totalorder %v6773, %v6677
    %v6775 = vsel %vm6774, %v6771, %v6769
    %v6776 = vrot.slane %v6775, 4
    %v6777 = vadd.f32 %v6775, %v6776
    %v6778 = vrot.slane %v6777, 2
    %v6779 = vadd.f32 %v6777, %v6778
    %v6780 = vrot.slane %v6779, 1
    %v6781 = vadd.f32 %v6779, %v6780
    %6782 = vst [vmem:[%s6674] sm:$0x1] %v6781
    %s6783 = smov [#allocation15]
    %s6784 = smov [#allocation6]
    %v6785 = vlaneseq
    %v6786 = vand.u32 %v6785, 127
    %v6787 = vmov %v6786
    %v6788 = vlaneseq
    %v6789 = vshrl.u32 %v6788, 7
    %v6790 = vmov %v6789
    %v6791 = vld [vmem:[%s6783] sm:$0xff]
    %vm6794 = vcmp.eq.s32.totalorder %v6790, %v6787
    %v6795 = vsel %vm6794, %v6791, 0.0
    %s6796 = scalar_lea.vmem %s6783, 8
    %v6797 = vld [vmem:[%s6796] sm:$0xff]
    %v6799 = vadd.s32 %v6790, 8
    %vm6800 = vcmp.eq.s32.totalorder %v6799, %v6787
    %v6801 = vsel %vm6800, %v6797, %v6795
    %s6802 = scalar_lea.vmem %s6783, 16
    %v6803 = vld [vmem:[%s6802] sm:$0xff]
    %v6805 = vadd.s32 %v6790, 16
    %vm6806 = vcmp.eq.s32.totalorder %v6805, %v6787
    %v6807 = vsel %vm6806, %v6803, %v6801
    %s6808 = scalar_lea.vmem %s6783, 24
    %v6809 = vld [vmem:[%s6808] sm:$0xff]
    %v6811 = vadd.s32 %v6790, 24
    %vm6812 = vcmp.eq.s32.totalorder %v6811, %v6787
    %v6813 = vsel %vm6812, %v6809, %v6807
    %s6814 = scalar_lea.vmem %s6783, 32
    %v6815 = vld [vmem:[%s6814] sm:$0xff]
    %v6817 = vadd.s32 %v6790, 32
    %vm6818 = vcmp.eq.s32.totalorder %v6817, %v6787
    %v6819 = vsel %vm6818, %v6815, %v6813
    %s6820 = scalar_lea.vmem %s6783, 40
    %v6821 = vld [vmem:[%s6820] sm:$0xff]
    %v6823 = vadd.s32 %v6790, 40
    %vm6824 = vcmp.eq.s32.totalorder %v6823, %v6787
    %v6825 = vsel %vm6824, %v6821, %v6819
    %s6826 = scalar_lea.vmem %s6783, 48
    %v6827 = vld [vmem:[%s6826] sm:$0xff]
    %v6829 = vadd.s32 %v6790, 48
    %vm6830 = vcmp.eq.s32.totalorder %v6829, %v6787
    %v6831 = vsel %vm6830, %v6827, %v6825
    %s6832 = scalar_lea.vmem %s6783, 56
    %v6833 = vld [vmem:[%s6832] sm:$0xff]
    %v6835 = vadd.s32 %v6790, 56
    %vm6836 = vcmp.eq.s32.totalorder %v6835, %v6787
    %v6837 = vsel %vm6836, %v6833, %v6831
    %s6838 = scalar_lea.vmem %s6783, 64
    %v6839 = vld [vmem:[%s6838] sm:$0xff]
    %v6841 = vadd.s32 %v6790, 64
    %vm6842 = vcmp.eq.s32.totalorder %v6841, %v6787
    %v6843 = vsel %vm6842, %v6839, %v6837
    %s6844 = scalar_lea.vmem %s6783, 72
    %v6845 = vld [vmem:[%s6844] sm:$0xff]
    %v6847 = vadd.s32 %v6790, 72
    %vm6848 = vcmp.eq.s32.totalorder %v6847, %v6787
    %v6849 = vsel %vm6848, %v6845, %v6843
    %s6850 = scalar_lea.vmem %s6783, 80
    %v6851 = vld [vmem:[%s6850] sm:$0xff]
    %v6853 = vadd.s32 %v6790, 80
    %vm6854 = vcmp.eq.s32.totalorder %v6853, %v6787
    %v6855 = vsel %vm6854, %v6851, %v6849
    %s6856 = scalar_lea.vmem %s6783, 88
    %v6857 = vld [vmem:[%s6856] sm:$0xff]
    %v6859 = vadd.s32 %v6790, 88
    %vm6860 = vcmp.eq.s32.totalorder %v6859, %v6787
    %v6861 = vsel %vm6860, %v6857, %v6855
    %s6862 = scalar_lea.vmem %s6783, 96
    %v6863 = vld [vmem:[%s6862] sm:$0xff]
    %v6865 = vadd.s32 %v6790, 96
    %vm6866 = vcmp.eq.s32.totalorder %v6865, %v6787
    %v6867 = vsel %vm6866, %v6863, %v6861
    %s6868 = scalar_lea.vmem %s6783, 104
    %v6869 = vld [vmem:[%s6868] sm:$0xff]
    %v6871 = vadd.s32 %v6790, 104
    %vm6872 = vcmp.eq.s32.totalorder %v6871, %v6787
    %v6873 = vsel %vm6872, %v6869, %v6867
    %s6874 = scalar_lea.vmem %s6783, 112
    %v6875 = vld [vmem:[%s6874] sm:$0xff]
    %v6877 = vadd.s32 %v6790, 112
    %vm6878 = vcmp.eq.s32.totalorder %v6877, %v6787
    %v6879 = vsel %vm6878, %v6875, %v6873
    %s6880 = scalar_lea.vmem %s6783, 120
    %v6881 = vld [vmem:[%s6880] sm:$0xff]
    %v6883 = vadd.s32 %v6790, 120
    %vm6884 = vcmp.eq.s32.totalorder %v6883, %v6787
    %v6885 = vsel %vm6884, %v6881, %v6879
    %v6886 = vrot.slane %v6885, 4
    %v6887 = vadd.f32 %v6885, %v6886
    %v6888 = vrot.slane %v6887, 2
    %v6889 = vadd.f32 %v6887, %v6888
    %v6890 = vrot.slane %v6889, 1
    %v6891 = vadd.f32 %v6889, %v6890
    %6892 = vst [vmem:[%s6784] sm:$0x1] %v6891
    %s6894 = sshllo.u32 0, 1
    %v6896 = vld [vmem:[#allocation4] sm:%s6894]
    %s6897 = sshllo.u32 0, 1
    %6898 = vst [vmem:[#allocation5] sm:%s6897] %v6896
    %s6900 = sshllo.u32 0, 1
    %v6902 = vld [vmem:[#allocation6] sm:%s6900]
    %s6903 = sshllo.u32 0, 1
    %6904 = vst [vmem:[#allocation7] sm:%s6903] %v6902
    // Predicated region
    $region104: #{custom-call.2} parent=1 // pred_check
      _
    $region105: #{custom-call.2} parent=1 // pred_check_branch
      %6906 = sbr.rel (0) target = $region107
    $region106: #{custom-call.2} parent=1 // pred_region
      %p6908 = scmp.gt.s32.totalorder 1, 0
      // Predicated region
      $region108: #{custom-call.2} parent=106 // pred_check
        %p6909 = pneg %p6908
      $region109: #{custom-call.2} parent=106 // pred_check_branch
        %6911 = sbr.rel (%p6909) target = $region111
      $region110: #{custom-call.2} parent=106 // pred_region
        %s6912 = sshra.s32 1, 3
        %p6913 = scmp.gt.s32.totalorder %s6912, 0
        // Predicated region
        $region112: #{custom-call.2} parent=110 // pred_check
          %p6914 = pneg %p6913
        $region113: #{custom-call.2} parent=110 // pred_check_branch
          %6916 = sbr.rel (%p6914) target = $region115
        $region114: #{custom-call.2} parent=110 // pred_region
          %s6917 = ssub.s32 %s6912, 1
          %s6918 = smul.u32 %s6917, 128
          %s6919 = sshra.s32 %s6918, 4
          %s6920 = scalar_lea.vmem [#allocation5], %s6919
          %v6921 = vld [vmem:[#allocation5] sm:$0xff]
          // While loop
          $region116: #{custom-call.2} parent=114 // loop_pre_header
            _
          $region117: #{custom-call.2} parent=114 // loop_header
            %s6922 = sphi [#allocation5], %s6944
            %s6923 = sphi %s4, %s6945
            %v6924 = vphi %v6921, %v6946
            %s6925 = ssub.s32 %s6920, 64
            %p6926 = scmp.gt.s32.totalorder %s6922, %s6925
          $region118: #{custom-call.2} parent=114 // loop_header_branch
            %6928 = sbr.rel (%p6926) target = $region122
          $region119: #{custom-call.2} parent=114 // loop_body
            %6929 = vst [vmem:[%s6923] sm:$0xff] %v6924
            %v6930 = vld [vmem:[%s6922 + $0x8] sm:$0xff]
            %6931 = vst [vmem:[%s6923 + $0x8] sm:$0xff] %v6930
            %v6932 = vld [vmem:[%s6922 + $0x10] sm:$0xff]
            %6933 = vst [vmem:[%s6923 + $0x10] sm:$0xff] %v6932
            %v6934 = vld [vmem:[%s6922 + $0x18] sm:$0xff]
            %6935 = vst [vmem:[%s6923 + $0x18] sm:$0xff] %v6934
            %v6936 = vld [vmem:[%s6922 + $0x20] sm:$0xff]
            %6937 = vst [vmem:[%s6923 + $0x20] sm:$0xff] %v6936
            %v6938 = vld [vmem:[%s6922 + $0x28] sm:$0xff]
            %6939 = vst [vmem:[%s6923 + $0x28] sm:$0xff] %v6938
            %v6940 = vld [vmem:[%s6922 + $0x30] sm:$0xff]
            %6941 = vst [vmem:[%s6923 + $0x30] sm:$0xff] %v6940
            %v6942 = vld [vmem:[%s6922 + $0x38] sm:$0xff]
            %6943 = vst [vmem:[%s6923 + $0x38] sm:$0xff] %v6942
          $region120: #{custom-call.2} parent=114 // loop_footer
            %s6944 = scalar_lea.vmem %s6922, 64
            %s6945 = scalar_lea.vmem %s6923, 64
            %v6946 = vld [vmem:[%s6922 + $0x40] sm:$0xff]
          $region121: #{custom-call.2} parent=114 // loop_footer_branch
            %6947 = sbr.rel target = $region117
          $region122: #{custom-call.2} parent=114 // loop_exit
            _
          // While loop
          $region123: #{custom-call.2} parent=114 // loop_pre_header
            _
          $region124: #{custom-call.2} parent=114 // loop_header
            %s6948 = sphi %s6922, %s6956
            %s6949 = sphi %s6923, %s6957
            %v6950 = vphi %v6924, %v6950
            %p6951 = scmp.gt.s32.totalorder %s6948, %s6920
          $region125: #{custom-call.2} parent=114 // loop_header_branch
            %6953 = sbr.rel (%p6951) target = $region129
          $region126: #{custom-call.2} parent=114 // loop_body
            %v6954 = vld [vmem:[%s6948] sm:$0xff]
            %6955 = vst [vmem:[%s6949] sm:$0xff] %v6954
          $region127: #{custom-call.2} parent=114 // loop_footer
            %s6956 = scalar_lea.vmem %s6948, 8
            %s6957 = scalar_lea.vmem %s6949, 8
          $region128: #{custom-call.2} parent=114 // loop_footer_branch
            %6958 = sbr.rel target = $region124
          $region129: #{custom-call.2} parent=114 // loop_exit
            _
        $region115: #{custom-call.2} parent=110 // pred_fallthru
          _
        %s6959 = sand.u32 1, 7
        %s6960 = sshllo.u32 0, %s6959
        %s6961 = smul.u32 %s6912, 128
        %s6962 = sshra.s32 %s6961, 4
        %s6963 = scalar_lea.vmem %s4, %s6962
        %s6964 = smul.u32 %s6912, 128
        %s6965 = sshra.s32 %s6964, 4
        %s6966 = scalar_lea.vmem [#allocation5], %s6965
        %v6967 = vld [vmem:[%s6966] sm:%s6960]
        %6968 = vst [vmem:[%s6963] sm:%s6960] %v6967
      $region111: #{custom-call.2} parent=106 // pred_fallthru
        _
    $region107: #{custom-call.2} parent=1 // pred_fallthru
      _
    // Predicated region
    $region130: #{custom-call.2} parent=1 // pred_check
      _
    $region131: #{custom-call.2} parent=1 // pred_check_branch
      %6970 = sbr.rel (0) target = $region133
    $region132: #{custom-call.2} parent=1 // pred_region
      %p6972 = scmp.gt.s32.totalorder 1, 0
      // Predicated region
      $region134: #{custom-call.2} parent=132 // pred_check
        %p6973 = pneg %p6972
      $region135: #{custom-call.2} parent=132 // pred_check_branch
        %6975 = sbr.rel (%p6973) target = $region137
      $region136: #{custom-call.2} parent=132 // pred_region
        %s6976 = sshra.s32 1, 3
        %p6977 = scmp.gt.s32.totalorder %s6976, 0
        // Predicated region
        $region138: #{custom-call.2} parent=136 // pred_check
          %p6978 = pneg %p6977
        $region139: #{custom-call.2} parent=136 // pred_check_branch
          %6980 = sbr.rel (%p6978) target = $region141
        $region140: #{custom-call.2} parent=136 // pred_region
          %s6981 = ssub.s32 %s6976, 1
          %s6982 = smul.u32 %s6981, 128
          %s6983 = sshra.s32 %s6982, 4
          %s6984 = scalar_lea.vmem [#allocation7], %s6983
          %v6985 = vld [vmem:[#allocation7] sm:$0xff]
          // While loop
          $region142: #{custom-call.2} parent=140 // loop_pre_header
            _
          $region143: #{custom-call.2} parent=140 // loop_header
            %s6986 = sphi [#allocation7], %s7008
            %s6987 = sphi %s5, %s7009
            %v6988 = vphi %v6985, %v7010
            %s6989 = ssub.s32 %s6984, 64
            %p6990 = scmp.gt.s32.totalorder %s6986, %s6989
          $region144: #{custom-call.2} parent=140 // loop_header_branch
            %6992 = sbr.rel (%p6990) target = $region148
          $region145: #{custom-call.2} parent=140 // loop_body
            %6993 = vst [vmem:[%s6987] sm:$0xff] %v6988
            %v6994 = vld [vmem:[%s6986 + $0x8] sm:$0xff]
            %6995 = vst [vmem:[%s6987 + $0x8] sm:$0xff] %v6994
            %v6996 = vld [vmem:[%s6986 + $0x10] sm:$0xff]
            %6997 = vst [vmem:[%s6987 + $0x10] sm:$0xff] %v6996
            %v6998 = vld [vmem:[%s6986 + $0x18] sm:$0xff]
            %6999 = vst [vmem:[%s6987 + $0x18] sm:$0xff] %v6998
            %v7000 = vld [vmem:[%s6986 + $0x20] sm:$0xff]
            %7001 = vst [vmem:[%s6987 + $0x20] sm:$0xff] %v7000
            %v7002 = vld [vmem:[%s6986 + $0x28] sm:$0xff]
            %7003 = vst [vmem:[%s6987 + $0x28] sm:$0xff] %v7002
            %v7004 = vld [vmem:[%s6986 + $0x30] sm:$0xff]
            %7005 = vst [vmem:[%s6987 + $0x30] sm:$0xff] %v7004
            %v7006 = vld [vmem:[%s6986 + $0x38] sm:$0xff]
            %7007 = vst [vmem:[%s6987 + $0x38] sm:$0xff] %v7006
          $region146: #{custom-call.2} parent=140 // loop_footer
            %s7008 = scalar_lea.vmem %s6986, 64
            %s7009 = scalar_lea.vmem %s6987, 64
            %v7010 = vld [vmem:[%s6986 + $0x40] sm:$0xff]
          $region147: #{custom-call.2} parent=140 // loop_footer_branch
            %7011 = sbr.rel target = $region143
          $region148: #{custom-call.2} parent=140 // loop_exit
            _
          // While loop
          $region149: #{custom-call.2} parent=140 // loop_pre_header
            _
          $region150: #{custom-call.2} parent=140 // loop_header
            %s7012 = sphi %s6986, %s7020
            %s7013 = sphi %s6987, %s7021
            %v7014 = vphi %v6988, %v7014
            %p7015 = scmp.gt.s32.totalorder %s7012, %s6984
          $region151: #{custom-call.2} parent=140 // loop_header_branch
            %7017 = sbr.rel (%p7015) target = $region155
          $region152: #{custom-call.2} parent=140 // loop_body
            %v7018 = vld [vmem:[%s7012] sm:$0xff]
            %7019 = vst [vmem:[%s7013] sm:$0xff] %v7018
          $region153: #{custom-call.2} parent=140 // loop_footer
            %s7020 = scalar_lea.vmem %s7012, 8
            %s7021 = scalar_lea.vmem %s7013, 8
          $region154: #{custom-call.2} parent=140 // loop_footer_branch
            %7022 = sbr.rel target = $region150
          $region155: #{custom-call.2} parent=140 // loop_exit
            _
        $region141: #{custom-call.2} parent=136 // pred_fallthru
          _
        %s7023 = sand.u32 1, 7
        %s7024 = sshllo.u32 0, %s7023
        %s7025 = smul.u32 %s6976, 128
        %s7026 = sshra.s32 %s7025, 4
        %s7027 = scalar_lea.vmem %s5, %s7026
        %s7028 = smul.u32 %s6976, 128
        %s7029 = sshra.s32 %s7028, 4
        %s7030 = scalar_lea.vmem [#allocation7], %s7029
        %v7031 = vld [vmem:[%s7030] sm:%s7024]
        %7032 = vst [vmem:[%s7027] sm:%s7024] %v7031
      $region137: #{custom-call.2} parent=132 // pred_fallthru
        _
    $region133: #{custom-call.2} parent=1 // pred_fallthru
      _
    %p7034 = scmp.gt.s32.totalorder 128, 0
    // Predicated region
    $region156: #{custom-call.2} parent=1 // pred_check
      %p7035 = pneg %p7034
    $region157: #{custom-call.2} parent=1 // pred_check_branch
      %7037 = sbr.rel (%p7035) target = $region159
    $region158: #{custom-call.2} parent=1 // pred_region
      %s7038 = sshra.s32 128, 3
      %p7039 = scmp.gt.s32.totalorder %s7038, 0
      // Predicated region
      $region160: #{custom-call.2} parent=158 // pred_check
        %p7040 = pneg %p7039
      $region161: #{custom-call.2} parent=158 // pred_check_branch
        %7042 = sbr.rel (%p7040) target = $region163
      $region162: #{custom-call.2} parent=158 // pred_region
        %s7043 = ssub.s32 %s7038, 1
        %s7044 = smul.u32 %s7043, 128
        %s7045 = sshra.s32 %s7044, 4
        %s7046 = scalar_lea.vmem [#allocation8], %s7045
        %v7047 = vld [vmem:[#allocation8] sm:$0xff]
        // While loop
        $region164: #{custom-call.2} parent=162 // loop_pre_header
          _
        $region165: #{custom-call.2} parent=162 // loop_header
          %s7048 = sphi [#allocation8], %s7070
          %s7049 = sphi %s6, %s7071
          %v7050 = vphi %v7047, %v7072
          %s7051 = ssub.s32 %s7046, 64
          %p7052 = scmp.gt.s32.totalorder %s7048, %s7051
        $region166: #{custom-call.2} parent=162 // loop_header_branch
          %7054 = sbr.rel (%p7052) target = $region170
        $region167: #{custom-call.2} parent=162 // loop_body
          %7055 = vst [vmem:[%s7049] sm:$0xff] %v7050
          %v7056 = vld [vmem:[%s7048 + $0x8] sm:$0xff]
          %7057 = vst [vmem:[%s7049 + $0x8] sm:$0xff] %v7056
          %v7058 = vld [vmem:[%s7048 + $0x10] sm:$0xff]
          %7059 = vst [vmem:[%s7049 + $0x10] sm:$0xff] %v7058
          %v7060 = vld [vmem:[%s7048 + $0x18] sm:$0xff]
          %7061 = vst [vmem:[%s7049 + $0x18] sm:$0xff] %v7060
          %v7062 = vld [vmem:[%s7048 + $0x20] sm:$0xff]
          %7063 = vst [vmem:[%s7049 + $0x20] sm:$0xff] %v7062
          %v7064 = vld [vmem:[%s7048 + $0x28] sm:$0xff]
          %7065 = vst [vmem:[%s7049 + $0x28] sm:$0xff] %v7064
          %v7066 = vld [vmem:[%s7048 + $0x30] sm:$0xff]
          %7067 = vst [vmem:[%s7049 + $0x30] sm:$0xff] %v7066
          %v7068 = vld [vmem:[%s7048 + $0x38] sm:$0xff]
          %7069 = vst [vmem:[%s7049 + $0x38] sm:$0xff] %v7068
        $region168: #{custom-call.2} parent=162 // loop_footer
          %s7070 = scalar_lea.vmem %s7048, 64
          %s7071 = scalar_lea.vmem %s7049, 64
          %v7072 = vld [vmem:[%s7048 + $0x40] sm:$0xff]
        $region169: #{custom-call.2} parent=162 // loop_footer_branch
          %7073 = sbr.rel target = $region165
        $region170: #{custom-call.2} parent=162 // loop_exit
          _
        // While loop
        $region171: #{custom-call.2} parent=162 // loop_pre_header
          _
        $region172: #{custom-call.2} parent=162 // loop_header
          %s7074 = sphi %s7048, %s7082
          %s7075 = sphi %s7049, %s7083
          %v7076 = vphi %v7050, %v7076
          %p7077 = scmp.gt.s32.totalorder %s7074, %s7046
        $region173: #{custom-call.2} parent=162 // loop_header_branch
          %7079 = sbr.rel (%p7077) target = $region177
        $region174: #{custom-call.2} parent=162 // loop_body
          %v7080 = vld [vmem:[%s7074] sm:$0xff]
          %7081 = vst [vmem:[%s7075] sm:$0xff] %v7080
        $region175: #{custom-call.2} parent=162 // loop_footer
          %s7082 = scalar_lea.vmem %s7074, 8
          %s7083 = scalar_lea.vmem %s7075, 8
        $region176: #{custom-call.2} parent=162 // loop_footer_branch
          %7084 = sbr.rel target = $region172
        $region177: #{custom-call.2} parent=162 // loop_exit
          _
      $region163: #{custom-call.2} parent=158 // pred_fallthru
        _
      %s7085 = sand.u32 128, 7
      %s7086 = sshllo.u32 0, %s7085
      %s7087 = smul.u32 %s7038, 128
      %s7088 = sshra.s32 %s7087, 4
      %s7089 = scalar_lea.vmem %s6, %s7088
      %s7090 = smul.u32 %s7038, 128
      %s7091 = sshra.s32 %s7090, 4
      %s7092 = scalar_lea.vmem [#allocation8], %s7091
      %v7093 = vld [vmem:[%s7092] sm:%s7086]
      %7094 = vst [vmem:[%s7089] sm:%s7086] %v7093
    $region159: #{custom-call.2} parent=1 // pred_fallthru
      _
    %p7096 = scmp.gt.s32.totalorder 128, 0
    // Predicated region
    $region178: #{custom-call.2} parent=1 // pred_check
      %p7097 = pneg %p7096
    $region179: #{custom-call.2} parent=1 // pred_check_branch
      %7099 = sbr.rel (%p7097) target = $region181
    $region180: #{custom-call.2} parent=1 // pred_region
      %s7100 = sshra.s32 128, 3
      %p7101 = scmp.gt.s32.totalorder %s7100, 0
      // Predicated region
      $region182: #{custom-call.2} parent=180 // pred_check
        %p7102 = pneg %p7101
      $region183: #{custom-call.2} parent=180 // pred_check_branch
        %7104 = sbr.rel (%p7102) target = $region185
      $region184: #{custom-call.2} parent=180 // pred_region
        %s7105 = ssub.s32 %s7100, 1
        %s7106 = smul.u32 %s7105, 128
        %s7107 = sshra.s32 %s7106, 4
        %s7108 = scalar_lea.vmem [#allocation9], %s7107
        %v7109 = vld [vmem:[#allocation9] sm:$0xff]
        // While loop
        $region186: #{custom-call.2} parent=184 // loop_pre_header
          _
        $region187: #{custom-call.2} parent=184 // loop_header
          %s7110 = sphi [#allocation9], %s7132
          %s7111 = sphi %s7, %s7133
          %v7112 = vphi %v7109, %v7134
          %s7113 = ssub.s32 %s7108, 64
          %p7114 = scmp.gt.s32.totalorder %s7110, %s7113
        $region188: #{custom-call.2} parent=184 // loop_header_branch
          %7116 = sbr.rel (%p7114) target = $region192
        $region189: #{custom-call.2} parent=184 // loop_body
          %7117 = vst [vmem:[%s7111] sm:$0xff] %v7112
          %v7118 = vld [vmem:[%s7110 + $0x8] sm:$0xff]
          %7119 = vst [vmem:[%s7111 + $0x8] sm:$0xff] %v7118
          %v7120 = vld [vmem:[%s7110 + $0x10] sm:$0xff]
          %7121 = vst [vmem:[%s7111 + $0x10] sm:$0xff] %v7120
          %v7122 = vld [vmem:[%s7110 + $0x18] sm:$0xff]
          %7123 = vst [vmem:[%s7111 + $0x18] sm:$0xff] %v7122
          %v7124 = vld [vmem:[%s7110 + $0x20] sm:$0xff]
          %7125 = vst [vmem:[%s7111 + $0x20] sm:$0xff] %v7124
          %v7126 = vld [vmem:[%s7110 + $0x28] sm:$0xff]
          %7127 = vst [vmem:[%s7111 + $0x28] sm:$0xff] %v7126
          %v7128 = vld [vmem:[%s7110 + $0x30] sm:$0xff]
          %7129 = vst [vmem:[%s7111 + $0x30] sm:$0xff] %v7128
          %v7130 = vld [vmem:[%s7110 + $0x38] sm:$0xff]
          %7131 = vst [vmem:[%s7111 + $0x38] sm:$0xff] %v7130
        $region190: #{custom-call.2} parent=184 // loop_footer
          %s7132 = scalar_lea.vmem %s7110, 64
          %s7133 = scalar_lea.vmem %s7111, 64
          %v7134 = vld [vmem:[%s7110 + $0x40] sm:$0xff]
        $region191: #{custom-call.2} parent=184 // loop_footer_branch
          %7135 = sbr.rel target = $region187
        $region192: #{custom-call.2} parent=184 // loop_exit
          _
        // While loop
        $region193: #{custom-call.2} parent=184 // loop_pre_header
          _
        $region194: #{custom-call.2} parent=184 // loop_header
          %s7136 = sphi %s7110, %s7144
          %s7137 = sphi %s7111, %s7145
          %v7138 = vphi %v7112, %v7138
          %p7139 = scmp.gt.s32.totalorder %s7136, %s7108
        $region195: #{custom-call.2} parent=184 // loop_header_branch
          %7141 = sbr.rel (%p7139) target = $region199
        $region196: #{custom-call.2} parent=184 // loop_body
          %v7142 = vld [vmem:[%s7136] sm:$0xff]
          %7143 = vst [vmem:[%s7137] sm:$0xff] %v7142
        $region197: #{custom-call.2} parent=184 // loop_footer
          %s7144 = scalar_lea.vmem %s7136, 8
          %s7145 = scalar_lea.vmem %s7137, 8
        $region198: #{custom-call.2} parent=184 // loop_footer_branch
          %7146 = sbr.rel target = $region194
        $region199: #{custom-call.2} parent=184 // loop_exit
          _
      $region185: #{custom-call.2} parent=180 // pred_fallthru
        _
      %s7147 = sand.u32 128, 7
      %s7148 = sshllo.u32 0, %s7147
      %s7149 = smul.u32 %s7100, 128
      %s7150 = sshra.s32 %s7149, 4
      %s7151 = scalar_lea.vmem %s7, %s7150
      %s7152 = smul.u32 %s7100, 128
      %s7153 = sshra.s32 %s7152, 4
      %s7154 = scalar_lea.vmem [#allocation9], %s7153
      %v7155 = vld [vmem:[%s7154] sm:%s7148]
      %7156 = vst [vmem:[%s7151] sm:%s7148] %v7155
    $region181: #{custom-call.2} parent=1 // pred_fallthru
      _
    %p7158 = scmp.gt.s32.totalorder 128, 0
    // Predicated region
    $region200: #{custom-call.2} parent=1 // pred_check
      %p7159 = pneg %p7158
    $region201: #{custom-call.2} parent=1 // pred_check_branch
      %7161 = sbr.rel (%p7159) target = $region203
    $region202: #{custom-call.2} parent=1 // pred_region
      %s7162 = sshra.s32 128, 3
      %p7163 = scmp.gt.s32.totalorder %s7162, 0
      // Predicated region
      $region204: #{custom-call.2} parent=202 // pred_check
        %p7164 = pneg %p7163
      $region205: #{custom-call.2} parent=202 // pred_check_branch
        %7166 = sbr.rel (%p7164) target = $region207
      $region206: #{custom-call.2} parent=202 // pred_region
        %s7167 = ssub.s32 %s7162, 1
        %s7168 = smul.u32 %s7167, 128
        %s7169 = sshra.s32 %s7168, 4
        %s7170 = scalar_lea.vmem [#allocation10], %s7169
        %v7171 = vld [vmem:[#allocation10] sm:$0xff]
        // While loop
        $region208: #{custom-call.2} parent=206 // loop_pre_header
          _
        $region209: #{custom-call.2} parent=206 // loop_header
          %s7172 = sphi [#allocation10], %s7194
          %s7173 = sphi %s8, %s7195
          %v7174 = vphi %v7171, %v7196
          %s7175 = ssub.s32 %s7170, 64
          %p7176 = scmp.gt.s32.totalorder %s7172, %s7175
        $region210: #{custom-call.2} parent=206 // loop_header_branch
          %7178 = sbr.rel (%p7176) target = $region214
        $region211: #{custom-call.2} parent=206 // loop_body
          %7179 = vst [vmem:[%s7173] sm:$0xff] %v7174
          %v7180 = vld [vmem:[%s7172 + $0x8] sm:$0xff]
          %7181 = vst [vmem:[%s7173 + $0x8] sm:$0xff] %v7180
          %v7182 = vld [vmem:[%s7172 + $0x10] sm:$0xff]
          %7183 = vst [vmem:[%s7173 + $0x10] sm:$0xff] %v7182
          %v7184 = vld [vmem:[%s7172 + $0x18] sm:$0xff]
          %7185 = vst [vmem:[%s7173 + $0x18] sm:$0xff] %v7184
          %v7186 = vld [vmem:[%s7172 + $0x20] sm:$0xff]
          %7187 = vst [vmem:[%s7173 + $0x20] sm:$0xff] %v7186
          %v7188 = vld [vmem:[%s7172 + $0x28] sm:$0xff]
          %7189 = vst [vmem:[%s7173 + $0x28] sm:$0xff] %v7188
          %v7190 = vld [vmem:[%s7172 + $0x30] sm:$0xff]
          %7191 = vst [vmem:[%s7173 + $0x30] sm:$0xff] %v7190
          %v7192 = vld [vmem:[%s7172 + $0x38] sm:$0xff]
          %7193 = vst [vmem:[%s7173 + $0x38] sm:$0xff] %v7192
        $region212: #{custom-call.2} parent=206 // loop_footer
          %s7194 = scalar_lea.vmem %s7172, 64
          %s7195 = scalar_lea.vmem %s7173, 64
          %v7196 = vld [vmem:[%s7172 + $0x40] sm:$0xff]
        $region213: #{custom-call.2} parent=206 // loop_footer_branch
          %7197 = sbr.rel target = $region209
        $region214: #{custom-call.2} parent=206 // loop_exit
          _
        // While loop
        $region215: #{custom-call.2} parent=206 // loop_pre_header
          _
        $region216: #{custom-call.2} parent=206 // loop_header
          %s7198 = sphi %s7172, %s7206
          %s7199 = sphi %s7173, %s7207
          %v7200 = vphi %v7174, %v7200
          %p7201 = scmp.gt.s32.totalorder %s7198, %s7170
        $region217: #{custom-call.2} parent=206 // loop_header_branch
          %7203 = sbr.rel (%p7201) target = $region221
        $region218: #{custom-call.2} parent=206 // loop_body
          %v7204 = vld [vmem:[%s7198] sm:$0xff]
          %7205 = vst [vmem:[%s7199] sm:$0xff] %v7204
        $region219: #{custom-call.2} parent=206 // loop_footer
          %s7206 = scalar_lea.vmem %s7198, 8
          %s7207 = scalar_lea.vmem %s7199, 8
        $region220: #{custom-call.2} parent=206 // loop_footer_branch
          %7208 = sbr.rel target = $region216
        $region221: #{custom-call.2} parent=206 // loop_exit
          _
      $region207: #{custom-call.2} parent=202 // pred_fallthru
        _
      %s7209 = sand.u32 128, 7
      %s7210 = sshllo.u32 0, %s7209
      %s7211 = smul.u32 %s7162, 128
      %s7212 = sshra.s32 %s7211, 4
      %s7213 = scalar_lea.vmem %s8, %s7212
      %s7214 = smul.u32 %s7162, 128
      %s7215 = sshra.s32 %s7214, 4
      %s7216 = scalar_lea.vmem [#allocation10], %s7215
      %v7217 = vld [vmem:[%s7216] sm:%s7210]
      %7218 = vst [vmem:[%s7213] sm:%s7210] %v7217
    $region203: #{custom-call.2} parent=1 // pred_fallthru
      _
    %p7220 = scmp.gt.s32.totalorder 128, 0
    // Predicated region
    $region222: #{custom-call.2} parent=1 // pred_check
      %p7221 = pneg %p7220
    $region223: #{custom-call.2} parent=1 // pred_check_branch
      %7223 = sbr.rel (%p7221) target = $region225
    $region224: #{custom-call.2} parent=1 // pred_region
      %s7224 = sshra.s32 128, 3
      %p7225 = scmp.gt.s32.totalorder %s7224, 0
      // Predicated region
      $region226: #{custom-call.2} parent=224 // pred_check
        %p7226 = pneg %p7225
      $region227: #{custom-call.2} parent=224 // pred_check_branch
        %7228 = sbr.rel (%p7226) target = $region229
      $region228: #{custom-call.2} parent=224 // pred_region
        %s7229 = ssub.s32 %s7224, 1
        %s7230 = smul.u32 %s7229, 128
        %s7231 = sshra.s32 %s7230, 4
        %s7232 = scalar_lea.vmem [#allocation11], %s7231
        %v7233 = vld [vmem:[#allocation11] sm:$0xff]
        // While loop
        $region230: #{custom-call.2} parent=228 // loop_pre_header
          _
        $region231: #{custom-call.2} parent=228 // loop_header
          %s7234 = sphi [#allocation11], %s7256
          %s7235 = sphi %s9, %s7257
          %v7236 = vphi %v7233, %v7258
          %s7237 = ssub.s32 %s7232, 64
          %p7238 = scmp.gt.s32.totalorder %s7234, %s7237
        $region232: #{custom-call.2} parent=228 // loop_header_branch
          %7240 = sbr.rel (%p7238) target = $region236
        $region233: #{custom-call.2} parent=228 // loop_body
          %7241 = vst [vmem:[%s7235] sm:$0xff] %v7236
          %v7242 = vld [vmem:[%s7234 + $0x8] sm:$0xff]
          %7243 = vst [vmem:[%s7235 + $0x8] sm:$0xff] %v7242
          %v7244 = vld [vmem:[%s7234 + $0x10] sm:$0xff]
          %7245 = vst [vmem:[%s7235 + $0x10] sm:$0xff] %v7244
          %v7246 = vld [vmem:[%s7234 + $0x18] sm:$0xff]
          %7247 = vst [vmem:[%s7235 + $0x18] sm:$0xff] %v7246
          %v7248 = vld [vmem:[%s7234 + $0x20] sm:$0xff]
          %7249 = vst [vmem:[%s7235 + $0x20] sm:$0xff] %v7248
          %v7250 = vld [vmem:[%s7234 + $0x28] sm:$0xff]
          %7251 = vst [vmem:[%s7235 + $0x28] sm:$0xff] %v7250
          %v7252 = vld [vmem:[%s7234 + $0x30] sm:$0xff]
          %7253 = vst [vmem:[%s7235 + $0x30] sm:$0xff] %v7252
          %v7254 = vld [vmem:[%s7234 + $0x38] sm:$0xff]
          %7255 = vst [vmem:[%s7235 + $0x38] sm:$0xff] %v7254
        $region234: #{custom-call.2} parent=228 // loop_footer
          %s7256 = scalar_lea.vmem %s7234, 64
          %s7257 = scalar_lea.vmem %s7235, 64
          %v7258 = vld [vmem:[%s7234 + $0x40] sm:$0xff]
        $region235: #{custom-call.2} parent=228 // loop_footer_branch
          %7259 = sbr.rel target = $region231
        $region236: #{custom-call.2} parent=228 // loop_exit
          _
        // While loop
        $region237: #{custom-call.2} parent=228 // loop_pre_header
          _
        $region238: #{custom-call.2} parent=228 // loop_header
          %s7260 = sphi %s7234, %s7268
          %s7261 = sphi %s7235, %s7269
          %v7262 = vphi %v7236, %v7262
          %p7263 = scmp.gt.s32.totalorder %s7260, %s7232
        $region239: #{custom-call.2} parent=228 // loop_header_branch
          %7265 = sbr.rel (%p7263) target = $region243
        $region240: #{custom-call.2} parent=228 // loop_body
          %v7266 = vld [vmem:[%s7260] sm:$0xff]
          %7267 = vst [vmem:[%s7261] sm:$0xff] %v7266
        $region241: #{custom-call.2} parent=228 // loop_footer
          %s7268 = scalar_lea.vmem %s7260, 8
          %s7269 = scalar_lea.vmem %s7261, 8
        $region242: #{custom-call.2} parent=228 // loop_footer_branch
          %7270 = sbr.rel target = $region238
        $region243: #{custom-call.2} parent=228 // loop_exit
          _
      $region229: #{custom-call.2} parent=224 // pred_fallthru
        _
      %s7271 = sand.u32 128, 7
      %s7272 = sshllo.u32 0, %s7271
      %s7273 = smul.u32 %s7224, 128
      %s7274 = sshra.s32 %s7273, 4
      %s7275 = scalar_lea.vmem %s9, %s7274
      %s7276 = smul.u32 %s7224, 128
      %s7277 = sshra.s32 %s7276, 4
      %s7278 = scalar_lea.vmem [#allocation11], %s7277
      %v7279 = vld [vmem:[%s7278] sm:%s7272]
      %7280 = vst [vmem:[%s7275] sm:%s7272] %v7279
    $region225: #{custom-call.2} parent=1 // pred_fallthru
      _
    // Predicated region
    $region244: #{custom-call.2} parent=1 // pred_check
      _
    $region245: #{custom-call.2} parent=1 // pred_check_branch
      %7282 = sbr.rel (0) target = $region247
    $region246: #{custom-call.2} parent=1 // pred_region
      _
    $region247: #{custom-call.2} parent=1 // pred_fallthru
      _
    // Predicated region
    $region248: #{custom-call.2} parent=1 // pred_check
      _
    $region249: #{custom-call.2} parent=1 // pred_check_branch
      %7284 = sbr.rel (0) target = $region251
    $region250: #{custom-call.2} parent=1 // pred_region
      _
    $region251: #{custom-call.2} parent=1 // pred_fallthru
      _

// kernel: model_forward.3
$region0: #{model_forward.3}
  #allocation0 [shape = 'u32[]', space=smem, size = 0x4, offset = 0x4, fixed_abs, tag = 'smem constant byte address 0x4 - core index']
  #allocation1 [shape = 'u32[144,128]{1,0:T(1,128)}', space=vmem, size = 0x12000, scoped, tag = 'internal scratch']
  #allocation2 [shape = 'f32[256,256]{1,0:T(8,128)}', space=vmem, size = 0x40000, scoped, tag = 'scratch operand']
  %s0 = inlined_call_operand.vmem [shape: f32[16,256], index: 0, kind: input, shape index: {}, may-alias: {0,1}]
  %s1 = inlined_call_operand.vmem [shape: f32[16,256], index: 1, kind: input, shape index: {}, may-alias: {0,1}]
  %s2 = inlined_call_operand.vmem [shape: f32[256,256], index: 2, kind: output, shape index: {}]
  %s3 = sld [smem:[#allocation0]]
  $region26: #{model_forward.3} parent=0
    _
  %s5 = ssub.s32 1, %s3
  %s6 = scalar_select 0, %s5, %s3
  // Predicated region
  $region2: #{model_forward.3} parent=0 // pred_check
    _
  $region3: #{model_forward.3} parent=0 // pred_check_branch
    %8 = sbr.rel (0) target = $region5
  $region4: #{model_forward.3} parent=0 // pred_region
    _
  $region5: #{model_forward.3} parent=0 // pred_fallthru
    _
  // Predicated region
  $region6: #{model_forward.3} parent=0 // pred_check
    _
  $region7: #{model_forward.3} parent=0 // pred_check_branch
    %10 = sbr.rel (0) target = $region9
  $region8: #{model_forward.3} parent=0 // pred_region
    _
  $region9: #{model_forward.3} parent=0 // pred_fallthru
    _
  %p11 = scmp.eq.s32.totalorder 0, 0
  // Predicated region
  $region10: #{model_forward.3} parent=0 // pred_check
    %p12 = pneg %p11
  $region11: #{model_forward.3} parent=0 // pred_check_branch
    %14 = sbr.rel (%p12) target = $region13
  $region12: #{model_forward.3} parent=0 // pred_region
    %15 = vst [vmem:[#allocation2] sm:$0xff] 0.0
    %16 = vst [vmem:[#allocation2 + $0x8] sm:$0xff] 0.0
    %17 = vst [vmem:[#allocation2 + $0x10] sm:$0xff] 0.0
    %18 = vst [vmem:[#allocation2 + $0x18] sm:$0xff] 0.0
    %19 = vst [vmem:[#allocation2 + $0x20] sm:$0xff] 0.0
    %20 = vst [vmem:[#allocation2 + $0x28] sm:$0xff] 0.0
    %21 = vst [vmem:[#allocation2 + $0x30] sm:$0xff] 0.0
    %22 = vst [vmem:[#allocation2 + $0x38] sm:$0xff] 0.0
    %23 = vst [vmem:[#allocation2 + $0x40] sm:$0xff] 0.0
    %24 = vst [vmem:[#allocation2 + $0x48] sm:$0xff] 0.0
    %25 = vst [vmem:[#allocation2 + $0x50] sm:$0xff] 0.0
    %26 = vst [vmem:[#allocation2 + $0x58] sm:$0xff] 0.0
    %27 = vst [vmem:[#allocation2 + $0x60] sm:$0xff] 0.0
    %28 = vst [vmem:[#allocation2 + $0x68] sm:$0xff] 0.0
    %29 = vst [vmem:[#allocation2 + $0x70] sm:$0xff] 0.0
    %30 = vst [vmem:[#allocation2 + $0x78] sm:$0xff] 0.0
    %31 = vst [vmem:[#allocation2 + $0x80] sm:$0xff] 0.0
    %32 = vst [vmem:[#allocation2 + $0x88] sm:$0xff] 0.0
    %33 = vst [vmem:[#allocation2 + $0x90] sm:$0xff] 0.0
    %34 = vst [vmem:[#allocation2 + $0x98] sm:$0xff] 0.0
    %35 = vst [vmem:[#allocation2 + $0xa0] sm:$0xff] 0.0
    %36 = vst [vmem:[#allocation2 + $0xa8] sm:$0xff] 0.0
    %37 = vst [vmem:[#allocation2 + $0xb0] sm:$0xff] 0.0
    %38 = vst [vmem:[#allocation2 + $0xb8] sm:$0xff] 0.0
    %39 = vst [vmem:[#allocation2 + $0xc0] sm:$0xff] 0.0
    %40 = vst [vmem:[#allocation2 + $0xc8] sm:$0xff] 0.0
    %41 = vst [vmem:[#allocation2 + $0xd0] sm:$0xff] 0.0
    %42 = vst [vmem:[#allocation2 + $0xd8] sm:$0xff] 0.0
    %43 = vst [vmem:[#allocation2 + $0xe0] sm:$0xff] 0.0
    %44 = vst [vmem:[#allocation2 + $0xe8] sm:$0xff] 0.0
    %45 = vst [vmem:[#allocation2 + $0xf0] sm:$0xff] 0.0
    %46 = vst [vmem:[#allocation2 + $0xf8] sm:$0xff] 0.0
    %47 = vst [vmem:[#allocation2 + $0x100] sm:$0xff] 0.0
    %48 = vst [vmem:[#allocation2 + $0x108] sm:$0xff] 0.0
    %49 = vst [vmem:[#allocation2 + $0x110] sm:$0xff] 0.0
    %50 = vst [vmem:[#allocation2 + $0x118] sm:$0xff] 0.0
    %51 = vst [vmem:[#allocation2 + $0x120] sm:$0xff] 0.0
    %52 = vst [vmem:[#allocation2 + $0x128] sm:$0xff] 0.0
    %53 = vst [vmem:[#allocation2 + $0x130] sm:$0xff] 0.0
    %54 = vst [vmem:[#allocation2 + $0x138] sm:$0xff] 0.0
    %55 = vst [vmem:[#allocation2 + $0x140] sm:$0xff] 0.0
    %56 = vst [vmem:[#allocation2 + $0x148] sm:$0xff] 0.0
    %57 = vst [vmem:[#allocation2 + $0x150] sm:$0xff] 0.0
    %58 = vst [vmem:[#allocation2 + $0x158] sm:$0xff] 0.0
    %59 = vst [vmem:[#allocation2 + $0x160] sm:$0xff] 0.0
    %60 = vst [vmem:[#allocation2 + $0x168] sm:$0xff] 0.0
    %61 = vst [vmem:[#allocation2 + $0x170] sm:$0xff] 0.0
    %62 = vst [vmem:[#allocation2 + $0x178] sm:$0xff] 0.0
    %63 = vst [vmem:[#allocation2 + $0x180] sm:$0xff] 0.0
    %64 = vst [vmem:[#allocation2 + $0x188] sm:$0xff] 0.0
    %65 = vst [vmem:[#allocation2 + $0x190] sm:$0xff] 0.0
    %66 = vst [vmem:[#allocation2 + $0x198] sm:$0xff] 0.0
    %67 = vst [vmem:[#allocation2 + $0x1a0] sm:$0xff] 0.0
    %68 = vst [vmem:[#allocation2 + $0x1a8] sm:$0xff] 0.0
    %69 = vst [vmem:[#allocation2 + $0x1b0] sm:$0xff] 0.0
    %70 = vst [vmem:[#allocation2 + $0x1b8] sm:$0xff] 0.0
    %71 = vst [vmem:[#allocation2 + $0x1c0] sm:$0xff] 0.0
    %72 = vst [vmem:[#allocation2 + $0x1c8] sm:$0xff] 0.0
    %73 = vst [vmem:[#allocation2 + $0x1d0] sm:$0xff] 0.0
    %74 = vst [vmem:[#allocation2 + $0x1d8] sm:$0xff] 0.0
    %75 = vst [vmem:[#allocation2 + $0x1e0] sm:$0xff] 0.0
    %76 = vst [vmem:[#allocation2 + $0x1e8] sm:$0xff] 0.0
    %77 = vst [vmem:[#allocation2 + $0x1f0] sm:$0xff] 0.0
    %78 = vst [vmem:[#allocation2 + $0x1f8] sm:$0xff] 0.0
  $region13: #{model_forward.3} parent=0 // pred_fallthru
    _
  %v79 = vld [vmem:[#allocation2] sm:$0xff]
  %v80 = vld [vmem:[#allocation2 + $0x8] sm:$0xff]
  %v81 = vld [vmem:[#allocation2 + $0x10] sm:$0xff]
  %v82 = vld [vmem:[#allocation2 + $0x18] sm:$0xff]
  %v83 = vld [vmem:[#allocation2 + $0x20] sm:$0xff]
  %v84 = vld [vmem:[#allocation2 + $0x28] sm:$0xff]
  %v85 = vld [vmem:[#allocation2 + $0x30] sm:$0xff]
  %v86 = vld [vmem:[#allocation2 + $0x38] sm:$0xff]
  %v87 = vld [vmem:[#allocation2 + $0x40] sm:$0xff]
  %v88 = vld [vmem:[#allocation2 + $0x48] sm:$0xff]
  %v89 = vld [vmem:[#allocation2 + $0x50] sm:$0xff]
  %v90 = vld [vmem:[#allocation2 + $0x58] sm:$0xff]
  %v91 = vld [vmem:[#allocation2 + $0x60] sm:$0xff]
  %v92 = vld [vmem:[#allocation2 + $0x68] sm:$0xff]
  %v93 = vld [vmem:[#allocation2 + $0x70] sm:$0xff]
  %v94 = vld [vmem:[#allocation2 + $0x78] sm:$0xff]
  %v95 = vld [vmem:[#allocation2 + $0x80] sm:$0xff]
  %v96 = vld [vmem:[#allocation2 + $0x88] sm:$0xff]
  %v97 = vld [vmem:[#allocation2 + $0x90] sm:$0xff]
  %v98 = vld [vmem:[#allocation2 + $0x98] sm:$0xff]
  %v99 = vld [vmem:[#allocation2 + $0xa0] sm:$0xff]
  %v100 = vld [vmem:[#allocation2 + $0xa8] sm:$0xff]
  %v101 = vld [vmem:[#allocation2 + $0xb0] sm:$0xff]
  %v102 = vld [vmem:[#allocation2 + $0xb8] sm:$0xff]
  %v103 = vld [vmem:[#allocation2 + $0xc0] sm:$0xff]
  %v104 = vld [vmem:[#allocation2 + $0xc8] sm:$0xff]
  %v105 = vld [vmem:[#allocation2 + $0xd0] sm:$0xff]
  %v106 = vld [vmem:[#allocation2 + $0xd8] sm:$0xff]
  %v107 = vld [vmem:[#allocation2 + $0xe0] sm:$0xff]
  %v108 = vld [vmem:[#allocation2 + $0xe8] sm:$0xff]
  %v109 = vld [vmem:[#allocation2 + $0xf0] sm:$0xff]
  %v110 = vld [vmem:[#allocation2 + $0xf8] sm:$0xff]
  %v111 = vld [vmem:[#allocation2 + $0x100] sm:$0xff]
  %v112 = vld [vmem:[#allocation2 + $0x108] sm:$0xff]
  %v113 = vld [vmem:[#allocation2 + $0x110] sm:$0xff]
  %v114 = vld [vmem:[#allocation2 + $0x118] sm:$0xff]
  %v115 = vld [vmem:[#allocation2 + $0x120] sm:$0xff]
  %v116 = vld [vmem:[#allocation2 + $0x128] sm:$0xff]
  %v117 = vld [vmem:[#allocation2 + $0x130] sm:$0xff]
  %v118 = vld [vmem:[#allocation2 + $0x138] sm:$0xff]
  %v119 = vld [vmem:[#allocation2 + $0x140] sm:$0xff]
  %v120 = vld [vmem:[#allocation2 + $0x148] sm:$0xff]
  %v121 = vld [vmem:[#allocation2 + $0x150] sm:$0xff]
  %v122 = vld [vmem:[#allocation2 + $0x158] sm:$0xff]
  %v123 = vld [vmem:[#allocation2 + $0x160] sm:$0xff]
  %v124 = vld [vmem:[#allocation2 + $0x168] sm:$0xff]
  %v125 = vld [vmem:[#allocation2 + $0x170] sm:$0xff]
  %v126 = vld [vmem:[#allocation2 + $0x178] sm:$0xff]
  %v127 = vld [vmem:[#allocation2 + $0x180] sm:$0xff]
  %v128 = vld [vmem:[#allocation2 + $0x188] sm:$0xff]
  %v129 = vld [vmem:[#allocation2 + $0x190] sm:$0xff]
  %v130 = vld [vmem:[#allocation2 + $0x198] sm:$0xff]
  %v131 = vld [vmem:[#allocation2 + $0x1a0] sm:$0xff]
  %v132 = vld [vmem:[#allocation2 + $0x1a8] sm:$0xff]
  %v133 = vld [vmem:[#allocation2 + $0x1b0] sm:$0xff]
  %v134 = vld [vmem:[#allocation2 + $0x1b8] sm:$0xff]
  %v135 = vld [vmem:[#allocation2 + $0x1c0] sm:$0xff]
  %v136 = vld [vmem:[#allocation2 + $0x1c8] sm:$0xff]
  %v137 = vld [vmem:[#allocation2 + $0x1d0] sm:$0xff]
  %v138 = vld [vmem:[#allocation2 + $0x1d8] sm:$0xff]
  %v139 = vld [vmem:[#allocation2 + $0x1e0] sm:$0xff]
  %v140 = vld [vmem:[#allocation2 + $0x1e8] sm:$0xff]
  %v141 = vld [vmem:[#allocation2 + $0x1f0] sm:$0xff]
  %v142 = vld [vmem:[#allocation2 + $0x1f8] sm:$0xff]
  %v143 = vld [vmem:[%s0] sm:$0xff]
  %v144 = vld [vmem:[%s0 + $0x8] sm:$0xff]
  %v145 = vld [vmem:[%s0 + $0x10] sm:$0xff]
  %v146 = vld [vmem:[%s0 + $0x18] sm:$0xff]
  %v147 = vld [vmem:[%s1] sm:$0xff]
  %v148 = vld [vmem:[%s1 + $0x8] sm:$0xff]
  %v149 = vld [vmem:[%s1 + $0x10] sm:$0xff]
  %v150 = vld [vmem:[%s1 + $0x18] sm:$0xff]
  %151 = vxpose.xlu0.b32.start [1/16] %v143, 128
  %152 = vxpose.xlu0.b32.cont [2/16] %v145, 128
  %153 = vxpose.xlu0.b32.cont [3/16] 0.0, 128
  %154 = vxpose.xlu0.b32.cont [4/16] 0.0, 128
  %155 = vxpose.xlu0.b32.cont [5/16] 0.0, 128
  %156 = vxpose.xlu0.b32.cont [6/16] 0.0, 128
  %157 = vxpose.xlu0.b32.cont [7/16] 0.0, 128
  %158 = vxpose.xlu0.b32.cont [8/16] 0.0, 128
  %159 = vxpose.xlu0.b32.cont [9/16] 0.0, 128
  %160 = vxpose.xlu0.b32.cont [10/16] 0.0, 128
  %161 = vxpose.xlu0.b32.cont [11/16] 0.0, 128
  %162 = vxpose.xlu0.b32.cont [12/16] 0.0, 128
  %163 = vxpose.xlu0.b32.cont [13/16] 0.0, 128
  %164 = vxpose.xlu0.b32.cont [14/16] 0.0, 128
  %165 = vxpose.xlu0.b32.cont [15/16] 0.0, 128
  %166 = vxpose.xlu0.b32.end [16/16] 0.0, 128
  %v167 = vpop.trf.xlu0
  %v168 = vpop.trf.xlu0
  %v169 = vpop.trf.xlu0
  %v170 = vpop.trf.xlu0
  %v171 = vpop.trf.xlu0
  %v172 = vpop.trf.xlu0
  %v173 = vpop.trf.xlu0
  %v174 = vpop.trf.xlu0
  %v175 = vpop.trf.xlu0
  %v176 = vpop.trf.xlu0
  %v177 = vpop.trf.xlu0
  %v178 = vpop.trf.xlu0
  %v179 = vpop.trf.xlu0
  %v180 = vpop.trf.xlu0
  %v181 = vpop.trf.xlu0
  %v182 = vpop.trf.xlu0
  %183 = vxpose.xlu0.b32.start [1/16] %v144, 128
  %184 = vxpose.xlu0.b32.cont [2/16] %v146, 128
  %185 = vxpose.xlu0.b32.cont [3/16] 0.0, 128
  %186 = vxpose.xlu0.b32.cont [4/16] 0.0, 128
  %187 = vxpose.xlu0.b32.cont [5/16] 0.0, 128
  %188 = vxpose.xlu0.b32.cont [6/16] 0.0, 128
  %189 = vxpose.xlu0.b32.cont [7/16] 0.0, 128
  %190 = vxpose.xlu0.b32.cont [8/16] 0.0, 128
  %191 = vxpose.xlu0.b32.cont [9/16] 0.0, 128
  %192 = vxpose.xlu0.b32.cont [10/16] 0.0, 128
  %193 = vxpose.xlu0.b32.cont [11/16] 0.0, 128
  %194 = vxpose.xlu0.b32.cont [12/16] 0.0, 128
  %195 = vxpose.xlu0.b32.cont [13/16] 0.0, 128
  %196 = vxpose.xlu0.b32.cont [14/16] 0.0, 128
  %197 = vxpose.xlu0.b32.cont [15/16] 0.0, 128
  %198 = vxpose.xlu0.b32.end [16/16] 0.0, 128
  %v199 = vpop.trf.xlu0
  %v200 = vpop.trf.xlu0
  %v201 = vpop.trf.xlu0
  %v202 = vpop.trf.xlu0
  %v203 = vpop.trf.xlu0
  %v204 = vpop.trf.xlu0
  %v205 = vpop.trf.xlu0
  %v206 = vpop.trf.xlu0
  %v207 = vpop.trf.xlu0
  %v208 = vpop.trf.xlu0
  %v209 = vpop.trf.xlu0
  %v210 = vpop.trf.xlu0
  %v211 = vpop.trf.xlu0
  %v212 = vpop.trf.xlu0
  %v213 = vpop.trf.xlu0
  %v214 = vpop.trf.xlu0
  %vm215 = vcmask 130048
  %v217 = vsel %vm215, %v167, 0
  %v220 = vsel %vm215, %v168, 0
  %v223 = vsel %vm215, %v169, 0
  %v226 = vsel %vm215, %v170, 0
  %v229 = vsel %vm215, %v171, 0
  %v232 = vsel %vm215, %v172, 0
  %v235 = vsel %vm215, %v173, 0
  %v238 = vsel %vm215, %v174, 0
  %v241 = vsel %vm215, %v175, 0
  %v244 = vsel %vm215, %v176, 0
  %v247 = vsel %vm215, %v177, 0
  %v250 = vsel %vm215, %v178, 0
  %v253 = vsel %vm215, %v179, 0
  %v256 = vsel %vm215, %v180, 0
  %v259 = vsel %vm215, %v181, 0
  %v262 = vsel %vm215, %v182, 0
  %v265 = vsel %vm215, %v199, 0
  %v268 = vsel %vm215, %v200, 0
  %v271 = vsel %vm215, %v201, 0
  %v274 = vsel %vm215, %v202, 0
  %v277 = vsel %vm215, %v203, 0
  %v280 = vsel %vm215, %v204, 0
  %v283 = vsel %vm215, %v205, 0
  %v286 = vsel %vm215, %v206, 0
  %v289 = vsel %vm215, %v207, 0
  %v292 = vsel %vm215, %v208, 0
  %v295 = vsel %vm215, %v209, 0
  %v298 = vsel %vm215, %v210, 0
  %v301 = vsel %vm215, %v211, 0
  %v304 = vsel %vm215, %v212, 0
  %v307 = vsel %vm215, %v213, 0
  %v310 = vsel %vm215, %v214, 0
  %312 = vmatprep.subr.mxu0 %v148
  %313 = vmatpush1.msra.mxu0 %v147
  %314 = vmatprep.subr.mxu0 %v150
  %315 = vmatpush1.msra.mxu0 %v149
  %316 = vmatprep.subr.mxu0 0.0
  %317 = vmatpush1.msra.mxu0 0.0
  %318 = vmatprep.subr.mxu0 0.0
  %319 = vmatpush1.msra.mxu0 0.0
  %320 = vmatprep.subr.mxu0 0.0
  %321 = vmatpush1.msra.mxu0 0.0
  %322 = vmatprep.subr.mxu0 0.0
  %323 = vmatpush1.msra.mxu0 0.0
  %324 = vmatprep.subr.mxu0 0.0
  %325 = vmatpush1.msra.mxu0 0.0
  %326 = vmatprep.subr.mxu0 0.0
  %327 = vmatpush1.msra.mxu0 0.0
  %328 = vmatprep.subr.mxu0 0.0
  %329 = vmatpush1.msra.mxu0 0.0
  %330 = vmatprep.subr.mxu0 0.0
  %331 = vmatpush1.msra.mxu0 0.0
  %332 = vmatprep.subr.mxu0 0.0
  %333 = vmatpush1.msra.mxu0 0.0
  %334 = vmatprep.subr.mxu0 0.0
  %335 = vmatpush1.msra.mxu0 0.0
  %336 = vmatprep.subr.mxu0 0.0
  %337 = vmatpush1.msra.mxu0 0.0
  %338 = vmatprep.subr.mxu0 0.0
  %339 = vmatpush1.msra.mxu0 0.0
  %340 = vmatprep.subr.mxu0 0.0
  %341 = vmatpush1.msra.mxu0 0.0
  %342 = vmatprep.subr.mxu0 0.0
  %343 = vmatpush1.msra.mxu0 0.0
  %344 = vmatprep.subr.mxu0 0.0
  %345 = vmatpush1.msra.mxu0 0.0
  %346 = vmatprep.subr.mxu0 0.0
  %347 = vmatpush1.msra.mxu0 0.0
  %348 = vmatprep.subr.mxu0 0.0
  %349 = vmatpush1.msra.mxu0 0.0
  %350 = vmatprep.subr.mxu0 0.0
  %351 = vmatpush1.msra.mxu0 0.0
  %352 = vmatprep.subr.mxu0 0.0
  %353 = vmatpush1.msra.mxu0 0.0
  %354 = vmatprep.subr.mxu0 0.0
  %355 = vmatpush1.msra.mxu0 0.0
  %356 = vmatprep.subr.mxu0 0.0
  %357 = vmatpush1.msra.mxu0 0.0
  %358 = vmatprep.subr.mxu0 0.0
  %359 = vmatpush1.msra.mxu0 0.0
  %360 = vmatprep.subr.mxu0 0.0
  %361 = vmatpush1.msra.mxu0 0.0
  %362 = vmatprep.subr.mxu0 0.0
  %363 = vmatpush1.msra.mxu0 0.0
  %364 = vmatprep.subr.mxu0 0.0
  %365 = vmatpush1.msra.mxu0 0.0
  %366 = vmatprep.subr.mxu0 0.0
  %367 = vmatpush1.msra.mxu0 0.0
  %368 = vmatprep.subr.mxu0 0.0
  %369 = vmatpush1.msra.mxu0 0.0
  %370 = vmatprep.subr.mxu0 0.0
  %371 = vmatpush1.msra.mxu0 0.0
  %372 = vmatprep.subr.mxu0 0.0
  %373 = vmatpush1.msra.mxu0 0.0
  %374 = vmatprep.subr.mxu0 0.0
  %375 = vmatpush1.msra.mxu0 0.0
  %376 = vmatprep.mubr.f32.mxu0 0.0
  %377 = vmatmul.mubr.f32.gmra.mrb[0].mxu0 %v217
  %v378 = vpop.f32.mrb[0].mxu0
  %v379 = vadd.f32 0.0, %v378
  %v380 = vpop.f32.mrb[0].mxu0
  %v381 = vadd.f32 0.0, %v380
  %382 = vmatprep.mubr.f32.mxu0 0.0
  %383 = vmatmul.mubr.f32.gmra.mrb[0].mxu0 %v220
  %v384 = vpop.f32.mrb[0].mxu0
  %v385 = vadd.f32 0.0, %v384
  %v386 = vpop.f32.mrb[0].mxu0
  %v387 = vadd.f32 0.0, %v386
  %388 = vmatprep.mubr.f32.mxu0 0.0
  %389 = vmatmul.mubr.f32.gmra.mrb[0].mxu0 %v223
  %v390 = vpop.f32.mrb[0].mxu0
  %v391 = vadd.f32 0.0, %v390
  %v392 = vpop.f32.mrb[0].mxu0
  %v393 = vadd.f32 0.0, %v392
  %394 = vmatprep.mubr.f32.mxu0 0.0
  %395 = vmatmul.mubr.f32.gmra.mrb[0].mxu0 %v226
  %v396 = vpop.f32.mrb[0].mxu0
  %v397 = vadd.f32 0.0, %v396
  %v398 = vpop.f32.mrb[0].mxu0
  %v399 = vadd.f32 0.0, %v398
  %400 = vmatprep.mubr.f32.mxu0 0.0
  %401 = vmatmul.mubr.f32.gmra.mrb[0].mxu0 %v229
  %v402 = vpop.f32.mrb[0].mxu0
  %v403 = vadd.f32 0.0, %v402
  %v404 = vpop.f32.mrb[0].mxu0
  %v405 = vadd.f32 0.0, %v404
  %406 = vmatprep.mubr.f32.mxu0 0.0
  %407 = vmatmul.mubr.f32.gmra.mrb[0].mxu0 %v232
  %v408 = vpop.f32.mrb[0].mxu0
  %v409 = vadd.f32 0.0, %v408
  %v410 = vpop.f32.mrb[0].mxu0
  %v411 = vadd.f32 0.0, %v410
  %412 = vmatprep.mubr.f32.mxu0 0.0
  %413 = vmatmul.mubr.f32.gmra.mrb[0].mxu0 %v235
  %v414 = vpop.f32.mrb[0].mxu0
  %v415 = vadd.f32 0.0, %v414
  %v416 = vpop.f32.mrb[0].mxu0
  %v417 = vadd.f32 0.0, %v416
  %418 = vmatprep.mubr.f32.mxu0 0.0
  %419 = vmatmul.mubr.f32.gmra.mrb[0].mxu0 %v238
  %v420 = vpop.f32.mrb[0].mxu0
  %v421 = vadd.f32 0.0, %v420
  %v422 = vpop.f32.mrb[0].mxu0
  %v423 = vadd.f32 0.0, %v422
  %424 = vmatprep.mubr.f32.mxu0 0.0
  %425 = vmatmul.mubr.f32.gmra.mrb[0].mxu0 %v241
  %v426 = vpop.f32.mrb[0].mxu0
  %v427 = vadd.f32 0.0, %v426
  %v428 = vpop.f32.mrb[0].mxu0
  %v429 = vadd.f32 0.0, %v428
  %430 = vmatprep.mubr.f32.mxu0 0.0
  %431 = vmatmul.mubr.f32.gmra.mrb[0].mxu0 %v244
  %v432 = vpop.f32.mrb[0].mxu0
  %v433 = vadd.f32 0.0, %v432
  %v434 = vpop.f32.mrb[0].mxu0
  %v435 = vadd.f32 0.0, %v434
  %436 = vmatprep.mubr.f32.mxu0 0.0
  %437 = vmatmul.mubr.f32.gmra.mrb[0].mxu0 %v247
  %v438 = vpop.f32.mrb[0].mxu0
  %v439 = vadd.f32 0.0, %v438
  %v440 = vpop.f32.mrb[0].mxu0
  %v441 = vadd.f32 0.0, %v440
  %442 = vmatprep.mubr.f32.mxu0 0.0
  %443 = vmatmul.mubr.f32.gmra.mrb[0].mxu0 %v250
  %v444 = vpop.f32.mrb[0].mxu0
  %v445 = vadd.f32 0.0, %v444
  %v446 = vpop.f32.mrb[0].mxu0
  %v447 = vadd.f32 0.0, %v446
  %448 = vmatprep.mubr.f32.mxu0 0.0
  %449 = vmatmul.mubr.f32.gmra.mrb[0].mxu0 %v253
  %v450 = vpop.f32.mrb[0].mxu0
  %v451 = vadd.f32 0.0, %v450
  %v452 = vpop.f32.mrb[0].mxu0
  %v453 = vadd.f32 0.0, %v452
  %454 = vmatprep.mubr.f32.mxu0 0.0
  %455 = vmatmul.mubr.f32.gmra.mrb[0].mxu0 %v256
  %v456 = vpop.f32.mrb[0].mxu0
  %v457 = vadd.f32 0.0, %v456
  %v458 = vpop.f32.mrb[0].mxu0
  %v459 = vadd.f32 0.0, %v458
  %460 = vmatprep.mubr.f32.mxu0 0.0
  %461 = vmatmul.mubr.f32.gmra.mrb[0].mxu0 %v259
  %v462 = vpop.f32.mrb[0].mxu0
  %v463 = vadd.f32 0.0, %v462
  %v464 = vpop.f32.mrb[0].mxu0
  %v465 = vadd.f32 0.0, %v464
  %466 = vmatprep.mubr.f32.mxu0 0.0
  %467 = vmatmul.mubr.f32.gmra.mrb[0].mxu0 %v262
  %v468 = vpop.f32.mrb[0].mxu0
  %v469 = vadd.f32 0.0, %v468
  %v470 = vpop.f32.mrb[0].mxu0
  %v471 = vadd.f32 0.0, %v470
  %472 = vmatprep.mubr.f32.mxu0 0.0
  %473 = vmatmul.mubr.f32.gmra.mrb[0].mxu0 %v265
  %v474 = vpop.f32.mrb[0].mxu0
  %v475 = vadd.f32 0.0, %v474
  %v476 = vpop.f32.mrb[0].mxu0
  %v477 = vadd.f32 0.0, %v476
  %478 = vmatprep.mubr.f32.mxu0 0.0
  %479 = vmatmul.mubr.f32.gmra.mrb[0].mxu0 %v268
  %v480 = vpop.f32.mrb[0].mxu0
  %v481 = vadd.f32 0.0, %v480
  %v482 = vpop.f32.mrb[0].mxu0
  %v483 = vadd.f32 0.0, %v482
  %484 = vmatprep.mubr.f32.mxu0 0.0
  %485 = vmatmul.mubr.f32.gmra.mrb[0].mxu0 %v271
  %v486 = vpop.f32.mrb[0].mxu0
  %v487 = vadd.f32 0.0, %v486
  %v488 = vpop.f32.mrb[0].mxu0
  %v489 = vadd.f32 0.0, %v488
  %490 = vmatprep.mubr.f32.mxu0 0.0
  %491 = vmatmul.mubr.f32.gmra.mrb[0].mxu0 %v274
  %v492 = vpop.f32.mrb[0].mxu0
  %v493 = vadd.f32 0.0, %v492
  %v494 = vpop.f32.mrb[0].mxu0
  %v495 = vadd.f32 0.0, %v494
  %496 = vmatprep.mubr.f32.mxu0 0.0
  %497 = vmatmul.mubr.f32.gmra.mrb[0].mxu0 %v277
  %v498 = vpop.f32.mrb[0].mxu0
  %v499 = vadd.f32 0.0, %v498
  %v500 = vpop.f32.mrb[0].mxu0
  %v501 = vadd.f32 0.0, %v500
  %502 = vmatprep.mubr.f32.mxu0 0.0
  %503 = vmatmul.mubr.f32.gmra.mrb[0].mxu0 %v280
  %v504 = vpop.f32.mrb[0].mxu0
  %v505 = vadd.f32 0.0, %v504
  %v506 = vpop.f32.mrb[0].mxu0
  %v507 = vadd.f32 0.0, %v506
  %508 = vmatprep.mubr.f32.mxu0 0.0
  %509 = vmatmul.mubr.f32.gmra.mrb[0].mxu0 %v283
  %v510 = vpop.f32.mrb[0].mxu0
  %v511 = vadd.f32 0.0, %v510
  %v512 = vpop.f32.mrb[0].mxu0
  %v513 = vadd.f32 0.0, %v512
  %514 = vmatprep.mubr.f32.mxu0 0.0
  %515 = vmatmul.mubr.f32.gmra.mrb[0].mxu0 %v286
  %v516 = vpop.f32.mrb[0].mxu0
  %v517 = vadd.f32 0.0, %v516
  %v518 = vpop.f32.mrb[0].mxu0
  %v519 = vadd.f32 0.0, %v518
  %520 = vmatprep.mubr.f32.mxu0 0.0
  %521 = vmatmul.mubr.f32.gmra.mrb[0].mxu0 %v289
  %v522 = vpop.f32.mrb[0].mxu0
  %v523 = vadd.f32 0.0, %v522
  %v524 = vpop.f32.mrb[0].mxu0
  %v525 = vadd.f32 0.0, %v524
  %526 = vmatprep.mubr.f32.mxu0 0.0
  %527 = vmatmul.mubr.f32.gmra.mrb[0].mxu0 %v292
  %v528 = vpop.f32.mrb[0].mxu0
  %v529 = vadd.f32 0.0, %v528
  %v530 = vpop.f32.mrb[0].mxu0
  %v531 = vadd.f32 0.0, %v530
  %532 = vmatprep.mubr.f32.mxu0 0.0
  %533 = vmatmul.mubr.f32.gmra.mrb[0].mxu0 %v295
  %v534 = vpop.f32.mrb[0].mxu0
  %v535 = vadd.f32 0.0, %v534
  %v536 = vpop.f32.mrb[0].mxu0
  %v537 = vadd.f32 0.0, %v536
  %538 = vmatprep.mubr.f32.mxu0 0.0
  %539 = vmatmul.mubr.f32.gmra.mrb[0].mxu0 %v298
  %v540 = vpop.f32.mrb[0].mxu0
  %v541 = vadd.f32 0.0, %v540
  %v542 = vpop.f32.mrb[0].mxu0
  %v543 = vadd.f32 0.0, %v542
  %544 = vmatprep.mubr.f32.mxu0 0.0
  %545 = vmatmul.mubr.f32.gmra.mrb[0].mxu0 %v301
  %v546 = vpop.f32.mrb[0].mxu0
  %v547 = vadd.f32 0.0, %v546
  %v548 = vpop.f32.mrb[0].mxu0
  %v549 = vadd.f32 0.0, %v548
  %550 = vmatprep.mubr.f32.mxu0 0.0
  %551 = vmatmul.mubr.f32.gmra.mrb[0].mxu0 %v304
  %v552 = vpop.f32.mrb[0].mxu0
  %v553 = vadd.f32 0.0, %v552
  %v554 = vpop.f32.mrb[0].mxu0
  %v555 = vadd.f32 0.0, %v554
  %556 = vmatprep.mubr.f32.mxu0 0.0
  %557 = vmatmul.mubr.f32.gmra.mrb[0].mxu0 %v307
  %v558 = vpop.f32.mrb[0].mxu0
  %v559 = vadd.f32 0.0, %v558
  %v560 = vpop.f32.mrb[0].mxu0
  %v561 = vadd.f32 0.0, %v560
  %562 = vmatprep.mubr.f32.mxu0 0.0
  %563 = vmatmul.mubr.f32.gmra.mrb[0].mxu0 %v310
  %v564 = vpop.f32.mrb[0].mxu0
  %v565 = vadd.f32 0.0, %v564
  %v566 = vpop.f32.mrb[0].mxu0
  %v567 = vadd.f32 0.0, %v566
  %568 = vdwg.mxu0
  %v569 = vadd.f32 %v79, %v379
  %v570 = vadd.f32 %v80, %v381
  %v571 = vadd.f32 %v81, %v385
  %v572 = vadd.f32 %v82, %v387
  %v573 = vadd.f32 %v83, %v391
  %v574 = vadd.f32 %v84, %v393
  %v575 = vadd.f32 %v85, %v397
  %v576 = vadd.f32 %v86, %v399
  %v577 = vadd.f32 %v87, %v403
  %v578 = vadd.f32 %v88, %v405
  %v579 = vadd.f32 %v89, %v409
  %v580 = vadd.f32 %v90, %v411
  %v581 = vadd.f32 %v91, %v415
  %v582 = vadd.f32 %v92, %v417
  %v583 = vadd.f32 %v93, %v421
  %v584 = vadd.f32 %v94, %v423
  %v585 = vadd.f32 %v95, %v427
  %v586 = vadd.f32 %v96, %v429
  %v587 = vadd.f32 %v97, %v433
  %v588 = vadd.f32 %v98, %v435
  %v589 = vadd.f32 %v99, %v439
  %v590 = vadd.f32 %v100, %v441
  %v591 = vadd.f32 %v101, %v445
  %v592 = vadd.f32 %v102, %v447
  %v593 = vadd.f32 %v103, %v451
  %v594 = vadd.f32 %v104, %v453
  %v595 = vadd.f32 %v105, %v457
  %v596 = vadd.f32 %v106, %v459
  %v597 = vadd.f32 %v107, %v463
  %v598 = vadd.f32 %v108, %v465
  %v599 = vadd.f32 %v109, %v469
  %v600 = vadd.f32 %v110, %v471
  %v601 = vadd.f32 %v111, %v475
  %v602 = vadd.f32 %v112, %v477
  %v603 = vadd.f32 %v113, %v481
  %v604 = vadd.f32 %v114, %v483
  %v605 = vadd.f32 %v115, %v487
  %v606 = vadd.f32 %v116, %v489
  %v607 = vadd.f32 %v117, %v493
  %v608 = vadd.f32 %v118, %v495
  %v609 = vadd.f32 %v119, %v499
  %v610 = vadd.f32 %v120, %v501
  %v611 = vadd.f32 %v121, %v505
  %v612 = vadd.f32 %v122, %v507
  %v613 = vadd.f32 %v123, %v511
  %v614 = vadd.f32 %v124, %v513
  %v615 = vadd.f32 %v125, %v517
  %v616 = vadd.f32 %v126, %v519
  %v617 = vadd.f32 %v127, %v523
  %v618 = vadd.f32 %v128, %v525
  %v619 = vadd.f32 %v129, %v529
  %v620 = vadd.f32 %v130, %v531
  %v621 = vadd.f32 %v131, %v535
  %v622 = vadd.f32 %v132, %v537
  %v623 = vadd.f32 %v133, %v541
  %v624 = vadd.f32 %v134, %v543
  %v625 = vadd.f32 %v135, %v547
  %v626 = vadd.f32 %v136, %v549
  %v627 = vadd.f32 %v137, %v553
  %v628 = vadd.f32 %v138, %v555
  %v629 = vadd.f32 %v139, %v559
  %v630 = vadd.f32 %v140, %v561
  %v631 = vadd.f32 %v141, %v565
  %v632 = vadd.f32 %v142, %v567
  %633 = vst [vmem:[#allocation2] sm:$0xff] %v569
  %634 = vst [vmem:[#allocation2 + $0x8] sm:$0xff] %v570
  %635 = vst [vmem:[#allocation2 + $0x10] sm:$0xff] %v571
  %636 = vst [vmem:[#allocation2 + $0x18] sm:$0xff] %v572
  %637 = vst [vmem:[#allocation2 + $0x20] sm:$0xff] %v573
  %638 = vst [vmem:[#allocation2 + $0x28] sm:$0xff] %v574
  %639 = vst [vmem:[#allocation2 + $0x30] sm:$0xff] %v575
  %640 = vst [vmem:[#allocation2 + $0x38] sm:$0xff] %v576
  %641 = vst [vmem:[#allocation2 + $0x40] sm:$0xff] %v577
  %642 = vst [vmem:[#allocation2 + $0x48] sm:$0xff] %v578
  %643 = vst [vmem:[#allocation2 + $0x50] sm:$0xff] %v579
  %644 = vst [vmem:[#allocation2 + $0x58] sm:$0xff] %v580
  %645 = vst [vmem:[#allocation2 + $0x60] sm:$0xff] %v581
  %646 = vst [vmem:[#allocation2 + $0x68] sm:$0xff] %v582
  %647 = vst [vmem:[#allocation2 + $0x70] sm:$0xff] %v583
  %648 = vst [vmem:[#allocation2 + $0x78] sm:$0xff] %v584
  %649 = vst [vmem:[#allocation2 + $0x80] sm:$0xff] %v585
  %650 = vst [vmem:[#allocation2 + $0x88] sm:$0xff] %v586
  %651 = vst [vmem:[#allocation2 + $0x90] sm:$0xff] %v587
  %652 = vst [vmem:[#allocation2 + $0x98] sm:$0xff] %v588
  %653 = vst [vmem:[#allocation2 + $0xa0] sm:$0xff] %v589
  %654 = vst [vmem:[#allocation2 + $0xa8] sm:$0xff] %v590
  %655 = vst [vmem:[#allocation2 + $0xb0] sm:$0xff] %v591
  %656 = vst [vmem:[#allocation2 + $0xb8] sm:$0xff] %v592
  %657 = vst [vmem:[#allocation2 + $0xc0] sm:$0xff] %v593
  %658 = vst [vmem:[#allocation2 + $0xc8] sm:$0xff] %v594
  %659 = vst [vmem:[#allocation2 + $0xd0] sm:$0xff] %v595
  %660 = vst [vmem:[#allocation2 + $0xd8] sm:$0xff] %v596
  %661 = vst [vmem:[#allocation2 + $0xe0] sm:$0xff] %v597
  %662 = vst [vmem:[#allocation2 + $0xe8] sm:$0xff] %v598
  %663 = vst [vmem:[#allocation2 + $0xf0] sm:$0xff] %v599
  %664 = vst [vmem:[#allocation2 + $0xf8] sm:$0xff] %v600
  %665 = vst [vmem:[#allocation2 + $0x100] sm:$0xff] %v601
  %666 = vst [vmem:[#allocation2 + $0x108] sm:$0xff] %v602
  %667 = vst [vmem:[#allocation2 + $0x110] sm:$0xff] %v603
  %668 = vst [vmem:[#allocation2 + $0x118] sm:$0xff] %v604
  %669 = vst [vmem:[#allocation2 + $0x120] sm:$0xff] %v605
  %670 = vst [vmem:[#allocation2 + $0x128] sm:$0xff] %v606
  %671 = vst [vmem:[#allocation2 + $0x130] sm:$0xff] %v607
  %672 = vst [vmem:[#allocation2 + $0x138] sm:$0xff] %v608
  %673 = vst [vmem:[#allocation2 + $0x140] sm:$0xff] %v609
  %674 = vst [vmem:[#allocation2 + $0x148] sm:$0xff] %v610
  %675 = vst [vmem:[#allocation2 + $0x150] sm:$0xff] %v611
  %676 = vst [vmem:[#allocation2 + $0x158] sm:$0xff] %v612
  %677 = vst [vmem:[#allocation2 + $0x160] sm:$0xff] %v613
  %678 = vst [vmem:[#allocation2 + $0x168] sm:$0xff] %v614
  %679 = vst [vmem:[#allocation2 + $0x170] sm:$0xff] %v615
  %680 = vst [vmem:[#allocation2 + $0x178] sm:$0xff] %v616
  %681 = vst [vmem:[#allocation2 + $0x180] sm:$0xff] %v617
  %682 = vst [vmem:[#allocation2 + $0x188] sm:$0xff] %v618
  %683 = vst [vmem:[#allocation2 + $0x190] sm:$0xff] %v619
  %684 = vst [vmem:[#allocation2 + $0x198] sm:$0xff] %v620
  %685 = vst [vmem:[#allocation2 + $0x1a0] sm:$0xff] %v621
  %686 = vst [vmem:[#allocation2 + $0x1a8] sm:$0xff] %v622
  %687 = vst [vmem:[#allocation2 + $0x1b0] sm:$0xff] %v623
  %688 = vst [vmem:[#allocation2 + $0x1b8] sm:$0xff] %v624
  %689 = vst [vmem:[#allocation2 + $0x1c0] sm:$0xff] %v625
  %690 = vst [vmem:[#allocation2 + $0x1c8] sm:$0xff] %v626
  %691 = vst [vmem:[#allocation2 + $0x1d0] sm:$0xff] %v627
  %692 = vst [vmem:[#allocation2 + $0x1d8] sm:$0xff] %v628
  %693 = vst [vmem:[#allocation2 + $0x1e0] sm:$0xff] %v629
  %694 = vst [vmem:[#allocation2 + $0x1e8] sm:$0xff] %v630
  %695 = vst [vmem:[#allocation2 + $0x1f0] sm:$0xff] %v631
  %696 = vst [vmem:[#allocation2 + $0x1f8] sm:$0xff] %v632
  // Predicated region
  $region14: #{model_forward.3} parent=0 // pred_check
    %p697 = pneg %p11
  $region15: #{model_forward.3} parent=0 // pred_check_branch
    %699 = sbr.rel (%p697) target = $region17
  $region16: #{model_forward.3} parent=0 // pred_region
    %v700 = vld [vmem:[#allocation2] sm:$0xff]
    %v701 = vld [vmem:[#allocation2 + $0x8] sm:$0xff]
    %v702 = vld [vmem:[#allocation2 + $0x10] sm:$0xff]
    %v703 = vld [vmem:[#allocation2 + $0x18] sm:$0xff]
    %v704 = vld [vmem:[#allocation2 + $0x20] sm:$0xff]
    %v705 = vld [vmem:[#allocation2 + $0x28] sm:$0xff]
    %v706 = vld [vmem:[#allocation2 + $0x30] sm:$0xff]
    %v707 = vld [vmem:[#allocation2 + $0x38] sm:$0xff]
    %v708 = vld [vmem:[#allocation2 + $0x40] sm:$0xff]
    %v709 = vld [vmem:[#allocation2 + $0x48] sm:$0xff]
    %v710 = vld [vmem:[#allocation2 + $0x50] sm:$0xff]
    %v711 = vld [vmem:[#allocation2 + $0x58] sm:$0xff]
    %v712 = vld [vmem:[#allocation2 + $0x60] sm:$0xff]
    %v713 = vld [vmem:[#allocation2 + $0x68] sm:$0xff]
    %v714 = vld [vmem:[#allocation2 + $0x70] sm:$0xff]
    %v715 = vld [vmem:[#allocation2 + $0x78] sm:$0xff]
    %v716 = vld [vmem:[#allocation2 + $0x80] sm:$0xff]
    %v717 = vld [vmem:[#allocation2 + $0x88] sm:$0xff]
    %v718 = vld [vmem:[#allocation2 + $0x90] sm:$0xff]
    %v719 = vld [vmem:[#allocation2 + $0x98] sm:$0xff]
    %v720 = vld [vmem:[#allocation2 + $0xa0] sm:$0xff]
    %v721 = vld [vmem:[#allocation2 + $0xa8] sm:$0xff]
    %v722 = vld [vmem:[#allocation2 + $0xb0] sm:$0xff]
    %v723 = vld [vmem:[#allocation2 + $0xb8] sm:$0xff]
    %v724 = vld [vmem:[#allocation2 + $0xc0] sm:$0xff]
    %v725 = vld [vmem:[#allocation2 + $0xc8] sm:$0xff]
    %v726 = vld [vmem:[#allocation2 + $0xd0] sm:$0xff]
    %v727 = vld [vmem:[#allocation2 + $0xd8] sm:$0xff]
    %v728 = vld [vmem:[#allocation2 + $0xe0] sm:$0xff]
    %v729 = vld [vmem:[#allocation2 + $0xe8] sm:$0xff]
    %v730 = vld [vmem:[#allocation2 + $0xf0] sm:$0xff]
    %v731 = vld [vmem:[#allocation2 + $0xf8] sm:$0xff]
    %v732 = vld [vmem:[#allocation2 + $0x100] sm:$0xff]
    %v733 = vld [vmem:[#allocation2 + $0x108] sm:$0xff]
    %v734 = vld [vmem:[#allocation2 + $0x110] sm:$0xff]
    %v735 = vld [vmem:[#allocation2 + $0x118] sm:$0xff]
    %v736 = vld [vmem:[#allocation2 + $0x120] sm:$0xff]
    %v737 = vld [vmem:[#allocation2 + $0x128] sm:$0xff]
    %v738 = vld [vmem:[#allocation2 + $0x130] sm:$0xff]
    %v739 = vld [vmem:[#allocation2 + $0x138] sm:$0xff]
    %v740 = vld [vmem:[#allocation2 + $0x140] sm:$0xff]
    %v741 = vld [vmem:[#allocation2 + $0x148] sm:$0xff]
    %v742 = vld [vmem:[#allocation2 + $0x150] sm:$0xff]
    %v743 = vld [vmem:[#allocation2 + $0x158] sm:$0xff]
    %v744 = vld [vmem:[#allocation2 + $0x160] sm:$0xff]
    %v745 = vld [vmem:[#allocation2 + $0x168] sm:$0xff]
    %v746 = vld [vmem:[#allocation2 + $0x170] sm:$0xff]
    %v747 = vld [vmem:[#allocation2 + $0x178] sm:$0xff]
    %v748 = vld [vmem:[#allocation2 + $0x180] sm:$0xff]
    %v749 = vld [vmem:[#allocation2 + $0x188] sm:$0xff]
    %v750 = vld [vmem:[#allocation2 + $0x190] sm:$0xff]
    %v751 = vld [vmem:[#allocation2 + $0x198] sm:$0xff]
    %v752 = vld [vmem:[#allocation2 + $0x1a0] sm:$0xff]
    %v753 = vld [vmem:[#allocation2 + $0x1a8] sm:$0xff]
    %v754 = vld [vmem:[#allocation2 + $0x1b0] sm:$0xff]
    %v755 = vld [vmem:[#allocation2 + $0x1b8] sm:$0xff]
    %v756 = vld [vmem:[#allocation2 + $0x1c0] sm:$0xff]
    %v757 = vld [vmem:[#allocation2 + $0x1c8] sm:$0xff]
    %v758 = vld [vmem:[#allocation2 + $0x1d0] sm:$0xff]
    %v759 = vld [vmem:[#allocation2 + $0x1d8] sm:$0xff]
    %v760 = vld [vmem:[#allocation2 + $0x1e0] sm:$0xff]
    %v761 = vld [vmem:[#allocation2 + $0x1e8] sm:$0xff]
    %v762 = vld [vmem:[#allocation2 + $0x1f0] sm:$0xff]
    %v763 = vld [vmem:[#allocation2 + $0x1f8] sm:$0xff]
    %764 = vst [vmem:[%s2] sm:$0xff] %v700
    %765 = vst [vmem:[%s2 + $0x8] sm:$0xff] %v701
    %766 = vst [vmem:[%s2 + $0x10] sm:$0xff] %v702
    %767 = vst [vmem:[%s2 + $0x18] sm:$0xff] %v703
    %768 = vst [vmem:[%s2 + $0x20] sm:$0xff] %v704
    %769 = vst [vmem:[%s2 + $0x28] sm:$0xff] %v705
    %770 = vst [vmem:[%s2 + $0x30] sm:$0xff] %v706
    %771 = vst [vmem:[%s2 + $0x38] sm:$0xff] %v707
    %772 = vst [vmem:[%s2 + $0x40] sm:$0xff] %v708
    %773 = vst [vmem:[%s2 + $0x48] sm:$0xff] %v709
    %774 = vst [vmem:[%s2 + $0x50] sm:$0xff] %v710
    %775 = vst [vmem:[%s2 + $0x58] sm:$0xff] %v711
    %776 = vst [vmem:[%s2 + $0x60] sm:$0xff] %v712
    %777 = vst [vmem:[%s2 + $0x68] sm:$0xff] %v713
    %778 = vst [vmem:[%s2 + $0x70] sm:$0xff] %v714
    %779 = vst [vmem:[%s2 + $0x78] sm:$0xff] %v715
    %780 = vst [vmem:[%s2 + $0x80] sm:$0xff] %v716
    %781 = vst [vmem:[%s2 + $0x88] sm:$0xff] %v717
    %782 = vst [vmem:[%s2 + $0x90] sm:$0xff] %v718
    %783 = vst [vmem:[%s2 + $0x98] sm:$0xff] %v719
    %784 = vst [vmem:[%s2 + $0xa0] sm:$0xff] %v720
    %785 = vst [vmem:[%s2 + $0xa8] sm:$0xff] %v721
    %786 = vst [vmem:[%s2 + $0xb0] sm:$0xff] %v722
    %787 = vst [vmem:[%s2 + $0xb8] sm:$0xff] %v723
    %788 = vst [vmem:[%s2 + $0xc0] sm:$0xff] %v724
    %789 = vst [vmem:[%s2 + $0xc8] sm:$0xff] %v725
    %790 = vst [vmem:[%s2 + $0xd0] sm:$0xff] %v726
    %791 = vst [vmem:[%s2 + $0xd8] sm:$0xff] %v727
    %792 = vst [vmem:[%s2 + $0xe0] sm:$0xff] %v728
    %793 = vst [vmem:[%s2 + $0xe8] sm:$0xff] %v729
    %794 = vst [vmem:[%s2 + $0xf0] sm:$0xff] %v730
    %795 = vst [vmem:[%s2 + $0xf8] sm:$0xff] %v731
    %796 = vst [vmem:[%s2 + $0x100] sm:$0xff] %v732
    %797 = vst [vmem:[%s2 + $0x108] sm:$0xff] %v733
    %798 = vst [vmem:[%s2 + $0x110] sm:$0xff] %v734
    %799 = vst [vmem:[%s2 + $0x118] sm:$0xff] %v735
    %800 = vst [vmem:[%s2 + $0x120] sm:$0xff] %v736
    %801 = vst [vmem:[%s2 + $0x128] sm:$0xff] %v737
    %802 = vst [vmem:[%s2 + $0x130] sm:$0xff] %v738
    %803 = vst [vmem:[%s2 + $0x138] sm:$0xff] %v739
    %804 = vst [vmem:[%s2 + $0x140] sm:$0xff] %v740
    %805 = vst [vmem:[%s2 + $0x148] sm:$0xff] %v741
    %806 = vst [vmem:[%s2 + $0x150] sm:$0xff] %v742
    %807 = vst [vmem:[%s2 + $0x158] sm:$0xff] %v743
    %808 = vst [vmem:[%s2 + $0x160] sm:$0xff] %v744
    %809 = vst [vmem:[%s2 + $0x168] sm:$0xff] %v745
    %810 = vst [vmem:[%s2 + $0x170] sm:$0xff] %v746
    %811 = vst [vmem:[%s2 + $0x178] sm:$0xff] %v747
    %812 = vst [vmem:[%s2 + $0x180] sm:$0xff] %v748
    %813 = vst [vmem:[%s2 + $0x188] sm:$0xff] %v749
    %814 = vst [vmem:[%s2 + $0x190] sm:$0xff] %v750
    %815 = vst [vmem:[%s2 + $0x198] sm:$0xff] %v751
    %816 = vst [vmem:[%s2 + $0x1a0] sm:$0xff] %v752
    %817 = vst [vmem:[%s2 + $0x1a8] sm:$0xff] %v753
    %818 = vst [vmem:[%s2 + $0x1b0] sm:$0xff] %v754
    %819 = vst [vmem:[%s2 + $0x1b8] sm:$0xff] %v755
    %820 = vst [vmem:[%s2 + $0x1c0] sm:$0xff] %v756
    %821 = vst [vmem:[%s2 + $0x1c8] sm:$0xff] %v757
    %822 = vst [vmem:[%s2 + $0x1d0] sm:$0xff] %v758
    %823 = vst [vmem:[%s2 + $0x1d8] sm:$0xff] %v759
    %824 = vst [vmem:[%s2 + $0x1e0] sm:$0xff] %v760
    %825 = vst [vmem:[%s2 + $0x1e8] sm:$0xff] %v761
    %826 = vst [vmem:[%s2 + $0x1f0] sm:$0xff] %v762
    %827 = vst [vmem:[%s2 + $0x1f8] sm:$0xff] %v763
  $region17: #{model_forward.3} parent=0 // pred_fallthru
    _
  // Predicated region
  $region18: #{model_forward.3} parent=0 // pred_check
    _
  $region19: #{model_forward.3} parent=0 // pred_check_branch
    %829 = sbr.rel (0) target = $region21
  $region20: #{model_forward.3} parent=0 // pred_region
    _
  $region21: #{model_forward.3} parent=0 // pred_fallthru
    _
  // Predicated region
  $region22: #{model_forward.3} parent=0 // pred_check
    _
  $region23: #{model_forward.3} parent=0 // pred_check_branch
    %831 = sbr.rel (0) target = $region25
  $region24: #{model_forward.3} parent=0 // pred_region
    _
  $region25: #{model_forward.3} parent=0 // pred_fallthru
    _

// kernel: model_forward.4
$region0: #{model_forward.4}
  #allocation0 [shape = 'u32[]', space=smem, size = 0x4, offset = 0x4, fixed_abs, tag = 'smem constant byte address 0x4 - core index']
  #allocation1 [shape = 'u32[144,128]{1,0:T(1,128)}', space=vmem, size = 0x12000, scoped, tag = 'internal scratch']
  %s0 = inlined_call_operand.vmem [shape: f32[3,256], index: 0, kind: input, shape index: {}]
  %s1 = inlined_call_operand.vmem [shape: f32[16,256], index: 1, kind: input, shape index: {}]
  %s2 = inlined_call_operand.vmem [shape: f32[3,16], index: 2, kind: output, shape index: {}]
  %s3 = sld [smem:[#allocation0]]
  $region18: #{model_forward.4} parent=0
    _
  %s5 = ssub.s32 1, %s3
  %s6 = scalar_select 0, %s5, %s3
  // Predicated region
  $region2: #{model_forward.4} parent=0 // pred_check
    _
  $region3: #{model_forward.4} parent=0 // pred_check_branch
    %8 = sbr.rel (0) target = $region5
  $region4: #{model_forward.4} parent=0 // pred_region
    _
  $region5: #{model_forward.4} parent=0 // pred_fallthru
    _
  // Predicated region
  $region6: #{model_forward.4} parent=0 // pred_check
    _
  $region7: #{model_forward.4} parent=0 // pred_check_branch
    %10 = sbr.rel (0) target = $region9
  $region8: #{model_forward.4} parent=0 // pred_region
    _
  $region9: #{model_forward.4} parent=0 // pred_fallthru
    _
  %v11 = vld [vmem:[%s0] sm:$0x77]
  %v12 = vld [vmem:[%s1] sm:$0xff]
  %v13 = vld [vmem:[%s1 + $0x8] sm:$0xff]
  %v14 = vld [vmem:[%s1 + $0x10] sm:$0xff]
  %v15 = vld [vmem:[%s1 + $0x18] sm:$0xff]
  %v17 = vcombine.high %v11, %v11
  %19 = vmatprep.subr.mxu0 %v13
  %20 = vmatpush1.xpose.msra.mxu0 %v12
  %21 = vmatprep.subr.mxu0 %v15
  %22 = vmatpush1.xpose.msra.mxu0 %v14
  %23 = vmatprep.subr.mxu0 0.0
  %24 = vmatpush1.xpose.msra.mxu0 0.0
  %25 = vmatprep.subr.mxu0 0.0
  %26 = vmatpush1.xpose.msra.mxu0 0.0
  %27 = vmatprep.subr.mxu0 0.0
  %28 = vmatpush1.xpose.msra.mxu0 0.0
  %29 = vmatprep.subr.mxu0 0.0
  %30 = vmatpush1.xpose.msra.mxu0 0.0
  %31 = vmatprep.subr.mxu0 0.0
  %32 = vmatpush1.xpose.msra.mxu0 0.0
  %33 = vmatprep.subr.mxu0 0.0
  %34 = vmatpush1.xpose.msra.mxu0 0.0
  %35 = vmatprep.subr.mxu0 0.0
  %36 = vmatpush1.xpose.msra.mxu0 0.0
  %37 = vmatprep.subr.mxu0 0.0
  %38 = vmatpush1.xpose.msra.mxu0 0.0
  %39 = vmatprep.subr.mxu0 0.0
  %40 = vmatpush1.xpose.msra.mxu0 0.0
  %41 = vmatprep.subr.mxu0 0.0
  %42 = vmatpush1.xpose.msra.mxu0 0.0
  %43 = vmatprep.subr.mxu0 0.0
  %44 = vmatpush1.xpose.msra.mxu0 0.0
  %45 = vmatprep.subr.mxu0 0.0
  %46 = vmatpush1.xpose.msra.mxu0 0.0
  %47 = vmatprep.subr.mxu0 0.0
  %48 = vmatpush1.xpose.msra.mxu0 0.0
  %49 = vmatprep.subr.mxu0 0.0
  %50 = vmatpush1.xpose.msra.mxu0 0.0
  %51 = vmatprep.subr.mxu0 0.0
  %52 = vmatpush1.xpose.msra.mxu0 0.0
  %53 = vmatprep.subr.mxu0 0.0
  %54 = vmatpush1.xpose.msra.mxu0 0.0
  %55 = vmatprep.subr.mxu0 0.0
  %56 = vmatpush1.xpose.msra.mxu0 0.0
  %57 = vmatprep.subr.mxu0 0.0
  %58 = vmatpush1.xpose.msra.mxu0 0.0
  %59 = vmatprep.subr.mxu0 0.0
  %60 = vmatpush1.xpose.msra.mxu0 0.0
  %61 = vmatprep.subr.mxu0 0.0
  %62 = vmatpush1.xpose.msra.mxu0 0.0
  %63 = vmatprep.subr.mxu0 0.0
  %64 = vmatpush1.xpose.msra.mxu0 0.0
  %65 = vmatprep.subr.mxu0 0.0
  %66 = vmatpush1.xpose.msra.mxu0 0.0
  %67 = vmatprep.subr.mxu0 0.0
  %68 = vmatpush1.xpose.msra.mxu0 0.0
  %69 = vmatprep.subr.mxu0 0.0
  %70 = vmatpush1.xpose.msra.mxu0 0.0
  %71 = vmatprep.subr.mxu0 0.0
  %72 = vmatpush1.xpose.msra.mxu0 0.0
  %73 = vmatprep.subr.mxu0 0.0
  %74 = vmatpush1.xpose.msra.mxu0 0.0
  %75 = vmatprep.subr.mxu0 0.0
  %76 = vmatpush1.xpose.msra.mxu0 0.0
  %77 = vmatprep.subr.mxu0 0.0
  %78 = vmatpush1.xpose.msra.mxu0 0.0
  %79 = vmatprep.subr.mxu0 0.0
  %80 = vmatpush1.xpose.msra.mxu0 0.0
  %81 = vmatprep.subr.mxu0 0.0
  %82 = vmatpush1.xpose.msra.mxu0 0.0
  %83 = vmatprep.mubr.f32.mxu0 %v17
  %84 = vmatmul.mubr.f32.gmra.mrb[0].mxu0 %v11
  %v85 = vpop.f32.mrb[0].mxu0
  %v86 = vadd.f32 0.0, %v85
  %v87 = vpop.f32.mrb[0].mxu0
  %88 = vdwg.mxu0
  %vm89 = vcmask 124928
  %90 = vst.msk [vmem:[%s2] sm:$0x7] %vm89, %v86
  // Predicated region
  $region10: #{model_forward.4} parent=0 // pred_check
    _
  $region11: #{model_forward.4} parent=0 // pred_check_branch
    %92 = sbr.rel (0) target = $region13
  $region12: #{model_forward.4} parent=0 // pred_region
    _
  $region13: #{model_forward.4} parent=0 // pred_fallthru
    _
  // Predicated region
  $region14: #{model_forward.4} parent=0 // pred_check
    _
  $region15: #{model_forward.4} parent=0 // pred_check_branch
    %94 = sbr.rel (0) target = $region17
  $region16: #{model_forward.4} parent=0 // pred_region
    _
  $region17: #{model_forward.4} parent=0 // pred_fallthru
    _

// kernel: model_forward.5
$region0: #{model_forward.5}
  #allocation0 [shape = 'u32[]', space=smem, size = 0x4, offset = 0x4, fixed_abs, tag = 'smem constant byte address 0x4 - core index']
  #allocation1 [shape = 'u32[144,128]{1,0:T(1,128)}', space=vmem, size = 0x12000, scoped, tag = 'internal scratch']
  %s0 = inlined_call_operand.vmem [shape: f32[3,16], index: 0, kind: input, shape index: {}]
  %s1 = inlined_call_operand.vmem [shape: f32[16,3], index: 1, kind: input, shape index: {}]
  %s2 = inlined_call_operand.hbm [shape: f32[1,16], index: 2, kind: output, shape index: {}]
  %s3 = sld [smem:[#allocation0]]
  $region25: #{model_forward.5} parent=0
    _
  %s5 = ssub.s32 1, %s3
  %s6 = scalar_select 0, %s5, %s3
  $region1: #{model_forward.5} parent=0
    #allocation2 [shape = 'u8[512]{0}', space=vmem, size = 0x400, scoped, tag = 'output window, operand 0, single buffered']
    #allocation3 [shape = 's32[1]{0}', space=sflag, size = 0x4, scoped, tag = 'scoped memory for model_forward.5']
    %7 = vsyncpa [#allocation3], 0
    // Predicated region
    $region2: #{model_forward.5} parent=1 // pred_check
      _
    $region3: #{model_forward.5} parent=1 // pred_check_branch
      %9 = sbr.rel (0) target = $region5
    $region4: #{model_forward.5} parent=1 // pred_region
      _
    $region5: #{model_forward.5} parent=1 // pred_fallthru
      _
    // Predicated region
    $region6: #{model_forward.5} parent=1 // pred_check
      _
    $region7: #{model_forward.5} parent=1 // pred_check_branch
      %11 = sbr.rel (0) target = $region9
    $region8: #{model_forward.5} parent=1 // pred_region
      _
    $region9: #{model_forward.5} parent=1 // pred_fallthru
      _
    %v12 = vld [vmem:[%s0] sm:$0x7]
    %v13 = vld [vmem:[%s1] sm:$0xff]
    %v14 = vld [vmem:[%s1 + $0x8] sm:$0xff]
    %v15 = vlaneseq
    %v16 = vand.u32 %v15, 127
    %vm17 = vcmp.lt.s32.totalorder %v16, 16
    %v18 = vsel %vm17, 1, 0
    %v19 = vcvt.s32.f32 %v18
    %v20 = vmul.f32 %v12, %v12
    %vm21 = vcmask 124928
    %v22 = vsel %vm21, %v20, 0.0
    %v23 = vrot.slane %v22, 4
    %v24 = vadd.f32 %v22, %v23
    %v25 = vrot.slane %v24, 2
    %v26 = vadd.f32 %v24, %v25
    %v27 = vrot.slane %v26, 1
    %v28 = vadd.f32 %v26, %v27
    %v29 = vlaneseq
    %v30 = vshrl.u32 %v29, 7
    %vm31 = vcmp.eq.s32.totalorder %v30, %v16
    %v32 = vsel %vm31, 1, 0
    %v33 = vcvt.s32.f32 %v32
    loop: start=0, step=1, limit=10
    $region10: #{model_forward.5} parent=1 // loop_pre_header
      _
    $region11: #{model_forward.5} parent=1 // loop_header
      %s35 = sphi 0, %s39
      %p36 = scmp.ge.s32.totalorder %s35, 10
      %v40 = vphi %v12, %v419
    $region12: #{model_forward.5} parent=1 // loop_header_branch
      %38 = sbr.rel (%p36) target = $region16
    $region13: #{model_forward.5} parent=1 // loop_body
      %41 = vxpose.xlu0.b32.start [1/16] %v40, 128
      %42 = vxpose.xlu0.b32.cont [2/16] 0.0, 128
      %43 = vxpose.xlu0.b32.cont [3/16] 0.0, 128
      %44 = vxpose.xlu0.b32.cont [4/16] 0.0, 128
      %45 = vxpose.xlu0.b32.cont [5/16] 0.0, 128
      %46 = vxpose.xlu0.b32.cont [6/16] 0.0, 128
      %47 = vxpose.xlu0.b32.cont [7/16] 0.0, 128
      %48 = vxpose.xlu0.b32.cont [8/16] 0.0, 128
      %49 = vxpose.xlu0.b32.cont [9/16] 0.0, 128
      %50 = vxpose.xlu0.b32.cont [10/16] 0.0, 128
      %51 = vxpose.xlu0.b32.cont [11/16] 0.0, 128
      %52 = vxpose.xlu0.b32.cont [12/16] 0.0, 128
      %53 = vxpose.xlu0.b32.cont [13/16] 0.0, 128
      %54 = vxpose.xlu0.b32.cont [14/16] 0.0, 128
      %55 = vxpose.xlu0.b32.cont [15/16] 0.0, 128
      %56 = vxpose.xlu0.b32.end [16/16] 0.0, 128
      %v57 = vpop.trf.xlu0
      %v58 = vpop.trf.xlu0
      %v59 = vpop.trf.xlu0
      %v60 = vpop.trf.xlu0
      %v61 = vpop.trf.xlu0
      %v62 = vpop.trf.xlu0
      %v63 = vpop.trf.xlu0
      %v64 = vpop.trf.xlu0
      %v65 = vpop.trf.xlu0
      %v66 = vpop.trf.xlu0
      %v67 = vpop.trf.xlu0
      %v68 = vpop.trf.xlu0
      %v69 = vpop.trf.xlu0
      %v70 = vpop.trf.xlu0
      %v71 = vpop.trf.xlu0
      %v72 = vpop.trf.xlu0
      %vm73 = vcmask 23552
      %v75 = vsel %vm73, %v57, 0
      %vm77 = vcmask 1042432
      %v79 = vsel %vm77, %v40, 0
      %81 = vmatprep.subr.mxu0 0.0
      %82 = vmatpush1.msra.mxu0 %v79
      %83 = vmatprep.subr.mxu0 0.0
      %84 = vmatpush1.msra.mxu0 0.0
      %85 = vmatprep.subr.mxu0 0.0
      %86 = vmatpush1.msra.mxu0 0.0
      %87 = vmatprep.subr.mxu0 0.0
      %88 = vmatpush1.msra.mxu0 0.0
      %89 = vmatprep.subr.mxu0 0.0
      %90 = vmatpush1.msra.mxu0 0.0
      %91 = vmatprep.subr.mxu0 0.0
      %92 = vmatpush1.msra.mxu0 0.0
      %93 = vmatprep.subr.mxu0 0.0
      %94 = vmatpush1.msra.mxu0 0.0
      %95 = vmatprep.subr.mxu0 0.0
      %96 = vmatpush1.msra.mxu0 0.0
      %97 = vmatprep.subr.mxu0 0.0
      %98 = vmatpush1.msra.mxu0 0.0
      %99 = vmatprep.subr.mxu0 0.0
      %100 = vmatpush1.msra.mxu0 0.0
      %101 = vmatprep.subr.mxu0 0.0
      %102 = vmatpush1.msra.mxu0 0.0
      %103 = vmatprep.subr.mxu0 0.0
      %104 = vmatpush1.msra.mxu0 0.0
      %105 = vmatprep.subr.mxu0 0.0
      %106 = vmatpush1.msra.mxu0 0.0
      %107 = vmatprep.subr.mxu0 0.0
      %108 = vmatpush1.msra.mxu0 0.0
      %109 = vmatprep.subr.mxu0 0.0
      %110 = vmatpush1.msra.mxu0 0.0
      %111 = vmatprep.subr.mxu0 0.0
      %112 = vmatpush1.msra.mxu0 0.0
      %113 = vmatprep.subr.mxu0 0.0
      %114 = vmatpush1.msra.mxu0 0.0
      %115 = vmatprep.subr.mxu0 0.0
      %116 = vmatpush1.msra.mxu0 0.0
      %117 = vmatprep.subr.mxu0 0.0
      %118 = vmatpush1.msra.mxu0 0.0
      %119 = vmatprep.subr.mxu0 0.0
      %120 = vmatpush1.msra.mxu0 0.0
      %121 = vmatprep.subr.mxu0 0.0
      %122 = vmatpush1.msra.mxu0 0.0
      %123 = vmatprep.subr.mxu0 0.0
      %124 = vmatpush1.msra.mxu0 0.0
      %125 = vmatprep.subr.mxu0 0.0
      %126 = vmatpush1.msra.mxu0 0.0
      %127 = vmatprep.subr.mxu0 0.0
      %128 = vmatpush1.msra.mxu0 0.0
      %129 = vmatprep.subr.mxu0 0.0
      %130 = vmatpush1.msra.mxu0 0.0
      %131 = vmatprep.subr.mxu0 0.0
      %132 = vmatpush1.msra.mxu0 0.0
      %133 = vmatprep.subr.mxu0 0.0
      %134 = vmatpush1.msra.mxu0 0.0
      %135 = vmatprep.subr.mxu0 0.0
      %136 = vmatpush1.msra.mxu0 0.0
      %137 = vmatprep.subr.mxu0 0.0
      %138 = vmatpush1.msra.mxu0 0.0
      %139 = vmatprep.subr.mxu0 0.0
      %140 = vmatpush1.msra.mxu0 0.0
      %141 = vmatprep.subr.mxu0 0.0
      %142 = vmatpush1.msra.mxu0 0.0
      %143 = vmatprep.subr.mxu0 0.0
      %144 = vmatpush1.msra.mxu0 0.0
      %145 = vmatprep.mubr.f32.mxu0 0.0
      %146 = vmatmul.mubr.f32.gmra.mrb[0].mxu0 %v75
      %v147 = vpop.f32.mrb[0].mxu0
      %v148 = vadd.f32 0.0, %v147
      %v149 = vpop.f32.mrb[0].mxu0
      %150 = vdwg.mxu0
      %v151 = vmul.f32 %v148, %v33
      %vm152 = vcmask 27648
      %v153 = vsel %vm152, %v151, 0.0
      %154 = vadd.xlane.f32.xlu0 %v153
      %v155 = vpop.xlane.xlu0 %154
      %v157 = vsel %vm77, %v12, 0
      %159 = vmatprep.subr.mxu0 0.0
      %160 = vmatpush1.msra.mxu0 %v157
      %161 = vmatprep.subr.mxu0 0.0
      %162 = vmatpush1.msra.mxu0 0.0
      %163 = vmatprep.subr.mxu0 0.0
      %164 = vmatpush1.msra.mxu0 0.0
      %165 = vmatprep.subr.mxu0 0.0
      %166 = vmatpush1.msra.mxu0 0.0
      %167 = vmatprep.subr.mxu0 0.0
      %168 = vmatpush1.msra.mxu0 0.0
      %169 = vmatprep.subr.mxu0 0.0
      %170 = vmatpush1.msra.mxu0 0.0
      %171 = vmatprep.subr.mxu0 0.0
      %172 = vmatpush1.msra.mxu0 0.0
      %173 = vmatprep.subr.mxu0 0.0
      %174 = vmatpush1.msra.mxu0 0.0
      %175 = vmatprep.subr.mxu0 0.0
      %176 = vmatpush1.msra.mxu0 0.0
      %177 = vmatprep.subr.mxu0 0.0
      %178 = vmatpush1.msra.mxu0 0.0
      %179 = vmatprep.subr.mxu0 0.0
      %180 = vmatpush1.msra.mxu0 0.0
      %181 = vmatprep.subr.mxu0 0.0
      %182 = vmatpush1.msra.mxu0 0.0
      %183 = vmatprep.subr.mxu0 0.0
      %184 = vmatpush1.msra.mxu0 0.0
      %185 = vmatprep.subr.mxu0 0.0
      %186 = vmatpush1.msra.mxu0 0.0
      %187 = vmatprep.subr.mxu0 0.0
      %188 = vmatpush1.msra.mxu0 0.0
      %189 = vmatprep.subr.mxu0 0.0
      %190 = vmatpush1.msra.mxu0 0.0
      %191 = vmatprep.subr.mxu0 0.0
      %192 = vmatpush1.msra.mxu0 0.0
      %193 = vmatprep.subr.mxu0 0.0
      %194 = vmatpush1.msra.mxu0 0.0
      %195 = vmatprep.subr.mxu0 0.0
      %196 = vmatpush1.msra.mxu0 0.0
      %197 = vmatprep.subr.mxu0 0.0
      %198 = vmatpush1.msra.mxu0 0.0
      %199 = vmatprep.subr.mxu0 0.0
      %200 = vmatpush1.msra.mxu0 0.0
      %201 = vmatprep.subr.mxu0 0.0
      %202 = vmatpush1.msra.mxu0 0.0
      %203 = vmatprep.subr.mxu0 0.0
      %204 = vmatpush1.msra.mxu0 0.0
      %205 = vmatprep.subr.mxu0 0.0
      %206 = vmatpush1.msra.mxu0 0.0
      %207 = vmatprep.subr.mxu0 0.0
      %208 = vmatpush1.msra.mxu0 0.0
      %209 = vmatprep.subr.mxu0 0.0
      %210 = vmatpush1.msra.mxu0 0.0
      %211 = vmatprep.subr.mxu0 0.0
      %212 = vmatpush1.msra.mxu0 0.0
      %213 = vmatprep.subr.mxu0 0.0
      %214 = vmatpush1.msra.mxu0 0.0
      %215 = vmatprep.subr.mxu0 0.0
      %216 = vmatpush1.msra.mxu0 0.0
      %217 = vmatprep.subr.mxu0 0.0
      %218 = vmatpush1.msra.mxu0 0.0
      %219 = vmatprep.subr.mxu0 0.0
      %220 = vmatpush1.msra.mxu0 0.0
      %221 = vmatprep.subr.mxu0 0.0
      %222 = vmatpush1.msra.mxu0 0.0
      %223 = vmatprep.mubr.f32.mxu0 0.0
      %224 = vmatmul.mubr.f32.gmra.mrb[0].mxu0 %v75
      %v225 = vpop.f32.mrb[0].mxu0
      %v226 = vadd.f32 0.0, %v225
      %v227 = vpop.f32.mrb[0].mxu0
      %228 = vdwg.mxu0
      %v229 = vmul.f32 %v226, 2.0
      %v230 = vsub.f32 %v28, %v229
      %v231 = vadd.f32 %v230, %v155
      %vm232 = vcmask 125952
      %v233 = vsel %vm232, %v231, inf
      %v234 = vrot.slane %v233, 4
      %v235 = vmin.f32 %v233, %v234
      %v236 = vrot.slane %v235, 2
      %v237 = vmin.f32 %v235, %v236
      %v238 = vrot.slane %v237, 1
      %v239 = vmin.f32 %v237, %v238
      %vm240 = vcmp.le.f32.partialorder %v231, %v239
      %v241 = vsel %vm240, %v30, 4
      %v242 = vsel %vm232, %v241, 2147483647
      %v243 = vrot.slane %v242, 4
      %vm244 = vcmp.lt.s32.totalorder %v242, %v243
      %v245 = vsel %vm244, %v242, %v243
      %v246 = vrot.slane %v245, 2
      %vm247 = vcmp.lt.s32.totalorder %v245, %v246
      %v248 = vsel %vm247, %v245, %v246
      %v249 = vrot.slane %v248, 1
      %vm250 = vcmp.lt.s32.totalorder %v248, %v249
      %v251 = vsel %vm250, %v248, %v249
      %vm252 = vcmp.eq.s32.totalorder %v251, %v30
      %v253 = vsel %vm252, 1, 0
      %v254 = vcvt.s32.f32 %v253
      %v255 = vmul.f32 %v254, %v19
      %vm256 = vcmask 130048
      %v257 = vsel %vm256, %v12, 0
      %v260 = vsel %vm256, %v255, 0
      %262 = vmatprep.subr.mxu0 0.0
      %263 = vmatpush1.xpose.msra.mxu0 %v260
      %264 = vmatprep.subr.mxu0 0.0
      %265 = vmatpush1.xpose.msra.mxu0 0.0
      %266 = vmatprep.subr.mxu0 0.0
      %267 = vmatpush1.xpose.msra.mxu0 0.0
      %268 = vmatprep.subr.mxu0 0.0
      %269 = vmatpush1.xpose.msra.mxu0 0.0
      %270 = vmatprep.subr.mxu0 0.0
      %271 = vmatpush1.xpose.msra.mxu0 0.0
      %272 = vmatprep.subr.mxu0 0.0
      %273 = vmatpush1.xpose.msra.mxu0 0.0
      %274 = vmatprep.subr.mxu0 0.0
      %275 = vmatpush1.xpose.msra.mxu0 0.0
      %276 = vmatprep.subr.mxu0 0.0
      %277 = vmatpush1.xpose.msra.mxu0 0.0
      %278 = vmatprep.subr.mxu0 0.0
      %279 = vmatpush1.xpose.msra.mxu0 0.0
      %280 = vmatprep.subr.mxu0 0.0
      %281 = vmatpush1.xpose.msra.mxu0 0.0
      %282 = vmatprep.subr.mxu0 0.0
      %283 = vmatpush1.xpose.msra.mxu0 0.0
      %284 = vmatprep.subr.mxu0 0.0
      %285 = vmatpush1.xpose.msra.mxu0 0.0
      %286 = vmatprep.subr.mxu0 0.0
      %287 = vmatpush1.xpose.msra.mxu0 0.0
      %288 = vmatprep.subr.mxu0 0.0
      %289 = vmatpush1.xpose.msra.mxu0 0.0
      %290 = vmatprep.subr.mxu0 0.0
      %291 = vmatpush1.xpose.msra.mxu0 0.0
      %292 = vmatprep.subr.mxu0 0.0
      %293 = vmatpush1.xpose.msra.mxu0 0.0
      %294 = vmatprep.subr.mxu0 0.0
      %295 = vmatpush1.xpose.msra.mxu0 0.0
      %296 = vmatprep.subr.mxu0 0.0
      %297 = vmatpush1.xpose.msra.mxu0 0.0
      %298 = vmatprep.subr.mxu0 0.0
      %299 = vmatpush1.xpose.msra.mxu0 0.0
      %300 = vmatprep.subr.mxu0 0.0
      %301 = vmatpush1.xpose.msra.mxu0 0.0
      %302 = vmatprep.subr.mxu0 0.0
      %303 = vmatpush1.xpose.msra.mxu0 0.0
      %304 = vmatprep.subr.mxu0 0.0
      %305 = vmatpush1.xpose.msra.mxu0 0.0
      %306 = vmatprep.subr.mxu0 0.0
      %307 = vmatpush1.xpose.msra.mxu0 0.0
      %308 = vmatprep.subr.mxu0 0.0
      %309 = vmatpush1.xpose.msra.mxu0 0.0
      %310 = vmatprep.subr.mxu0 0.0
      %311 = vmatpush1.xpose.msra.mxu0 0.0
      %312 = vmatprep.subr.mxu0 0.0
      %313 = vmatpush1.xpose.msra.mxu0 0.0
      %314 = vmatprep.subr.mxu0 0.0
      %315 = vmatpush1.xpose.msra.mxu0 0.0
      %316 = vmatprep.subr.mxu0 0.0
      %317 = vmatpush1.xpose.msra.mxu0 0.0
      %318 = vmatprep.subr.mxu0 0.0
      %319 = vmatpush1.xpose.msra.mxu0 0.0
      %320 = vmatprep.subr.mxu0 0.0
      %321 = vmatpush1.xpose.msra.mxu0 0.0
      %322 = vmatprep.subr.mxu0 0.0
      %323 = vmatpush1.xpose.msra.mxu0 0.0
      %324 = vmatprep.subr.mxu0 0.0
      %325 = vmatpush1.xpose.msra.mxu0 0.0
      %326 = vmatprep.mubr.f32.mxu0 0.0
      %327 = vmatmul.mubr.f32.gmra.mrb[0].mxu0 %v257
      %v328 = vpop.f32.mrb[0].mxu0
      %v329 = vadd.f32 0.0, %v328
      %v330 = vpop.f32.mrb[0].mxu0
      %331 = vdwg.mxu0
      %v333 = vsel %vm256, %v19, 0
      %335 = vmatprep.subr.mxu0 0.0
      %336 = vmatpush1.xpose.msra.mxu0 %v260
      %337 = vmatprep.subr.mxu0 0.0
      %338 = vmatpush1.xpose.msra.mxu0 0.0
      %339 = vmatprep.subr.mxu0 0.0
      %340 = vmatpush1.xpose.msra.mxu0 0.0
      %341 = vmatprep.subr.mxu0 0.0
      %342 = vmatpush1.xpose.msra.mxu0 0.0
      %343 = vmatprep.subr.mxu0 0.0
      %344 = vmatpush1.xpose.msra.mxu0 0.0
      %345 = vmatprep.subr.mxu0 0.0
      %346 = vmatpush1.xpose.msra.mxu0 0.0
      %347 = vmatprep.subr.mxu0 0.0
      %348 = vmatpush1.xpose.msra.mxu0 0.0
      %349 = vmatprep.subr.mxu0 0.0
      %350 = vmatpush1.xpose.msra.mxu0 0.0
      %351 = vmatprep.subr.mxu0 0.0
      %352 = vmatpush1.xpose.msra.mxu0 0.0
      %353 = vmatprep.subr.mxu0 0.0
      %354 = vmatpush1.xpose.msra.mxu0 0.0
      %355 = vmatprep.subr.mxu0 0.0
      %356 = vmatpush1.xpose.msra.mxu0 0.0
      %357 = vmatprep.subr.mxu0 0.0
      %358 = vmatpush1.xpose.msra.mxu0 0.0
      %359 = vmatprep.subr.mxu0 0.0
      %360 = vmatpush1.xpose.msra.mxu0 0.0
      %361 = vmatprep.subr.mxu0 0.0
      %362 = vmatpush1.xpose.msra.mxu0 0.0
      %363 = vmatprep.subr.mxu0 0.0
      %364 = vmatpush1.xpose.msra.mxu0 0.0
      %365 = vmatprep.subr.mxu0 0.0
      %366 = vmatpush1.xpose.msra.mxu0 0.0
      %367 = vmatprep.subr.mxu0 0.0
      %368 = vmatpush1.xpose.msra.mxu0 0.0
      %369 = vmatprep.subr.mxu0 0.0
      %370 = vmatpush1.xpose.msra.mxu0 0.0
      %371 = vmatprep.subr.mxu0 0.0
      %372 = vmatpush1.xpose.msra.mxu0 0.0
      %373 = vmatprep.subr.mxu0 0.0
      %374 = vmatpush1.xpose.msra.mxu0 0.0
      %375 = vmatprep.subr.mxu0 0.0
      %376 = vmatpush1.xpose.msra.mxu0 0.0
      %377 = vmatprep.subr.mxu0 0.0
      %378 = vmatpush1.xpose.msra.mxu0 0.0
      %379 = vmatprep.subr.mxu0 0.0
      %380 = vmatpush1.xpose.msra.mxu0 0.0
      %381 = vmatprep.subr.mxu0 0.0
      %382 = vmatpush1.xpose.msra.mxu0 0.0
      %383 = vmatprep.subr.mxu0 0.0
      %384 = vmatpush1.xpose.msra.mxu0 0.0
      %385 = vmatprep.subr.mxu0 0.0
      %386 = vmatpush1.xpose.msra.mxu0 0.0
      %387 = vmatprep.subr.mxu0 0.0
      %388 = vmatpush1.xpose.msra.mxu0 0.0
      %389 = vmatprep.subr.mxu0 0.0
      %390 = vmatpush1.xpose.msra.mxu0 0.0
      %391 = vmatprep.subr.mxu0 0.0
      %392 = vmatpush1.xpose.msra.mxu0 0.0
      %393 = vmatprep.subr.mxu0 0.0
      %394 = vmatpush1.xpose.msra.mxu0 0.0
      %395 = vmatprep.subr.mxu0 0.0
      %396 = vmatpush1.xpose.msra.mxu0 0.0
      %397 = vmatprep.subr.mxu0 0.0
      %398 = vmatpush1.xpose.msra.mxu0 0.0
      %399 = vmatprep.mubr.f32.mxu0 0.0
      %400 = vmatmul.mubr.f32.gmra.mrb[0].mxu0 %v333
      %v401 = vpop.f32.mrb[0].mxu0
      %v402 = vadd.f32 0.0, %v401
      %v403 = vpop.f32.mrb[0].mxu0
      %404 = vdwg.mxu0
      %vm405 = vcmp.gt.f32.partialorder %v402, 0.0
      %v406 = vmax.f32 %v402, 1.0
      %v407 = vlaneseq
      %v408 = vshrl.u32 %v407, 7
      %v409 = vsub.s32 0, %v408
      %v410 = vrot.slane %v406, %v409
      %v411 = vrcp.pop %v410
      %v412 = vmul.f32 %v329, %v411
      %v413 = vsel %vm405, 1, 0
      %v414 = vlaneseq
      %v415 = vshrl.u32 %v414, 7
      %v416 = vsub.s32 0, %v415
      %v417 = vrot.slane %v413, %v416
      %vm418 = vcmp.eq.s32.totalorder %v417, 1
      %v419 = vsel %vm418, %v412, %v40
    $region14: #{model_forward.5} parent=1 // loop_footer
      %s39 = sadd.s32 1, %s35
    $region15: #{model_forward.5} parent=1 // loop_footer_branch
      %34 = sbr.rel target = $region11
    $region16: #{model_forward.5} parent=1 // loop_exit
      _
    %420 = vxpose.xlu0.b32.start [1/16] %v40, 128
    %421 = vxpose.xlu0.b32.cont [2/16] 0.0, 128
    %422 = vxpose.xlu0.b32.cont [3/16] 0.0, 128
    %423 = vxpose.xlu0.b32.cont [4/16] 0.0, 128
    %424 = vxpose.xlu0.b32.cont [5/16] 0.0, 128
    %425 = vxpose.xlu0.b32.cont [6/16] 0.0, 128
    %426 = vxpose.xlu0.b32.cont [7/16] 0.0, 128
    %427 = vxpose.xlu0.b32.cont [8/16] 0.0, 128
    %428 = vxpose.xlu0.b32.cont [9/16] 0.0, 128
    %429 = vxpose.xlu0.b32.cont [10/16] 0.0, 128
    %430 = vxpose.xlu0.b32.cont [11/16] 0.0, 128
    %431 = vxpose.xlu0.b32.cont [12/16] 0.0, 128
    %432 = vxpose.xlu0.b32.cont [13/16] 0.0, 128
    %433 = vxpose.xlu0.b32.cont [14/16] 0.0, 128
    %434 = vxpose.xlu0.b32.cont [15/16] 0.0, 128
    %435 = vxpose.xlu0.b32.end [16/16] 0.0, 128
    %v436 = vpop.trf.xlu0
    %v437 = vpop.trf.xlu0
    %v438 = vpop.trf.xlu0
    %v439 = vpop.trf.xlu0
    %v440 = vpop.trf.xlu0
    %v441 = vpop.trf.xlu0
    %v442 = vpop.trf.xlu0
    %v443 = vpop.trf.xlu0
    %v444 = vpop.trf.xlu0
    %v445 = vpop.trf.xlu0
    %v446 = vpop.trf.xlu0
    %v447 = vpop.trf.xlu0
    %v448 = vpop.trf.xlu0
    %v449 = vpop.trf.xlu0
    %v450 = vpop.trf.xlu0
    %v451 = vpop.trf.xlu0
    %vm452 = vcmask 23552
    %v454 = vsel %vm452, %v436, 0
    %vm456 = vcmask 1042432
    %v458 = vsel %vm456, %v40, 0
    %460 = vmatprep.subr.mxu0 0.0
    %461 = vmatpush1.msra.mxu0 %v458
    %462 = vmatprep.subr.mxu0 0.0
    %463 = vmatpush1.msra.mxu0 0.0
    %464 = vmatprep.subr.mxu0 0.0
    %465 = vmatpush1.msra.mxu0 0.0
    %466 = vmatprep.subr.mxu0 0.0
    %467 = vmatpush1.msra.mxu0 0.0
    %468 = vmatprep.subr.mxu0 0.0
    %469 = vmatpush1.msra.mxu0 0.0
    %470 = vmatprep.subr.mxu0 0.0
    %471 = vmatpush1.msra.mxu0 0.0
    %472 = vmatprep.subr.mxu0 0.0
    %473 = vmatpush1.msra.mxu0 0.0
    %474 = vmatprep.subr.mxu0 0.0
    %475 = vmatpush1.msra.mxu0 0.0
    %476 = vmatprep.subr.mxu0 0.0
    %477 = vmatpush1.msra.mxu0 0.0
    %478 = vmatprep.subr.mxu0 0.0
    %479 = vmatpush1.msra.mxu0 0.0
    %480 = vmatprep.subr.mxu0 0.0
    %481 = vmatpush1.msra.mxu0 0.0
    %482 = vmatprep.subr.mxu0 0.0
    %483 = vmatpush1.msra.mxu0 0.0
    %484 = vmatprep.subr.mxu0 0.0
    %485 = vmatpush1.msra.mxu0 0.0
    %486 = vmatprep.subr.mxu0 0.0
    %487 = vmatpush1.msra.mxu0 0.0
    %488 = vmatprep.subr.mxu0 0.0
    %489 = vmatpush1.msra.mxu0 0.0
    %490 = vmatprep.subr.mxu0 0.0
    %491 = vmatpush1.msra.mxu0 0.0
    %492 = vmatprep.subr.mxu0 0.0
    %493 = vmatpush1.msra.mxu0 0.0
    %494 = vmatprep.subr.mxu0 0.0
    %495 = vmatpush1.msra.mxu0 0.0
    %496 = vmatprep.subr.mxu0 0.0
    %497 = vmatpush1.msra.mxu0 0.0
    %498 = vmatprep.subr.mxu0 0.0
    %499 = vmatpush1.msra.mxu0 0.0
    %500 = vmatprep.subr.mxu0 0.0
    %501 = vmatpush1.msra.mxu0 0.0
    %502 = vmatprep.subr.mxu0 0.0
    %503 = vmatpush1.msra.mxu0 0.0
    %504 = vmatprep.subr.mxu0 0.0
    %505 = vmatpush1.msra.mxu0 0.0
    %506 = vmatprep.subr.mxu0 0.0
    %507 = vmatpush1.msra.mxu0 0.0
    %508 = vmatprep.subr.mxu0 0.0
    %509 = vmatpush1.msra.mxu0 0.0
    %510 = vmatprep.subr.mxu0 0.0
    %511 = vmatpush1.msra.mxu0 0.0
    %512 = vmatprep.subr.mxu0 0.0
    %513 = vmatpush1.msra.mxu0 0.0
    %514 = vmatprep.subr.mxu0 0.0
    %515 = vmatpush1.msra.mxu0 0.0
    %516 = vmatprep.subr.mxu0 0.0
    %517 = vmatpush1.msra.mxu0 0.0
    %518 = vmatprep.subr.mxu0 0.0
    %519 = vmatpush1.msra.mxu0 0.0
    %520 = vmatprep.subr.mxu0 0.0
    %521 = vmatpush1.msra.mxu0 0.0
    %522 = vmatprep.subr.mxu0 0.0
    %523 = vmatpush1.msra.mxu0 0.0
    %524 = vmatprep.mubr.f32.mxu0 0.0
    %525 = vmatmul.mubr.f32.gmra.mrb[0].mxu0 %v454
    %v526 = vpop.f32.mrb[0].mxu0
    %v527 = vadd.f32 0.0, %v526
    %v528 = vpop.f32.mrb[0].mxu0
    %529 = vdwg.mxu0
    %v530 = vmul.f32 %v527, %v33
    %vm531 = vcmask 27648
    %v532 = vsel %vm531, %v530, 0.0
    %533 = vadd.xlane.f32.xlu0 %v532
    %v534 = vpop.xlane.xlu0 %533
    %v536 = vsel %vm456, %v12, 0
    %538 = vmatprep.subr.mxu0 0.0
    %539 = vmatpush1.msra.mxu0 %v536
    %540 = vmatprep.subr.mxu0 0.0
    %541 = vmatpush1.msra.mxu0 0.0
    %542 = vmatprep.subr.mxu0 0.0
    %543 = vmatpush1.msra.mxu0 0.0
    %544 = vmatprep.subr.mxu0 0.0
    %545 = vmatpush1.msra.mxu0 0.0
    %546 = vmatprep.subr.mxu0 0.0
    %547 = vmatpush1.msra.mxu0 0.0
    %548 = vmatprep.subr.mxu0 0.0
    %549 = vmatpush1.msra.mxu0 0.0
    %550 = vmatprep.subr.mxu0 0.0
    %551 = vmatpush1.msra.mxu0 0.0
    %552 = vmatprep.subr.mxu0 0.0
    %553 = vmatpush1.msra.mxu0 0.0
    %554 = vmatprep.subr.mxu0 0.0
    %555 = vmatpush1.msra.mxu0 0.0
    %556 = vmatprep.subr.mxu0 0.0
    %557 = vmatpush1.msra.mxu0 0.0
    %558 = vmatprep.subr.mxu0 0.0
    %559 = vmatpush1.msra.mxu0 0.0
    %560 = vmatprep.subr.mxu0 0.0
    %561 = vmatpush1.msra.mxu0 0.0
    %562 = vmatprep.subr.mxu0 0.0
    %563 = vmatpush1.msra.mxu0 0.0
    %564 = vmatprep.subr.mxu0 0.0
    %565 = vmatpush1.msra.mxu0 0.0
    %566 = vmatprep.subr.mxu0 0.0
    %567 = vmatpush1.msra.mxu0 0.0
    %568 = vmatprep.subr.mxu0 0.0
    %569 = vmatpush1.msra.mxu0 0.0
    %570 = vmatprep.subr.mxu0 0.0
    %571 = vmatpush1.msra.mxu0 0.0
    %572 = vmatprep.subr.mxu0 0.0
    %573 = vmatpush1.msra.mxu0 0.0
    %574 = vmatprep.subr.mxu0 0.0
    %575 = vmatpush1.msra.mxu0 0.0
    %576 = vmatprep.subr.mxu0 0.0
    %577 = vmatpush1.msra.mxu0 0.0
    %578 = vmatprep.subr.mxu0 0.0
    %579 = vmatpush1.msra.mxu0 0.0
    %580 = vmatprep.subr.mxu0 0.0
    %581 = vmatpush1.msra.mxu0 0.0
    %582 = vmatprep.subr.mxu0 0.0
    %583 = vmatpush1.msra.mxu0 0.0
    %584 = vmatprep.subr.mxu0 0.0
    %585 = vmatpush1.msra.mxu0 0.0
    %586 = vmatprep.subr.mxu0 0.0
    %587 = vmatpush1.msra.mxu0 0.0
    %588 = vmatprep.subr.mxu0 0.0
    %589 = vmatpush1.msra.mxu0 0.0
    %590 = vmatprep.subr.mxu0 0.0
    %591 = vmatpush1.msra.mxu0 0.0
    %592 = vmatprep.subr.mxu0 0.0
    %593 = vmatpush1.msra.mxu0 0.0
    %594 = vmatprep.subr.mxu0 0.0
    %595 = vmatpush1.msra.mxu0 0.0
    %596 = vmatprep.subr.mxu0 0.0
    %597 = vmatpush1.msra.mxu0 0.0
    %598 = vmatprep.subr.mxu0 0.0
    %599 = vmatpush1.msra.mxu0 0.0
    %600 = vmatprep.subr.mxu0 0.0
    %601 = vmatpush1.msra.mxu0 0.0
    %602 = vmatprep.mubr.f32.mxu0 0.0
    %603 = vmatmul.mubr.f32.gmra.mrb[0].mxu0 %v454
    %v604 = vpop.f32.mrb[0].mxu0
    %v605 = vadd.f32 0.0, %v604
    %v606 = vpop.f32.mrb[0].mxu0
    %607 = vdwg.mxu0
    %v608 = vmul.f32 %v605, 2.0
    %v609 = vsub.f32 %v28, %v608
    %v610 = vadd.f32 %v609, %v534
    %vm611 = vcmask 125952
    %v612 = vsel %vm611, %v610, inf
    %v613 = vrot.slane %v612, 4
    %v614 = vmin.f32 %v612, %v613
    %v615 = vrot.slane %v614, 2
    %v616 = vmin.f32 %v614, %v615
    %v617 = vrot.slane %v616, 1
    %v618 = vmin.f32 %v616, %v617
    %vm619 = vcmp.le.f32.partialorder %v610, %v618
    %v620 = vsel %vm619, %v30, 4
    %v621 = vsel %vm611, %v620, 2147483647
    %v622 = vrot.slane %v621, 4
    %vm623 = vcmp.lt.s32.totalorder %v621, %v622
    %v624 = vsel %vm623, %v621, %v622
    %v625 = vrot.slane %v624, 2
    %vm626 = vcmp.lt.s32.totalorder %v624, %v625
    %v627 = vsel %vm626, %v624, %v625
    %v628 = vrot.slane %v627, 1
    %vm629 = vcmp.lt.s32.totalorder %v627, %v628
    %v630 = vsel %vm629, %v627, %v628
    %vm631 = vcmp.eq.s32.totalorder %v630, %v30
    %v632 = vsel %vm631, 1, 0
    %v633 = vcvt.s32.f32 %v632
    %v634 = vmul.f32 %v633, %v19
    %vm635 = vcmask 130048
    %v637 = vsel %vm635, %v634, 0
    %639 = vmatprep.subr.mxu0 0.0
    %640 = vmatpush1.msra.mxu0 %v13
    %641 = vmatprep.subr.mxu0 0.0
    %642 = vmatpush1.msra.mxu0 %v14
    %643 = vmatprep.subr.mxu0 0.0
    %644 = vmatpush1.msra.mxu0 0.0
    %645 = vmatprep.subr.mxu0 0.0
    %646 = vmatpush1.msra.mxu0 0.0
    %647 = vmatprep.subr.mxu0 0.0
    %648 = vmatpush1.msra.mxu0 0.0
    %649 = vmatprep.subr.mxu0 0.0
    %650 = vmatpush1.msra.mxu0 0.0
    %651 = vmatprep.subr.mxu0 0.0
    %652 = vmatpush1.msra.mxu0 0.0
    %653 = vmatprep.subr.mxu0 0.0
    %654 = vmatpush1.msra.mxu0 0.0
    %655 = vmatprep.subr.mxu0 0.0
    %656 = vmatpush1.msra.mxu0 0.0
    %657 = vmatprep.subr.mxu0 0.0
    %658 = vmatpush1.msra.mxu0 0.0
    %659 = vmatprep.subr.mxu0 0.0
    %660 = vmatpush1.msra.mxu0 0.0
    %661 = vmatprep.subr.mxu0 0.0
    %662 = vmatpush1.msra.mxu0 0.0
    %663 = vmatprep.subr.mxu0 0.0
    %664 = vmatpush1.msra.mxu0 0.0
    %665 = vmatprep.subr.mxu0 0.0
    %666 = vmatpush1.msra.mxu0 0.0
    %667 = vmatprep.subr.mxu0 0.0
    %668 = vmatpush1.msra.mxu0 0.0
    %669 = vmatprep.subr.mxu0 0.0
    %670 = vmatpush1.msra.mxu0 0.0
    %671 = vmatprep.subr.mxu0 0.0
    %672 = vmatpush1.msra.mxu0 0.0
    %673 = vmatprep.subr.mxu0 0.0
    %674 = vmatpush1.msra.mxu0 0.0
    %675 = vmatprep.subr.mxu0 0.0
    %676 = vmatpush1.msra.mxu0 0.0
    %677 = vmatprep.subr.mxu0 0.0
    %678 = vmatpush1.msra.mxu0 0.0
    %679 = vmatprep.subr.mxu0 0.0
    %680 = vmatpush1.msra.mxu0 0.0
    %681 = vmatprep.subr.mxu0 0.0
    %682 = vmatpush1.msra.mxu0 0.0
    %683 = vmatprep.subr.mxu0 0.0
    %684 = vmatpush1.msra.mxu0 0.0
    %685 = vmatprep.subr.mxu0 0.0
    %686 = vmatpush1.msra.mxu0 0.0
    %687 = vmatprep.subr.mxu0 0.0
    %688 = vmatpush1.msra.mxu0 0.0
    %689 = vmatprep.subr.mxu0 0.0
    %690 = vmatpush1.msra.mxu0 0.0
    %691 = vmatprep.subr.mxu0 0.0
    %692 = vmatpush1.msra.mxu0 0.0
    %693 = vmatprep.subr.mxu0 0.0
    %694 = vmatpush1.msra.mxu0 0.0
    %695 = vmatprep.subr.mxu0 0.0
    %696 = vmatpush1.msra.mxu0 0.0
    %697 = vmatprep.subr.mxu0 0.0
    %698 = vmatpush1.msra.mxu0 0.0
    %699 = vmatprep.subr.mxu0 0.0
    %700 = vmatpush1.msra.mxu0 0.0
    %701 = vmatprep.subr.mxu0 0.0
    %702 = vmatpush1.msra.mxu0 0.0
    %703 = vmatprep.mubr.f32.mxu0 0.0
    %704 = vmatmul.mubr.f32.gmra.mrb[0].mxu0 %v637
    %v705 = vpop.f32.mrb[0].mxu0
    %v706 = vadd.f32 0.0, %v705
    %v707 = vpop.f32.mrb[0].mxu0
    %708 = vdwg.mxu0
    %vm709 = vcmask 19456
    %v710 = vsel %vm709, %v706, -inf
    %711 = vmax.xlane.f32.xlu0 %v710
    %v712 = vpop.xlane.xlu0 %711
    %vm713 = vcmp.ge.f32.partialorder %v706, %v712
    %v714 = vsel %vm713, %v16, 3
    %v715 = vsel %vm709, %v714, 2147483647
    %v716 = vand.u32 %v715, 65535
    %v717 = vshra.s32 %v715, 16
    %v718 = vcvt.s32.f32 %v716
    %v719 = vcvt.s32.f32 %v717
    %720 = vmin.xlane.f32.xlu0 %v719
    %v721 = vpop.xlane.xlu0 %720
    %vm722 = vcmp.eq.f32.partialorder %v719, %v721
    %v723 = vsel %vm722, %v718, inf
    %724 = vmin.xlane.f32.xlu0 %v723
    %v725 = vpop.xlane.xlu0 %724
    %v726 = vcvt.f32.s32 %v725
    %v727 = vcvt.f32.s32 %v721
    %v728 = vshll.u32 %v727, 16
    %v729 = vadd.s32 %v728, %v726
    %v730 = vcvt.s32.f32 %v729
    %v731 = vmul.f32 %v730, %v634
    %v732 = vsel %vm611, %v731, 0.0
    %v733 = vrot.slane %v732, 4
    %v734 = vadd.f32 %v732, %v733
    %v735 = vrot.slane %v734, 2
    %v736 = vadd.f32 %v734, %v735
    %v737 = vrot.slane %v736, 1
    %v738 = vadd.f32 %v736, %v737
    %vm739 = vcmask 122880
    %740 = vst.msk [vmem:[#allocation2] sm:$0x1] %vm739, %v738
    // Predicated region
    $region17: #{model_forward.5} parent=1 // pred_check
      _
    $region18: #{model_forward.5} parent=1 // pred_check_branch
      %742 = sbr.rel (0) target = $region20
    $region19: #{model_forward.5} parent=1 // pred_region
      %s744 = ssub.s32 16, 16
      %745 = vsyncadd [#allocation3], %s744
      %s747 = sshll.u32 [#allocation2], 4
      %s748 = int_to_ptr.vmem [resolvable:$true] %s747
      %750 = dma.vmem_to_hbm [thread:$0]  %s748, 16, %s2, [#allocation3]
    $region20: #{model_forward.5} parent=1 // pred_fallthru
      _
    // Predicated region
    $region21: #{model_forward.5} parent=1 // pred_check
      _
    $region22: #{model_forward.5} parent=1 // pred_check_branch
      %752 = sbr.rel (0) target = $region24
    $region23: #{model_forward.5} parent=1 // pred_region
      %753 = dma.done [#allocation3], 16
    $region24: #{model_forward.5} parent=1 // pred_fallthru
      _
    %754 = vsyncpa [#allocation3], 1

</llo_original>
